<compile_context>
chip_gen: v7x
topology: tpu7x:2x2x1
jax: 0.10.0
libtpu: 0.0.40
codegen_flags: <defaults>
</compile_context>

<pallas_src>
import math

import jax
import jax.numpy as jnp
from jax.experimental import pallas as pl
from jax.experimental.pallas import tpu as pltpu

H_REAL = 3000          # hidden width hard-coded by the module
H_PAD = 3072           # padded to a multiple of 128 lanes (24 * 128)
TN = 1024              # output-feature tile per grid step (H_PAD // TN = 3)
N_HIDDEN = 5           # fc1..fc5
BN_EPS = 1e-5
DROP_P = 0.5           # F.dropout default


# ---------------------------------------------------------------------------
# fused kernel
# ---------------------------------------------------------------------------
def _one_net_kernel(x_ref, w1_ref, bst1_ref, drop1_ref,
                    w_ref, bst_ref, drop_ref, wout_ref, bout_ref,
                    o_ref, act_ref, acc_ref):
    """grid = (n_big_layers, n_tiles):
         axis 0 (l): hidden layers fc2..fc5   (carried activation -> arbitrary)
         axis 1 (j): TN-wide output tile      (fc_out accumulates  -> arbitrary)
       act_ref: (2, n_tiles, B, TN) f32 ping-pong activation scratch.
       acc_ref: (B, 1) f32 accumulator for the folded fc_out."""
    l = pl.program_id(0)
    j = pl.program_id(1)
    n_layers = pl.num_programs(0)
    n_tiles = pl.num_programs(1)
    nt = act_ref.shape[1]
    bsz = act_ref.shape[2]
    tn = act_ref.shape[3]

    # ---- first grid step: layer 1 (tiny K = c_in + p_in) in one shot -------
    @pl.when((l == 0) & (j == 0))
    def _init():
        h1 = jnp.dot(x_ref[...].astype(jnp.bfloat16), w1_ref[...],
                     preferred_element_type=jnp.float32)
        h1 = jnp.maximum(h1 + bst1_ref[0:1, :], 0.0)        # + bias, ReLU
        h1 = h1 * bst1_ref[1:2, :] + bst1_ref[2:3, :]       # folded BatchNorm
        h1 = h1 * drop1_ref[...]                            # dropout scale (0/2)
        for kt in range(nt):
            act_ref[0, kt] = h1[:, kt * tn:(kt + 1) * tn]
        acc_ref[...] = jnp.zeros(acc_ref.shape, acc_ref.dtype)

    # ---- hidden layer l+2: Linear -> ReLU -> folded BN -> dropout ----------
    src = l % 2
    dst = (l + 1) % 2
    h = jnp.zeros((bsz, tn), jnp.float32)
    for kt in range(nt):   # K tiled to match the scratch layout (static unroll)
        h = h + jnp.dot(act_ref[src, kt].astype(jnp.bfloat16),
                        w_ref[kt * tn:(kt + 1) * tn, :],
                        preferred_element_type=jnp.float32)
    h = jnp.maximum(h + bst_ref[0:1, :], 0.0)
    h = h * bst_ref[1:2, :] + bst_ref[2:3, :]
    h = h * drop_ref[...]
    act_ref[dst, j] = h

    # ---- folded fc_out (3072 -> 1) + sigmoid on the last layer's tiles -----
    @pl.when(l == n_layers - 1)
    def _accumulate_out():
        acc_ref[...] += jnp.sum(h * wout_ref[...], axis=1, keepdims=True)

    @pl.when((l == n_layers - 1) & (j == n_tiles - 1))
    def _finish():
        o_ref[...] = jax.nn.sigmoid(acc_ref[...] + bout_ref[...])


# ---------------------------------------------------------------------------
# wrapper
# ---------------------------------------------------------------------------
def one_net_forward(params, c, p, drop1, drop_rest):
    """Single fused pallas_call for the whole forward pass."""
    x = jnp.concatenate([c, p], axis=1)
    b, d_in = x.shape
    n_tiles = H_PAD // TN
    n_big = N_HIDDEN - 1                     # fc2..fc5 share the (H_PAD, H_PAD) shape

    return pl.pallas_call(
        _one_net_kernel,
        out_shape=jax.ShapeDtypeStruct((b, 1), jnp.float32),
        grid=(n_big, n_tiles),
        in_specs=[
            pl.BlockSpec((b, d_in), lambda l, j: (0, 0)),              # x (loaded once)
            pl.BlockSpec((d_in, H_PAD), lambda l, j: (0, 0)),          # W1 (bf16)
            pl.BlockSpec((3, H_PAD), lambda l, j: (0, 0)),             # [b1; s1; t1]
            pl.BlockSpec((b, H_PAD), lambda l, j: (0, 0)),             # dropout scale 1
            pl.BlockSpec((None, H_PAD, TN), lambda l, j: (l, 0, j)),   # W2..W5 (bf16)
            pl.BlockSpec((None, 3, TN), lambda l, j: (l, 0, j)),       # [b; s; t] 2..5
            pl.BlockSpec((None, b, TN), lambda l, j: (l, 0, j)),       # dropout 2..5
            pl.BlockSpec((1, TN), lambda l, j: (0, j)),                # w_out row
            pl.BlockSpec((1, 1), lambda l, j: (0, 0)),                 # b_out
        ],
        out_specs=pl.BlockSpec((b, 1), lambda l, j: (0, 0)),
        scratch_shapes=[
            pltpu.VMEM((2, n_tiles, b, TN), jnp.float32),   # ping-pong activation
            pltpu.VMEM((b, 1), jnp.float32),                # fc_out accumulator
        ],
        compiler_params=pltpu.CompilerParams(
            dimension_semantics=("arbitrary", "arbitrary"),
            vmem_limit_bytes=32 * 1024 * 1024,
        ),
    )(x, params["w1"], params["bst1"], drop1,
      params["w"], params["bst"], drop_rest,
      params["w_out"], params["b_out"])


# ---------------------------------------------------------------------------
# deterministic parameter init (PyTorch defaults) + BN folding + bf16 weights
# ---------------------------------------------------------------------------
def init_params(key, c_in, p_in):
    d_in = c_in + p_in
    keys = jax.random.split(key, 2 * N_HIDDEN + 2)

    def linear(kw, kb, fan_in, fan_out):
        bound = 1.0 / math.sqrt(fan_in)     # nn.Linear default: U(-1/sqrt(fan_in), +)
        w = jax.random.uniform(kw, (fan_in, fan_out), minval=-bound, maxval=bound,
                               dtype=jnp.float32)
        bb = jax.random.uniform(kb, (fan_out,), minval=-bound, maxval=bound,
                                dtype=jnp.float32)
        return w, bb

    # BatchNorm1d defaults: gamma=1, beta=0, running_mean=0, running_var=1.
    # Folded (running-stats): s = gamma * rsqrt(var + eps), t = beta - mean * s.
    s_real = jnp.full((H_REAL,), 1.0 / math.sqrt(1.0 + BN_EPS), jnp.float32)
    t_real = jnp.zeros((H_REAL,), jnp.float32)

    def fold_bst(bias):
        # rows: [linear bias, BN scale, BN shift]; padded channels stay 0 so
        # lanes 3000..3071 remain exactly 0 after every layer.
        bst = jnp.zeros((3, H_PAD), jnp.float32)
        bst = bst.at[0, :H_REAL].set(bias)
        bst = bst.at[1, :H_REAL].set(s_real)
        bst = bst.at[2, :H_REAL].set(t_real)
        return bst

    w1, b1 = linear(keys[0], keys[1], d_in, H_REAL)
    w1_pad = jnp.zeros((d_in, H_PAD), jnp.float32).at[:, :H_REAL].set(w1)

    ws, bsts = [], []
    for i in range(1, N_HIDDEN):
        w, bb = linear(keys[2 * i], keys[2 * i + 1], H_REAL, H_REAL)
        w_pad = jnp.zeros((H_PAD, H_PAD), jnp.float32).at[:H_REAL, :H_REAL].set(w)
        ws.append(w_pad.astype(jnp.bfloat16))
        bsts.append(fold_bst(bb))

    w_out, b_out = linear(keys[-2], keys[-1], H_REAL, 1)
    wout = jnp.zeros((1, H_PAD), jnp.float32).at[0, :H_REAL].set(w_out[:, 0])

    return {
        "w1": w1_pad.astype(jnp.bfloat16),   # (d_in, H_PAD)      bf16
        "bst1": fold_bst(b1),                # (3, H_PAD)         f32
        "w": jnp.stack(ws),                  # (4, H_PAD, H_PAD)  bf16
        "bst": jnp.stack(bsts),              # (4, 3, H_PAD)      f32
        "w_out": wout,                       # (1, H_PAD)         f32
        "b_out": b_out.reshape(1, 1),        # (1, 1)             f32
    }


def make_dropout_scales(key, batch):
    """F.dropout defaults (p=0.5, training=True): keep w.p. 0.5, scale by 2."""
    keys = jax.random.split(key, N_HIDDEN)
    scales = [jnp.where(jax.random.bernoulli(k, 1.0 - DROP_P, (batch, H_PAD)),
                        1.0 / (1.0 - DROP_P), 0.0).astype(jnp.float32)
              for k in keys]
    return scales[0], jnp.stack(scales[1:])   # (B, H_PAD), (4, B, H_PAD)


def reference_forward(params, c, p, drop1, drop_rest):
    """Plain-jnp reference using the same bf16 weights and dropout masks."""
    def layer(x, w, bst, drop):
        h = jnp.dot(x.astype(jnp.bfloat16), w, preferred_element_type=jnp.float32)
        h = jnp.maximum(h + bst[0:1, :], 0.0)
        h = h * bst[1:2, :] + bst[2:3, :]
        return h * drop

    h = layer(jnp.concatenate([c, p], axis=1), params["w1"], params["bst1"], drop1)
    for i in range(params["w"].shape[0]):
        h = layer(h, params["w"][i], params["bst"][i], drop_rest[i])
    logit = jnp.sum(h * params["w_out"], axis=1, keepdims=True) + params["b_out"]
    return jax.nn.sigmoid(logit)


# ---------------------------------------------------------------------------
if __name__ == "__main__":
    B, c_in, p_in = 8, 4, 4
    key = jax.random.PRNGKey(0)
    k_c, k_p, k_params, k_drop = jax.random.split(key, 4)
    c = jax.random.normal(k_c, (B, c_in), dtype=jnp.float32)
    p = jax.random.normal(k_p, (B, p_in), dtype=jnp.float32)

    params = init_params(k_params, c_in, p_in)
    drop1, drop_rest = make_dropout_scales(k_drop, B)

    out = one_net_forward(params, c, p, drop1, drop_rest)
    out = jax.block_until_ready(out)

    assert out.shape == (B, 1) and out.dtype == jnp.float32
    assert bool(jnp.all(jnp.isfinite(out)))
    assert bool(jnp.all((out >= 0.0) & (out <= 1.0)))       # sigmoid range

    ref = reference_forward(params, c, p, drop1, drop_rest)
    assert bool(jnp.allclose(out, ref, atol=1e-3, rtol=1e-3))

    print("KERNEL_OK")
</pallas_src>

<mosaic_0001>
module attributes {stable_mosaic.version = 11 : i64} {
  func.func @_one_net_kernel(%arg0: i32, %arg1: i32, %arg2: memref<8x8xf32, #tpu.memory_space<vmem>>, %arg3: memref<8x3072xbf16, #tpu.memory_space<vmem>>, %arg4: memref<3x3072xf32, #tpu.memory_space<vmem>>, %arg5: memref<8x3072xf32, #tpu.memory_space<vmem>>, %arg6: memref<1x3072x1024xbf16, #tpu.memory_space<vmem>>, %arg7: memref<1x3x1024xf32, #tpu.memory_space<vmem>>, %arg8: memref<1x8x1024xf32, #tpu.memory_space<vmem>>, %arg9: memref<1x1024xf32, #tpu.memory_space<vmem>>, %arg10: memref<1x1xf32, #tpu.memory_space<vmem>>, %arg11: memref<8x1xf32, #tpu.memory_space<vmem>>, %arg12: memref<2x3x8x1024xf32, #tpu.memory_space<vmem>>, %arg13: memref<8x1xf32, #tpu.memory_space<vmem>>) attributes {dimension_semantics = [#tpu.dimension_semantics<arbitrary>, #tpu.dimension_semantics<arbitrary>], iteration_bounds = array<i64: 4, 3>, scalar_prefetch = 0 : i64, scratch_operands = 2 : i64, tpu.core_type = #tpu.core_type<tc>, window_params = [{pipeline_mode = #tpu.pipeline_mode<synchronous>, transform_indices = @transform_0, window_bounds = array<i64: 8, 8>}, {pipeline_mode = #tpu.pipeline_mode<synchronous>, transform_indices = @transform_1, window_bounds = array<i64: 8, 3072>}, {pipeline_mode = #tpu.pipeline_mode<synchronous>, transform_indices = @transform_2, window_bounds = array<i64: 3, 3072>}, {pipeline_mode = #tpu.pipeline_mode<synchronous>, transform_indices = @transform_3, window_bounds = array<i64: 8, 3072>}, {transform_indices = @transform_4, window_bounds = array<i64: 1, 3072, 1024>}, {transform_indices = @transform_5, window_bounds = array<i64: 1, 3, 1024>}, {transform_indices = @transform_6, window_bounds = array<i64: 1, 8, 1024>}, {transform_indices = @transform_7, window_bounds = array<i64: 1, 1024>}, {pipeline_mode = #tpu.pipeline_mode<synchronous>, transform_indices = @transform_8, window_bounds = array<i64: 1, 1>}, {pipeline_mode = #tpu.pipeline_mode<synchronous>, transform_indices = @transform_9, window_bounds = array<i64: 8, 1>}]} {
    %c0_i32 = arith.constant 0 : i32
    %0 = arith.cmpi eq, %arg0, %c0_i32 : i32
    %c0_i32_0 = arith.constant 0 : i32
    %1 = arith.cmpi eq, %arg1, %c0_i32_0 : i32
    %2 = arith.andi %0, %1 : i1
    %3 = arith.extui %2 : i1 to i32
    %c0_i32_1 = arith.constant 0 : i32
    %4 = arith.cmpi ne, %3, %c0_i32_1 : i32
    scf.if %4 {
      %c0_48 = arith.constant 0 : index
      %c0_49 = arith.constant 0 : index
      %81 = vector.load %arg2[%c0_48, %c0_49] : memref<8x8xf32, #tpu.memory_space<vmem>>, vector<8x8xf32>
      %82 = arith.truncf %81 : vector<8x8xf32> to vector<8x8xbf16>
      %c0_50 = arith.constant 0 : index
      %c0_51 = arith.constant 0 : index
      %83 = vector.load %arg3[%c0_50, %c0_51] : memref<8x3072xbf16, #tpu.memory_space<vmem>>, vector<8x3072xbf16>
      %cst_52 = arith.constant dense<0.000000e+00> : vector<8x3072xf32>
      %84 = tpu.matmul %82, %83, %cst_52 {dimension_numbers = #tpu.dot_dimension_numbers<[1], [0], [0], [1], [0, 0, 1, 1], [], []>} : vector<8x8xbf16>, vector<8x3072xbf16>, vector<8x3072xf32> -> vector<8x3072xf32>
      %c0_53 = arith.constant 0 : index
      %c0_54 = arith.constant 0 : index
      %85 = vector.load %arg4[%c0_53, %c0_54] : memref<3x3072xf32, #tpu.memory_space<vmem>>, vector<1x3072xf32>
      %86 = vector.broadcast %85 : vector<1x3072xf32> to vector<8x3072xf32>
      %87 = arith.addf %84, %86 : vector<8x3072xf32>
      %cst_55 = arith.constant 0.000000e+00 : f32
      %88 = vector.broadcast %cst_55 : f32 to vector<8x3072xf32>
      %89 = arith.maximumf %87, %88 : vector<8x3072xf32>
      %c1_56 = arith.constant 1 : index
      %c0_57 = arith.constant 0 : index
      %90 = vector.load %arg4[%c1_56, %c0_57] : memref<3x3072xf32, #tpu.memory_space<vmem>>, vector<1x3072xf32>
      %91 = vector.broadcast %90 : vector<1x3072xf32> to vector<8x3072xf32>
      %92 = arith.mulf %89, %91 : vector<8x3072xf32>
      %c2_58 = arith.constant 2 : index
      %c0_59 = arith.constant 0 : index
      %93 = vector.load %arg4[%c2_58, %c0_59] : memref<3x3072xf32, #tpu.memory_space<vmem>>, vector<1x3072xf32>
      %94 = vector.broadcast %93 : vector<1x3072xf32> to vector<8x3072xf32>
      %95 = arith.addf %92, %94 : vector<8x3072xf32>
      %c0_60 = arith.constant 0 : index
      %c0_61 = arith.constant 0 : index
      %96 = vector.load %arg5[%c0_60, %c0_61] : memref<8x3072xf32, #tpu.memory_space<vmem>>, vector<8x3072xf32>
      %97 = arith.mulf %95, %96 : vector<8x3072xf32>
      %98 = vector.extract_strided_slice %97 {offsets = [0, 0], sizes = [8, 1024], strides = [1, 1]} : vector<8x3072xf32> to vector<8x1024xf32>
      %c0_62 = arith.constant 0 : index
      %c0_63 = arith.constant 0 : index
      %c0_64 = arith.constant 0 : index
      %c0_65 = arith.constant 0 : index
      %99 = vector.load %arg12[%c0_62, %c0_63, %c0_64, %c0_65] : memref<2x3x8x1024xf32, #tpu.memory_space<vmem>>, vector<1x1x8x1024xf32>
      %100 = vector.shape_cast %99 : vector<1x1x8x1024xf32> to vector<8x1024xf32>
      %101 = vector.shape_cast %98 : vector<8x1024xf32> to vector<1x1x8x1024xf32>
      tpu.vector_store %arg12[%c0_62, %c0_63, %c0_64, %c0_65], %101 {strides = array<i32>} : memref<2x3x8x1024xf32, #tpu.memory_space<vmem>>, vector<1x1x8x1024xf32>,
      %102 = vector.extract_strided_slice %97 {offsets = [0, 1024], sizes = [8, 1024], strides = [1, 1]} : vector<8x3072xf32> to vector<8x1024xf32>
      %c0_66 = arith.constant 0 : index
      %c1_67 = arith.constant 1 : index
      %c0_68 = arith.constant 0 : index
      %c0_69 = arith.constant 0 : index
      %103 = vector.load %arg12[%c0_66, %c1_67, %c0_68, %c0_69] : memref<2x3x8x1024xf32, #tpu.memory_space<vmem>>, vector<1x1x8x1024xf32>
      %104 = vector.shape_cast %103 : vector<1x1x8x1024xf32> to vector<8x1024xf32>
      %105 = vector.shape_cast %102 : vector<8x1024xf32> to vector<1x1x8x1024xf32>
      tpu.vector_store %arg12[%c0_66, %c1_67, %c0_68, %c0_69], %105 {strides = array<i32>} : memref<2x3x8x1024xf32, #tpu.memory_space<vmem>>, vector<1x1x8x1024xf32>,
      %106 = vector.extract_strided_slice %97 {offsets = [0, 2048], sizes = [8, 1024], strides = [1, 1]} : vector<8x3072xf32> to vector<8x1024xf32>
      %c0_70 = arith.constant 0 : index
      %c2_71 = arith.constant 2 : index
      %c0_72 = arith.constant 0 : index
      %c0_73 = arith.constant 0 : index
      %107 = vector.load %arg12[%c0_70, %c2_71, %c0_72, %c0_73] : memref<2x3x8x1024xf32, #tpu.memory_space<vmem>>, vector<1x1x8x1024xf32>
      %108 = vector.shape_cast %107 : vector<1x1x8x1024xf32> to vector<8x1024xf32>
      %109 = vector.shape_cast %106 : vector<8x1024xf32> to vector<1x1x8x1024xf32>
      tpu.vector_store %arg12[%c0_70, %c2_71, %c0_72, %c0_73], %109 {strides = array<i32>} : memref<2x3x8x1024xf32, #tpu.memory_space<vmem>>, vector<1x1x8x1024xf32>,
      %cst_74 = arith.constant 0.000000e+00 : f32
      %110 = vector.broadcast %cst_74 : f32 to vector<8x1xf32>
      %c0_75 = arith.constant 0 : index
      %c0_76 = arith.constant 0 : index
      %111 = vector.load %arg13[%c0_75, %c0_76] : memref<8x1xf32, #tpu.memory_space<vmem>>, vector<8x1xf32>
      tpu.vector_store %arg13[%c0_75, %c0_76], %110 {strides = array<i32>} : memref<8x1xf32, #tpu.memory_space<vmem>>, vector<8x1xf32>,
    } else {
    }
    %c2_i32 = arith.constant 2 : i32
    %c0_i32_2 = arith.constant 0 : i32
    %5 = arith.cmpi eq, %c2_i32, %c0_i32_2 : i32
    %c1_i32 = arith.constant 1 : i32
    %6 = arith.select %5, %c1_i32, %c2_i32 : i32
    %7 = arith.remsi %arg0, %6 : i32
    %c0_i32_3 = arith.constant 0 : i32
    %8 = arith.cmpi ne, %7, %c0_i32_3 : i32
    %c0_i32_4 = arith.constant 0 : i32
    %9 = arith.cmpi slt, %7, %c0_i32_4 : i32
    %c0_i32_5 = arith.constant 0 : i32
    %10 = arith.cmpi slt, %6, %c0_i32_5 : i32
    %11 = arith.xori %9, %10 : i1
    %12 = arith.andi %11, %8 : i1
    %13 = arith.addi %7, %6 : i32
    %14 = arith.select %12, %13, %7 : i32
    %c1_i32_6 = arith.constant 1 : i32
    %15 = arith.addi %arg0, %c1_i32_6 : i32
    %c2_i32_7 = arith.constant 2 : i32
    %c0_i32_8 = arith.constant 0 : i32
    %16 = arith.cmpi eq, %c2_i32_7, %c0_i32_8 : i32
    %c1_i32_9 = arith.constant 1 : i32
    %17 = arith.select %16, %c1_i32_9, %c2_i32_7 : i32
    %18 = arith.remsi %15, %17 : i32
    %c0_i32_10 = arith.constant 0 : i32
    %19 = arith.cmpi ne, %18, %c0_i32_10 : i32
    %c0_i32_11 = arith.constant 0 : i32
    %20 = arith.cmpi slt, %18, %c0_i32_11 : i32
    %c0_i32_12 = arith.constant 0 : i32
    %21 = arith.cmpi slt, %17, %c0_i32_12 : i32
    %22 = arith.xori %20, %21 : i1
    %23 = arith.andi %22, %19 : i1
    %24 = arith.addi %18, %17 : i32
    %25 = arith.select %23, %24, %18 : i32
    %cst = arith.constant 0.000000e+00 : f32
    %26 = vector.broadcast %cst : f32 to vector<8x1024xf32>
    %27 = arith.index_cast %14 : i32 to index
    %c0 = arith.constant 0 : index
    %c0_13 = arith.constant 0 : index
    %c0_14 = arith.constant 0 : index
    %28 = vector.load %arg12[%27, %c0, %c0_13, %c0_14] : memref<2x3x8x1024xf32, #tpu.memory_space<vmem>>, vector<1x1x8x1024xf32>
    %29 = vector.shape_cast %28 : vector<1x1x8x1024xf32> to vector<8x1024xf32>
    %30 = arith.truncf %29 : vector<8x1024xf32> to vector<8x1024xbf16>
    %c0_15 = arith.constant 0 : index
    %c0_16 = arith.constant 0 : index
    %c0_17 = arith.constant 0 : index
    %31 = vector.load %arg6[%c0_15, %c0_16, %c0_17] : memref<1x3072x1024xbf16, #tpu.memory_space<vmem>>, vector<1x1024x1024xbf16>
    %32 = vector.shape_cast %31 : vector<1x1024x1024xbf16> to vector<1024x1024xbf16>
    %cst_18 = arith.constant dense<0.000000e+00> : vector<8x1024xf32>
    %33 = tpu.matmul %30, %32, %cst_18 {dimension_numbers = #tpu.dot_dimension_numbers<[1], [0], [0], [1], [0, 0, 1, 1], [], []>} : vector<8x1024xbf16>, vector<1024x1024xbf16>, vector<8x1024xf32> -> vector<8x1024xf32>
    %34 = arith.addf %26, %33 : vector<8x1024xf32>
    %35 = arith.index_cast %14 : i32 to index
    %c1 = arith.constant 1 : index
    %c0_19 = arith.constant 0 : index
    %c0_20 = arith.constant 0 : index
    %36 = vector.load %arg12[%35, %c1, %c0_19, %c0_20] : memref<2x3x8x1024xf32, #tpu.memory_space<vmem>>, vector<1x1x8x1024xf32>
    %37 = vector.shape_cast %36 : vector<1x1x8x1024xf32> to vector<8x1024xf32>
    %38 = arith.truncf %37 : vector<8x1024xf32> to vector<8x1024xbf16>
    %c0_21 = arith.constant 0 : index
    %c1024 = arith.constant 1024 : index
    %c0_22 = arith.constant 0 : index
    %39 = vector.load %arg6[%c0_21, %c1024, %c0_22] : memref<1x3072x1024xbf16, #tpu.memory_space<vmem>>, vector<1x1024x1024xbf16>
    %40 = vector.shape_cast %39 : vector<1x1024x1024xbf16> to vector<1024x1024xbf16>
    %cst_23 = arith.constant dense<0.000000e+00> : vector<8x1024xf32>
    %41 = tpu.matmul %38, %40, %cst_23 {dimension_numbers = #tpu.dot_dimension_numbers<[1], [0], [0], [1], [0, 0, 1, 1], [], []>} : vector<8x1024xbf16>, vector<1024x1024xbf16>, vector<8x1024xf32> -> vector<8x1024xf32>
    %42 = arith.addf %34, %41 : vector<8x1024xf32>
    %43 = arith.index_cast %14 : i32 to index
    %c2 = arith.constant 2 : index
    %c0_24 = arith.constant 0 : index
    %c0_25 = arith.constant 0 : index
    %44 = vector.load %arg12[%43, %c2, %c0_24, %c0_25] : memref<2x3x8x1024xf32, #tpu.memory_space<vmem>>, vector<1x1x8x1024xf32>
    %45 = vector.shape_cast %44 : vector<1x1x8x1024xf32> to vector<8x1024xf32>
    %46 = arith.truncf %45 : vector<8x1024xf32> to vector<8x1024xbf16>
    %c0_26 = arith.constant 0 : index
    %c2048 = arith.constant 2048 : index
    %c0_27 = arith.constant 0 : index
    %47 = vector.load %arg6[%c0_26, %c2048, %c0_27] : memref<1x3072x1024xbf16, #tpu.memory_space<vmem>>, vector<1x1024x1024xbf16>
    %48 = vector.shape_cast %47 : vector<1x1024x1024xbf16> to vector<1024x1024xbf16>
    %cst_28 = arith.constant dense<0.000000e+00> : vector<8x1024xf32>
    %49 = tpu.matmul %46, %48, %cst_28 {dimension_numbers = #tpu.dot_dimension_numbers<[1], [0], [0], [1], [0, 0, 1, 1], [], []>} : vector<8x1024xbf16>, vector<1024x1024xbf16>, vector<8x1024xf32> -> vector<8x1024xf32>
    %50 = arith.addf %42, %49 : vector<8x1024xf32>
    %c0_29 = arith.constant 0 : index
    %c0_30 = arith.constant 0 : index
    %c0_31 = arith.constant 0 : index
    %51 = vector.load %arg7[%c0_29, %c0_30, %c0_31] : memref<1x3x1024xf32, #tpu.memory_space<vmem>>, vector<1x1x1024xf32>
    %52 = vector.shape_cast %51 : vector<1x1x1024xf32> to vector<1x1024xf32>
    %53 = vector.broadcast %52 : vector<1x1024xf32> to vector<8x1024xf32>
    %54 = arith.addf %50, %53 : vector<8x1024xf32>
    %cst_32 = arith.constant 0.000000e+00 : f32
    %55 = vector.broadcast %cst_32 : f32 to vector<8x1024xf32>
    %56 = arith.maximumf %54, %55 : vector<8x1024xf32>
    %c0_33 = arith.constant 0 : index
    %c1_34 = arith.constant 1 : index
    %c0_35 = arith.constant 0 : index
    %57 = vector.load %arg7[%c0_33, %c1_34, %c0_35] : memref<1x3x1024xf32, #tpu.memory_space<vmem>>, vector<1x1x1024xf32>
    %58 = vector.shape_cast %57 : vector<1x1x1024xf32> to vector<1x1024xf32>
    %59 = vector.broadcast %58 : vector<1x1024xf32> to vector<8x1024xf32>
    %60 = arith.mulf %56, %59 : vector<8x1024xf32>
    %c0_36 = arith.constant 0 : index
    %c2_37 = arith.constant 2 : index
    %c0_38 = arith.constant 0 : index
    %61 = vector.load %arg7[%c0_36, %c2_37, %c0_38] : memref<1x3x1024xf32, #tpu.memory_space<vmem>>, vector<1x1x1024xf32>
    %62 = vector.shape_cast %61 : vector<1x1x1024xf32> to vector<1x1024xf32>
    %63 = vector.broadcast %62 : vector<1x1024xf32> to vector<8x1024xf32>
    %64 = arith.addf %60, %63 : vector<8x1024xf32>
    %c0_39 = arith.constant 0 : index
    %c0_40 = arith.constant 0 : index
    %c0_41 = arith.constant 0 : index
    %65 = vector.load %arg8[%c0_39, %c0_40, %c0_41] : memref<1x8x1024xf32, #tpu.memory_space<vmem>>, vector<1x8x1024xf32>
    %66 = vector.shape_cast %65 : vector<1x8x1024xf32> to vector<8x1024xf32>
    %67 = arith.mulf %64, %66 : vector<8x1024xf32>
    %68 = arith.index_cast %25 : i32 to index
    %69 = arith.index_cast %arg1 : i32 to index
    %c0_42 = arith.constant 0 : index
    %c0_43 = arith.constant 0 : index
    %70 = vector.load %arg12[%68, %69, %c0_42, %c0_43] : memref<2x3x8x1024xf32, #tpu.memory_space<vmem>>, vector<1x1x8x1024xf32>
    %71 = vector.shape_cast %70 : vector<1x1x8x1024xf32> to vector<8x1024xf32>
    %72 = vector.shape_cast %67 : vector<8x1024xf32> to vector<1x1x8x1024xf32>
    tpu.vector_store %arg12[%68, %69, %c0_42, %c0_43], %72 {strides = array<i32>} : memref<2x3x8x1024xf32, #tpu.memory_space<vmem>>, vector<1x1x8x1024xf32>,
    %c3_i32 = arith.constant 3 : i32
    %73 = arith.cmpi eq, %arg0, %c3_i32 : i32
    %74 = arith.extui %73 : i1 to i32
    %c0_i32_44 = arith.constant 0 : i32
    %75 = arith.cmpi ne, %74, %c0_i32_44 : i32
    scf.if %75 {
      %c0_48 = arith.constant 0 : index
      %c0_49 = arith.constant 0 : index
      %81 = vector.load %arg13[%c0_48, %c0_49] : memref<8x1xf32, #tpu.memory_space<vmem>>, vector<8x1xf32>
      %c0_50 = arith.constant 0 : index
      %c0_51 = arith.constant 0 : index
      %82 = vector.load %arg9[%c0_50, %c0_51] : memref<1x1024xf32, #tpu.memory_space<vmem>>, vector<1x1024xf32>
      %83 = vector.broadcast %82 : vector<1x1024xf32> to vector<8x1024xf32>
      %84 = arith.mulf %67, %83 : vector<8x1024xf32>
      %cst_52 = arith.constant dense<0.000000e+00> : vector<8xf32>
      %85 = vector.multi_reduction <add>, %84, %cst_52 [1] : vector<8x1024xf32> to vector<8xf32>
      %86 = vector.shape_cast %85 : vector<8xf32> to vector<8x1xf32>
      %87 = arith.addf %81, %86 : vector<8x1xf32>
      %c0_53 = arith.constant 0 : index
      %c0_54 = arith.constant 0 : index
      %88 = vector.load %arg13[%c0_53, %c0_54] : memref<8x1xf32, #tpu.memory_space<vmem>>, vector<8x1xf32>
      tpu.vector_store %arg13[%c0_53, %c0_54], %87 {strides = array<i32>} : memref<8x1xf32, #tpu.memory_space<vmem>>, vector<8x1xf32>,
    } else {
    }
    %c3_i32_45 = arith.constant 3 : i32
    %76 = arith.cmpi eq, %arg0, %c3_i32_45 : i32
    %c2_i32_46 = arith.constant 2 : i32
    %77 = arith.cmpi eq, %arg1, %c2_i32_46 : i32
    %78 = arith.andi %76, %77 : i1
    %79 = arith.extui %78 : i1 to i32
    %c0_i32_47 = arith.constant 0 : i32
    %80 = arith.cmpi ne, %79, %c0_i32_47 : i32
    scf.if %80 {
      %c0_48 = arith.constant 0 : index
      %c0_49 = arith.constant 0 : index
      %81 = vector.load %arg13[%c0_48, %c0_49] : memref<8x1xf32, #tpu.memory_space<vmem>>, vector<8x1xf32>
      %c0_50 = arith.constant 0 : index
      %c0_51 = arith.constant 0 : index
      %82 = vector.load %arg10[%c0_50, %c0_51] : memref<1x1xf32, #tpu.memory_space<vmem>>, vector<1x1xf32>
      %83 = vector.broadcast %82 : vector<1x1xf32> to vector<8x1xf32>
      %84 = arith.addf %81, %83 : vector<8x1xf32>
      %85 = arith.negf %84 : vector<8x1xf32>
      %86 = math.exp %85 : vector<8x1xf32>
      %cst_52 = arith.constant 1.000000e+00 : f32
      %87 = vector.broadcast %cst_52 : f32 to vector<8x1xf32>
      %88 = arith.addf %87, %86 : vector<8x1xf32>
      %89 = arith.divf %87, %88 : vector<8x1xf32>
      %c0_53 = arith.constant 0 : index
      %c0_54 = arith.constant 0 : index
      %90 = vector.load %arg11[%c0_53, %c0_54] : memref<8x1xf32, #tpu.memory_space<vmem>>, vector<8x1xf32>
      tpu.vector_store %arg11[%c0_53, %c0_54], %89 {strides = array<i32>} : memref<8x1xf32, #tpu.memory_space<vmem>>, vector<8x1xf32>,
    } else {
    }
    return
  }
  func.func @transform_0(%arg0: i32, %arg1: i32) -> (i32, i32) {
    %c0_i32 = arith.constant 0 : i32
    %c0_i32_0 = arith.constant 0 : i32
    %c0_i32_1 = arith.constant 0 : i32
    return %c0_i32, %c0_i32_0 : i32, i32
  }
  func.func @transform_1(%arg0: i32, %arg1: i32) -> (i32, i32) {
    %c0_i32 = arith.constant 0 : i32
    %c0_i32_0 = arith.constant 0 : i32
    %c0_i32_1 = arith.constant 0 : i32
    return %c0_i32, %c0_i32_0 : i32, i32
  }
  func.func @transform_2(%arg0: i32, %arg1: i32) -> (i32, i32) {
    %c0_i32 = arith.constant 0 : i32
    %c0_i32_0 = arith.constant 0 : i32
    %c0_i32_1 = arith.constant 0 : i32
    return %c0_i32, %c0_i32_0 : i32, i32
  }
  func.func @transform_3(%arg0: i32, %arg1: i32) -> (i32, i32) {
    %c0_i32 = arith.constant 0 : i32
    %c0_i32_0 = arith.constant 0 : i32
    %c0_i32_1 = arith.constant 0 : i32
    return %c0_i32, %c0_i32_0 : i32, i32
  }
  func.func @transform_4(%arg0: i32, %arg1: i32) -> (i32, i32, i32) {
    %c0_i32 = arith.constant 0 : i32
    %c0_i32_0 = arith.constant 0 : i32
    return %arg0, %c0_i32, %arg1 : i32, i32, i32
  }
  func.func @transform_5(%arg0: i32, %arg1: i32) -> (i32, i32, i32) {
    %c0_i32 = arith.constant 0 : i32
    %c0_i32_0 = arith.constant 0 : i32
    return %arg0, %c0_i32, %arg1 : i32, i32, i32
  }
  func.func @transform_6(%arg0: i32, %arg1: i32) -> (i32, i32, i32) {
    %c0_i32 = arith.constant 0 : i32
    %c0_i32_0 = arith.constant 0 : i32
    return %arg0, %c0_i32, %arg1 : i32, i32, i32
  }
  func.func @transform_7(%arg0: i32, %arg1: i32) -> (i32, i32) {
    %c0_i32 = arith.constant 0 : i32
    %c0_i32_0 = arith.constant 0 : i32
    return %c0_i32, %arg1 : i32, i32
  }
  func.func @transform_8(%arg0: i32, %arg1: i32) -> (i32, i32) {
    %c0_i32 = arith.constant 0 : i32
    %c0_i32_0 = arith.constant 0 : i32
    %c0_i32_1 = arith.constant 0 : i32
    return %c0_i32, %c0_i32_0 : i32, i32
  }
  func.func @transform_9(%arg0: i32, %arg1: i32) -> (i32, i32) {
    %c0_i32 = arith.constant 0 : i32
    %c0_i32_0 = arith.constant 0 : i32
    %c0_i32_1 = arith.constant 0 : i32
    return %c0_i32, %c0_i32_0 : i32, i32
  }
}

</mosaic_0001>

<llo_original>
// kernel: tpu_custom_call.1
$region0: #{tpu_custom_call.1}
  #allocation0 [shape = 'u32[]', space=smem, size = 0x4, offset = 0x4, fixed_abs, tag = 'smem constant byte address 0x4 - core index']
  #allocation1 [shape = 'u32[144,128]{1,0:T(1,128)}', space=vmem, size = 0x12000, scoped, tag = 'internal scratch']
  #allocation2 [shape = 'f32[2,3,8,1024]{3,2,1,0:T(8,128)}', space=vmem, size = 0x30000, scoped, tag = 'scratch operand']
  #allocation3 [shape = 'f32[8,1]{1,0:T(8,128)}', space=vmem, size = 0x1000, scoped, tag = 'scratch operand']
  #allocation4 [shape = 'f32[1,1]{1,0:T(1,128)S(1)}', space=vmem, size = 0x200, scoped, tag = 'scoped memory for tpu_custom_call.1']
  %s0 = inlined_call_operand.hbm [shape: f32[8,8], index: 0, kind: input, shape index: {}]
  %s1 = inlined_call_operand.hbm [shape: bf16[8,3072], index: 1, kind: input, shape index: {}]
  %s2 = inlined_call_operand.hbm [shape: f32[3,3072], index: 2, kind: input, shape index: {}]
  %s3 = inlined_call_operand.hbm [shape: f32[8,3072], index: 3, kind: input, shape index: {}]
  %s4 = inlined_call_operand.hbm [shape: bf16[4,3072,3072], index: 4, kind: input, shape index: {}]
  %s5 = inlined_call_operand.vmem [shape: f32[4,3,3072], index: 5, kind: input, shape index: {}]
  %s6 = inlined_call_operand.hbm [shape: f32[4,8,3072], index: 6, kind: input, shape index: {}]
  %s7 = inlined_call_operand.hbm [shape: f32[1,3072], index: 7, kind: input, shape index: {}]
  %s8 = inlined_call_operand.<no memory space> [shape: f32[1,1], index: 8, kind: input, shape index: {}]
  %s9 = inlined_call_operand.vmem [shape: f32[8,1], index: 9, kind: output, shape index: {}]
  %s10 = sld [smem:[#allocation0]]
  $region109: #{tpu_custom_call.1} parent=0
    _
  %s12 = ssub.s32 1, %s10
  %s13 = scalar_select 0, %s12, %s10
  %v14 = vstv %s8
  %15 = vst [vmem:[#allocation4] sm:$0x1] %v14
  $region1: #{tpu_custom_call.1} parent=0
    #allocation5 [shape = 'u8[4096]{0}', space=vmem, size = 0x1000, scoped, tag = 'input window, operand 0, single buffered']
    #allocation6 [shape = 's32[2]{0}', space=sflag, size = 0x8, scoped, tag = 'scoped memory for tpu_custom_call.1']
    #allocation7 [shape = 'u8[49152]{0}', space=vmem, size = 0xc000, scoped, tag = 'input window, operand 1, single buffered']
    #allocation8 [shape = 's32[1]{0}', space=sflag, size = 0x4, scoped, tag = 'scoped memory for tpu_custom_call.1']
    #allocation9 [shape = 'u8[49152]{0}', space=vmem, size = 0xc000, scoped, tag = 'input window, operand 2, single buffered']
    #allocation10 [shape = 'u8[98304]{0}', space=vmem, size = 0x18000, scoped, tag = 'input window, operand 3, single buffered']
    #allocation11 [shape = 's32[1]{0}', space=sflag, size = 0x4, scoped, tag = 'scoped memory for tpu_custom_call.1']
    #allocation12 [shape = 'u8[12582912]{0}', space=vmem, size = 0xc00000, scoped, tag = 'input window, operand 4']
    #allocation13 [shape = 'u8[65536]{0}', space=vmem, size = 0x10000, scoped, tag = 'input window, operand 6']
    #allocation14 [shape = 'u8[8192]{0}', space=vmem, size = 0x2000, scoped, tag = 'input window, operand 7']
    %16 = vsyncpa [#allocation6], 0
    %17 = vsyncpa [#allocation8], 0
    %18 = vsyncpa [#allocation11], 0
    loop: start=0, step=1, limit=14
    $region2: #{tpu_custom_call.1} parent=1 // loop_pre_header
      _
    $region3: #{tpu_custom_call.1} parent=1 // loop_header
      %s20 = sphi 0, %s24
      %p21 = scmp.ge.s32.totalorder %s20, 14
      %s27 = sphi 0, %s39
      %s28 = sphi 0, %s35
      %s29 = sphi 0, %s27
      %s30 = sphi 0, %s28
      %s31 = sphi 0, %s29
      %s32 = sphi 0, %s30
      %s40 = sphi 0, %s40
      %s42 = sphi 0, %s40
      %s43 = sphi 0, %s42
      %s57 = sphi 0, %s43
      %s61 = sphi 0, %s61
      %s63 = sphi 0, %s61
      %s64 = sphi 0, %s63
      %s78 = sphi 0, %s64
      %s82 = sphi 0, %s82
      %s84 = sphi 0, %s82
      %s85 = sphi 0, %s84
      %s99 = sphi 0, %s85
      %s103 = sphi 0, %s103
      %s105 = sphi 0, %s103
      %s106 = sphi 0, %s105
      %s120 = sphi 0, %s106
      %s128 = sphi 0, %s130
      %s131 = sphi 0, %s128
      %s132 = sphi 0, %s131
      %s148 = sphi 0, %s132
      %s156 = sphi 0, %s158
      %s159 = sphi 0, %s156
      %s160 = sphi 0, %s159
      %s176 = sphi 0, %s160
      %s184 = sphi 0, %s186
      %s187 = sphi 0, %s184
      %s188 = sphi 0, %s187
      %s204 = sphi 0, %s188
      %s210 = sphi 0, %s212
      %s213 = sphi 0, %s210
      %s214 = sphi 0, %s213
      %s230 = sphi 0, %s214
      %s234 = sphi 0, %s234
      %s236 = sphi 0, %s234
      %s237 = sphi 0, %s236
      %s251 = sphi 0, %s237
      %s255 = sphi 0, %s255
      %s257 = sphi 0, %s255
      %s258 = sphi 0, %s257
      %s272 = sphi 0, %s258
    $region4: #{tpu_custom_call.1} parent=1 // loop_header_branch
      %23 = sbr.rel (%p21) target = $region8
    $region5: #{tpu_custom_call.1} parent=1 // loop_body
      %s25 = ssub.s32 %s20, 1
      %s26 = ssub.s32 %s20, 2
      %s33 = sadd.s32 1, %s28
      %p34 = scmp.ge.s32.totalorder %s33, 3
      %s35 = scalar_select %p34, 0, %s33
      %s36 = sadd.s32 1, %s27
      %s37 = scalar_select %p34, %s36, %s27
      %p38 = scmp.ge.s32.totalorder %s37, 4
      %s39 = scalar_select %p38, 0, %s37
      %s41 = sadd.s32 %s40, 1
      %p44 = scmp.eq.s32.totalorder %s20, 11
      %p45 = scmp.ne.s32.totalorder %s40, %s42
      %p46 = scmp.eq.s32.totalorder %s20, 0
      %p47 = por %p45, %p46
      %p48 = scmp.ne.s32.totalorder %s40, %s42
      %p49 = scmp.eq.s32.totalorder %s25, 11
      %p50 = por %p48, %p49
      %p51 = scmp.ne.s32.totalorder %s42, %s43
      %p52 = scmp.eq.s32.totalorder %s25, 0
      %p53 = por %p51, %p52
      %p54 = scmp.ne.s32.totalorder %s42, %s43
      %p55 = scmp.eq.s32.totalorder %s26, 11
      %p56 = por %p54, %p55
      %p58 = scmp.ne.s32.totalorder %s43, %s57
      %p59 = scmp.eq.s32.totalorder %s26, 0
      %p60 = por %p58, %p59
      %s62 = sadd.s32 %s61, 1
      %p65 = scmp.eq.s32.totalorder %s20, 11
      %p66 = scmp.ne.s32.totalorder %s61, %s63
      %p67 = scmp.eq.s32.totalorder %s20, 0
      %p68 = por %p66, %p67
      %p69 = scmp.ne.s32.totalorder %s61, %s63
      %p70 = scmp.eq.s32.totalorder %s25, 11
      %p71 = por %p69, %p70
      %p72 = scmp.ne.s32.totalorder %s63, %s64
      %p73 = scmp.eq.s32.totalorder %s25, 0
      %p74 = por %p72, %p73
      %p75 = scmp.ne.s32.totalorder %s63, %s64
      %p76 = scmp.eq.s32.totalorder %s26, 11
      %p77 = por %p75, %p76
      %p79 = scmp.ne.s32.totalorder %s64, %s78
      %p80 = scmp.eq.s32.totalorder %s26, 0
      %p81 = por %p79, %p80
      %s83 = sadd.s32 %s82, 1
      %p86 = scmp.eq.s32.totalorder %s20, 11
      %p87 = scmp.ne.s32.totalorder %s82, %s84
      %p88 = scmp.eq.s32.totalorder %s20, 0
      %p89 = por %p87, %p88
      %p90 = scmp.ne.s32.totalorder %s82, %s84
      %p91 = scmp.eq.s32.totalorder %s25, 11
      %p92 = por %p90, %p91
      %p93 = scmp.ne.s32.totalorder %s84, %s85
      %p94 = scmp.eq.s32.totalorder %s25, 0
      %p95 = por %p93, %p94
      %p96 = scmp.ne.s32.totalorder %s84, %s85
      %p97 = scmp.eq.s32.totalorder %s26, 11
      %p98 = por %p96, %p97
      %p100 = scmp.ne.s32.totalorder %s85, %s99
      %p101 = scmp.eq.s32.totalorder %s26, 0
      %p102 = por %p100, %p101
      %s104 = sadd.s32 %s103, 1
      %p107 = scmp.eq.s32.totalorder %s20, 11
      %p108 = scmp.ne.s32.totalorder %s103, %s105
      %p109 = scmp.eq.s32.totalorder %s20, 0
      %p110 = por %p108, %p109
      %p111 = scmp.ne.s32.totalorder %s103, %s105
      %p112 = scmp.eq.s32.totalorder %s25, 11
      %p113 = por %p111, %p112
      %p114 = scmp.ne.s32.totalorder %s105, %s106
      %p115 = scmp.eq.s32.totalorder %s25, 0
      %p116 = por %p114, %p115
      %p117 = scmp.ne.s32.totalorder %s105, %s106
      %p118 = scmp.eq.s32.totalorder %s26, 11
      %p119 = por %p117, %p118
      %p121 = scmp.ne.s32.totalorder %s106, %s120
      %p122 = scmp.eq.s32.totalorder %s26, 0
      %p123 = por %p121, %p122
      %s124 = ssub.s32 %s27, %s39
      %s125 = ssub.s32 %s28, %s35
      %s126 = sor.u32 %s124, %s125
      %p127 = scmp.eq.s32.totalorder %s126, 0
      %s129 = sadd.s32 %s128, 1
      %s130 = scalar_select %p127, %s128, %s129
      %p133 = pneg %p127
      %p134 = scmp.eq.s32.totalorder %s20, 11
      %p135 = por %p133, %p134
      %p136 = scmp.ne.s32.totalorder %s128, %s131
      %p137 = scmp.eq.s32.totalorder %s20, 0
      %p138 = por %p136, %p137
      %p139 = scmp.ne.s32.totalorder %s128, %s131
      %p140 = scmp.eq.s32.totalorder %s25, 11
      %p141 = por %p139, %p140
      %p142 = scmp.ne.s32.totalorder %s131, %s132
      %p143 = scmp.eq.s32.totalorder %s25, 0
      %p144 = por %p142, %p143
      %p145 = scmp.ne.s32.totalorder %s131, %s132
      %p146 = scmp.eq.s32.totalorder %s26, 11
      %p147 = por %p145, %p146
      %p149 = scmp.ne.s32.totalorder %s132, %s148
      %p150 = scmp.eq.s32.totalorder %s26, 0
      %p151 = por %p149, %p150
      %s152 = ssub.s32 %s27, %s39
      %s153 = ssub.s32 %s28, %s35
      %s154 = sor.u32 %s152, %s153
      %p155 = scmp.eq.s32.totalorder %s154, 0
      %s157 = sadd.s32 %s156, 1
      %s158 = scalar_select %p155, %s156, %s157
      %p161 = pneg %p155
      %p162 = scmp.eq.s32.totalorder %s20, 11
      %p163 = por %p161, %p162
      %p164 = scmp.ne.s32.totalorder %s156, %s159
      %p165 = scmp.eq.s32.totalorder %s20, 0
      %p166 = por %p164, %p165
      %p167 = scmp.ne.s32.totalorder %s156, %s159
      %p168 = scmp.eq.s32.totalorder %s25, 11
      %p169 = por %p167, %p168
      %p170 = scmp.ne.s32.totalorder %s159, %s160
      %p171 = scmp.eq.s32.totalorder %s25, 0
      %p172 = por %p170, %p171
      %p173 = scmp.ne.s32.totalorder %s159, %s160
      %p174 = scmp.eq.s32.totalorder %s26, 11
      %p175 = por %p173, %p174
      %p177 = scmp.ne.s32.totalorder %s160, %s176
      %p178 = scmp.eq.s32.totalorder %s26, 0
      %p179 = por %p177, %p178
      %s180 = ssub.s32 %s27, %s39
      %s181 = ssub.s32 %s28, %s35
      %s182 = sor.u32 %s180, %s181
      %p183 = scmp.eq.s32.totalorder %s182, 0
      %s185 = sadd.s32 %s184, 1
      %s186 = scalar_select %p183, %s184, %s185
      %p189 = pneg %p183
      %p190 = scmp.eq.s32.totalorder %s20, 11
      %p191 = por %p189, %p190
      %p192 = scmp.ne.s32.totalorder %s184, %s187
      %p193 = scmp.eq.s32.totalorder %s20, 0
      %p194 = por %p192, %p193
      %p195 = scmp.ne.s32.totalorder %s184, %s187
      %p196 = scmp.eq.s32.totalorder %s25, 11
      %p197 = por %p195, %p196
      %p198 = scmp.ne.s32.totalorder %s187, %s188
      %p199 = scmp.eq.s32.totalorder %s25, 0
      %p200 = por %p198, %p199
      %p201 = scmp.ne.s32.totalorder %s187, %s188
      %p202 = scmp.eq.s32.totalorder %s26, 11
      %p203 = por %p201, %p202
      %p205 = scmp.ne.s32.totalorder %s188, %s204
      %p206 = scmp.eq.s32.totalorder %s26, 0
      %p207 = por %p205, %p206
      %s208 = ssub.s32 %s28, %s35
      %p209 = scmp.eq.s32.totalorder %s208, 0
      %s211 = sadd.s32 %s210, 1
      %s212 = scalar_select %p209, %s210, %s211
      %p215 = pneg %p209
      %p216 = scmp.eq.s32.totalorder %s20, 11
      %p217 = por %p215, %p216
      %p218 = scmp.ne.s32.totalorder %s210, %s213
      %p219 = scmp.eq.s32.totalorder %s20, 0
      %p220 = por %p218, %p219
      %p221 = scmp.ne.s32.totalorder %s210, %s213
      %p222 = scmp.eq.s32.totalorder %s25, 11
      %p223 = por %p221, %p222
      %p224 = scmp.ne.s32.totalorder %s213, %s214
      %p225 = scmp.eq.s32.totalorder %s25, 0
      %p226 = por %p224, %p225
      %p227 = scmp.ne.s32.totalorder %s213, %s214
      %p228 = scmp.eq.s32.totalorder %s26, 11
      %p229 = por %p227, %p228
      %p231 = scmp.ne.s32.totalorder %s214, %s230
      %p232 = scmp.eq.s32.totalorder %s26, 0
      %p233 = por %p231, %p232
      %s235 = sadd.s32 %s234, 1
      %p238 = scmp.eq.s32.totalorder %s20, 11
      %p239 = scmp.ne.s32.totalorder %s234, %s236
      %p240 = scmp.eq.s32.totalorder %s20, 0
      %p241 = por %p239, %p240
      %p242 = scmp.ne.s32.totalorder %s234, %s236
      %p243 = scmp.eq.s32.totalorder %s25, 11
      %p244 = por %p242, %p243
      %p245 = scmp.ne.s32.totalorder %s236, %s237
      %p246 = scmp.eq.s32.totalorder %s25, 0
      %p247 = por %p245, %p246
      %p248 = scmp.ne.s32.totalorder %s236, %s237
      %p249 = scmp.eq.s32.totalorder %s26, 11
      %p250 = por %p248, %p249
      %p252 = scmp.ne.s32.totalorder %s237, %s251
      %p253 = scmp.eq.s32.totalorder %s26, 0
      %p254 = por %p252, %p253
      %s256 = sadd.s32 %s255, 1
      %p259 = scmp.eq.s32.totalorder %s20, 11
      %p260 = scmp.ne.s32.totalorder %s255, %s257
      %p261 = scmp.eq.s32.totalorder %s20, 0
      %p262 = por %p260, %p261
      %p263 = scmp.ne.s32.totalorder %s255, %s257
      %p264 = scmp.eq.s32.totalorder %s25, 11
      %p265 = por %p263, %p264
      %p266 = scmp.ne.s32.totalorder %s257, %s258
      %p267 = scmp.eq.s32.totalorder %s25, 0
      %p268 = por %p266, %p267
      %p269 = scmp.ne.s32.totalorder %s257, %s258
      %p270 = scmp.eq.s32.totalorder %s26, 11
      %p271 = por %p269, %p270
      %p273 = scmp.ne.s32.totalorder %s258, %s272
      %p274 = scmp.eq.s32.totalorder %s26, 0
      %p275 = por %p273, %p274
      %p276 = scmp.le.s32.totalorder 1, %s20
      %p277 = scmp.lt.s32.totalorder %s20, 13
      %p278 = pnand %p276, %p277
      %p279 = pneg %p278
      // Predicated region
      $region9: #{tpu_custom_call.1} parent=5 // pred_check
        _
      $region10: #{tpu_custom_call.1} parent=5 // pred_check_branch
        %281 = sbr.rel (%p278) target = $region12
      $region11: #{tpu_custom_call.1} parent=5 // pred_region
        %s282 = ssub.s32 %s20, 1
        // Predicated region
        $region13: #{tpu_custom_call.1} parent=11 // pred_check
          %p283 = pneg %p53
        $region14: #{tpu_custom_call.1} parent=11 // pred_check_branch
          %285 = sbr.rel (%p283) target = $region16
        $region15: #{tpu_custom_call.1} parent=11 // pred_region
          %s287 = ssub.s32 128, 128
          %288 = vsyncadd [#allocation6], %s287
          %s290 = sshll.u32 [#allocation5], 4
          %s291 = int_to_ptr.vmem [resolvable:$true] %s290
          %293 = dma.hbm_to_vmem [thread:$0]  %s0, 128, %s291, [#allocation6]
        $region16: #{tpu_custom_call.1} parent=11 // pred_fallthru
          _
        // Predicated region
        $region17: #{tpu_custom_call.1} parent=11 // pred_check
          %p294 = pneg %p74
        $region18: #{tpu_custom_call.1} parent=11 // pred_check_branch
          %296 = sbr.rel (%p294) target = $region20
        $region19: #{tpu_custom_call.1} parent=11 // pred_region
          %s298 = ssub.s32 1536, 1536
          %299 = vsyncadd [#allocation8], %s298
          %s301 = sshll.u32 [#allocation7], 4
          %s302 = int_to_ptr.vmem [resolvable:$true] %s301
          %304 = dma.hbm_to_vmem [thread:$0]  %s1, 1536, %s302, [#allocation8]
        $region20: #{tpu_custom_call.1} parent=11 // pred_fallthru
          _
        // Predicated region
        $region21: #{tpu_custom_call.1} parent=11 // pred_check
          %p305 = pneg %p95
        $region22: #{tpu_custom_call.1} parent=11 // pred_check_branch
          %307 = sbr.rel (%p305) target = $region24
        $region23: #{tpu_custom_call.1} parent=11 // pred_region
          %s309 = ssub.s32 1536, 1536
          %310 = vsyncadd [#allocation8], %s309
          %s312 = sshll.u32 [#allocation9], 4
          %s313 = int_to_ptr.vmem [resolvable:$true] %s312
          %315 = dma.hbm_to_vmem [thread:$0]  %s2, 1536, %s313, [#allocation8]
        $region24: #{tpu_custom_call.1} parent=11 // pred_fallthru
          _
        // Predicated region
        $region25: #{tpu_custom_call.1} parent=11 // pred_check
          %p316 = pneg %p116
        $region26: #{tpu_custom_call.1} parent=11 // pred_check_branch
          %318 = sbr.rel (%p316) target = $region28
        $region27: #{tpu_custom_call.1} parent=11 // pred_region
          %s320 = ssub.s32 3072, 3072
          %321 = vsyncadd [#allocation11], %s320
          %s323 = sshll.u32 [#allocation10], 4
          %s324 = int_to_ptr.vmem [resolvable:$true] %s323
          %326 = dma.hbm_to_vmem [thread:$0]  %s3, 3072, %s324, [#allocation11]
        $region28: #{tpu_custom_call.1} parent=11 // pred_fallthru
          _
        // Predicated region
        $region29: #{tpu_custom_call.1} parent=11 // pred_check
          %p327 = pneg %p247
        $region30: #{tpu_custom_call.1} parent=11 // pred_check_branch
          %329 = sbr.rel (%p327) target = $region32
        $region31: #{tpu_custom_call.1} parent=11 // pred_region
          _
        $region32: #{tpu_custom_call.1} parent=11 // pred_fallthru
          _
      $region12: #{tpu_custom_call.1} parent=5 // pred_fallthru
        _
      %p330 = scmp.lt.s32.totalorder %s20, 12
      // Predicated region
      $region33: #{tpu_custom_call.1} parent=5 // pred_check
        %p331 = pneg %p330
      $region34: #{tpu_custom_call.1} parent=5 // pred_check_branch
        %333 = sbr.rel (%p331) target = $region36
      $region35: #{tpu_custom_call.1} parent=5 // pred_region
        // Predicated region
        $region37: #{tpu_custom_call.1} parent=35 // pred_check
          %p334 = pneg %p138
        $region38: #{tpu_custom_call.1} parent=35 // pred_check_branch
          %336 = sbr.rel (%p334) target = $region40
        $region39: #{tpu_custom_call.1} parent=35 // pred_region
          %s337 = sand.u32 %s20, 1
          %s338 = scalar_lea.sflag [#allocation6], %s337
          %s339 = sand.u32 %s128, 1
          %s340 = smul.addr %s339, 12288
          %s341 = scalar_lea.vmem [#allocation12], %s340
          %s342 = smul.u32 8, %s28
          %s344 = ssub.s32 196608, 196608
          %345 = vsyncadd %s338, %s344
          %s346 = smul.addr %s27, 9216
          %s347 = sadd.s32 %s342, %s346
          %s348 = smul.addr %s347, 64
          %s349 = scalar_lea.hbm %s4, %s348
          %s350 = sshll.u32 %s341, 4
          %s351 = int_to_ptr.vmem [resolvable:$true] %s350
          %356 = dma.hbm_to_vmem [thread:$0]  %s349, 196608, %s351, %s338, 1536, 512, 32
        $region40: #{tpu_custom_call.1} parent=35 // pred_fallthru
          _
        // Predicated region
        $region41: #{tpu_custom_call.1} parent=35 // pred_check
          %p357 = pneg %p166
        $region42: #{tpu_custom_call.1} parent=35 // pred_check_branch
          %359 = sbr.rel (%p357) target = $region44
        $region43: #{tpu_custom_call.1} parent=35 // pred_region
          %s360 = smul.u32 8, %s28
          %p361 = scmp.lt.s32.totalorder %s27, 3
          %s362 = scalar_select %p361, %s27, 3
          %p363 = scmp.lt.s32.totalorder %s360, 23
          %s364 = scalar_select %p363, %s360, 23
          %s365 = smul.addr %s362, 24
          %s366 = sadd.s32 %s364, %s365
          %s367 = smul.addr %s366, 4
          %s368 = scalar_lea.vmem %s5, %s367
          %s369 = smul.u32 8, %s28
        $region44: #{tpu_custom_call.1} parent=35 // pred_fallthru
          _
        // Predicated region
        $region45: #{tpu_custom_call.1} parent=35 // pred_check
          %p370 = pneg %p194
        $region46: #{tpu_custom_call.1} parent=35 // pred_check_branch
          %372 = sbr.rel (%p370) target = $region48
        $region47: #{tpu_custom_call.1} parent=35 // pred_region
          %s373 = sand.u32 %s20, 1
          %s374 = scalar_lea.sflag [#allocation6], %s373
          %s375 = sand.u32 %s184, 1
          %s376 = smul.addr %s375, 64
          %s377 = scalar_lea.vmem [#allocation13], %s376
          %s378 = smul.u32 8, %s28
          %s380 = ssub.s32 1024, 1024
          %381 = vsyncadd %s374, %s380
          %s382 = smul.addr %s27, 24
          %s383 = sadd.s32 %s378, %s382
          %s384 = smul.addr %s383, 128
          %s385 = scalar_lea.hbm %s6, %s384
          %s387 = sshll.u32 %s377, 4
          %s388 = int_to_ptr.vmem [resolvable:$true] %s387
          %390 = dma.hbm_to_vmem [thread:$0]  %s385, 1024, %s388, %s374
        $region48: #{tpu_custom_call.1} parent=35 // pred_fallthru
          _
        // Predicated region
        $region49: #{tpu_custom_call.1} parent=35 // pred_check
          %p391 = pneg %p220
        $region50: #{tpu_custom_call.1} parent=35 // pred_check_branch
          %393 = sbr.rel (%p391) target = $region52
        $region51: #{tpu_custom_call.1} parent=35 // pred_region
          %s394 = sand.u32 %s20, 1
          %s395 = scalar_lea.sflag [#allocation6], %s394
          %s396 = sand.u32 %s210, 1
          %s397 = smul.addr %s396, 8
          %s398 = scalar_lea.vmem [#allocation14], %s397
          %s399 = smul.u32 8, %s28
          %s401 = ssub.s32 128, 128
          %402 = vsyncadd %s395, %s401
          %s403 = smul.addr %s399, 16
          %s404 = scalar_lea.hbm %s7, %s403
          %s406 = sshll.u32 %s398, 4
          %s407 = int_to_ptr.vmem [resolvable:$true] %s406
          %409 = dma.hbm_to_vmem [thread:$0]  %s404, 128, %s407, %s395
        $region52: #{tpu_custom_call.1} parent=35 // pred_fallthru
          _
      $region36: #{tpu_custom_call.1} parent=5 // pred_fallthru
        _
      %p410 = scmp.le.s32.totalorder 1, %s20
      %p411 = scmp.lt.s32.totalorder %s20, 13
      %p412 = pnand %p410, %p411
      %p413 = pneg %p412
      // Predicated region
      $region53: #{tpu_custom_call.1} parent=5 // pred_check
        _
      $region54: #{tpu_custom_call.1} parent=5 // pred_check_branch
        %415 = sbr.rel (%p412) target = $region56
      $region55: #{tpu_custom_call.1} parent=5 // pred_region
        %s416 = ssub.s32 %s20, 1
        // Predicated region
        $region57: #{tpu_custom_call.1} parent=55 // pred_check
          %p417 = pneg %p53
        $region58: #{tpu_custom_call.1} parent=55 // pred_check_branch
          %419 = sbr.rel (%p417) target = $region60
        $region59: #{tpu_custom_call.1} parent=55 // pred_region
          %420 = dma.done [#allocation6], 128
        $region60: #{tpu_custom_call.1} parent=55 // pred_fallthru
          _
        // Predicated region
        $region61: #{tpu_custom_call.1} parent=55 // pred_check
          %p421 = pneg %p74
        $region62: #{tpu_custom_call.1} parent=55 // pred_check_branch
          %423 = sbr.rel (%p421) target = $region64
        $region63: #{tpu_custom_call.1} parent=55 // pred_region
          %424 = dma.done [#allocation8], 1536
        $region64: #{tpu_custom_call.1} parent=55 // pred_fallthru
          _
        // Predicated region
        $region65: #{tpu_custom_call.1} parent=55 // pred_check
          %p425 = pneg %p95
        $region66: #{tpu_custom_call.1} parent=55 // pred_check_branch
          %427 = sbr.rel (%p425) target = $region68
        $region67: #{tpu_custom_call.1} parent=55 // pred_region
          %428 = dma.done [#allocation8], 1536
        $region68: #{tpu_custom_call.1} parent=55 // pred_fallthru
          _
        // Predicated region
        $region69: #{tpu_custom_call.1} parent=55 // pred_check
          %p429 = pneg %p116
        $region70: #{tpu_custom_call.1} parent=55 // pred_check_branch
          %431 = sbr.rel (%p429) target = $region72
        $region71: #{tpu_custom_call.1} parent=55 // pred_region
          %432 = dma.done [#allocation11], 3072
        $region72: #{tpu_custom_call.1} parent=55 // pred_fallthru
          _
        %s433 = sand.u32 %s25, 1
        %s434 = scalar_lea.sflag [#allocation6], %s433
        %s435 = sand.u32 %s131, 1
        %s436 = smul.addr %s435, 12288
        %s437 = scalar_lea.vmem [#allocation12], %s436
        // Predicated region
        $region73: #{tpu_custom_call.1} parent=55 // pred_check
          %p438 = pneg %p144
        $region74: #{tpu_custom_call.1} parent=55 // pred_check_branch
          %440 = sbr.rel (%p438) target = $region76
        $region75: #{tpu_custom_call.1} parent=55 // pred_region
          %441 = dma.done %s434, 196608
        $region76: #{tpu_custom_call.1} parent=55 // pred_fallthru
          _
        %s442 = sand.u32 %s25, 1
        %s443 = scalar_lea.sflag [#allocation6], %s442
        %s444 = sand.u32 %s187, 1
        %s445 = smul.addr %s444, 64
        %s446 = scalar_lea.vmem [#allocation13], %s445
        // Predicated region
        $region77: #{tpu_custom_call.1} parent=55 // pred_check
          %p447 = pneg %p200
        $region78: #{tpu_custom_call.1} parent=55 // pred_check_branch
          %449 = sbr.rel (%p447) target = $region80
        $region79: #{tpu_custom_call.1} parent=55 // pred_region
          %450 = dma.done %s443, 1024
        $region80: #{tpu_custom_call.1} parent=55 // pred_fallthru
          _
        %s451 = sand.u32 %s25, 1
        %s452 = scalar_lea.sflag [#allocation6], %s451
        %s453 = sand.u32 %s213, 1
        %s454 = smul.addr %s453, 8
        %s455 = scalar_lea.vmem [#allocation14], %s454
        // Predicated region
        $region81: #{tpu_custom_call.1} parent=55 // pred_check
          %p456 = pneg %p226
        $region82: #{tpu_custom_call.1} parent=55 // pred_check_branch
          %458 = sbr.rel (%p456) target = $region84
        $region83: #{tpu_custom_call.1} parent=55 // pred_region
          %459 = dma.done %s452, 128
        $region84: #{tpu_custom_call.1} parent=55 // pred_fallthru
          _
        %p460 = pneg %p53
        %p461 = pneg %p50
        %p462 = pneg %p74
        %p463 = pneg %p71
        %p464 = pneg %p95
        %p465 = pneg %p92
        %p466 = pneg %p116
        %p467 = pneg %p113
        %s468 = sand.u32 %s25, 1
        %s469 = scalar_lea.sflag [#allocation6], %s468
        %s470 = sand.u32 %s131, 1
        %s471 = smul.addr %s470, 12288
        %s472 = scalar_lea.vmem [#allocation12], %s471
        %p473 = pneg %p144
        %p474 = pneg %p141
        %s475 = smul.u32 8, %s30
        %p476 = scmp.lt.s32.totalorder %s29, 3
        %s477 = scalar_select %p476, %s29, 3
        %p478 = scmp.lt.s32.totalorder %s475, 23
        %s479 = scalar_select %p478, %s475, 23
        %s480 = smul.addr %s477, 24
        %s481 = sadd.s32 %s479, %s480
        %s482 = smul.addr %s481, 4
        %s483 = scalar_lea.vmem %s5, %s482
        %p484 = pneg %p172
        %p485 = pneg %p169
        %s486 = sand.u32 %s25, 1
        %s487 = scalar_lea.sflag [#allocation6], %s486
        %s488 = sand.u32 %s187, 1
        %s489 = smul.addr %s488, 64
        %s490 = scalar_lea.vmem [#allocation13], %s489
        %p491 = pneg %p200
        %p492 = pneg %p197
        %s493 = sand.u32 %s25, 1
        %s494 = scalar_lea.sflag [#allocation6], %s493
        %s495 = sand.u32 %s213, 1
        %s496 = smul.addr %s495, 8
        %s497 = scalar_lea.vmem [#allocation14], %s496
        %p498 = pneg %p226
        %p499 = pneg %p223
        %p500 = pneg %p247
        %p501 = pneg %p244
        %p502 = pneg %p268
        %p503 = pneg %p265
        %s504 = smul.u32 8, %s30
        %s505 = smul.u32 8, %s30
        %p506 = scmp.lt.s32.totalorder %s29, 3
        %s507 = scalar_select %p506, %s29, 3
        %p508 = scmp.lt.s32.totalorder %s505, 23
        %s509 = scalar_select %p508, %s505, 23
        %s510 = smul.addr %s507, 24
        %s511 = sadd.s32 %s509, %s510
        %s512 = smul.addr %s511, 4
        %s513 = scalar_lea.vmem %s5, %s512
        %s514 = smul.u32 8, %s30
        %s515 = smul.u32 8, %s30
        %s516 = smul.u32 8, %s30
        %p518 = scmp.eq.s32.totalorder %s29, 0
        %p519 = scmp.eq.s32.totalorder %s30, 0
        %p520 = pnand %p518, %p519
        %p521 = pneg %p520
        // Predicated region
        $region85: #{tpu_custom_call.1} parent=55 // pred_check
          _
        $region86: #{tpu_custom_call.1} parent=55 // pred_check_branch
          %523 = sbr.rel (%p520) target = $region88
        $region87: #{tpu_custom_call.1} parent=55 // pred_region
          %v524 = vld [vmem:[#allocation5] sm:$0xff]
          %v525 = vpack.c.bf16 %v524, %v524
          %v526 = vld [vmem:[#allocation7] sm:$0xff]
          %v527 = vld [vmem:[#allocation7 + $0x8] sm:$0xff]
          %v528 = vld [vmem:[#allocation7 + $0x10] sm:$0xff]
          %v529 = vld [vmem:[#allocation7 + $0x18] sm:$0xff]
          %v530 = vld [vmem:[#allocation7 + $0x20] sm:$0xff]
          %v531 = vld [vmem:[#allocation7 + $0x28] sm:$0xff]
          %v532 = vld [vmem:[#allocation7 + $0x30] sm:$0xff]
          %v533 = vld [vmem:[#allocation7 + $0x38] sm:$0xff]
          %v534 = vld [vmem:[#allocation7 + $0x40] sm:$0xff]
          %v535 = vld [vmem:[#allocation7 + $0x48] sm:$0xff]
          %v536 = vld [vmem:[#allocation7 + $0x50] sm:$0xff]
          %v537 = vld [vmem:[#allocation7 + $0x58] sm:$0xff]
          %v538 = vld [vmem:[#allocation9] ss:$4 sm:$0xff]
          %s539 = scalar_lea.vmem [#allocation9], 32
          %v540 = vld [vmem:[%s539] ss:$4 sm:$0xff]
          %s541 = scalar_lea.vmem [#allocation9], 64
          %v542 = vld [vmem:[%s541] ss:$4 sm:$0xff]
          %v546 = vlaneseq
          %v547 = vshrl.u32 %v546, 7
          %v548 = vsub.s32 0, %v547
          %v549 = vrot.slane %v538, %v548
          %v550 = vlaneseq
          %v551 = vshrl.u32 %v550, 7
          %v552 = vsub.s32 1, %v551
          %v553 = vrot.slane %v538, %v552
          %v554 = vlaneseq
          %v555 = vshrl.u32 %v554, 7
          %v556 = vsub.s32 2, %v555
          %v557 = vrot.slane %v538, %v556
          %v558 = vlaneseq
          %v559 = vshrl.u32 %v558, 7
          %v560 = vsub.s32 3, %v559
          %v561 = vrot.slane %v538, %v560
          %v562 = vlaneseq
          %v563 = vshrl.u32 %v562, 7
          %v564 = vsub.s32 4, %v563
          %v565 = vrot.slane %v538, %v564
          %v566 = vlaneseq
          %v567 = vshrl.u32 %v566, 7
          %v568 = vsub.s32 5, %v567
          %v569 = vrot.slane %v538, %v568
          %v570 = vlaneseq
          %v571 = vshrl.u32 %v570, 7
          %v572 = vsub.s32 6, %v571
          %v573 = vrot.slane %v538, %v572
          %v574 = vlaneseq
          %v575 = vshrl.u32 %v574, 7
          %v576 = vsub.s32 7, %v575
          %v577 = vrot.slane %v538, %v576
          %v578 = vlaneseq
          %v579 = vshrl.u32 %v578, 7
          %v580 = vsub.s32 0, %v579
          %v581 = vrot.slane %v540, %v580
          %v582 = vlaneseq
          %v583 = vshrl.u32 %v582, 7
          %v584 = vsub.s32 1, %v583
          %v585 = vrot.slane %v540, %v584
          %v586 = vlaneseq
          %v587 = vshrl.u32 %v586, 7
          %v588 = vsub.s32 2, %v587
          %v589 = vrot.slane %v540, %v588
          %v590 = vlaneseq
          %v591 = vshrl.u32 %v590, 7
          %v592 = vsub.s32 3, %v591
          %v593 = vrot.slane %v540, %v592
          %v594 = vlaneseq
          %v595 = vshrl.u32 %v594, 7
          %v596 = vsub.s32 4, %v595
          %v597 = vrot.slane %v540, %v596
          %v598 = vlaneseq
          %v599 = vshrl.u32 %v598, 7
          %v600 = vsub.s32 5, %v599
          %v601 = vrot.slane %v540, %v600
          %v602 = vlaneseq
          %v603 = vshrl.u32 %v602, 7
          %v604 = vsub.s32 6, %v603
          %v605 = vrot.slane %v540, %v604
          %v606 = vlaneseq
          %v607 = vshrl.u32 %v606, 7
          %v608 = vsub.s32 7, %v607
          %v609 = vrot.slane %v540, %v608
          %v610 = vlaneseq
          %v611 = vshrl.u32 %v610, 7
          %v612 = vsub.s32 0, %v611
          %v613 = vrot.slane %v542, %v612
          %v614 = vlaneseq
          %v615 = vshrl.u32 %v614, 7
          %v616 = vsub.s32 1, %v615
          %v617 = vrot.slane %v542, %v616
          %v618 = vlaneseq
          %v619 = vshrl.u32 %v618, 7
          %v620 = vsub.s32 2, %v619
          %v621 = vrot.slane %v542, %v620
          %v622 = vlaneseq
          %v623 = vshrl.u32 %v622, 7
          %v624 = vsub.s32 3, %v623
          %v625 = vrot.slane %v542, %v624
          %v626 = vlaneseq
          %v627 = vshrl.u32 %v626, 7
          %v628 = vsub.s32 4, %v627
          %v629 = vrot.slane %v542, %v628
          %v630 = vlaneseq
          %v631 = vshrl.u32 %v630, 7
          %v632 = vsub.s32 5, %v631
          %v633 = vrot.slane %v542, %v632
          %v634 = vlaneseq
          %v635 = vshrl.u32 %v634, 7
          %v636 = vsub.s32 6, %v635
          %v637 = vrot.slane %v542, %v636
          %v638 = vlaneseq
          %v639 = vshrl.u32 %v638, 7
          %v640 = vsub.s32 7, %v639
          %v641 = vrot.slane %v542, %v640
          %v678 = vunpack.c.l.b16 %v526
          %v679 = vunpack.c.h.b16 %v526
          %v680 = vunpack.c.l.b16 %v527
          %v681 = vunpack.c.h.b16 %v527
          %v682 = vunpack.c.l.b16 %v528
          %v683 = vunpack.c.h.b16 %v528
          %v684 = vunpack.c.l.b16 %v529
          %v685 = vunpack.c.h.b16 %v529
          %v686 = vunpack.c.l.b16 %v530
          %v687 = vunpack.c.h.b16 %v530
          %v688 = vunpack.c.l.b16 %v531
          %v689 = vunpack.c.h.b16 %v531
          %v690 = vunpack.c.l.b16 %v532
          %v691 = vunpack.c.h.b16 %v532
          %v692 = vunpack.c.l.b16 %v533
          %v693 = vunpack.c.h.b16 %v533
          %v694 = vunpack.c.l.b16 %v534
          %v695 = vunpack.c.h.b16 %v534
          %v696 = vunpack.c.l.b16 %v535
          %v697 = vunpack.c.h.b16 %v535
          %v698 = vunpack.c.l.b16 %v536
          %v699 = vunpack.c.h.b16 %v536
          %v700 = vunpack.c.l.b16 %v537
          %v701 = vunpack.c.h.b16 %v537
          %v702 = vpack.c.b16 %v678, %v678
          %v703 = vpack.c.b16 %v679, %v679
          %v704 = vpack.c.b16 %v680, %v680
          %v705 = vpack.c.b16 %v681, %v681
          %v706 = vpack.c.b16 %v682, %v682
          %v707 = vpack.c.b16 %v683, %v683
          %v708 = vpack.c.b16 %v684, %v684
          %v709 = vpack.c.b16 %v685, %v685
          %v710 = vpack.c.b16 %v686, %v686
          %v711 = vpack.c.b16 %v687, %v687
          %v712 = vpack.c.b16 %v688, %v688
          %v713 = vpack.c.b16 %v689, %v689
          %v714 = vpack.c.b16 %v690, %v690
          %v715 = vpack.c.b16 %v691, %v691
          %v716 = vpack.c.b16 %v692, %v692
          %v717 = vpack.c.b16 %v693, %v693
          %v718 = vpack.c.b16 %v694, %v694
          %v719 = vpack.c.b16 %v695, %v695
          %v720 = vpack.c.b16 %v696, %v696
          %v721 = vpack.c.b16 %v697, %v697
          %v722 = vpack.c.b16 %v698, %v698
          %v723 = vpack.c.b16 %v699, %v699
          %v724 = vpack.c.b16 %v700, %v700
          %v725 = vpack.c.b16 %v701, %v701
          %vm726 = vcmask 64512
          %v728 = vsel %vm726, %v525, 0
          %vm730 = vcmask 1043456
          %v732 = vsel %vm730, %v702, 0
          %v735 = vsel %vm730, %v703, 0
          %v738 = vsel %vm730, %v704, 0
          %v741 = vsel %vm730, %v705, 0
          %v744 = vsel %vm730, %v706, 0
          %v747 = vsel %vm730, %v707, 0
          %v750 = vsel %vm730, %v708, 0
          %v753 = vsel %vm730, %v709, 0
          %v756 = vsel %vm730, %v710, 0
          %v759 = vsel %vm730, %v711, 0
          %v762 = vsel %vm730, %v712, 0
          %v765 = vsel %vm730, %v713, 0
          %v768 = vsel %vm730, %v714, 0
          %v771 = vsel %vm730, %v715, 0
          %v774 = vsel %vm730, %v716, 0
          %v777 = vsel %vm730, %v717, 0
          %v780 = vsel %vm730, %v718, 0
          %v783 = vsel %vm730, %v719, 0
          %v786 = vsel %vm730, %v720, 0
          %v789 = vsel %vm730, %v721, 0
          %v792 = vsel %vm730, %v722, 0
          %v795 = vsel %vm730, %v723, 0
          %v798 = vsel %vm730, %v724, 0
          %v801 = vsel %vm730, %v725, 0
          %803 = vmatprep.subr.bf16.mxu0 %v735
          %804 = vmatpush1.bf16.msra.mxu0 %v732
          %805 = vmatprep.subr.bf16.mxu0 0
          %806 = vmatpush1.bf16.msra.mxu0 0
          %807 = vmatprep.subr.bf16.mxu0 0
          %808 = vmatpush1.bf16.msra.mxu0 0
          %809 = vmatprep.subr.bf16.mxu0 0
          %810 = vmatpush1.bf16.msra.mxu0 0
          %811 = vmatprep.subr.bf16.mxu0 0
          %812 = vmatpush1.bf16.msra.mxu0 0
          %813 = vmatprep.subr.bf16.mxu0 0
          %814 = vmatpush1.bf16.msra.mxu0 0
          %815 = vmatprep.subr.bf16.mxu0 0
          %816 = vmatpush1.bf16.msra.mxu0 0
          %817 = vmatprep.subr.bf16.mxu0 0
          %818 = vmatpush1.bf16.msra.mxu0 0
          %819 = vmatprep.subr.bf16.mxu0 0
          %820 = vmatpush1.bf16.msra.mxu0 0
          %821 = vmatprep.subr.bf16.mxu0 0
          %822 = vmatpush1.bf16.msra.mxu0 0
          %823 = vmatprep.subr.bf16.mxu0 0
          %824 = vmatpush1.bf16.msra.mxu0 0
          %825 = vmatprep.subr.bf16.mxu0 0
          %826 = vmatpush1.bf16.msra.mxu0 0
          %827 = vmatprep.subr.bf16.mxu0 0
          %828 = vmatpush1.bf16.msra.mxu0 0
          %829 = vmatprep.subr.bf16.mxu0 0
          %830 = vmatpush1.bf16.msra.mxu0 0
          %831 = vmatprep.subr.bf16.mxu0 0
          %832 = vmatpush1.bf16.msra.mxu0 0
          %833 = vmatprep.subr.bf16.mxu0 0
          %834 = vmatpush1.bf16.msra.mxu0 0
          %835 = vmatprep.mubr.bf16.mxu0 0
          %836 = vmatmul.mubr.bf16.gmra.mrb[0].mxu0 %v728
          %v837 = vpop.f32.mrb[0].mxu0
          %v838 = vadd.f32 %v549, %v837
          %v839 = vpop.f32.mrb[0].mxu0
          %v840 = vadd.f32 %v553, %v839
          %v841 = vpop.f32.mrb[0].mxu0
          %v842 = vpop.f32.mrb[0].mxu0
          %843 = vdwg.mxu0
          %844 = vmatprep.subr.bf16.mxu0 %v741
          %845 = vmatpush1.bf16.msra.mxu0 %v738
          %846 = vmatprep.subr.bf16.mxu0 0
          %847 = vmatpush1.bf16.msra.mxu0 0
          %848 = vmatprep.subr.bf16.mxu0 0
          %849 = vmatpush1.bf16.msra.mxu0 0
          %850 = vmatprep.subr.bf16.mxu0 0
          %851 = vmatpush1.bf16.msra.mxu0 0
          %852 = vmatprep.subr.bf16.mxu0 0
          %853 = vmatpush1.bf16.msra.mxu0 0
          %854 = vmatprep.subr.bf16.mxu0 0
          %855 = vmatpush1.bf16.msra.mxu0 0
          %856 = vmatprep.subr.bf16.mxu0 0
          %857 = vmatpush1.bf16.msra.mxu0 0
          %858 = vmatprep.subr.bf16.mxu0 0
          %859 = vmatpush1.bf16.msra.mxu0 0
          %860 = vmatprep.subr.bf16.mxu0 0
          %861 = vmatpush1.bf16.msra.mxu0 0
          %862 = vmatprep.subr.bf16.mxu0 0
          %863 = vmatpush1.bf16.msra.mxu0 0
          %864 = vmatprep.subr.bf16.mxu0 0
          %865 = vmatpush1.bf16.msra.mxu0 0
          %866 = vmatprep.subr.bf16.mxu0 0
          %867 = vmatpush1.bf16.msra.mxu0 0
          %868 = vmatprep.subr.bf16.mxu0 0
          %869 = vmatpush1.bf16.msra.mxu0 0
          %870 = vmatprep.subr.bf16.mxu0 0
          %871 = vmatpush1.bf16.msra.mxu0 0
          %872 = vmatprep.subr.bf16.mxu0 0
          %873 = vmatpush1.bf16.msra.mxu0 0
          %874 = vmatprep.subr.bf16.mxu0 0
          %875 = vmatpush1.bf16.msra.mxu0 0
          %876 = vmatprep.mubr.bf16.mxu0 0
          %877 = vmatmul.mubr.bf16.gmra.mrb[0].mxu0 %v728
          %v878 = vpop.f32.mrb[0].mxu0
          %v879 = vadd.f32 %v557, %v878
          %v880 = vpop.f32.mrb[0].mxu0
          %v881 = vadd.f32 %v561, %v880
          %v882 = vpop.f32.mrb[0].mxu0
          %v883 = vpop.f32.mrb[0].mxu0
          %884 = vdwg.mxu0
          %885 = vmatprep.subr.bf16.mxu0 %v747
          %886 = vmatpush1.bf16.msra.mxu0 %v744
          %887 = vmatprep.subr.bf16.mxu0 0
          %888 = vmatpush1.bf16.msra.mxu0 0
          %889 = vmatprep.subr.bf16.mxu0 0
          %890 = vmatpush1.bf16.msra.mxu0 0
          %891 = vmatprep.subr.bf16.mxu0 0
          %892 = vmatpush1.bf16.msra.mxu0 0
          %893 = vmatprep.subr.bf16.mxu0 0
          %894 = vmatpush1.bf16.msra.mxu0 0
          %895 = vmatprep.subr.bf16.mxu0 0
          %896 = vmatpush1.bf16.msra.mxu0 0
          %897 = vmatprep.subr.bf16.mxu0 0
          %898 = vmatpush1.bf16.msra.mxu0 0
          %899 = vmatprep.subr.bf16.mxu0 0
          %900 = vmatpush1.bf16.msra.mxu0 0
          %901 = vmatprep.subr.bf16.mxu0 0
          %902 = vmatpush1.bf16.msra.mxu0 0
          %903 = vmatprep.subr.bf16.mxu0 0
          %904 = vmatpush1.bf16.msra.mxu0 0
          %905 = vmatprep.subr.bf16.mxu0 0
          %906 = vmatpush1.bf16.msra.mxu0 0
          %907 = vmatprep.subr.bf16.mxu0 0
          %908 = vmatpush1.bf16.msra.mxu0 0
          %909 = vmatprep.subr.bf16.mxu0 0
          %910 = vmatpush1.bf16.msra.mxu0 0
          %911 = vmatprep.subr.bf16.mxu0 0
          %912 = vmatpush1.bf16.msra.mxu0 0
          %913 = vmatprep.subr.bf16.mxu0 0
          %914 = vmatpush1.bf16.msra.mxu0 0
          %915 = vmatprep.subr.bf16.mxu0 0
          %916 = vmatpush1.bf16.msra.mxu0 0
          %917 = vmatprep.mubr.bf16.mxu0 0
          %918 = vmatmul.mubr.bf16.gmra.mrb[0].mxu0 %v728
          %v919 = vpop.f32.mrb[0].mxu0
          %v920 = vadd.f32 %v565, %v919
          %v921 = vpop.f32.mrb[0].mxu0
          %v922 = vadd.f32 %v569, %v921
          %v923 = vpop.f32.mrb[0].mxu0
          %v924 = vpop.f32.mrb[0].mxu0
          %925 = vdwg.mxu0
          %926 = vmatprep.subr.bf16.mxu0 %v753
          %927 = vmatpush1.bf16.msra.mxu0 %v750
          %928 = vmatprep.subr.bf16.mxu0 0
          %929 = vmatpush1.bf16.msra.mxu0 0
          %930 = vmatprep.subr.bf16.mxu0 0
          %931 = vmatpush1.bf16.msra.mxu0 0
          %932 = vmatprep.subr.bf16.mxu0 0
          %933 = vmatpush1.bf16.msra.mxu0 0
          %934 = vmatprep.subr.bf16.mxu0 0
          %935 = vmatpush1.bf16.msra.mxu0 0
          %936 = vmatprep.subr.bf16.mxu0 0
          %937 = vmatpush1.bf16.msra.mxu0 0
          %938 = vmatprep.subr.bf16.mxu0 0
          %939 = vmatpush1.bf16.msra.mxu0 0
          %940 = vmatprep.subr.bf16.mxu0 0
          %941 = vmatpush1.bf16.msra.mxu0 0
          %942 = vmatprep.subr.bf16.mxu0 0
          %943 = vmatpush1.bf16.msra.mxu0 0
          %944 = vmatprep.subr.bf16.mxu0 0
          %945 = vmatpush1.bf16.msra.mxu0 0
          %946 = vmatprep.subr.bf16.mxu0 0
          %947 = vmatpush1.bf16.msra.mxu0 0
          %948 = vmatprep.subr.bf16.mxu0 0
          %949 = vmatpush1.bf16.msra.mxu0 0
          %950 = vmatprep.subr.bf16.mxu0 0
          %951 = vmatpush1.bf16.msra.mxu0 0
          %952 = vmatprep.subr.bf16.mxu0 0
          %953 = vmatpush1.bf16.msra.mxu0 0
          %954 = vmatprep.subr.bf16.mxu0 0
          %955 = vmatpush1.bf16.msra.mxu0 0
          %956 = vmatprep.subr.bf16.mxu0 0
          %957 = vmatpush1.bf16.msra.mxu0 0
          %958 = vmatprep.mubr.bf16.mxu0 0
          %959 = vmatmul.mubr.bf16.gmra.mrb[0].mxu0 %v728
          %v960 = vpop.f32.mrb[0].mxu0
          %v961 = vadd.f32 %v573, %v960
          %v962 = vpop.f32.mrb[0].mxu0
          %v963 = vadd.f32 %v577, %v962
          %v964 = vpop.f32.mrb[0].mxu0
          %v965 = vpop.f32.mrb[0].mxu0
          %966 = vdwg.mxu0
          %967 = vmatprep.subr.bf16.mxu0 %v759
          %968 = vmatpush1.bf16.msra.mxu0 %v756
          %969 = vmatprep.subr.bf16.mxu0 0
          %970 = vmatpush1.bf16.msra.mxu0 0
          %971 = vmatprep.subr.bf16.mxu0 0
          %972 = vmatpush1.bf16.msra.mxu0 0
          %973 = vmatprep.subr.bf16.mxu0 0
          %974 = vmatpush1.bf16.msra.mxu0 0
          %975 = vmatprep.subr.bf16.mxu0 0
          %976 = vmatpush1.bf16.msra.mxu0 0
          %977 = vmatprep.subr.bf16.mxu0 0
          %978 = vmatpush1.bf16.msra.mxu0 0
          %979 = vmatprep.subr.bf16.mxu0 0
          %980 = vmatpush1.bf16.msra.mxu0 0
          %981 = vmatprep.subr.bf16.mxu0 0
          %982 = vmatpush1.bf16.msra.mxu0 0
          %983 = vmatprep.subr.bf16.mxu0 0
          %984 = vmatpush1.bf16.msra.mxu0 0
          %985 = vmatprep.subr.bf16.mxu0 0
          %986 = vmatpush1.bf16.msra.mxu0 0
          %987 = vmatprep.subr.bf16.mxu0 0
          %988 = vmatpush1.bf16.msra.mxu0 0
          %989 = vmatprep.subr.bf16.mxu0 0
          %990 = vmatpush1.bf16.msra.mxu0 0
          %991 = vmatprep.subr.bf16.mxu0 0
          %992 = vmatpush1.bf16.msra.mxu0 0
          %993 = vmatprep.subr.bf16.mxu0 0
          %994 = vmatpush1.bf16.msra.mxu0 0
          %995 = vmatprep.subr.bf16.mxu0 0
          %996 = vmatpush1.bf16.msra.mxu0 0
          %997 = vmatprep.subr.bf16.mxu0 0
          %998 = vmatpush1.bf16.msra.mxu0 0
          %999 = vmatprep.mubr.bf16.mxu0 0
          %1000 = vmatmul.mubr.bf16.gmra.mrb[0].mxu0 %v728
          %v1001 = vpop.f32.mrb[0].mxu0
          %v1002 = vadd.f32 %v581, %v1001
          %v1003 = vpop.f32.mrb[0].mxu0
          %v1004 = vadd.f32 %v585, %v1003
          %v1005 = vpop.f32.mrb[0].mxu0
          %v1006 = vpop.f32.mrb[0].mxu0
          %1007 = vdwg.mxu0
          %1008 = vmatprep.subr.bf16.mxu0 %v765
          %1009 = vmatpush1.bf16.msra.mxu0 %v762
          %1010 = vmatprep.subr.bf16.mxu0 0
          %1011 = vmatpush1.bf16.msra.mxu0 0
          %1012 = vmatprep.subr.bf16.mxu0 0
          %1013 = vmatpush1.bf16.msra.mxu0 0
          %1014 = vmatprep.subr.bf16.mxu0 0
          %1015 = vmatpush1.bf16.msra.mxu0 0
          %1016 = vmatprep.subr.bf16.mxu0 0
          %1017 = vmatpush1.bf16.msra.mxu0 0
          %1018 = vmatprep.subr.bf16.mxu0 0
          %1019 = vmatpush1.bf16.msra.mxu0 0
          %1020 = vmatprep.subr.bf16.mxu0 0
          %1021 = vmatpush1.bf16.msra.mxu0 0
          %1022 = vmatprep.subr.bf16.mxu0 0
          %1023 = vmatpush1.bf16.msra.mxu0 0
          %1024 = vmatprep.subr.bf16.mxu0 0
          %1025 = vmatpush1.bf16.msra.mxu0 0
          %1026 = vmatprep.subr.bf16.mxu0 0
          %1027 = vmatpush1.bf16.msra.mxu0 0
          %1028 = vmatprep.subr.bf16.mxu0 0
          %1029 = vmatpush1.bf16.msra.mxu0 0
          %1030 = vmatprep.subr.bf16.mxu0 0
          %1031 = vmatpush1.bf16.msra.mxu0 0
          %1032 = vmatprep.subr.bf16.mxu0 0
          %1033 = vmatpush1.bf16.msra.mxu0 0
          %1034 = vmatprep.subr.bf16.mxu0 0
          %1035 = vmatpush1.bf16.msra.mxu0 0
          %1036 = vmatprep.subr.bf16.mxu0 0
          %1037 = vmatpush1.bf16.msra.mxu0 0
          %1038 = vmatprep.subr.bf16.mxu0 0
          %1039 = vmatpush1.bf16.msra.mxu0 0
          %1040 = vmatprep.mubr.bf16.mxu0 0
          %1041 = vmatmul.mubr.bf16.gmra.mrb[0].mxu0 %v728
          %v1042 = vpop.f32.mrb[0].mxu0
          %v1043 = vadd.f32 %v589, %v1042
          %v1044 = vpop.f32.mrb[0].mxu0
          %v1045 = vadd.f32 %v593, %v1044
          %v1046 = vpop.f32.mrb[0].mxu0
          %v1047 = vpop.f32.mrb[0].mxu0
          %1048 = vdwg.mxu0
          %1049 = vmatprep.subr.bf16.mxu0 %v771
          %1050 = vmatpush1.bf16.msra.mxu0 %v768
          %1051 = vmatprep.subr.bf16.mxu0 0
          %1052 = vmatpush1.bf16.msra.mxu0 0
          %1053 = vmatprep.subr.bf16.mxu0 0
          %1054 = vmatpush1.bf16.msra.mxu0 0
          %1055 = vmatprep.subr.bf16.mxu0 0
          %1056 = vmatpush1.bf16.msra.mxu0 0
          %1057 = vmatprep.subr.bf16.mxu0 0
          %1058 = vmatpush1.bf16.msra.mxu0 0
          %1059 = vmatprep.subr.bf16.mxu0 0
          %1060 = vmatpush1.bf16.msra.mxu0 0
          %1061 = vmatprep.subr.bf16.mxu0 0
          %1062 = vmatpush1.bf16.msra.mxu0 0
          %1063 = vmatprep.subr.bf16.mxu0 0
          %1064 = vmatpush1.bf16.msra.mxu0 0
          %1065 = vmatprep.subr.bf16.mxu0 0
          %1066 = vmatpush1.bf16.msra.mxu0 0
          %1067 = vmatprep.subr.bf16.mxu0 0
          %1068 = vmatpush1.bf16.msra.mxu0 0
          %1069 = vmatprep.subr.bf16.mxu0 0
          %1070 = vmatpush1.bf16.msra.mxu0 0
          %1071 = vmatprep.subr.bf16.mxu0 0
          %1072 = vmatpush1.bf16.msra.mxu0 0
          %1073 = vmatprep.subr.bf16.mxu0 0
          %1074 = vmatpush1.bf16.msra.mxu0 0
          %1075 = vmatprep.subr.bf16.mxu0 0
          %1076 = vmatpush1.bf16.msra.mxu0 0
          %1077 = vmatprep.subr.bf16.mxu0 0
          %1078 = vmatpush1.bf16.msra.mxu0 0
          %1079 = vmatprep.subr.bf16.mxu0 0
          %1080 = vmatpush1.bf16.msra.mxu0 0
          %1081 = vmatprep.mubr.bf16.mxu0 0
          %1082 = vmatmul.mubr.bf16.gmra.mrb[0].mxu0 %v728
          %v1083 = vpop.f32.mrb[0].mxu0
          %v1084 = vadd.f32 %v597, %v1083
          %v1085 = vpop.f32.mrb[0].mxu0
          %v1086 = vadd.f32 %v601, %v1085
          %v1087 = vpop.f32.mrb[0].mxu0
          %v1088 = vpop.f32.mrb[0].mxu0
          %1089 = vdwg.mxu0
          %1090 = vmatprep.subr.bf16.mxu0 %v777
          %1091 = vmatpush1.bf16.msra.mxu0 %v774
          %1092 = vmatprep.subr.bf16.mxu0 0
          %1093 = vmatpush1.bf16.msra.mxu0 0
          %1094 = vmatprep.subr.bf16.mxu0 0
          %1095 = vmatpush1.bf16.msra.mxu0 0
          %1096 = vmatprep.subr.bf16.mxu0 0
          %1097 = vmatpush1.bf16.msra.mxu0 0
          %1098 = vmatprep.subr.bf16.mxu0 0
          %1099 = vmatpush1.bf16.msra.mxu0 0
          %1100 = vmatprep.subr.bf16.mxu0 0
          %1101 = vmatpush1.bf16.msra.mxu0 0
          %1102 = vmatprep.subr.bf16.mxu0 0
          %1103 = vmatpush1.bf16.msra.mxu0 0
          %1104 = vmatprep.subr.bf16.mxu0 0
          %1105 = vmatpush1.bf16.msra.mxu0 0
          %1106 = vmatprep.subr.bf16.mxu0 0
          %1107 = vmatpush1.bf16.msra.mxu0 0
          %1108 = vmatprep.subr.bf16.mxu0 0
          %1109 = vmatpush1.bf16.msra.mxu0 0
          %1110 = vmatprep.subr.bf16.mxu0 0
          %1111 = vmatpush1.bf16.msra.mxu0 0
          %1112 = vmatprep.subr.bf16.mxu0 0
          %1113 = vmatpush1.bf16.msra.mxu0 0
          %1114 = vmatprep.subr.bf16.mxu0 0
          %1115 = vmatpush1.bf16.msra.mxu0 0
          %1116 = vmatprep.subr.bf16.mxu0 0
          %1117 = vmatpush1.bf16.msra.mxu0 0
          %1118 = vmatprep.subr.bf16.mxu0 0
          %1119 = vmatpush1.bf16.msra.mxu0 0
          %1120 = vmatprep.subr.bf16.mxu0 0
          %1121 = vmatpush1.bf16.msra.mxu0 0
          %1122 = vmatprep.mubr.bf16.mxu0 0
          %1123 = vmatmul.mubr.bf16.gmra.mrb[0].mxu0 %v728
          %v1124 = vpop.f32.mrb[0].mxu0
          %v1125 = vadd.f32 %v605, %v1124
          %v1126 = vpop.f32.mrb[0].mxu0
          %v1127 = vadd.f32 %v609, %v1126
          %v1128 = vpop.f32.mrb[0].mxu0
          %v1129 = vpop.f32.mrb[0].mxu0
          %1130 = vdwg.mxu0
          %1131 = vmatprep.subr.bf16.mxu0 %v783
          %1132 = vmatpush1.bf16.msra.mxu0 %v780
          %1133 = vmatprep.subr.bf16.mxu0 0
          %1134 = vmatpush1.bf16.msra.mxu0 0
          %1135 = vmatprep.subr.bf16.mxu0 0
          %1136 = vmatpush1.bf16.msra.mxu0 0
          %1137 = vmatprep.subr.bf16.mxu0 0
          %1138 = vmatpush1.bf16.msra.mxu0 0
          %1139 = vmatprep.subr.bf16.mxu0 0
          %1140 = vmatpush1.bf16.msra.mxu0 0
          %1141 = vmatprep.subr.bf16.mxu0 0
          %1142 = vmatpush1.bf16.msra.mxu0 0
          %1143 = vmatprep.subr.bf16.mxu0 0
          %1144 = vmatpush1.bf16.msra.mxu0 0
          %1145 = vmatprep.subr.bf16.mxu0 0
          %1146 = vmatpush1.bf16.msra.mxu0 0
          %1147 = vmatprep.subr.bf16.mxu0 0
          %1148 = vmatpush1.bf16.msra.mxu0 0
          %1149 = vmatprep.subr.bf16.mxu0 0
          %1150 = vmatpush1.bf16.msra.mxu0 0
          %1151 = vmatprep.subr.bf16.mxu0 0
          %1152 = vmatpush1.bf16.msra.mxu0 0
          %1153 = vmatprep.subr.bf16.mxu0 0
          %1154 = vmatpush1.bf16.msra.mxu0 0
          %1155 = vmatprep.subr.bf16.mxu0 0
          %1156 = vmatpush1.bf16.msra.mxu0 0
          %1157 = vmatprep.subr.bf16.mxu0 0
          %1158 = vmatpush1.bf16.msra.mxu0 0
          %1159 = vmatprep.subr.bf16.mxu0 0
          %1160 = vmatpush1.bf16.msra.mxu0 0
          %1161 = vmatprep.subr.bf16.mxu0 0
          %1162 = vmatpush1.bf16.msra.mxu0 0
          %1163 = vmatprep.mubr.bf16.mxu0 0
          %1164 = vmatmul.mubr.bf16.gmra.mrb[0].mxu0 %v728
          %v1165 = vpop.f32.mrb[0].mxu0
          %v1166 = vadd.f32 %v613, %v1165
          %v1167 = vpop.f32.mrb[0].mxu0
          %v1168 = vadd.f32 %v617, %v1167
          %v1169 = vpop.f32.mrb[0].mxu0
          %v1170 = vpop.f32.mrb[0].mxu0
          %1171 = vdwg.mxu0
          %1172 = vmatprep.subr.bf16.mxu0 %v789
          %1173 = vmatpush1.bf16.msra.mxu0 %v786
          %1174 = vmatprep.subr.bf16.mxu0 0
          %1175 = vmatpush1.bf16.msra.mxu0 0
          %1176 = vmatprep.subr.bf16.mxu0 0
          %1177 = vmatpush1.bf16.msra.mxu0 0
          %1178 = vmatprep.subr.bf16.mxu0 0
          %1179 = vmatpush1.bf16.msra.mxu0 0
          %1180 = vmatprep.subr.bf16.mxu0 0
          %1181 = vmatpush1.bf16.msra.mxu0 0
          %1182 = vmatprep.subr.bf16.mxu0 0
          %1183 = vmatpush1.bf16.msra.mxu0 0
          %1184 = vmatprep.subr.bf16.mxu0 0
          %1185 = vmatpush1.bf16.msra.mxu0 0
          %1186 = vmatprep.subr.bf16.mxu0 0
          %1187 = vmatpush1.bf16.msra.mxu0 0
          %1188 = vmatprep.subr.bf16.mxu0 0
          %1189 = vmatpush1.bf16.msra.mxu0 0
          %1190 = vmatprep.subr.bf16.mxu0 0
          %1191 = vmatpush1.bf16.msra.mxu0 0
          %1192 = vmatprep.subr.bf16.mxu0 0
          %1193 = vmatpush1.bf16.msra.mxu0 0
          %1194 = vmatprep.subr.bf16.mxu0 0
          %1195 = vmatpush1.bf16.msra.mxu0 0
          %1196 = vmatprep.subr.bf16.mxu0 0
          %1197 = vmatpush1.bf16.msra.mxu0 0
          %1198 = vmatprep.subr.bf16.mxu0 0
          %1199 = vmatpush1.bf16.msra.mxu0 0
          %1200 = vmatprep.subr.bf16.mxu0 0
          %1201 = vmatpush1.bf16.msra.mxu0 0
          %1202 = vmatprep.subr.bf16.mxu0 0
          %1203 = vmatpush1.bf16.msra.mxu0 0
          %1204 = vmatprep.mubr.bf16.mxu0 0
          %1205 = vmatmul.mubr.bf16.gmra.mrb[0].mxu0 %v728
          %v1206 = vpop.f32.mrb[0].mxu0
          %v1207 = vadd.f32 %v621, %v1206
          %v1208 = vpop.f32.mrb[0].mxu0
          %v1209 = vadd.f32 %v625, %v1208
          %v1210 = vpop.f32.mrb[0].mxu0
          %v1211 = vpop.f32.mrb[0].mxu0
          %1212 = vdwg.mxu0
          %1213 = vmatprep.subr.bf16.mxu0 %v795
          %1214 = vmatpush1.bf16.msra.mxu0 %v792
          %1215 = vmatprep.subr.bf16.mxu0 0
          %1216 = vmatpush1.bf16.msra.mxu0 0
          %1217 = vmatprep.subr.bf16.mxu0 0
          %1218 = vmatpush1.bf16.msra.mxu0 0
          %1219 = vmatprep.subr.bf16.mxu0 0
          %1220 = vmatpush1.bf16.msra.mxu0 0
          %1221 = vmatprep.subr.bf16.mxu0 0
          %1222 = vmatpush1.bf16.msra.mxu0 0
          %1223 = vmatprep.subr.bf16.mxu0 0
          %1224 = vmatpush1.bf16.msra.mxu0 0
          %1225 = vmatprep.subr.bf16.mxu0 0
          %1226 = vmatpush1.bf16.msra.mxu0 0
          %1227 = vmatprep.subr.bf16.mxu0 0
          %1228 = vmatpush1.bf16.msra.mxu0 0
          %1229 = vmatprep.subr.bf16.mxu0 0
          %1230 = vmatpush1.bf16.msra.mxu0 0
          %1231 = vmatprep.subr.bf16.mxu0 0
          %1232 = vmatpush1.bf16.msra.mxu0 0
          %1233 = vmatprep.subr.bf16.mxu0 0
          %1234 = vmatpush1.bf16.msra.mxu0 0
          %1235 = vmatprep.subr.bf16.mxu0 0
          %1236 = vmatpush1.bf16.msra.mxu0 0
          %1237 = vmatprep.subr.bf16.mxu0 0
          %1238 = vmatpush1.bf16.msra.mxu0 0
          %1239 = vmatprep.subr.bf16.mxu0 0
          %1240 = vmatpush1.bf16.msra.mxu0 0
          %1241 = vmatprep.subr.bf16.mxu0 0
          %1242 = vmatpush1.bf16.msra.mxu0 0
          %1243 = vmatprep.subr.bf16.mxu0 0
          %1244 = vmatpush1.bf16.msra.mxu0 0
          %1245 = vmatprep.mubr.bf16.mxu0 0
          %1246 = vmatmul.mubr.bf16.gmra.mrb[0].mxu0 %v728
          %v1247 = vpop.f32.mrb[0].mxu0
          %v1248 = vadd.f32 %v629, %v1247
          %v1249 = vpop.f32.mrb[0].mxu0
          %v1250 = vadd.f32 %v633, %v1249
          %v1251 = vpop.f32.mrb[0].mxu0
          %v1252 = vpop.f32.mrb[0].mxu0
          %1253 = vdwg.mxu0
          %1254 = vmatprep.subr.bf16.mxu0 %v801
          %1255 = vmatpush1.bf16.msra.mxu0 %v798
          %1256 = vmatprep.subr.bf16.mxu0 0
          %1257 = vmatpush1.bf16.msra.mxu0 0
          %1258 = vmatprep.subr.bf16.mxu0 0
          %1259 = vmatpush1.bf16.msra.mxu0 0
          %1260 = vmatprep.subr.bf16.mxu0 0
          %1261 = vmatpush1.bf16.msra.mxu0 0
          %1262 = vmatprep.subr.bf16.mxu0 0
          %1263 = vmatpush1.bf16.msra.mxu0 0
          %1264 = vmatprep.subr.bf16.mxu0 0
          %1265 = vmatpush1.bf16.msra.mxu0 0
          %1266 = vmatprep.subr.bf16.mxu0 0
          %1267 = vmatpush1.bf16.msra.mxu0 0
          %1268 = vmatprep.subr.bf16.mxu0 0
          %1269 = vmatpush1.bf16.msra.mxu0 0
          %1270 = vmatprep.subr.bf16.mxu0 0
          %1271 = vmatpush1.bf16.msra.mxu0 0
          %1272 = vmatprep.subr.bf16.mxu0 0
          %1273 = vmatpush1.bf16.msra.mxu0 0
          %1274 = vmatprep.subr.bf16.mxu0 0
          %1275 = vmatpush1.bf16.msra.mxu0 0
          %1276 = vmatprep.subr.bf16.mxu0 0
          %1277 = vmatpush1.bf16.msra.mxu0 0
          %1278 = vmatprep.subr.bf16.mxu0 0
          %1279 = vmatpush1.bf16.msra.mxu0 0
          %1280 = vmatprep.subr.bf16.mxu0 0
          %1281 = vmatpush1.bf16.msra.mxu0 0
          %1282 = vmatprep.subr.bf16.mxu0 0
          %1283 = vmatpush1.bf16.msra.mxu0 0
          %1284 = vmatprep.subr.bf16.mxu0 0
          %1285 = vmatpush1.bf16.msra.mxu0 0
          %1286 = vmatprep.mubr.bf16.mxu0 0
          %1287 = vmatmul.mubr.bf16.gmra.mrb[0].mxu0 %v728
          %v1288 = vpop.f32.mrb[0].mxu0
          %v1289 = vadd.f32 %v637, %v1288
          %v1290 = vpop.f32.mrb[0].mxu0
          %v1291 = vadd.f32 %v641, %v1290
          %v1292 = vpop.f32.mrb[0].mxu0
          %v1293 = vpop.f32.mrb[0].mxu0
          %1294 = vdwg.mxu0
          %v1295 = vmax.f32 %v838, 0.0
          %v1296 = vmax.f32 %v840, 0.0
          %v1297 = vmax.f32 %v879, 0.0
          %v1298 = vmax.f32 %v881, 0.0
          %v1299 = vmax.f32 %v920, 0.0
          %v1300 = vmax.f32 %v922, 0.0
          %v1301 = vmax.f32 %v961, 0.0
          %v1302 = vmax.f32 %v963, 0.0
          %v1303 = vmax.f32 %v1002, 0.0
          %v1304 = vmax.f32 %v1004, 0.0
          %v1305 = vmax.f32 %v1043, 0.0
          %v1306 = vmax.f32 %v1045, 0.0
          %v1307 = vmax.f32 %v1084, 0.0
          %v1308 = vmax.f32 %v1086, 0.0
          %v1309 = vmax.f32 %v1125, 0.0
          %v1310 = vmax.f32 %v1127, 0.0
          %v1311 = vmax.f32 %v1166, 0.0
          %v1312 = vmax.f32 %v1168, 0.0
          %v1313 = vmax.f32 %v1207, 0.0
          %v1314 = vmax.f32 %v1209, 0.0
          %v1315 = vmax.f32 %v1248, 0.0
          %v1316 = vmax.f32 %v1250, 0.0
          %v1317 = vmax.f32 %v1289, 0.0
          %v1318 = vmax.f32 %v1291, 0.0
          %s1319 = scalar_lea.vmem [#allocation9], 1
          %v1320 = vld [vmem:[%s1319] ss:$4 sm:$0xff]
          %s1321 = scalar_lea.vmem [#allocation9], 33
          %v1322 = vld [vmem:[%s1321] ss:$4 sm:$0xff]
          %s1323 = scalar_lea.vmem [#allocation9], 65
          %v1324 = vld [vmem:[%s1323] ss:$4 sm:$0xff]
          %v1328 = vlaneseq
          %v1329 = vshrl.u32 %v1328, 7
          %v1330 = vsub.s32 0, %v1329
          %v1331 = vrot.slane %v1320, %v1330
          %v1332 = vlaneseq
          %v1333 = vshrl.u32 %v1332, 7
          %v1334 = vsub.s32 1, %v1333
          %v1335 = vrot.slane %v1320, %v1334
          %v1336 = vlaneseq
          %v1337 = vshrl.u32 %v1336, 7
          %v1338 = vsub.s32 2, %v1337
          %v1339 = vrot.slane %v1320, %v1338
          %v1340 = vlaneseq
          %v1341 = vshrl.u32 %v1340, 7
          %v1342 = vsub.s32 3, %v1341
          %v1343 = vrot.slane %v1320, %v1342
          %v1344 = vlaneseq
          %v1345 = vshrl.u32 %v1344, 7
          %v1346 = vsub.s32 4, %v1345
          %v1347 = vrot.slane %v1320, %v1346
          %v1348 = vlaneseq
          %v1349 = vshrl.u32 %v1348, 7
          %v1350 = vsub.s32 5, %v1349
          %v1351 = vrot.slane %v1320, %v1350
          %v1352 = vlaneseq
          %v1353 = vshrl.u32 %v1352, 7
          %v1354 = vsub.s32 6, %v1353
          %v1355 = vrot.slane %v1320, %v1354
          %v1356 = vlaneseq
          %v1357 = vshrl.u32 %v1356, 7
          %v1358 = vsub.s32 7, %v1357
          %v1359 = vrot.slane %v1320, %v1358
          %v1360 = vlaneseq
          %v1361 = vshrl.u32 %v1360, 7
          %v1362 = vsub.s32 0, %v1361
          %v1363 = vrot.slane %v1322, %v1362
          %v1364 = vlaneseq
          %v1365 = vshrl.u32 %v1364, 7
          %v1366 = vsub.s32 1, %v1365
          %v1367 = vrot.slane %v1322, %v1366
          %v1368 = vlaneseq
          %v1369 = vshrl.u32 %v1368, 7
          %v1370 = vsub.s32 2, %v1369
          %v1371 = vrot.slane %v1322, %v1370
          %v1372 = vlaneseq
          %v1373 = vshrl.u32 %v1372, 7
          %v1374 = vsub.s32 3, %v1373
          %v1375 = vrot.slane %v1322, %v1374
          %v1376 = vlaneseq
          %v1377 = vshrl.u32 %v1376, 7
          %v1378 = vsub.s32 4, %v1377
          %v1379 = vrot.slane %v1322, %v1378
          %v1380 = vlaneseq
          %v1381 = vshrl.u32 %v1380, 7
          %v1382 = vsub.s32 5, %v1381
          %v1383 = vrot.slane %v1322, %v1382
          %v1384 = vlaneseq
          %v1385 = vshrl.u32 %v1384, 7
          %v1386 = vsub.s32 6, %v1385
          %v1387 = vrot.slane %v1322, %v1386
          %v1388 = vlaneseq
          %v1389 = vshrl.u32 %v1388, 7
          %v1390 = vsub.s32 7, %v1389
          %v1391 = vrot.slane %v1322, %v1390
          %v1392 = vlaneseq
          %v1393 = vshrl.u32 %v1392, 7
          %v1394 = vsub.s32 0, %v1393
          %v1395 = vrot.slane %v1324, %v1394
          %v1396 = vlaneseq
          %v1397 = vshrl.u32 %v1396, 7
          %v1398 = vsub.s32 1, %v1397
          %v1399 = vrot.slane %v1324, %v1398
          %v1400 = vlaneseq
          %v1401 = vshrl.u32 %v1400, 7
          %v1402 = vsub.s32 2, %v1401
          %v1403 = vrot.slane %v1324, %v1402
          %v1404 = vlaneseq
          %v1405 = vshrl.u32 %v1404, 7
          %v1406 = vsub.s32 3, %v1405
          %v1407 = vrot.slane %v1324, %v1406
          %v1408 = vlaneseq
          %v1409 = vshrl.u32 %v1408, 7
          %v1410 = vsub.s32 4, %v1409
          %v1411 = vrot.slane %v1324, %v1410
          %v1412 = vlaneseq
          %v1413 = vshrl.u32 %v1412, 7
          %v1414 = vsub.s32 5, %v1413
          %v1415 = vrot.slane %v1324, %v1414
          %v1416 = vlaneseq
          %v1417 = vshrl.u32 %v1416, 7
          %v1418 = vsub.s32 6, %v1417
          %v1419 = vrot.slane %v1324, %v1418
          %v1420 = vlaneseq
          %v1421 = vshrl.u32 %v1420, 7
          %v1422 = vsub.s32 7, %v1421
          %v1423 = vrot.slane %v1324, %v1422
          %v1448 = vmul.f32 %v1295, %v1331
          %v1449 = vmul.f32 %v1296, %v1335
          %v1450 = vmul.f32 %v1297, %v1339
          %v1451 = vmul.f32 %v1298, %v1343
          %v1452 = vmul.f32 %v1299, %v1347
          %v1453 = vmul.f32 %v1300, %v1351
          %v1454 = vmul.f32 %v1301, %v1355
          %v1455 = vmul.f32 %v1302, %v1359
          %v1456 = vmul.f32 %v1303, %v1363
          %v1457 = vmul.f32 %v1304, %v1367
          %v1458 = vmul.f32 %v1305, %v1371
          %v1459 = vmul.f32 %v1306, %v1375
          %v1460 = vmul.f32 %v1307, %v1379
          %v1461 = vmul.f32 %v1308, %v1383
          %v1462 = vmul.f32 %v1309, %v1387
          %v1463 = vmul.f32 %v1310, %v1391
          %v1464 = vmul.f32 %v1311, %v1395
          %v1465 = vmul.f32 %v1312, %v1399
          %v1466 = vmul.f32 %v1313, %v1403
          %v1467 = vmul.f32 %v1314, %v1407
          %v1468 = vmul.f32 %v1315, %v1411
          %v1469 = vmul.f32 %v1316, %v1415
          %v1470 = vmul.f32 %v1317, %v1419
          %v1471 = vmul.f32 %v1318, %v1423
          %s1472 = scalar_lea.vmem [#allocation9], 2
          %v1473 = vld [vmem:[%s1472] ss:$4 sm:$0xff]
          %s1474 = scalar_lea.vmem [#allocation9], 34
          %v1475 = vld [vmem:[%s1474] ss:$4 sm:$0xff]
          %s1476 = scalar_lea.vmem [#allocation9], 66
          %v1477 = vld [vmem:[%s1476] ss:$4 sm:$0xff]
          %v1481 = vlaneseq
          %v1482 = vshrl.u32 %v1481, 7
          %v1483 = vsub.s32 0, %v1482
          %v1484 = vrot.slane %v1473, %v1483
          %v1485 = vlaneseq
          %v1486 = vshrl.u32 %v1485, 7
          %v1487 = vsub.s32 1, %v1486
          %v1488 = vrot.slane %v1473, %v1487
          %v1489 = vlaneseq
          %v1490 = vshrl.u32 %v1489, 7
          %v1491 = vsub.s32 2, %v1490
          %v1492 = vrot.slane %v1473, %v1491
          %v1493 = vlaneseq
          %v1494 = vshrl.u32 %v1493, 7
          %v1495 = vsub.s32 3, %v1494
          %v1496 = vrot.slane %v1473, %v1495
          %v1497 = vlaneseq
          %v1498 = vshrl.u32 %v1497, 7
          %v1499 = vsub.s32 4, %v1498
          %v1500 = vrot.slane %v1473, %v1499
          %v1501 = vlaneseq
          %v1502 = vshrl.u32 %v1501, 7
          %v1503 = vsub.s32 5, %v1502
          %v1504 = vrot.slane %v1473, %v1503
          %v1505 = vlaneseq
          %v1506 = vshrl.u32 %v1505, 7
          %v1507 = vsub.s32 6, %v1506
          %v1508 = vrot.slane %v1473, %v1507
          %v1509 = vlaneseq
          %v1510 = vshrl.u32 %v1509, 7
          %v1511 = vsub.s32 7, %v1510
          %v1512 = vrot.slane %v1473, %v1511
          %v1513 = vlaneseq
          %v1514 = vshrl.u32 %v1513, 7
          %v1515 = vsub.s32 0, %v1514
          %v1516 = vrot.slane %v1475, %v1515
          %v1517 = vlaneseq
          %v1518 = vshrl.u32 %v1517, 7
          %v1519 = vsub.s32 1, %v1518
          %v1520 = vrot.slane %v1475, %v1519
          %v1521 = vlaneseq
          %v1522 = vshrl.u32 %v1521, 7
          %v1523 = vsub.s32 2, %v1522
          %v1524 = vrot.slane %v1475, %v1523
          %v1525 = vlaneseq
          %v1526 = vshrl.u32 %v1525, 7
          %v1527 = vsub.s32 3, %v1526
          %v1528 = vrot.slane %v1475, %v1527
          %v1529 = vlaneseq
          %v1530 = vshrl.u32 %v1529, 7
          %v1531 = vsub.s32 4, %v1530
          %v1532 = vrot.slane %v1475, %v1531
          %v1533 = vlaneseq
          %v1534 = vshrl.u32 %v1533, 7
          %v1535 = vsub.s32 5, %v1534
          %v1536 = vrot.slane %v1475, %v1535
          %v1537 = vlaneseq
          %v1538 = vshrl.u32 %v1537, 7
          %v1539 = vsub.s32 6, %v1538
          %v1540 = vrot.slane %v1475, %v1539
          %v1541 = vlaneseq
          %v1542 = vshrl.u32 %v1541, 7
          %v1543 = vsub.s32 7, %v1542
          %v1544 = vrot.slane %v1475, %v1543
          %v1545 = vlaneseq
          %v1546 = vshrl.u32 %v1545, 7
          %v1547 = vsub.s32 0, %v1546
          %v1548 = vrot.slane %v1477, %v1547
          %v1549 = vlaneseq
          %v1550 = vshrl.u32 %v1549, 7
          %v1551 = vsub.s32 1, %v1550
          %v1552 = vrot.slane %v1477, %v1551
          %v1553 = vlaneseq
          %v1554 = vshrl.u32 %v1553, 7
          %v1555 = vsub.s32 2, %v1554
          %v1556 = vrot.slane %v1477, %v1555
          %v1557 = vlaneseq
          %v1558 = vshrl.u32 %v1557, 7
          %v1559 = vsub.s32 3, %v1558
          %v1560 = vrot.slane %v1477, %v1559
          %v1561 = vlaneseq
          %v1562 = vshrl.u32 %v1561, 7
          %v1563 = vsub.s32 4, %v1562
          %v1564 = vrot.slane %v1477, %v1563
          %v1565 = vlaneseq
          %v1566 = vshrl.u32 %v1565, 7
          %v1567 = vsub.s32 5, %v1566
          %v1568 = vrot.slane %v1477, %v1567
          %v1569 = vlaneseq
          %v1570 = vshrl.u32 %v1569, 7
          %v1571 = vsub.s32 6, %v1570
          %v1572 = vrot.slane %v1477, %v1571
          %v1573 = vlaneseq
          %v1574 = vshrl.u32 %v1573, 7
          %v1575 = vsub.s32 7, %v1574
          %v1576 = vrot.slane %v1477, %v1575
          %v1601 = vadd.f32 %v1448, %v1484
          %v1602 = vadd.f32 %v1449, %v1488
          %v1603 = vadd.f32 %v1450, %v1492
          %v1604 = vadd.f32 %v1451, %v1496
          %v1605 = vadd.f32 %v1452, %v1500
          %v1606 = vadd.f32 %v1453, %v1504
          %v1607 = vadd.f32 %v1454, %v1508
          %v1608 = vadd.f32 %v1455, %v1512
          %v1609 = vadd.f32 %v1456, %v1516
          %v1610 = vadd.f32 %v1457, %v1520
          %v1611 = vadd.f32 %v1458, %v1524
          %v1612 = vadd.f32 %v1459, %v1528
          %v1613 = vadd.f32 %v1460, %v1532
          %v1614 = vadd.f32 %v1461, %v1536
          %v1615 = vadd.f32 %v1462, %v1540
          %v1616 = vadd.f32 %v1463, %v1544
          %v1617 = vadd.f32 %v1464, %v1548
          %v1618 = vadd.f32 %v1465, %v1552
          %v1619 = vadd.f32 %v1466, %v1556
          %v1620 = vadd.f32 %v1467, %v1560
          %v1621 = vadd.f32 %v1468, %v1564
          %v1622 = vadd.f32 %v1469, %v1568
          %v1623 = vadd.f32 %v1470, %v1572
          %v1624 = vadd.f32 %v1471, %v1576
          %v1625 = vld [vmem:[#allocation10] sm:$0xff]
          %v1626 = vld [vmem:[#allocation10 + $0x8] sm:$0xff]
          %v1627 = vld [vmem:[#allocation10 + $0x10] sm:$0xff]
          %v1628 = vld [vmem:[#allocation10 + $0x18] sm:$0xff]
          %v1629 = vld [vmem:[#allocation10 + $0x20] sm:$0xff]
          %v1630 = vld [vmem:[#allocation10 + $0x28] sm:$0xff]
          %v1631 = vld [vmem:[#allocation10 + $0x30] sm:$0xff]
          %v1632 = vld [vmem:[#allocation10 + $0x38] sm:$0xff]
          %v1633 = vld [vmem:[#allocation10 + $0x40] sm:$0xff]
          %v1634 = vld [vmem:[#allocation10 + $0x48] sm:$0xff]
          %v1635 = vld [vmem:[#allocation10 + $0x50] sm:$0xff]
          %v1636 = vld [vmem:[#allocation10 + $0x58] sm:$0xff]
          %v1637 = vld [vmem:[#allocation10 + $0x60] sm:$0xff]
          %v1638 = vld [vmem:[#allocation10 + $0x68] sm:$0xff]
          %v1639 = vld [vmem:[#allocation10 + $0x70] sm:$0xff]
          %v1640 = vld [vmem:[#allocation10 + $0x78] sm:$0xff]
          %v1641 = vld [vmem:[#allocation10 + $0x80] sm:$0xff]
          %v1642 = vld [vmem:[#allocation10 + $0x88] sm:$0xff]
          %v1643 = vld [vmem:[#allocation10 + $0x90] sm:$0xff]
          %v1644 = vld [vmem:[#allocation10 + $0x98] sm:$0xff]
          %v1645 = vld [vmem:[#allocation10 + $0xa0] sm:$0xff]
          %v1646 = vld [vmem:[#allocation10 + $0xa8] sm:$0xff]
          %v1647 = vld [vmem:[#allocation10 + $0xb0] sm:$0xff]
          %v1648 = vld [vmem:[#allocation10 + $0xb8] sm:$0xff]
          %v1649 = vmul.f32 %v1601, %v1625
          %v1650 = vmul.f32 %v1602, %v1626
          %v1651 = vmul.f32 %v1603, %v1627
          %v1652 = vmul.f32 %v1604, %v1628
          %v1653 = vmul.f32 %v1605, %v1629
          %v1654 = vmul.f32 %v1606, %v1630
          %v1655 = vmul.f32 %v1607, %v1631
          %v1656 = vmul.f32 %v1608, %v1632
          %v1657 = vmul.f32 %v1609, %v1633
          %v1658 = vmul.f32 %v1610, %v1634
          %v1659 = vmul.f32 %v1611, %v1635
          %v1660 = vmul.f32 %v1612, %v1636
          %v1661 = vmul.f32 %v1613, %v1637
          %v1662 = vmul.f32 %v1614, %v1638
          %v1663 = vmul.f32 %v1615, %v1639
          %v1664 = vmul.f32 %v1616, %v1640
          %v1665 = vmul.f32 %v1617, %v1641
          %v1666 = vmul.f32 %v1618, %v1642
          %v1667 = vmul.f32 %v1619, %v1643
          %v1668 = vmul.f32 %v1620, %v1644
          %v1669 = vmul.f32 %v1621, %v1645
          %v1670 = vmul.f32 %v1622, %v1646
          %v1671 = vmul.f32 %v1623, %v1647
          %v1672 = vmul.f32 %v1624, %v1648
          %1673 = vst [vmem:[#allocation2] sm:$0xff] %v1649
          %1674 = vst [vmem:[#allocation2 + $0x8] sm:$0xff] %v1650
          %1675 = vst [vmem:[#allocation2 + $0x10] sm:$0xff] %v1651
          %1676 = vst [vmem:[#allocation2 + $0x18] sm:$0xff] %v1652
          %1677 = vst [vmem:[#allocation2 + $0x20] sm:$0xff] %v1653
          %1678 = vst [vmem:[#allocation2 + $0x28] sm:$0xff] %v1654
          %1679 = vst [vmem:[#allocation2 + $0x30] sm:$0xff] %v1655
          %1680 = vst [vmem:[#allocation2 + $0x38] sm:$0xff] %v1656
          %s1681 = scalar_lea.vmem [#allocation2], 64
          %1682 = vst [vmem:[%s1681] sm:$0xff] %v1657
          %1683 = vst [vmem:[%s1681 + $0x8] sm:$0xff] %v1658
          %1684 = vst [vmem:[%s1681 + $0x10] sm:$0xff] %v1659
          %1685 = vst [vmem:[%s1681 + $0x18] sm:$0xff] %v1660
          %1686 = vst [vmem:[%s1681 + $0x20] sm:$0xff] %v1661
          %1687 = vst [vmem:[%s1681 + $0x28] sm:$0xff] %v1662
          %1688 = vst [vmem:[%s1681 + $0x30] sm:$0xff] %v1663
          %1689 = vst [vmem:[%s1681 + $0x38] sm:$0xff] %v1664
          %s1690 = scalar_lea.vmem [#allocation2], 128
          %1691 = vst [vmem:[%s1690] sm:$0xff] %v1665
          %1692 = vst [vmem:[%s1690 + $0x8] sm:$0xff] %v1666
          %1693 = vst [vmem:[%s1690 + $0x10] sm:$0xff] %v1667
          %1694 = vst [vmem:[%s1690 + $0x18] sm:$0xff] %v1668
          %1695 = vst [vmem:[%s1690 + $0x20] sm:$0xff] %v1669
          %1696 = vst [vmem:[%s1690 + $0x28] sm:$0xff] %v1670
          %1697 = vst [vmem:[%s1690 + $0x30] sm:$0xff] %v1671
          %1698 = vst [vmem:[%s1690 + $0x38] sm:$0xff] %v1672
          %vm1699 = vcmask 7168
          %1700 = vst.msk [vmem:[#allocation3] sm:$0xff] %vm1699, 0.0
        $region88: #{tpu_custom_call.1} parent=55 // pred_fallthru
          _
        %p1701 = scmp.lt.s32.totalorder %s29, 0
        %s1702 = ssub.s32 0, %s29
        %s1703 = scalar_select %p1701, %s1702, %s29
        %s1704 = sand.u32 %s1703, 1
        %s1705 = ssub.s32 0, %s1704
        %s1706 = scalar_select %p1701, %s1705, %s1704
        %p1707 = scmp.ne.s32.totalorder %s1706, 0
        %p1708 = scmp.lt.s32.totalorder %s1706, 0
        %p1709 = pnand %p1708, %p1707
        %p1710 = pneg %p1709
        %s1711 = sadd.s32 %s1706, 2
        %s1712 = scalar_select %p1710, %s1711, %s1706
        %s1713 = sadd.s32 %s29, 1
        %p1714 = scmp.lt.s32.totalorder %s1713, 0
        %s1715 = ssub.s32 0, %s1713
        %s1716 = scalar_select %p1714, %s1715, %s1713
        %s1717 = sand.u32 %s1716, 1
        %s1718 = ssub.s32 0, %s1717
        %s1719 = scalar_select %p1714, %s1718, %s1717
        %p1720 = scmp.ne.s32.totalorder %s1719, 0
        %p1721 = scmp.lt.s32.totalorder %s1719, 0
        %p1722 = pnand %p1721, %p1720
        %p1723 = pneg %p1722
        %s1724 = sadd.s32 %s1719, 2
        %s1725 = scalar_select %p1723, %s1724, %s1719
        %s1726 = smul.u32 %s1712, 24
        %s1727 = smul.addr %s1726, 8
        %s1728 = scalar_lea.vmem [#allocation2], %s1727
        %v1729 = vld [vmem:[%s1728] sm:$0xff]
        %v1730 = vld [vmem:[%s1728 + $0x8] sm:$0xff]
        %v1731 = vld [vmem:[%s1728 + $0x10] sm:$0xff]
        %v1732 = vld [vmem:[%s1728 + $0x18] sm:$0xff]
        %v1733 = vld [vmem:[%s1728 + $0x20] sm:$0xff]
        %v1734 = vld [vmem:[%s1728 + $0x28] sm:$0xff]
        %v1735 = vld [vmem:[%s1728 + $0x30] sm:$0xff]
        %v1736 = vld [vmem:[%s1728 + $0x38] sm:$0xff]
        %v1737 = vpack.c.bf16 %v1729, %v1729
        %v1738 = vpack.c.bf16 %v1730, %v1730
        %v1739 = vpack.c.bf16 %v1731, %v1731
        %v1740 = vpack.c.bf16 %v1732, %v1732
        %v1741 = vpack.c.bf16 %v1733, %v1733
        %v1742 = vpack.c.bf16 %v1734, %v1734
        %v1743 = vpack.c.bf16 %v1735, %v1735
        %v1744 = vpack.c.bf16 %v1736, %v1736
        %v1745 = vld [vmem:[%s437] sm:$0xff]
        %v1746 = vld [vmem:[%s437 + $0x8] sm:$0xff]
        %v1747 = vld [vmem:[%s437 + $0x10] sm:$0xff]
        %v1748 = vld [vmem:[%s437 + $0x18] sm:$0xff]
        %v1749 = vld [vmem:[%s437 + $0x20] sm:$0xff]
        %v1750 = vld [vmem:[%s437 + $0x28] sm:$0xff]
        %v1751 = vld [vmem:[%s437 + $0x30] sm:$0xff]
        %v1752 = vld [vmem:[%s437 + $0x38] sm:$0xff]
        %v1753 = vld [vmem:[%s437 + $0x40] sm:$0xff]
        %v1754 = vld [vmem:[%s437 + $0x48] sm:$0xff]
        %v1755 = vld [vmem:[%s437 + $0x50] sm:$0xff]
        %v1756 = vld [vmem:[%s437 + $0x58] sm:$0xff]
        %v1757 = vld [vmem:[%s437 + $0x60] sm:$0xff]
        %v1758 = vld [vmem:[%s437 + $0x68] sm:$0xff]
        %v1759 = vld [vmem:[%s437 + $0x70] sm:$0xff]
        %v1760 = vld [vmem:[%s437 + $0x78] sm:$0xff]
        %v1761 = vld [vmem:[%s437 + $0x80] sm:$0xff]
        %v1762 = vld [vmem:[%s437 + $0x88] sm:$0xff]
        %v1763 = vld [vmem:[%s437 + $0x90] sm:$0xff]
        %v1764 = vld [vmem:[%s437 + $0x98] sm:$0xff]
        %v1765 = vld [vmem:[%s437 + $0xa0] sm:$0xff]
        %v1766 = vld [vmem:[%s437 + $0xa8] sm:$0xff]
        %v1767 = vld [vmem:[%s437 + $0xb0] sm:$0xff]
        %v1768 = vld [vmem:[%s437 + $0xb8] sm:$0xff]
        %v1769 = vld [vmem:[%s437 + $0xc0] sm:$0xff]
        %v1770 = vld [vmem:[%s437 + $0xc8] sm:$0xff]
        %v1771 = vld [vmem:[%s437 + $0xd0] sm:$0xff]
        %v1772 = vld [vmem:[%s437 + $0xd8] sm:$0xff]
        %v1773 = vld [vmem:[%s437 + $0xe0] sm:$0xff]
        %v1774 = vld [vmem:[%s437 + $0xe8] sm:$0xff]
        %v1775 = vld [vmem:[%s437 + $0xf0] sm:$0xff]
        %v1776 = vld [vmem:[%s437 + $0xf8] sm:$0xff]
        %v1777 = vld [vmem:[%s437 + $0x100] sm:$0xff]
        %v1778 = vld [vmem:[%s437 + $0x108] sm:$0xff]
        %v1779 = vld [vmem:[%s437 + $0x110] sm:$0xff]
        %v1780 = vld [vmem:[%s437 + $0x118] sm:$0xff]
        %v1781 = vld [vmem:[%s437 + $0x120] sm:$0xff]
        %v1782 = vld [vmem:[%s437 + $0x128] sm:$0xff]
        %v1783 = vld [vmem:[%s437 + $0x130] sm:$0xff]
        %v1784 = vld [vmem:[%s437 + $0x138] sm:$0xff]
        %v1785 = vld [vmem:[%s437 + $0x140] sm:$0xff]
        %v1786 = vld [vmem:[%s437 + $0x148] sm:$0xff]
        %v1787 = vld [vmem:[%s437 + $0x150] sm:$0xff]
        %v1788 = vld [vmem:[%s437 + $0x158] sm:$0xff]
        %v1789 = vld [vmem:[%s437 + $0x160] sm:$0xff]
        %v1790 = vld [vmem:[%s437 + $0x168] sm:$0xff]
        %v1791 = vld [vmem:[%s437 + $0x170] sm:$0xff]
        %v1792 = vld [vmem:[%s437 + $0x178] sm:$0xff]
        %v1793 = vld [vmem:[%s437 + $0x180] sm:$0xff]
        %v1794 = vld [vmem:[%s437 + $0x188] sm:$0xff]
        %v1795 = vld [vmem:[%s437 + $0x190] sm:$0xff]
        %v1796 = vld [vmem:[%s437 + $0x198] sm:$0xff]
        %v1797 = vld [vmem:[%s437 + $0x1a0] sm:$0xff]
        %v1798 = vld [vmem:[%s437 + $0x1a8] sm:$0xff]
        %v1799 = vld [vmem:[%s437 + $0x1b0] sm:$0xff]
        %v1800 = vld [vmem:[%s437 + $0x1b8] sm:$0xff]
        %v1801 = vld [vmem:[%s437 + $0x1c0] sm:$0xff]
        %v1802 = vld [vmem:[%s437 + $0x1c8] sm:$0xff]
        %v1803 = vld [vmem:[%s437 + $0x1d0] sm:$0xff]
        %v1804 = vld [vmem:[%s437 + $0x1d8] sm:$0xff]
        %v1805 = vld [vmem:[%s437 + $0x1e0] sm:$0xff]
        %v1806 = vld [vmem:[%s437 + $0x1e8] sm:$0xff]
        %v1807 = vld [vmem:[%s437 + $0x1f0] sm:$0xff]
        %v1808 = vld [vmem:[%s437 + $0x1f8] sm:$0xff]
        %v1809 = vld [vmem:[%s437 + $0x200] sm:$0xff]
        %v1810 = vld [vmem:[%s437 + $0x208] sm:$0xff]
        %v1811 = vld [vmem:[%s437 + $0x210] sm:$0xff]
        %v1812 = vld [vmem:[%s437 + $0x218] sm:$0xff]
        %v1813 = vld [vmem:[%s437 + $0x220] sm:$0xff]
        %v1814 = vld [vmem:[%s437 + $0x228] sm:$0xff]
        %v1815 = vld [vmem:[%s437 + $0x230] sm:$0xff]
        %v1816 = vld [vmem:[%s437 + $0x238] sm:$0xff]
        %v1817 = vld [vmem:[%s437 + $0x240] sm:$0xff]
        %v1818 = vld [vmem:[%s437 + $0x248] sm:$0xff]
        %v1819 = vld [vmem:[%s437 + $0x250] sm:$0xff]
        %v1820 = vld [vmem:[%s437 + $0x258] sm:$0xff]
        %v1821 = vld [vmem:[%s437 + $0x260] sm:$0xff]
        %v1822 = vld [vmem:[%s437 + $0x268] sm:$0xff]
        %v1823 = vld [vmem:[%s437 + $0x270] sm:$0xff]
        %v1824 = vld [vmem:[%s437 + $0x278] sm:$0xff]
        %v1825 = vld [vmem:[%s437 + $0x280] sm:$0xff]
        %v1826 = vld [vmem:[%s437 + $0x288] sm:$0xff]
        %v1827 = vld [vmem:[%s437 + $0x290] sm:$0xff]
        %v1828 = vld [vmem:[%s437 + $0x298] sm:$0xff]
        %v1829 = vld [vmem:[%s437 + $0x2a0] sm:$0xff]
        %v1830 = vld [vmem:[%s437 + $0x2a8] sm:$0xff]
        %v1831 = vld [vmem:[%s437 + $0x2b0] sm:$0xff]
        %v1832 = vld [vmem:[%s437 + $0x2b8] sm:$0xff]
        %v1833 = vld [vmem:[%s437 + $0x2c0] sm:$0xff]
        %v1834 = vld [vmem:[%s437 + $0x2c8] sm:$0xff]
        %v1835 = vld [vmem:[%s437 + $0x2d0] sm:$0xff]
        %v1836 = vld [vmem:[%s437 + $0x2d8] sm:$0xff]
        %v1837 = vld [vmem:[%s437 + $0x2e0] sm:$0xff]
        %v1838 = vld [vmem:[%s437 + $0x2e8] sm:$0xff]
        %v1839 = vld [vmem:[%s437 + $0x2f0] sm:$0xff]
        %v1840 = vld [vmem:[%s437 + $0x2f8] sm:$0xff]
        %v1841 = vld [vmem:[%s437 + $0x300] sm:$0xff]
        %v1842 = vld [vmem:[%s437 + $0x308] sm:$0xff]
        %v1843 = vld [vmem:[%s437 + $0x310] sm:$0xff]
        %v1844 = vld [vmem:[%s437 + $0x318] sm:$0xff]
        %v1845 = vld [vmem:[%s437 + $0x320] sm:$0xff]
        %v1846 = vld [vmem:[%s437 + $0x328] sm:$0xff]
        %v1847 = vld [vmem:[%s437 + $0x330] sm:$0xff]
        %v1848 = vld [vmem:[%s437 + $0x338] sm:$0xff]
        %v1849 = vld [vmem:[%s437 + $0x340] sm:$0xff]
        %v1850 = vld [vmem:[%s437 + $0x348] sm:$0xff]
        %v1851 = vld [vmem:[%s437 + $0x350] sm:$0xff]
        %v1852 = vld [vmem:[%s437 + $0x358] sm:$0xff]
        %v1853 = vld [vmem:[%s437 + $0x360] sm:$0xff]
        %v1854 = vld [vmem:[%s437 + $0x368] sm:$0xff]
        %v1855 = vld [vmem:[%s437 + $0x370] sm:$0xff]
        %v1856 = vld [vmem:[%s437 + $0x378] sm:$0xff]
        %v1857 = vld [vmem:[%s437 + $0x380] sm:$0xff]
        %v1858 = vld [vmem:[%s437 + $0x388] sm:$0xff]
        %v1859 = vld [vmem:[%s437 + $0x390] sm:$0xff]
        %v1860 = vld [vmem:[%s437 + $0x398] sm:$0xff]
        %v1861 = vld [vmem:[%s437 + $0x3a0] sm:$0xff]
        %v1862 = vld [vmem:[%s437 + $0x3a8] sm:$0xff]
        %v1863 = vld [vmem:[%s437 + $0x3b0] sm:$0xff]
        %v1864 = vld [vmem:[%s437 + $0x3b8] sm:$0xff]
        %v1865 = vld [vmem:[%s437 + $0x3c0] sm:$0xff]
        %v1866 = vld [vmem:[%s437 + $0x3c8] sm:$0xff]
        %v1867 = vld [vmem:[%s437 + $0x3d0] sm:$0xff]
        %v1868 = vld [vmem:[%s437 + $0x3d8] sm:$0xff]
        %v1869 = vld [vmem:[%s437 + $0x3e0] sm:$0xff]
        %v1870 = vld [vmem:[%s437 + $0x3e8] sm:$0xff]
        %v1871 = vld [vmem:[%s437 + $0x3f0] sm:$0xff]
        %v1872 = vld [vmem:[%s437 + $0x3f8] sm:$0xff]
        %v1873 = vld [vmem:[%s437 + $0x400] sm:$0xff]
        %v1874 = vld [vmem:[%s437 + $0x408] sm:$0xff]
        %v1875 = vld [vmem:[%s437 + $0x410] sm:$0xff]
        %v1876 = vld [vmem:[%s437 + $0x418] sm:$0xff]
        %v1877 = vld [vmem:[%s437 + $0x420] sm:$0xff]
        %v1878 = vld [vmem:[%s437 + $0x428] sm:$0xff]
        %v1879 = vld [vmem:[%s437 + $0x430] sm:$0xff]
        %v1880 = vld [vmem:[%s437 + $0x438] sm:$0xff]
        %v1881 = vld [vmem:[%s437 + $0x440] sm:$0xff]
        %v1882 = vld [vmem:[%s437 + $0x448] sm:$0xff]
        %v1883 = vld [vmem:[%s437 + $0x450] sm:$0xff]
        %v1884 = vld [vmem:[%s437 + $0x458] sm:$0xff]
        %v1885 = vld [vmem:[%s437 + $0x460] sm:$0xff]
        %v1886 = vld [vmem:[%s437 + $0x468] sm:$0xff]
        %v1887 = vld [vmem:[%s437 + $0x470] sm:$0xff]
        %v1888 = vld [vmem:[%s437 + $0x478] sm:$0xff]
        %v1889 = vld [vmem:[%s437 + $0x480] sm:$0xff]
        %v1890 = vld [vmem:[%s437 + $0x488] sm:$0xff]
        %v1891 = vld [vmem:[%s437 + $0x490] sm:$0xff]
        %v1892 = vld [vmem:[%s437 + $0x498] sm:$0xff]
        %v1893 = vld [vmem:[%s437 + $0x4a0] sm:$0xff]
        %v1894 = vld [vmem:[%s437 + $0x4a8] sm:$0xff]
        %v1895 = vld [vmem:[%s437 + $0x4b0] sm:$0xff]
        %v1896 = vld [vmem:[%s437 + $0x4b8] sm:$0xff]
        %v1897 = vld [vmem:[%s437 + $0x4c0] sm:$0xff]
        %v1898 = vld [vmem:[%s437 + $0x4c8] sm:$0xff]
        %v1899 = vld [vmem:[%s437 + $0x4d0] sm:$0xff]
        %v1900 = vld [vmem:[%s437 + $0x4d8] sm:$0xff]
        %v1901 = vld [vmem:[%s437 + $0x4e0] sm:$0xff]
        %v1902 = vld [vmem:[%s437 + $0x4e8] sm:$0xff]
        %v1903 = vld [vmem:[%s437 + $0x4f0] sm:$0xff]
        %v1904 = vld [vmem:[%s437 + $0x4f8] sm:$0xff]
        %v1905 = vld [vmem:[%s437 + $0x500] sm:$0xff]
        %v1906 = vld [vmem:[%s437 + $0x508] sm:$0xff]
        %v1907 = vld [vmem:[%s437 + $0x510] sm:$0xff]
        %v1908 = vld [vmem:[%s437 + $0x518] sm:$0xff]
        %v1909 = vld [vmem:[%s437 + $0x520] sm:$0xff]
        %v1910 = vld [vmem:[%s437 + $0x528] sm:$0xff]
        %v1911 = vld [vmem:[%s437 + $0x530] sm:$0xff]
        %v1912 = vld [vmem:[%s437 + $0x538] sm:$0xff]
        %v1913 = vld [vmem:[%s437 + $0x540] sm:$0xff]
        %v1914 = vld [vmem:[%s437 + $0x548] sm:$0xff]
        %v1915 = vld [vmem:[%s437 + $0x550] sm:$0xff]
        %v1916 = vld [vmem:[%s437 + $0x558] sm:$0xff]
        %v1917 = vld [vmem:[%s437 + $0x560] sm:$0xff]
        %v1918 = vld [vmem:[%s437 + $0x568] sm:$0xff]
        %v1919 = vld [vmem:[%s437 + $0x570] sm:$0xff]
        %v1920 = vld [vmem:[%s437 + $0x578] sm:$0xff]
        %v1921 = vld [vmem:[%s437 + $0x580] sm:$0xff]
        %v1922 = vld [vmem:[%s437 + $0x588] sm:$0xff]
        %v1923 = vld [vmem:[%s437 + $0x590] sm:$0xff]
        %v1924 = vld [vmem:[%s437 + $0x598] sm:$0xff]
        %v1925 = vld [vmem:[%s437 + $0x5a0] sm:$0xff]
        %v1926 = vld [vmem:[%s437 + $0x5a8] sm:$0xff]
        %v1927 = vld [vmem:[%s437 + $0x5b0] sm:$0xff]
        %v1928 = vld [vmem:[%s437 + $0x5b8] sm:$0xff]
        %v1929 = vld [vmem:[%s437 + $0x5c0] sm:$0xff]
        %v1930 = vld [vmem:[%s437 + $0x5c8] sm:$0xff]
        %v1931 = vld [vmem:[%s437 + $0x5d0] sm:$0xff]
        %v1932 = vld [vmem:[%s437 + $0x5d8] sm:$0xff]
        %v1933 = vld [vmem:[%s437 + $0x5e0] sm:$0xff]
        %v1934 = vld [vmem:[%s437 + $0x5e8] sm:$0xff]
        %v1935 = vld [vmem:[%s437 + $0x5f0] sm:$0xff]
        %v1936 = vld [vmem:[%s437 + $0x5f8] sm:$0xff]
        %v1937 = vld [vmem:[%s437 + $0x600] sm:$0xff]
        %v1938 = vld [vmem:[%s437 + $0x608] sm:$0xff]
        %v1939 = vld [vmem:[%s437 + $0x610] sm:$0xff]
        %v1940 = vld [vmem:[%s437 + $0x618] sm:$0xff]
        %v1941 = vld [vmem:[%s437 + $0x620] sm:$0xff]
        %v1942 = vld [vmem:[%s437 + $0x628] sm:$0xff]
        %v1943 = vld [vmem:[%s437 + $0x630] sm:$0xff]
        %v1944 = vld [vmem:[%s437 + $0x638] sm:$0xff]
        %v1945 = vld [vmem:[%s437 + $0x640] sm:$0xff]
        %v1946 = vld [vmem:[%s437 + $0x648] sm:$0xff]
        %v1947 = vld [vmem:[%s437 + $0x650] sm:$0xff]
        %v1948 = vld [vmem:[%s437 + $0x658] sm:$0xff]
        %v1949 = vld [vmem:[%s437 + $0x660] sm:$0xff]
        %v1950 = vld [vmem:[%s437 + $0x668] sm:$0xff]
        %v1951 = vld [vmem:[%s437 + $0x670] sm:$0xff]
        %v1952 = vld [vmem:[%s437 + $0x678] sm:$0xff]
        %v1953 = vld [vmem:[%s437 + $0x680] sm:$0xff]
        %v1954 = vld [vmem:[%s437 + $0x688] sm:$0xff]
        %v1955 = vld [vmem:[%s437 + $0x690] sm:$0xff]
        %v1956 = vld [vmem:[%s437 + $0x698] sm:$0xff]
        %v1957 = vld [vmem:[%s437 + $0x6a0] sm:$0xff]
        %v1958 = vld [vmem:[%s437 + $0x6a8] sm:$0xff]
        %v1959 = vld [vmem:[%s437 + $0x6b0] sm:$0xff]
        %v1960 = vld [vmem:[%s437 + $0x6b8] sm:$0xff]
        %v1961 = vld [vmem:[%s437 + $0x6c0] sm:$0xff]
        %v1962 = vld [vmem:[%s437 + $0x6c8] sm:$0xff]
        %v1963 = vld [vmem:[%s437 + $0x6d0] sm:$0xff]
        %v1964 = vld [vmem:[%s437 + $0x6d8] sm:$0xff]
        %v1965 = vld [vmem:[%s437 + $0x6e0] sm:$0xff]
        %v1966 = vld [vmem:[%s437 + $0x6e8] sm:$0xff]
        %v1967 = vld [vmem:[%s437 + $0x6f0] sm:$0xff]
        %v1968 = vld [vmem:[%s437 + $0x6f8] sm:$0xff]
        %v1969 = vld [vmem:[%s437 + $0x700] sm:$0xff]
        %v1970 = vld [vmem:[%s437 + $0x708] sm:$0xff]
        %v1971 = vld [vmem:[%s437 + $0x710] sm:$0xff]
        %v1972 = vld [vmem:[%s437 + $0x718] sm:$0xff]
        %v1973 = vld [vmem:[%s437 + $0x720] sm:$0xff]
        %v1974 = vld [vmem:[%s437 + $0x728] sm:$0xff]
        %v1975 = vld [vmem:[%s437 + $0x730] sm:$0xff]
        %v1976 = vld [vmem:[%s437 + $0x738] sm:$0xff]
        %v1977 = vld [vmem:[%s437 + $0x740] sm:$0xff]
        %v1978 = vld [vmem:[%s437 + $0x748] sm:$0xff]
        %v1979 = vld [vmem:[%s437 + $0x750] sm:$0xff]
        %v1980 = vld [vmem:[%s437 + $0x758] sm:$0xff]
        %v1981 = vld [vmem:[%s437 + $0x760] sm:$0xff]
        %v1982 = vld [vmem:[%s437 + $0x768] sm:$0xff]
        %v1983 = vld [vmem:[%s437 + $0x770] sm:$0xff]
        %v1984 = vld [vmem:[%s437 + $0x778] sm:$0xff]
        %v1985 = vld [vmem:[%s437 + $0x780] sm:$0xff]
        %v1986 = vld [vmem:[%s437 + $0x788] sm:$0xff]
        %v1987 = vld [vmem:[%s437 + $0x790] sm:$0xff]
        %v1988 = vld [vmem:[%s437 + $0x798] sm:$0xff]
        %v1989 = vld [vmem:[%s437 + $0x7a0] sm:$0xff]
        %v1990 = vld [vmem:[%s437 + $0x7a8] sm:$0xff]
        %v1991 = vld [vmem:[%s437 + $0x7b0] sm:$0xff]
        %v1992 = vld [vmem:[%s437 + $0x7b8] sm:$0xff]
        %v1993 = vld [vmem:[%s437 + $0x7c0] sm:$0xff]
        %v1994 = vld [vmem:[%s437 + $0x7c8] sm:$0xff]
        %v1995 = vld [vmem:[%s437 + $0x7d0] sm:$0xff]
        %v1996 = vld [vmem:[%s437 + $0x7d8] sm:$0xff]
        %v1997 = vld [vmem:[%s437 + $0x7e0] sm:$0xff]
        %v1998 = vld [vmem:[%s437 + $0x7e8] sm:$0xff]
        %v1999 = vld [vmem:[%s437 + $0x7f0] sm:$0xff]
        %v2000 = vld [vmem:[%s437 + $0x7f8] sm:$0xff]
        %v2001 = vld [vmem:[%s437 + $0x800] sm:$0xff]
        %v2002 = vld [vmem:[%s437 + $0x808] sm:$0xff]
        %v2003 = vld [vmem:[%s437 + $0x810] sm:$0xff]
        %v2004 = vld [vmem:[%s437 + $0x818] sm:$0xff]
        %v2005 = vld [vmem:[%s437 + $0x820] sm:$0xff]
        %v2006 = vld [vmem:[%s437 + $0x828] sm:$0xff]
        %v2007 = vld [vmem:[%s437 + $0x830] sm:$0xff]
        %v2008 = vld [vmem:[%s437 + $0x838] sm:$0xff]
        %v2009 = vld [vmem:[%s437 + $0x840] sm:$0xff]
        %v2010 = vld [vmem:[%s437 + $0x848] sm:$0xff]
        %v2011 = vld [vmem:[%s437 + $0x850] sm:$0xff]
        %v2012 = vld [vmem:[%s437 + $0x858] sm:$0xff]
        %v2013 = vld [vmem:[%s437 + $0x860] sm:$0xff]
        %v2014 = vld [vmem:[%s437 + $0x868] sm:$0xff]
        %v2015 = vld [vmem:[%s437 + $0x870] sm:$0xff]
        %v2016 = vld [vmem:[%s437 + $0x878] sm:$0xff]
        %v2017 = vld [vmem:[%s437 + $0x880] sm:$0xff]
        %v2018 = vld [vmem:[%s437 + $0x888] sm:$0xff]
        %v2019 = vld [vmem:[%s437 + $0x890] sm:$0xff]
        %v2020 = vld [vmem:[%s437 + $0x898] sm:$0xff]
        %v2021 = vld [vmem:[%s437 + $0x8a0] sm:$0xff]
        %v2022 = vld [vmem:[%s437 + $0x8a8] sm:$0xff]
        %v2023 = vld [vmem:[%s437 + $0x8b0] sm:$0xff]
        %v2024 = vld [vmem:[%s437 + $0x8b8] sm:$0xff]
        %v2025 = vld [vmem:[%s437 + $0x8c0] sm:$0xff]
        %v2026 = vld [vmem:[%s437 + $0x8c8] sm:$0xff]
        %v2027 = vld [vmem:[%s437 + $0x8d0] sm:$0xff]
        %v2028 = vld [vmem:[%s437 + $0x8d8] sm:$0xff]
        %v2029 = vld [vmem:[%s437 + $0x8e0] sm:$0xff]
        %v2030 = vld [vmem:[%s437 + $0x8e8] sm:$0xff]
        %v2031 = vld [vmem:[%s437 + $0x8f0] sm:$0xff]
        %v2032 = vld [vmem:[%s437 + $0x8f8] sm:$0xff]
        %v2033 = vld [vmem:[%s437 + $0x900] sm:$0xff]
        %v2034 = vld [vmem:[%s437 + $0x908] sm:$0xff]
        %v2035 = vld [vmem:[%s437 + $0x910] sm:$0xff]
        %v2036 = vld [vmem:[%s437 + $0x918] sm:$0xff]
        %v2037 = vld [vmem:[%s437 + $0x920] sm:$0xff]
        %v2038 = vld [vmem:[%s437 + $0x928] sm:$0xff]
        %v2039 = vld [vmem:[%s437 + $0x930] sm:$0xff]
        %v2040 = vld [vmem:[%s437 + $0x938] sm:$0xff]
        %v2041 = vld [vmem:[%s437 + $0x940] sm:$0xff]
        %v2042 = vld [vmem:[%s437 + $0x948] sm:$0xff]
        %v2043 = vld [vmem:[%s437 + $0x950] sm:$0xff]
        %v2044 = vld [vmem:[%s437 + $0x958] sm:$0xff]
        %v2045 = vld [vmem:[%s437 + $0x960] sm:$0xff]
        %v2046 = vld [vmem:[%s437 + $0x968] sm:$0xff]
        %v2047 = vld [vmem:[%s437 + $0x970] sm:$0xff]
        %v2048 = vld [vmem:[%s437 + $0x978] sm:$0xff]
        %v2049 = vld [vmem:[%s437 + $0x980] sm:$0xff]
        %v2050 = vld [vmem:[%s437 + $0x988] sm:$0xff]
        %v2051 = vld [vmem:[%s437 + $0x990] sm:$0xff]
        %v2052 = vld [vmem:[%s437 + $0x998] sm:$0xff]
        %v2053 = vld [vmem:[%s437 + $0x9a0] sm:$0xff]
        %v2054 = vld [vmem:[%s437 + $0x9a8] sm:$0xff]
        %v2055 = vld [vmem:[%s437 + $0x9b0] sm:$0xff]
        %v2056 = vld [vmem:[%s437 + $0x9b8] sm:$0xff]
        %v2057 = vld [vmem:[%s437 + $0x9c0] sm:$0xff]
        %v2058 = vld [vmem:[%s437 + $0x9c8] sm:$0xff]
        %v2059 = vld [vmem:[%s437 + $0x9d0] sm:$0xff]
        %v2060 = vld [vmem:[%s437 + $0x9d8] sm:$0xff]
        %v2061 = vld [vmem:[%s437 + $0x9e0] sm:$0xff]
        %v2062 = vld [vmem:[%s437 + $0x9e8] sm:$0xff]
        %v2063 = vld [vmem:[%s437 + $0x9f0] sm:$0xff]
        %v2064 = vld [vmem:[%s437 + $0x9f8] sm:$0xff]
        %v2065 = vld [vmem:[%s437 + $0xa00] sm:$0xff]
        %v2066 = vld [vmem:[%s437 + $0xa08] sm:$0xff]
        %v2067 = vld [vmem:[%s437 + $0xa10] sm:$0xff]
        %v2068 = vld [vmem:[%s437 + $0xa18] sm:$0xff]
        %v2069 = vld [vmem:[%s437 + $0xa20] sm:$0xff]
        %v2070 = vld [vmem:[%s437 + $0xa28] sm:$0xff]
        %v2071 = vld [vmem:[%s437 + $0xa30] sm:$0xff]
        %v2072 = vld [vmem:[%s437 + $0xa38] sm:$0xff]
        %v2073 = vld [vmem:[%s437 + $0xa40] sm:$0xff]
        %v2074 = vld [vmem:[%s437 + $0xa48] sm:$0xff]
        %v2075 = vld [vmem:[%s437 + $0xa50] sm:$0xff]
        %v2076 = vld [vmem:[%s437 + $0xa58] sm:$0xff]
        %v2077 = vld [vmem:[%s437 + $0xa60] sm:$0xff]
        %v2078 = vld [vmem:[%s437 + $0xa68] sm:$0xff]
        %v2079 = vld [vmem:[%s437 + $0xa70] sm:$0xff]
        %v2080 = vld [vmem:[%s437 + $0xa78] sm:$0xff]
        %v2081 = vld [vmem:[%s437 + $0xa80] sm:$0xff]
        %v2082 = vld [vmem:[%s437 + $0xa88] sm:$0xff]
        %v2083 = vld [vmem:[%s437 + $0xa90] sm:$0xff]
        %v2084 = vld [vmem:[%s437 + $0xa98] sm:$0xff]
        %v2085 = vld [vmem:[%s437 + $0xaa0] sm:$0xff]
        %v2086 = vld [vmem:[%s437 + $0xaa8] sm:$0xff]
        %v2087 = vld [vmem:[%s437 + $0xab0] sm:$0xff]
        %v2088 = vld [vmem:[%s437 + $0xab8] sm:$0xff]
        %v2089 = vld [vmem:[%s437 + $0xac0] sm:$0xff]
        %v2090 = vld [vmem:[%s437 + $0xac8] sm:$0xff]
        %v2091 = vld [vmem:[%s437 + $0xad0] sm:$0xff]
        %v2092 = vld [vmem:[%s437 + $0xad8] sm:$0xff]
        %v2093 = vld [vmem:[%s437 + $0xae0] sm:$0xff]
        %v2094 = vld [vmem:[%s437 + $0xae8] sm:$0xff]
        %v2095 = vld [vmem:[%s437 + $0xaf0] sm:$0xff]
        %v2096 = vld [vmem:[%s437 + $0xaf8] sm:$0xff]
        %v2097 = vld [vmem:[%s437 + $0xb00] sm:$0xff]
        %v2098 = vld [vmem:[%s437 + $0xb08] sm:$0xff]
        %v2099 = vld [vmem:[%s437 + $0xb10] sm:$0xff]
        %v2100 = vld [vmem:[%s437 + $0xb18] sm:$0xff]
        %v2101 = vld [vmem:[%s437 + $0xb20] sm:$0xff]
        %v2102 = vld [vmem:[%s437 + $0xb28] sm:$0xff]
        %v2103 = vld [vmem:[%s437 + $0xb30] sm:$0xff]
        %v2104 = vld [vmem:[%s437 + $0xb38] sm:$0xff]
        %v2105 = vld [vmem:[%s437 + $0xb40] sm:$0xff]
        %v2106 = vld [vmem:[%s437 + $0xb48] sm:$0xff]
        %v2107 = vld [vmem:[%s437 + $0xb50] sm:$0xff]
        %v2108 = vld [vmem:[%s437 + $0xb58] sm:$0xff]
        %v2109 = vld [vmem:[%s437 + $0xb60] sm:$0xff]
        %v2110 = vld [vmem:[%s437 + $0xb68] sm:$0xff]
        %v2111 = vld [vmem:[%s437 + $0xb70] sm:$0xff]
        %v2112 = vld [vmem:[%s437 + $0xb78] sm:$0xff]
        %v2113 = vld [vmem:[%s437 + $0xb80] sm:$0xff]
        %v2114 = vld [vmem:[%s437 + $0xb88] sm:$0xff]
        %v2115 = vld [vmem:[%s437 + $0xb90] sm:$0xff]
        %v2116 = vld [vmem:[%s437 + $0xb98] sm:$0xff]
        %v2117 = vld [vmem:[%s437 + $0xba0] sm:$0xff]
        %v2118 = vld [vmem:[%s437 + $0xba8] sm:$0xff]
        %v2119 = vld [vmem:[%s437 + $0xbb0] sm:$0xff]
        %v2120 = vld [vmem:[%s437 + $0xbb8] sm:$0xff]
        %v2121 = vld [vmem:[%s437 + $0xbc0] sm:$0xff]
        %v2122 = vld [vmem:[%s437 + $0xbc8] sm:$0xff]
        %v2123 = vld [vmem:[%s437 + $0xbd0] sm:$0xff]
        %v2124 = vld [vmem:[%s437 + $0xbd8] sm:$0xff]
        %v2125 = vld [vmem:[%s437 + $0xbe0] sm:$0xff]
        %v2126 = vld [vmem:[%s437 + $0xbe8] sm:$0xff]
        %v2127 = vld [vmem:[%s437 + $0xbf0] sm:$0xff]
        %v2128 = vld [vmem:[%s437 + $0xbf8] sm:$0xff]
        %v2129 = vld [vmem:[%s437 + $0xc00] sm:$0xff]
        %v2130 = vld [vmem:[%s437 + $0xc08] sm:$0xff]
        %v2131 = vld [vmem:[%s437 + $0xc10] sm:$0xff]
        %v2132 = vld [vmem:[%s437 + $0xc18] sm:$0xff]
        %v2133 = vld [vmem:[%s437 + $0xc20] sm:$0xff]
        %v2134 = vld [vmem:[%s437 + $0xc28] sm:$0xff]
        %v2135 = vld [vmem:[%s437 + $0xc30] sm:$0xff]
        %v2136 = vld [vmem:[%s437 + $0xc38] sm:$0xff]
        %v2137 = vld [vmem:[%s437 + $0xc40] sm:$0xff]
        %v2138 = vld [vmem:[%s437 + $0xc48] sm:$0xff]
        %v2139 = vld [vmem:[%s437 + $0xc50] sm:$0xff]
        %v2140 = vld [vmem:[%s437 + $0xc58] sm:$0xff]
        %v2141 = vld [vmem:[%s437 + $0xc60] sm:$0xff]
        %v2142 = vld [vmem:[%s437 + $0xc68] sm:$0xff]
        %v2143 = vld [vmem:[%s437 + $0xc70] sm:$0xff]
        %v2144 = vld [vmem:[%s437 + $0xc78] sm:$0xff]
        %v2145 = vld [vmem:[%s437 + $0xc80] sm:$0xff]
        %v2146 = vld [vmem:[%s437 + $0xc88] sm:$0xff]
        %v2147 = vld [vmem:[%s437 + $0xc90] sm:$0xff]
        %v2148 = vld [vmem:[%s437 + $0xc98] sm:$0xff]
        %v2149 = vld [vmem:[%s437 + $0xca0] sm:$0xff]
        %v2150 = vld [vmem:[%s437 + $0xca8] sm:$0xff]
        %v2151 = vld [vmem:[%s437 + $0xcb0] sm:$0xff]
        %v2152 = vld [vmem:[%s437 + $0xcb8] sm:$0xff]
        %v2153 = vld [vmem:[%s437 + $0xcc0] sm:$0xff]
        %v2154 = vld [vmem:[%s437 + $0xcc8] sm:$0xff]
        %v2155 = vld [vmem:[%s437 + $0xcd0] sm:$0xff]
        %v2156 = vld [vmem:[%s437 + $0xcd8] sm:$0xff]
        %v2157 = vld [vmem:[%s437 + $0xce0] sm:$0xff]
        %v2158 = vld [vmem:[%s437 + $0xce8] sm:$0xff]
        %v2159 = vld [vmem:[%s437 + $0xcf0] sm:$0xff]
        %v2160 = vld [vmem:[%s437 + $0xcf8] sm:$0xff]
        %v2161 = vld [vmem:[%s437 + $0xd00] sm:$0xff]
        %v2162 = vld [vmem:[%s437 + $0xd08] sm:$0xff]
        %v2163 = vld [vmem:[%s437 + $0xd10] sm:$0xff]
        %v2164 = vld [vmem:[%s437 + $0xd18] sm:$0xff]
        %v2165 = vld [vmem:[%s437 + $0xd20] sm:$0xff]
        %v2166 = vld [vmem:[%s437 + $0xd28] sm:$0xff]
        %v2167 = vld [vmem:[%s437 + $0xd30] sm:$0xff]
        %v2168 = vld [vmem:[%s437 + $0xd38] sm:$0xff]
        %v2169 = vld [vmem:[%s437 + $0xd40] sm:$0xff]
        %v2170 = vld [vmem:[%s437 + $0xd48] sm:$0xff]
        %v2171 = vld [vmem:[%s437 + $0xd50] sm:$0xff]
        %v2172 = vld [vmem:[%s437 + $0xd58] sm:$0xff]
        %v2173 = vld [vmem:[%s437 + $0xd60] sm:$0xff]
        %v2174 = vld [vmem:[%s437 + $0xd68] sm:$0xff]
        %v2175 = vld [vmem:[%s437 + $0xd70] sm:$0xff]
        %v2176 = vld [vmem:[%s437 + $0xd78] sm:$0xff]
        %v2177 = vld [vmem:[%s437 + $0xd80] sm:$0xff]
        %v2178 = vld [vmem:[%s437 + $0xd88] sm:$0xff]
        %v2179 = vld [vmem:[%s437 + $0xd90] sm:$0xff]
        %v2180 = vld [vmem:[%s437 + $0xd98] sm:$0xff]
        %v2181 = vld [vmem:[%s437 + $0xda0] sm:$0xff]
        %v2182 = vld [vmem:[%s437 + $0xda8] sm:$0xff]
        %v2183 = vld [vmem:[%s437 + $0xdb0] sm:$0xff]
        %v2184 = vld [vmem:[%s437 + $0xdb8] sm:$0xff]
        %v2185 = vld [vmem:[%s437 + $0xdc0] sm:$0xff]
        %v2186 = vld [vmem:[%s437 + $0xdc8] sm:$0xff]
        %v2187 = vld [vmem:[%s437 + $0xdd0] sm:$0xff]
        %v2188 = vld [vmem:[%s437 + $0xdd8] sm:$0xff]
        %v2189 = vld [vmem:[%s437 + $0xde0] sm:$0xff]
        %v2190 = vld [vmem:[%s437 + $0xde8] sm:$0xff]
        %v2191 = vld [vmem:[%s437 + $0xdf0] sm:$0xff]
        %v2192 = vld [vmem:[%s437 + $0xdf8] sm:$0xff]
        %v2193 = vld [vmem:[%s437 + $0xe00] sm:$0xff]
        %v2194 = vld [vmem:[%s437 + $0xe08] sm:$0xff]
        %v2195 = vld [vmem:[%s437 + $0xe10] sm:$0xff]
        %v2196 = vld [vmem:[%s437 + $0xe18] sm:$0xff]
        %v2197 = vld [vmem:[%s437 + $0xe20] sm:$0xff]
        %v2198 = vld [vmem:[%s437 + $0xe28] sm:$0xff]
        %v2199 = vld [vmem:[%s437 + $0xe30] sm:$0xff]
        %v2200 = vld [vmem:[%s437 + $0xe38] sm:$0xff]
        %v2201 = vld [vmem:[%s437 + $0xe40] sm:$0xff]
        %v2202 = vld [vmem:[%s437 + $0xe48] sm:$0xff]
        %v2203 = vld [vmem:[%s437 + $0xe50] sm:$0xff]
        %v2204 = vld [vmem:[%s437 + $0xe58] sm:$0xff]
        %v2205 = vld [vmem:[%s437 + $0xe60] sm:$0xff]
        %v2206 = vld [vmem:[%s437 + $0xe68] sm:$0xff]
        %v2207 = vld [vmem:[%s437 + $0xe70] sm:$0xff]
        %v2208 = vld [vmem:[%s437 + $0xe78] sm:$0xff]
        %v2209 = vld [vmem:[%s437 + $0xe80] sm:$0xff]
        %v2210 = vld [vmem:[%s437 + $0xe88] sm:$0xff]
        %v2211 = vld [vmem:[%s437 + $0xe90] sm:$0xff]
        %v2212 = vld [vmem:[%s437 + $0xe98] sm:$0xff]
        %v2213 = vld [vmem:[%s437 + $0xea0] sm:$0xff]
        %v2214 = vld [vmem:[%s437 + $0xea8] sm:$0xff]
        %v2215 = vld [vmem:[%s437 + $0xeb0] sm:$0xff]
        %v2216 = vld [vmem:[%s437 + $0xeb8] sm:$0xff]
        %v2217 = vld [vmem:[%s437 + $0xec0] sm:$0xff]
        %v2218 = vld [vmem:[%s437 + $0xec8] sm:$0xff]
        %v2219 = vld [vmem:[%s437 + $0xed0] sm:$0xff]
        %v2220 = vld [vmem:[%s437 + $0xed8] sm:$0xff]
        %v2221 = vld [vmem:[%s437 + $0xee0] sm:$0xff]
        %v2222 = vld [vmem:[%s437 + $0xee8] sm:$0xff]
        %v2223 = vld [vmem:[%s437 + $0xef0] sm:$0xff]
        %v2224 = vld [vmem:[%s437 + $0xef8] sm:$0xff]
        %v2225 = vld [vmem:[%s437 + $0xf00] sm:$0xff]
        %v2226 = vld [vmem:[%s437 + $0xf08] sm:$0xff]
        %v2227 = vld [vmem:[%s437 + $0xf10] sm:$0xff]
        %v2228 = vld [vmem:[%s437 + $0xf18] sm:$0xff]
        %v2229 = vld [vmem:[%s437 + $0xf20] sm:$0xff]
        %v2230 = vld [vmem:[%s437 + $0xf28] sm:$0xff]
        %v2231 = vld [vmem:[%s437 + $0xf30] sm:$0xff]
        %v2232 = vld [vmem:[%s437 + $0xf38] sm:$0xff]
        %v2233 = vld [vmem:[%s437 + $0xf40] sm:$0xff]
        %v2234 = vld [vmem:[%s437 + $0xf48] sm:$0xff]
        %v2235 = vld [vmem:[%s437 + $0xf50] sm:$0xff]
        %v2236 = vld [vmem:[%s437 + $0xf58] sm:$0xff]
        %v2237 = vld [vmem:[%s437 + $0xf60] sm:$0xff]
        %v2238 = vld [vmem:[%s437 + $0xf68] sm:$0xff]
        %v2239 = vld [vmem:[%s437 + $0xf70] sm:$0xff]
        %v2240 = vld [vmem:[%s437 + $0xf78] sm:$0xff]
        %v2241 = vld [vmem:[%s437 + $0xf80] sm:$0xff]
        %v2242 = vld [vmem:[%s437 + $0xf88] sm:$0xff]
        %v2243 = vld [vmem:[%s437 + $0xf90] sm:$0xff]
        %v2244 = vld [vmem:[%s437 + $0xf98] sm:$0xff]
        %v2245 = vld [vmem:[%s437 + $0xfa0] sm:$0xff]
        %v2246 = vld [vmem:[%s437 + $0xfa8] sm:$0xff]
        %v2247 = vld [vmem:[%s437 + $0xfb0] sm:$0xff]
        %v2248 = vld [vmem:[%s437 + $0xfb8] sm:$0xff]
        %v2249 = vld [vmem:[%s437 + $0xfc0] sm:$0xff]
        %v2250 = vld [vmem:[%s437 + $0xfc8] sm:$0xff]
        %v2251 = vld [vmem:[%s437 + $0xfd0] sm:$0xff]
        %v2252 = vld [vmem:[%s437 + $0xfd8] sm:$0xff]
        %v2253 = vld [vmem:[%s437 + $0xfe0] sm:$0xff]
        %v2254 = vld [vmem:[%s437 + $0xfe8] sm:$0xff]
        %v2255 = vld [vmem:[%s437 + $0xff0] sm:$0xff]
        %v2256 = vld [vmem:[%s437 + $0xff8] sm:$0xff]
        %s2257 = sadd.s32 8, %s1726
        %s2258 = smul.addr %s2257, 8
        %s2259 = scalar_lea.vmem [#allocation2], %s2258
        %v2260 = vld [vmem:[%s2259] sm:$0xff]
        %v2261 = vld [vmem:[%s2259 + $0x8] sm:$0xff]
        %v2262 = vld [vmem:[%s2259 + $0x10] sm:$0xff]
        %v2263 = vld [vmem:[%s2259 + $0x18] sm:$0xff]
        %v2264 = vld [vmem:[%s2259 + $0x20] sm:$0xff]
        %v2265 = vld [vmem:[%s2259 + $0x28] sm:$0xff]
        %v2266 = vld [vmem:[%s2259 + $0x30] sm:$0xff]
        %v2267 = vld [vmem:[%s2259 + $0x38] sm:$0xff]
        %v2268 = vpack.c.bf16 %v2260, %v2260
        %v2269 = vpack.c.bf16 %v2261, %v2261
        %v2270 = vpack.c.bf16 %v2262, %v2262
        %v2271 = vpack.c.bf16 %v2263, %v2263
        %v2272 = vpack.c.bf16 %v2264, %v2264
        %v2273 = vpack.c.bf16 %v2265, %v2265
        %v2274 = vpack.c.bf16 %v2266, %v2266
        %v2275 = vpack.c.bf16 %v2267, %v2267
        %v2276 = vld [vmem:[%s437 + $0x1000] sm:$0xff]
        %v2277 = vld [vmem:[%s437 + $0x1008] sm:$0xff]
        %v2278 = vld [vmem:[%s437 + $0x1010] sm:$0xff]
        %v2279 = vld [vmem:[%s437 + $0x1018] sm:$0xff]
        %v2280 = vld [vmem:[%s437 + $0x1020] sm:$0xff]
        %v2281 = vld [vmem:[%s437 + $0x1028] sm:$0xff]
        %v2282 = vld [vmem:[%s437 + $0x1030] sm:$0xff]
        %v2283 = vld [vmem:[%s437 + $0x1038] sm:$0xff]
        %v2284 = vld [vmem:[%s437 + $0x1040] sm:$0xff]
        %v2285 = vld [vmem:[%s437 + $0x1048] sm:$0xff]
        %v2286 = vld [vmem:[%s437 + $0x1050] sm:$0xff]
        %v2287 = vld [vmem:[%s437 + $0x1058] sm:$0xff]
        %v2288 = vld [vmem:[%s437 + $0x1060] sm:$0xff]
        %v2289 = vld [vmem:[%s437 + $0x1068] sm:$0xff]
        %v2290 = vld [vmem:[%s437 + $0x1070] sm:$0xff]
        %v2291 = vld [vmem:[%s437 + $0x1078] sm:$0xff]
        %v2292 = vld [vmem:[%s437 + $0x1080] sm:$0xff]
        %v2293 = vld [vmem:[%s437 + $0x1088] sm:$0xff]
        %v2294 = vld [vmem:[%s437 + $0x1090] sm:$0xff]
        %v2295 = vld [vmem:[%s437 + $0x1098] sm:$0xff]
        %v2296 = vld [vmem:[%s437 + $0x10a0] sm:$0xff]
        %v2297 = vld [vmem:[%s437 + $0x10a8] sm:$0xff]
        %v2298 = vld [vmem:[%s437 + $0x10b0] sm:$0xff]
        %v2299 = vld [vmem:[%s437 + $0x10b8] sm:$0xff]
        %v2300 = vld [vmem:[%s437 + $0x10c0] sm:$0xff]
        %v2301 = vld [vmem:[%s437 + $0x10c8] sm:$0xff]
        %v2302 = vld [vmem:[%s437 + $0x10d0] sm:$0xff]
        %v2303 = vld [vmem:[%s437 + $0x10d8] sm:$0xff]
        %v2304 = vld [vmem:[%s437 + $0x10e0] sm:$0xff]
        %v2305 = vld [vmem:[%s437 + $0x10e8] sm:$0xff]
        %v2306 = vld [vmem:[%s437 + $0x10f0] sm:$0xff]
        %v2307 = vld [vmem:[%s437 + $0x10f8] sm:$0xff]
        %v2308 = vld [vmem:[%s437 + $0x1100] sm:$0xff]
        %v2309 = vld [vmem:[%s437 + $0x1108] sm:$0xff]
        %v2310 = vld [vmem:[%s437 + $0x1110] sm:$0xff]
        %v2311 = vld [vmem:[%s437 + $0x1118] sm:$0xff]
        %v2312 = vld [vmem:[%s437 + $0x1120] sm:$0xff]
        %v2313 = vld [vmem:[%s437 + $0x1128] sm:$0xff]
        %v2314 = vld [vmem:[%s437 + $0x1130] sm:$0xff]
        %v2315 = vld [vmem:[%s437 + $0x1138] sm:$0xff]
        %v2316 = vld [vmem:[%s437 + $0x1140] sm:$0xff]
        %v2317 = vld [vmem:[%s437 + $0x1148] sm:$0xff]
        %v2318 = vld [vmem:[%s437 + $0x1150] sm:$0xff]
        %v2319 = vld [vmem:[%s437 + $0x1158] sm:$0xff]
        %v2320 = vld [vmem:[%s437 + $0x1160] sm:$0xff]
        %v2321 = vld [vmem:[%s437 + $0x1168] sm:$0xff]
        %v2322 = vld [vmem:[%s437 + $0x1170] sm:$0xff]
        %v2323 = vld [vmem:[%s437 + $0x1178] sm:$0xff]
        %v2324 = vld [vmem:[%s437 + $0x1180] sm:$0xff]
        %v2325 = vld [vmem:[%s437 + $0x1188] sm:$0xff]
        %v2326 = vld [vmem:[%s437 + $0x1190] sm:$0xff]
        %v2327 = vld [vmem:[%s437 + $0x1198] sm:$0xff]
        %v2328 = vld [vmem:[%s437 + $0x11a0] sm:$0xff]
        %v2329 = vld [vmem:[%s437 + $0x11a8] sm:$0xff]
        %v2330 = vld [vmem:[%s437 + $0x11b0] sm:$0xff]
        %v2331 = vld [vmem:[%s437 + $0x11b8] sm:$0xff]
        %v2332 = vld [vmem:[%s437 + $0x11c0] sm:$0xff]
        %v2333 = vld [vmem:[%s437 + $0x11c8] sm:$0xff]
        %v2334 = vld [vmem:[%s437 + $0x11d0] sm:$0xff]
        %v2335 = vld [vmem:[%s437 + $0x11d8] sm:$0xff]
        %v2336 = vld [vmem:[%s437 + $0x11e0] sm:$0xff]
        %v2337 = vld [vmem:[%s437 + $0x11e8] sm:$0xff]
        %v2338 = vld [vmem:[%s437 + $0x11f0] sm:$0xff]
        %v2339 = vld [vmem:[%s437 + $0x11f8] sm:$0xff]
        %v2340 = vld [vmem:[%s437 + $0x1200] sm:$0xff]
        %v2341 = vld [vmem:[%s437 + $0x1208] sm:$0xff]
        %v2342 = vld [vmem:[%s437 + $0x1210] sm:$0xff]
        %v2343 = vld [vmem:[%s437 + $0x1218] sm:$0xff]
        %v2344 = vld [vmem:[%s437 + $0x1220] sm:$0xff]
        %v2345 = vld [vmem:[%s437 + $0x1228] sm:$0xff]
        %v2346 = vld [vmem:[%s437 + $0x1230] sm:$0xff]
        %v2347 = vld [vmem:[%s437 + $0x1238] sm:$0xff]
        %v2348 = vld [vmem:[%s437 + $0x1240] sm:$0xff]
        %v2349 = vld [vmem:[%s437 + $0x1248] sm:$0xff]
        %v2350 = vld [vmem:[%s437 + $0x1250] sm:$0xff]
        %v2351 = vld [vmem:[%s437 + $0x1258] sm:$0xff]
        %v2352 = vld [vmem:[%s437 + $0x1260] sm:$0xff]
        %v2353 = vld [vmem:[%s437 + $0x1268] sm:$0xff]
        %v2354 = vld [vmem:[%s437 + $0x1270] sm:$0xff]
        %v2355 = vld [vmem:[%s437 + $0x1278] sm:$0xff]
        %v2356 = vld [vmem:[%s437 + $0x1280] sm:$0xff]
        %v2357 = vld [vmem:[%s437 + $0x1288] sm:$0xff]
        %v2358 = vld [vmem:[%s437 + $0x1290] sm:$0xff]
        %v2359 = vld [vmem:[%s437 + $0x1298] sm:$0xff]
        %v2360 = vld [vmem:[%s437 + $0x12a0] sm:$0xff]
        %v2361 = vld [vmem:[%s437 + $0x12a8] sm:$0xff]
        %v2362 = vld [vmem:[%s437 + $0x12b0] sm:$0xff]
        %v2363 = vld [vmem:[%s437 + $0x12b8] sm:$0xff]
        %v2364 = vld [vmem:[%s437 + $0x12c0] sm:$0xff]
        %v2365 = vld [vmem:[%s437 + $0x12c8] sm:$0xff]
        %v2366 = vld [vmem:[%s437 + $0x12d0] sm:$0xff]
        %v2367 = vld [vmem:[%s437 + $0x12d8] sm:$0xff]
        %v2368 = vld [vmem:[%s437 + $0x12e0] sm:$0xff]
        %v2369 = vld [vmem:[%s437 + $0x12e8] sm:$0xff]
        %v2370 = vld [vmem:[%s437 + $0x12f0] sm:$0xff]
        %v2371 = vld [vmem:[%s437 + $0x12f8] sm:$0xff]
        %v2372 = vld [vmem:[%s437 + $0x1300] sm:$0xff]
        %v2373 = vld [vmem:[%s437 + $0x1308] sm:$0xff]
        %v2374 = vld [vmem:[%s437 + $0x1310] sm:$0xff]
        %v2375 = vld [vmem:[%s437 + $0x1318] sm:$0xff]
        %v2376 = vld [vmem:[%s437 + $0x1320] sm:$0xff]
        %v2377 = vld [vmem:[%s437 + $0x1328] sm:$0xff]
        %v2378 = vld [vmem:[%s437 + $0x1330] sm:$0xff]
        %v2379 = vld [vmem:[%s437 + $0x1338] sm:$0xff]
        %v2380 = vld [vmem:[%s437 + $0x1340] sm:$0xff]
        %v2381 = vld [vmem:[%s437 + $0x1348] sm:$0xff]
        %v2382 = vld [vmem:[%s437 + $0x1350] sm:$0xff]
        %v2383 = vld [vmem:[%s437 + $0x1358] sm:$0xff]
        %v2384 = vld [vmem:[%s437 + $0x1360] sm:$0xff]
        %v2385 = vld [vmem:[%s437 + $0x1368] sm:$0xff]
        %v2386 = vld [vmem:[%s437 + $0x1370] sm:$0xff]
        %v2387 = vld [vmem:[%s437 + $0x1378] sm:$0xff]
        %v2388 = vld [vmem:[%s437 + $0x1380] sm:$0xff]
        %v2389 = vld [vmem:[%s437 + $0x1388] sm:$0xff]
        %v2390 = vld [vmem:[%s437 + $0x1390] sm:$0xff]
        %v2391 = vld [vmem:[%s437 + $0x1398] sm:$0xff]
        %v2392 = vld [vmem:[%s437 + $0x13a0] sm:$0xff]
        %v2393 = vld [vmem:[%s437 + $0x13a8] sm:$0xff]
        %v2394 = vld [vmem:[%s437 + $0x13b0] sm:$0xff]
        %v2395 = vld [vmem:[%s437 + $0x13b8] sm:$0xff]
        %v2396 = vld [vmem:[%s437 + $0x13c0] sm:$0xff]
        %v2397 = vld [vmem:[%s437 + $0x13c8] sm:$0xff]
        %v2398 = vld [vmem:[%s437 + $0x13d0] sm:$0xff]
        %v2399 = vld [vmem:[%s437 + $0x13d8] sm:$0xff]
        %v2400 = vld [vmem:[%s437 + $0x13e0] sm:$0xff]
        %v2401 = vld [vmem:[%s437 + $0x13e8] sm:$0xff]
        %v2402 = vld [vmem:[%s437 + $0x13f0] sm:$0xff]
        %v2403 = vld [vmem:[%s437 + $0x13f8] sm:$0xff]
        %v2404 = vld [vmem:[%s437 + $0x1400] sm:$0xff]
        %v2405 = vld [vmem:[%s437 + $0x1408] sm:$0xff]
        %v2406 = vld [vmem:[%s437 + $0x1410] sm:$0xff]
        %v2407 = vld [vmem:[%s437 + $0x1418] sm:$0xff]
        %v2408 = vld [vmem:[%s437 + $0x1420] sm:$0xff]
        %v2409 = vld [vmem:[%s437 + $0x1428] sm:$0xff]
        %v2410 = vld [vmem:[%s437 + $0x1430] sm:$0xff]
        %v2411 = vld [vmem:[%s437 + $0x1438] sm:$0xff]
        %v2412 = vld [vmem:[%s437 + $0x1440] sm:$0xff]
        %v2413 = vld [vmem:[%s437 + $0x1448] sm:$0xff]
        %v2414 = vld [vmem:[%s437 + $0x1450] sm:$0xff]
        %v2415 = vld [vmem:[%s437 + $0x1458] sm:$0xff]
        %v2416 = vld [vmem:[%s437 + $0x1460] sm:$0xff]
        %v2417 = vld [vmem:[%s437 + $0x1468] sm:$0xff]
        %v2418 = vld [vmem:[%s437 + $0x1470] sm:$0xff]
        %v2419 = vld [vmem:[%s437 + $0x1478] sm:$0xff]
        %v2420 = vld [vmem:[%s437 + $0x1480] sm:$0xff]
        %v2421 = vld [vmem:[%s437 + $0x1488] sm:$0xff]
        %v2422 = vld [vmem:[%s437 + $0x1490] sm:$0xff]
        %v2423 = vld [vmem:[%s437 + $0x1498] sm:$0xff]
        %v2424 = vld [vmem:[%s437 + $0x14a0] sm:$0xff]
        %v2425 = vld [vmem:[%s437 + $0x14a8] sm:$0xff]
        %v2426 = vld [vmem:[%s437 + $0x14b0] sm:$0xff]
        %v2427 = vld [vmem:[%s437 + $0x14b8] sm:$0xff]
        %v2428 = vld [vmem:[%s437 + $0x14c0] sm:$0xff]
        %v2429 = vld [vmem:[%s437 + $0x14c8] sm:$0xff]
        %v2430 = vld [vmem:[%s437 + $0x14d0] sm:$0xff]
        %v2431 = vld [vmem:[%s437 + $0x14d8] sm:$0xff]
        %v2432 = vld [vmem:[%s437 + $0x14e0] sm:$0xff]
        %v2433 = vld [vmem:[%s437 + $0x14e8] sm:$0xff]
        %v2434 = vld [vmem:[%s437 + $0x14f0] sm:$0xff]
        %v2435 = vld [vmem:[%s437 + $0x14f8] sm:$0xff]
        %v2436 = vld [vmem:[%s437 + $0x1500] sm:$0xff]
        %v2437 = vld [vmem:[%s437 + $0x1508] sm:$0xff]
        %v2438 = vld [vmem:[%s437 + $0x1510] sm:$0xff]
        %v2439 = vld [vmem:[%s437 + $0x1518] sm:$0xff]
        %v2440 = vld [vmem:[%s437 + $0x1520] sm:$0xff]
        %v2441 = vld [vmem:[%s437 + $0x1528] sm:$0xff]
        %v2442 = vld [vmem:[%s437 + $0x1530] sm:$0xff]
        %v2443 = vld [vmem:[%s437 + $0x1538] sm:$0xff]
        %v2444 = vld [vmem:[%s437 + $0x1540] sm:$0xff]
        %v2445 = vld [vmem:[%s437 + $0x1548] sm:$0xff]
        %v2446 = vld [vmem:[%s437 + $0x1550] sm:$0xff]
        %v2447 = vld [vmem:[%s437 + $0x1558] sm:$0xff]
        %v2448 = vld [vmem:[%s437 + $0x1560] sm:$0xff]
        %v2449 = vld [vmem:[%s437 + $0x1568] sm:$0xff]
        %v2450 = vld [vmem:[%s437 + $0x1570] sm:$0xff]
        %v2451 = vld [vmem:[%s437 + $0x1578] sm:$0xff]
        %v2452 = vld [vmem:[%s437 + $0x1580] sm:$0xff]
        %v2453 = vld [vmem:[%s437 + $0x1588] sm:$0xff]
        %v2454 = vld [vmem:[%s437 + $0x1590] sm:$0xff]
        %v2455 = vld [vmem:[%s437 + $0x1598] sm:$0xff]
        %v2456 = vld [vmem:[%s437 + $0x15a0] sm:$0xff]
        %v2457 = vld [vmem:[%s437 + $0x15a8] sm:$0xff]
        %v2458 = vld [vmem:[%s437 + $0x15b0] sm:$0xff]
        %v2459 = vld [vmem:[%s437 + $0x15b8] sm:$0xff]
        %v2460 = vld [vmem:[%s437 + $0x15c0] sm:$0xff]
        %v2461 = vld [vmem:[%s437 + $0x15c8] sm:$0xff]
        %v2462 = vld [vmem:[%s437 + $0x15d0] sm:$0xff]
        %v2463 = vld [vmem:[%s437 + $0x15d8] sm:$0xff]
        %v2464 = vld [vmem:[%s437 + $0x15e0] sm:$0xff]
        %v2465 = vld [vmem:[%s437 + $0x15e8] sm:$0xff]
        %v2466 = vld [vmem:[%s437 + $0x15f0] sm:$0xff]
        %v2467 = vld [vmem:[%s437 + $0x15f8] sm:$0xff]
        %v2468 = vld [vmem:[%s437 + $0x1600] sm:$0xff]
        %v2469 = vld [vmem:[%s437 + $0x1608] sm:$0xff]
        %v2470 = vld [vmem:[%s437 + $0x1610] sm:$0xff]
        %v2471 = vld [vmem:[%s437 + $0x1618] sm:$0xff]
        %v2472 = vld [vmem:[%s437 + $0x1620] sm:$0xff]
        %v2473 = vld [vmem:[%s437 + $0x1628] sm:$0xff]
        %v2474 = vld [vmem:[%s437 + $0x1630] sm:$0xff]
        %v2475 = vld [vmem:[%s437 + $0x1638] sm:$0xff]
        %v2476 = vld [vmem:[%s437 + $0x1640] sm:$0xff]
        %v2477 = vld [vmem:[%s437 + $0x1648] sm:$0xff]
        %v2478 = vld [vmem:[%s437 + $0x1650] sm:$0xff]
        %v2479 = vld [vmem:[%s437 + $0x1658] sm:$0xff]
        %v2480 = vld [vmem:[%s437 + $0x1660] sm:$0xff]
        %v2481 = vld [vmem:[%s437 + $0x1668] sm:$0xff]
        %v2482 = vld [vmem:[%s437 + $0x1670] sm:$0xff]
        %v2483 = vld [vmem:[%s437 + $0x1678] sm:$0xff]
        %v2484 = vld [vmem:[%s437 + $0x1680] sm:$0xff]
        %v2485 = vld [vmem:[%s437 + $0x1688] sm:$0xff]
        %v2486 = vld [vmem:[%s437 + $0x1690] sm:$0xff]
        %v2487 = vld [vmem:[%s437 + $0x1698] sm:$0xff]
        %v2488 = vld [vmem:[%s437 + $0x16a0] sm:$0xff]
        %v2489 = vld [vmem:[%s437 + $0x16a8] sm:$0xff]
        %v2490 = vld [vmem:[%s437 + $0x16b0] sm:$0xff]
        %v2491 = vld [vmem:[%s437 + $0x16b8] sm:$0xff]
        %v2492 = vld [vmem:[%s437 + $0x16c0] sm:$0xff]
        %v2493 = vld [vmem:[%s437 + $0x16c8] sm:$0xff]
        %v2494 = vld [vmem:[%s437 + $0x16d0] sm:$0xff]
        %v2495 = vld [vmem:[%s437 + $0x16d8] sm:$0xff]
        %v2496 = vld [vmem:[%s437 + $0x16e0] sm:$0xff]
        %v2497 = vld [vmem:[%s437 + $0x16e8] sm:$0xff]
        %v2498 = vld [vmem:[%s437 + $0x16f0] sm:$0xff]
        %v2499 = vld [vmem:[%s437 + $0x16f8] sm:$0xff]
        %v2500 = vld [vmem:[%s437 + $0x1700] sm:$0xff]
        %v2501 = vld [vmem:[%s437 + $0x1708] sm:$0xff]
        %v2502 = vld [vmem:[%s437 + $0x1710] sm:$0xff]
        %v2503 = vld [vmem:[%s437 + $0x1718] sm:$0xff]
        %v2504 = vld [vmem:[%s437 + $0x1720] sm:$0xff]
        %v2505 = vld [vmem:[%s437 + $0x1728] sm:$0xff]
        %v2506 = vld [vmem:[%s437 + $0x1730] sm:$0xff]
        %v2507 = vld [vmem:[%s437 + $0x1738] sm:$0xff]
        %v2508 = vld [vmem:[%s437 + $0x1740] sm:$0xff]
        %v2509 = vld [vmem:[%s437 + $0x1748] sm:$0xff]
        %v2510 = vld [vmem:[%s437 + $0x1750] sm:$0xff]
        %v2511 = vld [vmem:[%s437 + $0x1758] sm:$0xff]
        %v2512 = vld [vmem:[%s437 + $0x1760] sm:$0xff]
        %v2513 = vld [vmem:[%s437 + $0x1768] sm:$0xff]
        %v2514 = vld [vmem:[%s437 + $0x1770] sm:$0xff]
        %v2515 = vld [vmem:[%s437 + $0x1778] sm:$0xff]
        %v2516 = vld [vmem:[%s437 + $0x1780] sm:$0xff]
        %v2517 = vld [vmem:[%s437 + $0x1788] sm:$0xff]
        %v2518 = vld [vmem:[%s437 + $0x1790] sm:$0xff]
        %v2519 = vld [vmem:[%s437 + $0x1798] sm:$0xff]
        %v2520 = vld [vmem:[%s437 + $0x17a0] sm:$0xff]
        %v2521 = vld [vmem:[%s437 + $0x17a8] sm:$0xff]
        %v2522 = vld [vmem:[%s437 + $0x17b0] sm:$0xff]
        %v2523 = vld [vmem:[%s437 + $0x17b8] sm:$0xff]
        %v2524 = vld [vmem:[%s437 + $0x17c0] sm:$0xff]
        %v2525 = vld [vmem:[%s437 + $0x17c8] sm:$0xff]
        %v2526 = vld [vmem:[%s437 + $0x17d0] sm:$0xff]
        %v2527 = vld [vmem:[%s437 + $0x17d8] sm:$0xff]
        %v2528 = vld [vmem:[%s437 + $0x17e0] sm:$0xff]
        %v2529 = vld [vmem:[%s437 + $0x17e8] sm:$0xff]
        %v2530 = vld [vmem:[%s437 + $0x17f0] sm:$0xff]
        %v2531 = vld [vmem:[%s437 + $0x17f8] sm:$0xff]
        %v2532 = vld [vmem:[%s437 + $0x1800] sm:$0xff]
        %v2533 = vld [vmem:[%s437 + $0x1808] sm:$0xff]
        %v2534 = vld [vmem:[%s437 + $0x1810] sm:$0xff]
        %v2535 = vld [vmem:[%s437 + $0x1818] sm:$0xff]
        %v2536 = vld [vmem:[%s437 + $0x1820] sm:$0xff]
        %v2537 = vld [vmem:[%s437 + $0x1828] sm:$0xff]
        %v2538 = vld [vmem:[%s437 + $0x1830] sm:$0xff]
        %v2539 = vld [vmem:[%s437 + $0x1838] sm:$0xff]
        %v2540 = vld [vmem:[%s437 + $0x1840] sm:$0xff]
        %v2541 = vld [vmem:[%s437 + $0x1848] sm:$0xff]
        %v2542 = vld [vmem:[%s437 + $0x1850] sm:$0xff]
        %v2543 = vld [vmem:[%s437 + $0x1858] sm:$0xff]
        %v2544 = vld [vmem:[%s437 + $0x1860] sm:$0xff]
        %v2545 = vld [vmem:[%s437 + $0x1868] sm:$0xff]
        %v2546 = vld [vmem:[%s437 + $0x1870] sm:$0xff]
        %v2547 = vld [vmem:[%s437 + $0x1878] sm:$0xff]
        %v2548 = vld [vmem:[%s437 + $0x1880] sm:$0xff]
        %v2549 = vld [vmem:[%s437 + $0x1888] sm:$0xff]
        %v2550 = vld [vmem:[%s437 + $0x1890] sm:$0xff]
        %v2551 = vld [vmem:[%s437 + $0x1898] sm:$0xff]
        %v2552 = vld [vmem:[%s437 + $0x18a0] sm:$0xff]
        %v2553 = vld [vmem:[%s437 + $0x18a8] sm:$0xff]
        %v2554 = vld [vmem:[%s437 + $0x18b0] sm:$0xff]
        %v2555 = vld [vmem:[%s437 + $0x18b8] sm:$0xff]
        %v2556 = vld [vmem:[%s437 + $0x18c0] sm:$0xff]
        %v2557 = vld [vmem:[%s437 + $0x18c8] sm:$0xff]
        %v2558 = vld [vmem:[%s437 + $0x18d0] sm:$0xff]
        %v2559 = vld [vmem:[%s437 + $0x18d8] sm:$0xff]
        %v2560 = vld [vmem:[%s437 + $0x18e0] sm:$0xff]
        %v2561 = vld [vmem:[%s437 + $0x18e8] sm:$0xff]
        %v2562 = vld [vmem:[%s437 + $0x18f0] sm:$0xff]
        %v2563 = vld [vmem:[%s437 + $0x18f8] sm:$0xff]
        %v2564 = vld [vmem:[%s437 + $0x1900] sm:$0xff]
        %v2565 = vld [vmem:[%s437 + $0x1908] sm:$0xff]
        %v2566 = vld [vmem:[%s437 + $0x1910] sm:$0xff]
        %v2567 = vld [vmem:[%s437 + $0x1918] sm:$0xff]
        %v2568 = vld [vmem:[%s437 + $0x1920] sm:$0xff]
        %v2569 = vld [vmem:[%s437 + $0x1928] sm:$0xff]
        %v2570 = vld [vmem:[%s437 + $0x1930] sm:$0xff]
        %v2571 = vld [vmem:[%s437 + $0x1938] sm:$0xff]
        %v2572 = vld [vmem:[%s437 + $0x1940] sm:$0xff]
        %v2573 = vld [vmem:[%s437 + $0x1948] sm:$0xff]
        %v2574 = vld [vmem:[%s437 + $0x1950] sm:$0xff]
        %v2575 = vld [vmem:[%s437 + $0x1958] sm:$0xff]
        %v2576 = vld [vmem:[%s437 + $0x1960] sm:$0xff]
        %v2577 = vld [vmem:[%s437 + $0x1968] sm:$0xff]
        %v2578 = vld [vmem:[%s437 + $0x1970] sm:$0xff]
        %v2579 = vld [vmem:[%s437 + $0x1978] sm:$0xff]
        %v2580 = vld [vmem:[%s437 + $0x1980] sm:$0xff]
        %v2581 = vld [vmem:[%s437 + $0x1988] sm:$0xff]
        %v2582 = vld [vmem:[%s437 + $0x1990] sm:$0xff]
        %v2583 = vld [vmem:[%s437 + $0x1998] sm:$0xff]
        %v2584 = vld [vmem:[%s437 + $0x19a0] sm:$0xff]
        %v2585 = vld [vmem:[%s437 + $0x19a8] sm:$0xff]
        %v2586 = vld [vmem:[%s437 + $0x19b0] sm:$0xff]
        %v2587 = vld [vmem:[%s437 + $0x19b8] sm:$0xff]
        %v2588 = vld [vmem:[%s437 + $0x19c0] sm:$0xff]
        %v2589 = vld [vmem:[%s437 + $0x19c8] sm:$0xff]
        %v2590 = vld [vmem:[%s437 + $0x19d0] sm:$0xff]
        %v2591 = vld [vmem:[%s437 + $0x19d8] sm:$0xff]
        %v2592 = vld [vmem:[%s437 + $0x19e0] sm:$0xff]
        %v2593 = vld [vmem:[%s437 + $0x19e8] sm:$0xff]
        %v2594 = vld [vmem:[%s437 + $0x19f0] sm:$0xff]
        %v2595 = vld [vmem:[%s437 + $0x19f8] sm:$0xff]
        %v2596 = vld [vmem:[%s437 + $0x1a00] sm:$0xff]
        %v2597 = vld [vmem:[%s437 + $0x1a08] sm:$0xff]
        %v2598 = vld [vmem:[%s437 + $0x1a10] sm:$0xff]
        %v2599 = vld [vmem:[%s437 + $0x1a18] sm:$0xff]
        %v2600 = vld [vmem:[%s437 + $0x1a20] sm:$0xff]
        %v2601 = vld [vmem:[%s437 + $0x1a28] sm:$0xff]
        %v2602 = vld [vmem:[%s437 + $0x1a30] sm:$0xff]
        %v2603 = vld [vmem:[%s437 + $0x1a38] sm:$0xff]
        %v2604 = vld [vmem:[%s437 + $0x1a40] sm:$0xff]
        %v2605 = vld [vmem:[%s437 + $0x1a48] sm:$0xff]
        %v2606 = vld [vmem:[%s437 + $0x1a50] sm:$0xff]
        %v2607 = vld [vmem:[%s437 + $0x1a58] sm:$0xff]
        %v2608 = vld [vmem:[%s437 + $0x1a60] sm:$0xff]
        %v2609 = vld [vmem:[%s437 + $0x1a68] sm:$0xff]
        %v2610 = vld [vmem:[%s437 + $0x1a70] sm:$0xff]
        %v2611 = vld [vmem:[%s437 + $0x1a78] sm:$0xff]
        %v2612 = vld [vmem:[%s437 + $0x1a80] sm:$0xff]
        %v2613 = vld [vmem:[%s437 + $0x1a88] sm:$0xff]
        %v2614 = vld [vmem:[%s437 + $0x1a90] sm:$0xff]
        %v2615 = vld [vmem:[%s437 + $0x1a98] sm:$0xff]
        %v2616 = vld [vmem:[%s437 + $0x1aa0] sm:$0xff]
        %v2617 = vld [vmem:[%s437 + $0x1aa8] sm:$0xff]
        %v2618 = vld [vmem:[%s437 + $0x1ab0] sm:$0xff]
        %v2619 = vld [vmem:[%s437 + $0x1ab8] sm:$0xff]
        %v2620 = vld [vmem:[%s437 + $0x1ac0] sm:$0xff]
        %v2621 = vld [vmem:[%s437 + $0x1ac8] sm:$0xff]
        %v2622 = vld [vmem:[%s437 + $0x1ad0] sm:$0xff]
        %v2623 = vld [vmem:[%s437 + $0x1ad8] sm:$0xff]
        %v2624 = vld [vmem:[%s437 + $0x1ae0] sm:$0xff]
        %v2625 = vld [vmem:[%s437 + $0x1ae8] sm:$0xff]
        %v2626 = vld [vmem:[%s437 + $0x1af0] sm:$0xff]
        %v2627 = vld [vmem:[%s437 + $0x1af8] sm:$0xff]
        %v2628 = vld [vmem:[%s437 + $0x1b00] sm:$0xff]
        %v2629 = vld [vmem:[%s437 + $0x1b08] sm:$0xff]
        %v2630 = vld [vmem:[%s437 + $0x1b10] sm:$0xff]
        %v2631 = vld [vmem:[%s437 + $0x1b18] sm:$0xff]
        %v2632 = vld [vmem:[%s437 + $0x1b20] sm:$0xff]
        %v2633 = vld [vmem:[%s437 + $0x1b28] sm:$0xff]
        %v2634 = vld [vmem:[%s437 + $0x1b30] sm:$0xff]
        %v2635 = vld [vmem:[%s437 + $0x1b38] sm:$0xff]
        %v2636 = vld [vmem:[%s437 + $0x1b40] sm:$0xff]
        %v2637 = vld [vmem:[%s437 + $0x1b48] sm:$0xff]
        %v2638 = vld [vmem:[%s437 + $0x1b50] sm:$0xff]
        %v2639 = vld [vmem:[%s437 + $0x1b58] sm:$0xff]
        %v2640 = vld [vmem:[%s437 + $0x1b60] sm:$0xff]
        %v2641 = vld [vmem:[%s437 + $0x1b68] sm:$0xff]
        %v2642 = vld [vmem:[%s437 + $0x1b70] sm:$0xff]
        %v2643 = vld [vmem:[%s437 + $0x1b78] sm:$0xff]
        %v2644 = vld [vmem:[%s437 + $0x1b80] sm:$0xff]
        %v2645 = vld [vmem:[%s437 + $0x1b88] sm:$0xff]
        %v2646 = vld [vmem:[%s437 + $0x1b90] sm:$0xff]
        %v2647 = vld [vmem:[%s437 + $0x1b98] sm:$0xff]
        %v2648 = vld [vmem:[%s437 + $0x1ba0] sm:$0xff]
        %v2649 = vld [vmem:[%s437 + $0x1ba8] sm:$0xff]
        %v2650 = vld [vmem:[%s437 + $0x1bb0] sm:$0xff]
        %v2651 = vld [vmem:[%s437 + $0x1bb8] sm:$0xff]
        %v2652 = vld [vmem:[%s437 + $0x1bc0] sm:$0xff]
        %v2653 = vld [vmem:[%s437 + $0x1bc8] sm:$0xff]
        %v2654 = vld [vmem:[%s437 + $0x1bd0] sm:$0xff]
        %v2655 = vld [vmem:[%s437 + $0x1bd8] sm:$0xff]
        %v2656 = vld [vmem:[%s437 + $0x1be0] sm:$0xff]
        %v2657 = vld [vmem:[%s437 + $0x1be8] sm:$0xff]
        %v2658 = vld [vmem:[%s437 + $0x1bf0] sm:$0xff]
        %v2659 = vld [vmem:[%s437 + $0x1bf8] sm:$0xff]
        %v2660 = vld [vmem:[%s437 + $0x1c00] sm:$0xff]
        %v2661 = vld [vmem:[%s437 + $0x1c08] sm:$0xff]
        %v2662 = vld [vmem:[%s437 + $0x1c10] sm:$0xff]
        %v2663 = vld [vmem:[%s437 + $0x1c18] sm:$0xff]
        %v2664 = vld [vmem:[%s437 + $0x1c20] sm:$0xff]
        %v2665 = vld [vmem:[%s437 + $0x1c28] sm:$0xff]
        %v2666 = vld [vmem:[%s437 + $0x1c30] sm:$0xff]
        %v2667 = vld [vmem:[%s437 + $0x1c38] sm:$0xff]
        %v2668 = vld [vmem:[%s437 + $0x1c40] sm:$0xff]
        %v2669 = vld [vmem:[%s437 + $0x1c48] sm:$0xff]
        %v2670 = vld [vmem:[%s437 + $0x1c50] sm:$0xff]
        %v2671 = vld [vmem:[%s437 + $0x1c58] sm:$0xff]
        %v2672 = vld [vmem:[%s437 + $0x1c60] sm:$0xff]
        %v2673 = vld [vmem:[%s437 + $0x1c68] sm:$0xff]
        %v2674 = vld [vmem:[%s437 + $0x1c70] sm:$0xff]
        %v2675 = vld [vmem:[%s437 + $0x1c78] sm:$0xff]
        %v2676 = vld [vmem:[%s437 + $0x1c80] sm:$0xff]
        %v2677 = vld [vmem:[%s437 + $0x1c88] sm:$0xff]
        %v2678 = vld [vmem:[%s437 + $0x1c90] sm:$0xff]
        %v2679 = vld [vmem:[%s437 + $0x1c98] sm:$0xff]
        %v2680 = vld [vmem:[%s437 + $0x1ca0] sm:$0xff]
        %v2681 = vld [vmem:[%s437 + $0x1ca8] sm:$0xff]
        %v2682 = vld [vmem:[%s437 + $0x1cb0] sm:$0xff]
        %v2683 = vld [vmem:[%s437 + $0x1cb8] sm:$0xff]
        %v2684 = vld [vmem:[%s437 + $0x1cc0] sm:$0xff]
        %v2685 = vld [vmem:[%s437 + $0x1cc8] sm:$0xff]
        %v2686 = vld [vmem:[%s437 + $0x1cd0] sm:$0xff]
        %v2687 = vld [vmem:[%s437 + $0x1cd8] sm:$0xff]
        %v2688 = vld [vmem:[%s437 + $0x1ce0] sm:$0xff]
        %v2689 = vld [vmem:[%s437 + $0x1ce8] sm:$0xff]
        %v2690 = vld [vmem:[%s437 + $0x1cf0] sm:$0xff]
        %v2691 = vld [vmem:[%s437 + $0x1cf8] sm:$0xff]
        %v2692 = vld [vmem:[%s437 + $0x1d00] sm:$0xff]
        %v2693 = vld [vmem:[%s437 + $0x1d08] sm:$0xff]
        %v2694 = vld [vmem:[%s437 + $0x1d10] sm:$0xff]
        %v2695 = vld [vmem:[%s437 + $0x1d18] sm:$0xff]
        %v2696 = vld [vmem:[%s437 + $0x1d20] sm:$0xff]
        %v2697 = vld [vmem:[%s437 + $0x1d28] sm:$0xff]
        %v2698 = vld [vmem:[%s437 + $0x1d30] sm:$0xff]
        %v2699 = vld [vmem:[%s437 + $0x1d38] sm:$0xff]
        %v2700 = vld [vmem:[%s437 + $0x1d40] sm:$0xff]
        %v2701 = vld [vmem:[%s437 + $0x1d48] sm:$0xff]
        %v2702 = vld [vmem:[%s437 + $0x1d50] sm:$0xff]
        %v2703 = vld [vmem:[%s437 + $0x1d58] sm:$0xff]
        %v2704 = vld [vmem:[%s437 + $0x1d60] sm:$0xff]
        %v2705 = vld [vmem:[%s437 + $0x1d68] sm:$0xff]
        %v2706 = vld [vmem:[%s437 + $0x1d70] sm:$0xff]
        %v2707 = vld [vmem:[%s437 + $0x1d78] sm:$0xff]
        %v2708 = vld [vmem:[%s437 + $0x1d80] sm:$0xff]
        %v2709 = vld [vmem:[%s437 + $0x1d88] sm:$0xff]
        %v2710 = vld [vmem:[%s437 + $0x1d90] sm:$0xff]
        %v2711 = vld [vmem:[%s437 + $0x1d98] sm:$0xff]
        %v2712 = vld [vmem:[%s437 + $0x1da0] sm:$0xff]
        %v2713 = vld [vmem:[%s437 + $0x1da8] sm:$0xff]
        %v2714 = vld [vmem:[%s437 + $0x1db0] sm:$0xff]
        %v2715 = vld [vmem:[%s437 + $0x1db8] sm:$0xff]
        %v2716 = vld [vmem:[%s437 + $0x1dc0] sm:$0xff]
        %v2717 = vld [vmem:[%s437 + $0x1dc8] sm:$0xff]
        %v2718 = vld [vmem:[%s437 + $0x1dd0] sm:$0xff]
        %v2719 = vld [vmem:[%s437 + $0x1dd8] sm:$0xff]
        %v2720 = vld [vmem:[%s437 + $0x1de0] sm:$0xff]
        %v2721 = vld [vmem:[%s437 + $0x1de8] sm:$0xff]
        %v2722 = vld [vmem:[%s437 + $0x1df0] sm:$0xff]
        %v2723 = vld [vmem:[%s437 + $0x1df8] sm:$0xff]
        %v2724 = vld [vmem:[%s437 + $0x1e00] sm:$0xff]
        %v2725 = vld [vmem:[%s437 + $0x1e08] sm:$0xff]
        %v2726 = vld [vmem:[%s437 + $0x1e10] sm:$0xff]
        %v2727 = vld [vmem:[%s437 + $0x1e18] sm:$0xff]
        %v2728 = vld [vmem:[%s437 + $0x1e20] sm:$0xff]
        %v2729 = vld [vmem:[%s437 + $0x1e28] sm:$0xff]
        %v2730 = vld [vmem:[%s437 + $0x1e30] sm:$0xff]
        %v2731 = vld [vmem:[%s437 + $0x1e38] sm:$0xff]
        %v2732 = vld [vmem:[%s437 + $0x1e40] sm:$0xff]
        %v2733 = vld [vmem:[%s437 + $0x1e48] sm:$0xff]
        %v2734 = vld [vmem:[%s437 + $0x1e50] sm:$0xff]
        %v2735 = vld [vmem:[%s437 + $0x1e58] sm:$0xff]
        %v2736 = vld [vmem:[%s437 + $0x1e60] sm:$0xff]
        %v2737 = vld [vmem:[%s437 + $0x1e68] sm:$0xff]
        %v2738 = vld [vmem:[%s437 + $0x1e70] sm:$0xff]
        %v2739 = vld [vmem:[%s437 + $0x1e78] sm:$0xff]
        %v2740 = vld [vmem:[%s437 + $0x1e80] sm:$0xff]
        %v2741 = vld [vmem:[%s437 + $0x1e88] sm:$0xff]
        %v2742 = vld [vmem:[%s437 + $0x1e90] sm:$0xff]
        %v2743 = vld [vmem:[%s437 + $0x1e98] sm:$0xff]
        %v2744 = vld [vmem:[%s437 + $0x1ea0] sm:$0xff]
        %v2745 = vld [vmem:[%s437 + $0x1ea8] sm:$0xff]
        %v2746 = vld [vmem:[%s437 + $0x1eb0] sm:$0xff]
        %v2747 = vld [vmem:[%s437 + $0x1eb8] sm:$0xff]
        %v2748 = vld [vmem:[%s437 + $0x1ec0] sm:$0xff]
        %v2749 = vld [vmem:[%s437 + $0x1ec8] sm:$0xff]
        %v2750 = vld [vmem:[%s437 + $0x1ed0] sm:$0xff]
        %v2751 = vld [vmem:[%s437 + $0x1ed8] sm:$0xff]
        %v2752 = vld [vmem:[%s437 + $0x1ee0] sm:$0xff]
        %v2753 = vld [vmem:[%s437 + $0x1ee8] sm:$0xff]
        %v2754 = vld [vmem:[%s437 + $0x1ef0] sm:$0xff]
        %v2755 = vld [vmem:[%s437 + $0x1ef8] sm:$0xff]
        %v2756 = vld [vmem:[%s437 + $0x1f00] sm:$0xff]
        %v2757 = vld [vmem:[%s437 + $0x1f08] sm:$0xff]
        %v2758 = vld [vmem:[%s437 + $0x1f10] sm:$0xff]
        %v2759 = vld [vmem:[%s437 + $0x1f18] sm:$0xff]
        %v2760 = vld [vmem:[%s437 + $0x1f20] sm:$0xff]
        %v2761 = vld [vmem:[%s437 + $0x1f28] sm:$0xff]
        %v2762 = vld [vmem:[%s437 + $0x1f30] sm:$0xff]
        %v2763 = vld [vmem:[%s437 + $0x1f38] sm:$0xff]
        %v2764 = vld [vmem:[%s437 + $0x1f40] sm:$0xff]
        %v2765 = vld [vmem:[%s437 + $0x1f48] sm:$0xff]
        %v2766 = vld [vmem:[%s437 + $0x1f50] sm:$0xff]
        %v2767 = vld [vmem:[%s437 + $0x1f58] sm:$0xff]
        %v2768 = vld [vmem:[%s437 + $0x1f60] sm:$0xff]
        %v2769 = vld [vmem:[%s437 + $0x1f68] sm:$0xff]
        %v2770 = vld [vmem:[%s437 + $0x1f70] sm:$0xff]
        %v2771 = vld [vmem:[%s437 + $0x1f78] sm:$0xff]
        %v2772 = vld [vmem:[%s437 + $0x1f80] sm:$0xff]
        %v2773 = vld [vmem:[%s437 + $0x1f88] sm:$0xff]
        %v2774 = vld [vmem:[%s437 + $0x1f90] sm:$0xff]
        %v2775 = vld [vmem:[%s437 + $0x1f98] sm:$0xff]
        %v2776 = vld [vmem:[%s437 + $0x1fa0] sm:$0xff]
        %v2777 = vld [vmem:[%s437 + $0x1fa8] sm:$0xff]
        %v2778 = vld [vmem:[%s437 + $0x1fb0] sm:$0xff]
        %v2779 = vld [vmem:[%s437 + $0x1fb8] sm:$0xff]
        %v2780 = vld [vmem:[%s437 + $0x1fc0] sm:$0xff]
        %v2781 = vld [vmem:[%s437 + $0x1fc8] sm:$0xff]
        %v2782 = vld [vmem:[%s437 + $0x1fd0] sm:$0xff]
        %v2783 = vld [vmem:[%s437 + $0x1fd8] sm:$0xff]
        %v2784 = vld [vmem:[%s437 + $0x1fe0] sm:$0xff]
        %v2785 = vld [vmem:[%s437 + $0x1fe8] sm:$0xff]
        %v2786 = vld [vmem:[%s437 + $0x1ff0] sm:$0xff]
        %v2787 = vld [vmem:[%s437 + $0x1ff8] sm:$0xff]
        %v3300 = vunpack.c.l.b16 %v2276
        %v3301 = vunpack.c.h.b16 %v2276
        %v3302 = vunpack.c.l.b16 %v2277
        %v3303 = vunpack.c.h.b16 %v2277
        %v3304 = vunpack.c.l.b16 %v2278
        %v3305 = vunpack.c.h.b16 %v2278
        %v3306 = vunpack.c.l.b16 %v2279
        %v3307 = vunpack.c.h.b16 %v2279
        %v3308 = vunpack.c.l.b16 %v2280
        %v3309 = vunpack.c.h.b16 %v2280
        %v3310 = vunpack.c.l.b16 %v2281
        %v3311 = vunpack.c.h.b16 %v2281
        %v3312 = vunpack.c.l.b16 %v2282
        %v3313 = vunpack.c.h.b16 %v2282
        %v3314 = vunpack.c.l.b16 %v2283
        %v3315 = vunpack.c.h.b16 %v2283
        %v3316 = vunpack.c.l.b16 %v2284
        %v3317 = vunpack.c.h.b16 %v2284
        %v3318 = vunpack.c.l.b16 %v2285
        %v3319 = vunpack.c.h.b16 %v2285
        %v3320 = vunpack.c.l.b16 %v2286
        %v3321 = vunpack.c.h.b16 %v2286
        %v3322 = vunpack.c.l.b16 %v2287
        %v3323 = vunpack.c.h.b16 %v2287
        %v3324 = vunpack.c.l.b16 %v2288
        %v3325 = vunpack.c.h.b16 %v2288
        %v3326 = vunpack.c.l.b16 %v2289
        %v3327 = vunpack.c.h.b16 %v2289
        %v3328 = vunpack.c.l.b16 %v2290
        %v3329 = vunpack.c.h.b16 %v2290
        %v3330 = vunpack.c.l.b16 %v2291
        %v3331 = vunpack.c.h.b16 %v2291
        %v3332 = vunpack.c.l.b16 %v2292
        %v3333 = vunpack.c.h.b16 %v2292
        %v3334 = vunpack.c.l.b16 %v2293
        %v3335 = vunpack.c.h.b16 %v2293
        %v3336 = vunpack.c.l.b16 %v2294
        %v3337 = vunpack.c.h.b16 %v2294
        %v3338 = vunpack.c.l.b16 %v2295
        %v3339 = vunpack.c.h.b16 %v2295
        %v3340 = vunpack.c.l.b16 %v2296
        %v3341 = vunpack.c.h.b16 %v2296
        %v3342 = vunpack.c.l.b16 %v2297
        %v3343 = vunpack.c.h.b16 %v2297
        %v3344 = vunpack.c.l.b16 %v2298
        %v3345 = vunpack.c.h.b16 %v2298
        %v3346 = vunpack.c.l.b16 %v2299
        %v3347 = vunpack.c.h.b16 %v2299
        %v3348 = vunpack.c.l.b16 %v2300
        %v3349 = vunpack.c.h.b16 %v2300
        %v3350 = vunpack.c.l.b16 %v2301
        %v3351 = vunpack.c.h.b16 %v2301
        %v3352 = vunpack.c.l.b16 %v2302
        %v3353 = vunpack.c.h.b16 %v2302
        %v3354 = vunpack.c.l.b16 %v2303
        %v3355 = vunpack.c.h.b16 %v2303
        %v3356 = vunpack.c.l.b16 %v2304
        %v3357 = vunpack.c.h.b16 %v2304
        %v3358 = vunpack.c.l.b16 %v2305
        %v3359 = vunpack.c.h.b16 %v2305
        %v3360 = vunpack.c.l.b16 %v2306
        %v3361 = vunpack.c.h.b16 %v2306
        %v3362 = vunpack.c.l.b16 %v2307
        %v3363 = vunpack.c.h.b16 %v2307
        %v3364 = vunpack.c.l.b16 %v2308
        %v3365 = vunpack.c.h.b16 %v2308
        %v3366 = vunpack.c.l.b16 %v2309
        %v3367 = vunpack.c.h.b16 %v2309
        %v3368 = vunpack.c.l.b16 %v2310
        %v3369 = vunpack.c.h.b16 %v2310
        %v3370 = vunpack.c.l.b16 %v2311
        %v3371 = vunpack.c.h.b16 %v2311
        %v3372 = vunpack.c.l.b16 %v2312
        %v3373 = vunpack.c.h.b16 %v2312
        %v3374 = vunpack.c.l.b16 %v2313
        %v3375 = vunpack.c.h.b16 %v2313
        %v3376 = vunpack.c.l.b16 %v2314
        %v3377 = vunpack.c.h.b16 %v2314
        %v3378 = vunpack.c.l.b16 %v2315
        %v3379 = vunpack.c.h.b16 %v2315
        %v3380 = vunpack.c.l.b16 %v2316
        %v3381 = vunpack.c.h.b16 %v2316
        %v3382 = vunpack.c.l.b16 %v2317
        %v3383 = vunpack.c.h.b16 %v2317
        %v3384 = vunpack.c.l.b16 %v2318
        %v3385 = vunpack.c.h.b16 %v2318
        %v3386 = vunpack.c.l.b16 %v2319
        %v3387 = vunpack.c.h.b16 %v2319
        %v3388 = vunpack.c.l.b16 %v2320
        %v3389 = vunpack.c.h.b16 %v2320
        %v3390 = vunpack.c.l.b16 %v2321
        %v3391 = vunpack.c.h.b16 %v2321
        %v3392 = vunpack.c.l.b16 %v2322
        %v3393 = vunpack.c.h.b16 %v2322
        %v3394 = vunpack.c.l.b16 %v2323
        %v3395 = vunpack.c.h.b16 %v2323
        %v3396 = vunpack.c.l.b16 %v2324
        %v3397 = vunpack.c.h.b16 %v2324
        %v3398 = vunpack.c.l.b16 %v2325
        %v3399 = vunpack.c.h.b16 %v2325
        %v3400 = vunpack.c.l.b16 %v2326
        %v3401 = vunpack.c.h.b16 %v2326
        %v3402 = vunpack.c.l.b16 %v2327
        %v3403 = vunpack.c.h.b16 %v2327
        %v3404 = vunpack.c.l.b16 %v2328
        %v3405 = vunpack.c.h.b16 %v2328
        %v3406 = vunpack.c.l.b16 %v2329
        %v3407 = vunpack.c.h.b16 %v2329
        %v3408 = vunpack.c.l.b16 %v2330
        %v3409 = vunpack.c.h.b16 %v2330
        %v3410 = vunpack.c.l.b16 %v2331
        %v3411 = vunpack.c.h.b16 %v2331
        %v3412 = vunpack.c.l.b16 %v2332
        %v3413 = vunpack.c.h.b16 %v2332
        %v3414 = vunpack.c.l.b16 %v2333
        %v3415 = vunpack.c.h.b16 %v2333
        %v3416 = vunpack.c.l.b16 %v2334
        %v3417 = vunpack.c.h.b16 %v2334
        %v3418 = vunpack.c.l.b16 %v2335
        %v3419 = vunpack.c.h.b16 %v2335
        %v3420 = vunpack.c.l.b16 %v2336
        %v3421 = vunpack.c.h.b16 %v2336
        %v3422 = vunpack.c.l.b16 %v2337
        %v3423 = vunpack.c.h.b16 %v2337
        %v3424 = vunpack.c.l.b16 %v2338
        %v3425 = vunpack.c.h.b16 %v2338
        %v3426 = vunpack.c.l.b16 %v2339
        %v3427 = vunpack.c.h.b16 %v2339
        %v3428 = vunpack.c.l.b16 %v2340
        %v3429 = vunpack.c.h.b16 %v2340
        %v3430 = vunpack.c.l.b16 %v2341
        %v3431 = vunpack.c.h.b16 %v2341
        %v3432 = vunpack.c.l.b16 %v2342
        %v3433 = vunpack.c.h.b16 %v2342
        %v3434 = vunpack.c.l.b16 %v2343
        %v3435 = vunpack.c.h.b16 %v2343
        %v3436 = vunpack.c.l.b16 %v2344
        %v3437 = vunpack.c.h.b16 %v2344
        %v3438 = vunpack.c.l.b16 %v2345
        %v3439 = vunpack.c.h.b16 %v2345
        %v3440 = vunpack.c.l.b16 %v2346
        %v3441 = vunpack.c.h.b16 %v2346
        %v3442 = vunpack.c.l.b16 %v2347
        %v3443 = vunpack.c.h.b16 %v2347
        %v3444 = vunpack.c.l.b16 %v2348
        %v3445 = vunpack.c.h.b16 %v2348
        %v3446 = vunpack.c.l.b16 %v2349
        %v3447 = vunpack.c.h.b16 %v2349
        %v3448 = vunpack.c.l.b16 %v2350
        %v3449 = vunpack.c.h.b16 %v2350
        %v3450 = vunpack.c.l.b16 %v2351
        %v3451 = vunpack.c.h.b16 %v2351
        %v3452 = vunpack.c.l.b16 %v2352
        %v3453 = vunpack.c.h.b16 %v2352
        %v3454 = vunpack.c.l.b16 %v2353
        %v3455 = vunpack.c.h.b16 %v2353
        %v3456 = vunpack.c.l.b16 %v2354
        %v3457 = vunpack.c.h.b16 %v2354
        %v3458 = vunpack.c.l.b16 %v2355
        %v3459 = vunpack.c.h.b16 %v2355
        %v3460 = vunpack.c.l.b16 %v2356
        %v3461 = vunpack.c.h.b16 %v2356
        %v3462 = vunpack.c.l.b16 %v2357
        %v3463 = vunpack.c.h.b16 %v2357
        %v3464 = vunpack.c.l.b16 %v2358
        %v3465 = vunpack.c.h.b16 %v2358
        %v3466 = vunpack.c.l.b16 %v2359
        %v3467 = vunpack.c.h.b16 %v2359
        %v3468 = vunpack.c.l.b16 %v2360
        %v3469 = vunpack.c.h.b16 %v2360
        %v3470 = vunpack.c.l.b16 %v2361
        %v3471 = vunpack.c.h.b16 %v2361
        %v3472 = vunpack.c.l.b16 %v2362
        %v3473 = vunpack.c.h.b16 %v2362
        %v3474 = vunpack.c.l.b16 %v2363
        %v3475 = vunpack.c.h.b16 %v2363
        %v3476 = vunpack.c.l.b16 %v2364
        %v3477 = vunpack.c.h.b16 %v2364
        %v3478 = vunpack.c.l.b16 %v2365
        %v3479 = vunpack.c.h.b16 %v2365
        %v3480 = vunpack.c.l.b16 %v2366
        %v3481 = vunpack.c.h.b16 %v2366
        %v3482 = vunpack.c.l.b16 %v2367
        %v3483 = vunpack.c.h.b16 %v2367
        %v3484 = vunpack.c.l.b16 %v2368
        %v3485 = vunpack.c.h.b16 %v2368
        %v3486 = vunpack.c.l.b16 %v2369
        %v3487 = vunpack.c.h.b16 %v2369
        %v3488 = vunpack.c.l.b16 %v2370
        %v3489 = vunpack.c.h.b16 %v2370
        %v3490 = vunpack.c.l.b16 %v2371
        %v3491 = vunpack.c.h.b16 %v2371
        %v3492 = vunpack.c.l.b16 %v2372
        %v3493 = vunpack.c.h.b16 %v2372
        %v3494 = vunpack.c.l.b16 %v2373
        %v3495 = vunpack.c.h.b16 %v2373
        %v3496 = vunpack.c.l.b16 %v2374
        %v3497 = vunpack.c.h.b16 %v2374
        %v3498 = vunpack.c.l.b16 %v2375
        %v3499 = vunpack.c.h.b16 %v2375
        %v3500 = vunpack.c.l.b16 %v2376
        %v3501 = vunpack.c.h.b16 %v2376
        %v3502 = vunpack.c.l.b16 %v2377
        %v3503 = vunpack.c.h.b16 %v2377
        %v3504 = vunpack.c.l.b16 %v2378
        %v3505 = vunpack.c.h.b16 %v2378
        %v3506 = vunpack.c.l.b16 %v2379
        %v3507 = vunpack.c.h.b16 %v2379
        %v3508 = vunpack.c.l.b16 %v2380
        %v3509 = vunpack.c.h.b16 %v2380
        %v3510 = vunpack.c.l.b16 %v2381
        %v3511 = vunpack.c.h.b16 %v2381
        %v3512 = vunpack.c.l.b16 %v2382
        %v3513 = vunpack.c.h.b16 %v2382
        %v3514 = vunpack.c.l.b16 %v2383
        %v3515 = vunpack.c.h.b16 %v2383
        %v3516 = vunpack.c.l.b16 %v2384
        %v3517 = vunpack.c.h.b16 %v2384
        %v3518 = vunpack.c.l.b16 %v2385
        %v3519 = vunpack.c.h.b16 %v2385
        %v3520 = vunpack.c.l.b16 %v2386
        %v3521 = vunpack.c.h.b16 %v2386
        %v3522 = vunpack.c.l.b16 %v2387
        %v3523 = vunpack.c.h.b16 %v2387
        %v3524 = vunpack.c.l.b16 %v2388
        %v3525 = vunpack.c.h.b16 %v2388
        %v3526 = vunpack.c.l.b16 %v2389
        %v3527 = vunpack.c.h.b16 %v2389
        %v3528 = vunpack.c.l.b16 %v2390
        %v3529 = vunpack.c.h.b16 %v2390
        %v3530 = vunpack.c.l.b16 %v2391
        %v3531 = vunpack.c.h.b16 %v2391
        %v3532 = vunpack.c.l.b16 %v2392
        %v3533 = vunpack.c.h.b16 %v2392
        %v3534 = vunpack.c.l.b16 %v2393
        %v3535 = vunpack.c.h.b16 %v2393
        %v3536 = vunpack.c.l.b16 %v2394
        %v3537 = vunpack.c.h.b16 %v2394
        %v3538 = vunpack.c.l.b16 %v2395
        %v3539 = vunpack.c.h.b16 %v2395
        %v3540 = vunpack.c.l.b16 %v2396
        %v3541 = vunpack.c.h.b16 %v2396
        %v3542 = vunpack.c.l.b16 %v2397
        %v3543 = vunpack.c.h.b16 %v2397
        %v3544 = vunpack.c.l.b16 %v2398
        %v3545 = vunpack.c.h.b16 %v2398
        %v3546 = vunpack.c.l.b16 %v2399
        %v3547 = vunpack.c.h.b16 %v2399
        %v3548 = vunpack.c.l.b16 %v2400
        %v3549 = vunpack.c.h.b16 %v2400
        %v3550 = vunpack.c.l.b16 %v2401
        %v3551 = vunpack.c.h.b16 %v2401
        %v3552 = vunpack.c.l.b16 %v2402
        %v3553 = vunpack.c.h.b16 %v2402
        %v3554 = vunpack.c.l.b16 %v2403
        %v3555 = vunpack.c.h.b16 %v2403
        %v3556 = vunpack.c.l.b16 %v2404
        %v3557 = vunpack.c.h.b16 %v2404
        %v3558 = vunpack.c.l.b16 %v2405
        %v3559 = vunpack.c.h.b16 %v2405
        %v3560 = vunpack.c.l.b16 %v2406
        %v3561 = vunpack.c.h.b16 %v2406
        %v3562 = vunpack.c.l.b16 %v2407
        %v3563 = vunpack.c.h.b16 %v2407
        %v3564 = vunpack.c.l.b16 %v2408
        %v3565 = vunpack.c.h.b16 %v2408
        %v3566 = vunpack.c.l.b16 %v2409
        %v3567 = vunpack.c.h.b16 %v2409
        %v3568 = vunpack.c.l.b16 %v2410
        %v3569 = vunpack.c.h.b16 %v2410
        %v3570 = vunpack.c.l.b16 %v2411
        %v3571 = vunpack.c.h.b16 %v2411
        %v3572 = vunpack.c.l.b16 %v2412
        %v3573 = vunpack.c.h.b16 %v2412
        %v3574 = vunpack.c.l.b16 %v2413
        %v3575 = vunpack.c.h.b16 %v2413
        %v3576 = vunpack.c.l.b16 %v2414
        %v3577 = vunpack.c.h.b16 %v2414
        %v3578 = vunpack.c.l.b16 %v2415
        %v3579 = vunpack.c.h.b16 %v2415
        %v3580 = vunpack.c.l.b16 %v2416
        %v3581 = vunpack.c.h.b16 %v2416
        %v3582 = vunpack.c.l.b16 %v2417
        %v3583 = vunpack.c.h.b16 %v2417
        %v3584 = vunpack.c.l.b16 %v2418
        %v3585 = vunpack.c.h.b16 %v2418
        %v3586 = vunpack.c.l.b16 %v2419
        %v3587 = vunpack.c.h.b16 %v2419
        %v3588 = vunpack.c.l.b16 %v2420
        %v3589 = vunpack.c.h.b16 %v2420
        %v3590 = vunpack.c.l.b16 %v2421
        %v3591 = vunpack.c.h.b16 %v2421
        %v3592 = vunpack.c.l.b16 %v2422
        %v3593 = vunpack.c.h.b16 %v2422
        %v3594 = vunpack.c.l.b16 %v2423
        %v3595 = vunpack.c.h.b16 %v2423
        %v3596 = vunpack.c.l.b16 %v2424
        %v3597 = vunpack.c.h.b16 %v2424
        %v3598 = vunpack.c.l.b16 %v2425
        %v3599 = vunpack.c.h.b16 %v2425
        %v3600 = vunpack.c.l.b16 %v2426
        %v3601 = vunpack.c.h.b16 %v2426
        %v3602 = vunpack.c.l.b16 %v2427
        %v3603 = vunpack.c.h.b16 %v2427
        %v3604 = vunpack.c.l.b16 %v2428
        %v3605 = vunpack.c.h.b16 %v2428
        %v3606 = vunpack.c.l.b16 %v2429
        %v3607 = vunpack.c.h.b16 %v2429
        %v3608 = vunpack.c.l.b16 %v2430
        %v3609 = vunpack.c.h.b16 %v2430
        %v3610 = vunpack.c.l.b16 %v2431
        %v3611 = vunpack.c.h.b16 %v2431
        %v3612 = vunpack.c.l.b16 %v2432
        %v3613 = vunpack.c.h.b16 %v2432
        %v3614 = vunpack.c.l.b16 %v2433
        %v3615 = vunpack.c.h.b16 %v2433
        %v3616 = vunpack.c.l.b16 %v2434
        %v3617 = vunpack.c.h.b16 %v2434
        %v3618 = vunpack.c.l.b16 %v2435
        %v3619 = vunpack.c.h.b16 %v2435
        %v3620 = vunpack.c.l.b16 %v2436
        %v3621 = vunpack.c.h.b16 %v2436
        %v3622 = vunpack.c.l.b16 %v2437
        %v3623 = vunpack.c.h.b16 %v2437
        %v3624 = vunpack.c.l.b16 %v2438
        %v3625 = vunpack.c.h.b16 %v2438
        %v3626 = vunpack.c.l.b16 %v2439
        %v3627 = vunpack.c.h.b16 %v2439
        %v3628 = vunpack.c.l.b16 %v2440
        %v3629 = vunpack.c.h.b16 %v2440
        %v3630 = vunpack.c.l.b16 %v2441
        %v3631 = vunpack.c.h.b16 %v2441
        %v3632 = vunpack.c.l.b16 %v2442
        %v3633 = vunpack.c.h.b16 %v2442
        %v3634 = vunpack.c.l.b16 %v2443
        %v3635 = vunpack.c.h.b16 %v2443
        %v3636 = vunpack.c.l.b16 %v2444
        %v3637 = vunpack.c.h.b16 %v2444
        %v3638 = vunpack.c.l.b16 %v2445
        %v3639 = vunpack.c.h.b16 %v2445
        %v3640 = vunpack.c.l.b16 %v2446
        %v3641 = vunpack.c.h.b16 %v2446
        %v3642 = vunpack.c.l.b16 %v2447
        %v3643 = vunpack.c.h.b16 %v2447
        %v3644 = vunpack.c.l.b16 %v2448
        %v3645 = vunpack.c.h.b16 %v2448
        %v3646 = vunpack.c.l.b16 %v2449
        %v3647 = vunpack.c.h.b16 %v2449
        %v3648 = vunpack.c.l.b16 %v2450
        %v3649 = vunpack.c.h.b16 %v2450
        %v3650 = vunpack.c.l.b16 %v2451
        %v3651 = vunpack.c.h.b16 %v2451
        %v3652 = vunpack.c.l.b16 %v2452
        %v3653 = vunpack.c.h.b16 %v2452
        %v3654 = vunpack.c.l.b16 %v2453
        %v3655 = vunpack.c.h.b16 %v2453
        %v3656 = vunpack.c.l.b16 %v2454
        %v3657 = vunpack.c.h.b16 %v2454
        %v3658 = vunpack.c.l.b16 %v2455
        %v3659 = vunpack.c.h.b16 %v2455
        %v3660 = vunpack.c.l.b16 %v2456
        %v3661 = vunpack.c.h.b16 %v2456
        %v3662 = vunpack.c.l.b16 %v2457
        %v3663 = vunpack.c.h.b16 %v2457
        %v3664 = vunpack.c.l.b16 %v2458
        %v3665 = vunpack.c.h.b16 %v2458
        %v3666 = vunpack.c.l.b16 %v2459
        %v3667 = vunpack.c.h.b16 %v2459
        %v3668 = vunpack.c.l.b16 %v2460
        %v3669 = vunpack.c.h.b16 %v2460
        %v3670 = vunpack.c.l.b16 %v2461
        %v3671 = vunpack.c.h.b16 %v2461
        %v3672 = vunpack.c.l.b16 %v2462
        %v3673 = vunpack.c.h.b16 %v2462
        %v3674 = vunpack.c.l.b16 %v2463
        %v3675 = vunpack.c.h.b16 %v2463
        %v3676 = vunpack.c.l.b16 %v2464
        %v3677 = vunpack.c.h.b16 %v2464
        %v3678 = vunpack.c.l.b16 %v2465
        %v3679 = vunpack.c.h.b16 %v2465
        %v3680 = vunpack.c.l.b16 %v2466
        %v3681 = vunpack.c.h.b16 %v2466
        %v3682 = vunpack.c.l.b16 %v2467
        %v3683 = vunpack.c.h.b16 %v2467
        %v3684 = vunpack.c.l.b16 %v2468
        %v3685 = vunpack.c.h.b16 %v2468
        %v3686 = vunpack.c.l.b16 %v2469
        %v3687 = vunpack.c.h.b16 %v2469
        %v3688 = vunpack.c.l.b16 %v2470
        %v3689 = vunpack.c.h.b16 %v2470
        %v3690 = vunpack.c.l.b16 %v2471
        %v3691 = vunpack.c.h.b16 %v2471
        %v3692 = vunpack.c.l.b16 %v2472
        %v3693 = vunpack.c.h.b16 %v2472
        %v3694 = vunpack.c.l.b16 %v2473
        %v3695 = vunpack.c.h.b16 %v2473
        %v3696 = vunpack.c.l.b16 %v2474
        %v3697 = vunpack.c.h.b16 %v2474
        %v3698 = vunpack.c.l.b16 %v2475
        %v3699 = vunpack.c.h.b16 %v2475
        %v3700 = vunpack.c.l.b16 %v2476
        %v3701 = vunpack.c.h.b16 %v2476
        %v3702 = vunpack.c.l.b16 %v2477
        %v3703 = vunpack.c.h.b16 %v2477
        %v3704 = vunpack.c.l.b16 %v2478
        %v3705 = vunpack.c.h.b16 %v2478
        %v3706 = vunpack.c.l.b16 %v2479
        %v3707 = vunpack.c.h.b16 %v2479
        %v3708 = vunpack.c.l.b16 %v2480
        %v3709 = vunpack.c.h.b16 %v2480
        %v3710 = vunpack.c.l.b16 %v2481
        %v3711 = vunpack.c.h.b16 %v2481
        %v3712 = vunpack.c.l.b16 %v2482
        %v3713 = vunpack.c.h.b16 %v2482
        %v3714 = vunpack.c.l.b16 %v2483
        %v3715 = vunpack.c.h.b16 %v2483
        %v3716 = vunpack.c.l.b16 %v2484
        %v3717 = vunpack.c.h.b16 %v2484
        %v3718 = vunpack.c.l.b16 %v2485
        %v3719 = vunpack.c.h.b16 %v2485
        %v3720 = vunpack.c.l.b16 %v2486
        %v3721 = vunpack.c.h.b16 %v2486
        %v3722 = vunpack.c.l.b16 %v2487
        %v3723 = vunpack.c.h.b16 %v2487
        %v3724 = vunpack.c.l.b16 %v2488
        %v3725 = vunpack.c.h.b16 %v2488
        %v3726 = vunpack.c.l.b16 %v2489
        %v3727 = vunpack.c.h.b16 %v2489
        %v3728 = vunpack.c.l.b16 %v2490
        %v3729 = vunpack.c.h.b16 %v2490
        %v3730 = vunpack.c.l.b16 %v2491
        %v3731 = vunpack.c.h.b16 %v2491
        %v3732 = vunpack.c.l.b16 %v2492
        %v3733 = vunpack.c.h.b16 %v2492
        %v3734 = vunpack.c.l.b16 %v2493
        %v3735 = vunpack.c.h.b16 %v2493
        %v3736 = vunpack.c.l.b16 %v2494
        %v3737 = vunpack.c.h.b16 %v2494
        %v3738 = vunpack.c.l.b16 %v2495
        %v3739 = vunpack.c.h.b16 %v2495
        %v3740 = vunpack.c.l.b16 %v2496
        %v3741 = vunpack.c.h.b16 %v2496
        %v3742 = vunpack.c.l.b16 %v2497
        %v3743 = vunpack.c.h.b16 %v2497
        %v3744 = vunpack.c.l.b16 %v2498
        %v3745 = vunpack.c.h.b16 %v2498
        %v3746 = vunpack.c.l.b16 %v2499
        %v3747 = vunpack.c.h.b16 %v2499
        %v3748 = vunpack.c.l.b16 %v2500
        %v3749 = vunpack.c.h.b16 %v2500
        %v3750 = vunpack.c.l.b16 %v2501
        %v3751 = vunpack.c.h.b16 %v2501
        %v3752 = vunpack.c.l.b16 %v2502
        %v3753 = vunpack.c.h.b16 %v2502
        %v3754 = vunpack.c.l.b16 %v2503
        %v3755 = vunpack.c.h.b16 %v2503
        %v3756 = vunpack.c.l.b16 %v2504
        %v3757 = vunpack.c.h.b16 %v2504
        %v3758 = vunpack.c.l.b16 %v2505
        %v3759 = vunpack.c.h.b16 %v2505
        %v3760 = vunpack.c.l.b16 %v2506
        %v3761 = vunpack.c.h.b16 %v2506
        %v3762 = vunpack.c.l.b16 %v2507
        %v3763 = vunpack.c.h.b16 %v2507
        %v3764 = vunpack.c.l.b16 %v2508
        %v3765 = vunpack.c.h.b16 %v2508
        %v3766 = vunpack.c.l.b16 %v2509
        %v3767 = vunpack.c.h.b16 %v2509
        %v3768 = vunpack.c.l.b16 %v2510
        %v3769 = vunpack.c.h.b16 %v2510
        %v3770 = vunpack.c.l.b16 %v2511
        %v3771 = vunpack.c.h.b16 %v2511
        %v3772 = vunpack.c.l.b16 %v2512
        %v3773 = vunpack.c.h.b16 %v2512
        %v3774 = vunpack.c.l.b16 %v2513
        %v3775 = vunpack.c.h.b16 %v2513
        %v3776 = vunpack.c.l.b16 %v2514
        %v3777 = vunpack.c.h.b16 %v2514
        %v3778 = vunpack.c.l.b16 %v2515
        %v3779 = vunpack.c.h.b16 %v2515
        %v3780 = vunpack.c.l.b16 %v2516
        %v3781 = vunpack.c.h.b16 %v2516
        %v3782 = vunpack.c.l.b16 %v2517
        %v3783 = vunpack.c.h.b16 %v2517
        %v3784 = vunpack.c.l.b16 %v2518
        %v3785 = vunpack.c.h.b16 %v2518
        %v3786 = vunpack.c.l.b16 %v2519
        %v3787 = vunpack.c.h.b16 %v2519
        %v3788 = vunpack.c.l.b16 %v2520
        %v3789 = vunpack.c.h.b16 %v2520
        %v3790 = vunpack.c.l.b16 %v2521
        %v3791 = vunpack.c.h.b16 %v2521
        %v3792 = vunpack.c.l.b16 %v2522
        %v3793 = vunpack.c.h.b16 %v2522
        %v3794 = vunpack.c.l.b16 %v2523
        %v3795 = vunpack.c.h.b16 %v2523
        %v3796 = vunpack.c.l.b16 %v2524
        %v3797 = vunpack.c.h.b16 %v2524
        %v3798 = vunpack.c.l.b16 %v2525
        %v3799 = vunpack.c.h.b16 %v2525
        %v3800 = vunpack.c.l.b16 %v2526
        %v3801 = vunpack.c.h.b16 %v2526
        %v3802 = vunpack.c.l.b16 %v2527
        %v3803 = vunpack.c.h.b16 %v2527
        %v3804 = vunpack.c.l.b16 %v2528
        %v3805 = vunpack.c.h.b16 %v2528
        %v3806 = vunpack.c.l.b16 %v2529
        %v3807 = vunpack.c.h.b16 %v2529
        %v3808 = vunpack.c.l.b16 %v2530
        %v3809 = vunpack.c.h.b16 %v2530
        %v3810 = vunpack.c.l.b16 %v2531
        %v3811 = vunpack.c.h.b16 %v2531
        %v3812 = vunpack.c.l.b16 %v2532
        %v3813 = vunpack.c.h.b16 %v2532
        %v3814 = vunpack.c.l.b16 %v2533
        %v3815 = vunpack.c.h.b16 %v2533
        %v3816 = vunpack.c.l.b16 %v2534
        %v3817 = vunpack.c.h.b16 %v2534
        %v3818 = vunpack.c.l.b16 %v2535
        %v3819 = vunpack.c.h.b16 %v2535
        %v3820 = vunpack.c.l.b16 %v2536
        %v3821 = vunpack.c.h.b16 %v2536
        %v3822 = vunpack.c.l.b16 %v2537
        %v3823 = vunpack.c.h.b16 %v2537
        %v3824 = vunpack.c.l.b16 %v2538
        %v3825 = vunpack.c.h.b16 %v2538
        %v3826 = vunpack.c.l.b16 %v2539
        %v3827 = vunpack.c.h.b16 %v2539
        %v3828 = vunpack.c.l.b16 %v2540
        %v3829 = vunpack.c.h.b16 %v2540
        %v3830 = vunpack.c.l.b16 %v2541
        %v3831 = vunpack.c.h.b16 %v2541
        %v3832 = vunpack.c.l.b16 %v2542
        %v3833 = vunpack.c.h.b16 %v2542
        %v3834 = vunpack.c.l.b16 %v2543
        %v3835 = vunpack.c.h.b16 %v2543
        %v3836 = vunpack.c.l.b16 %v2544
        %v3837 = vunpack.c.h.b16 %v2544
        %v3838 = vunpack.c.l.b16 %v2545
        %v3839 = vunpack.c.h.b16 %v2545
        %v3840 = vunpack.c.l.b16 %v2546
        %v3841 = vunpack.c.h.b16 %v2546
        %v3842 = vunpack.c.l.b16 %v2547
        %v3843 = vunpack.c.h.b16 %v2547
        %v3844 = vunpack.c.l.b16 %v2548
        %v3845 = vunpack.c.h.b16 %v2548
        %v3846 = vunpack.c.l.b16 %v2549
        %v3847 = vunpack.c.h.b16 %v2549
        %v3848 = vunpack.c.l.b16 %v2550
        %v3849 = vunpack.c.h.b16 %v2550
        %v3850 = vunpack.c.l.b16 %v2551
        %v3851 = vunpack.c.h.b16 %v2551
        %v3852 = vunpack.c.l.b16 %v2552
        %v3853 = vunpack.c.h.b16 %v2552
        %v3854 = vunpack.c.l.b16 %v2553
        %v3855 = vunpack.c.h.b16 %v2553
        %v3856 = vunpack.c.l.b16 %v2554
        %v3857 = vunpack.c.h.b16 %v2554
        %v3858 = vunpack.c.l.b16 %v2555
        %v3859 = vunpack.c.h.b16 %v2555
        %v3860 = vunpack.c.l.b16 %v2556
        %v3861 = vunpack.c.h.b16 %v2556
        %v3862 = vunpack.c.l.b16 %v2557
        %v3863 = vunpack.c.h.b16 %v2557
        %v3864 = vunpack.c.l.b16 %v2558
        %v3865 = vunpack.c.h.b16 %v2558
        %v3866 = vunpack.c.l.b16 %v2559
        %v3867 = vunpack.c.h.b16 %v2559
        %v3868 = vunpack.c.l.b16 %v2560
        %v3869 = vunpack.c.h.b16 %v2560
        %v3870 = vunpack.c.l.b16 %v2561
        %v3871 = vunpack.c.h.b16 %v2561
        %v3872 = vunpack.c.l.b16 %v2562
        %v3873 = vunpack.c.h.b16 %v2562
        %v3874 = vunpack.c.l.b16 %v2563
        %v3875 = vunpack.c.h.b16 %v2563
        %v3876 = vunpack.c.l.b16 %v2564
        %v3877 = vunpack.c.h.b16 %v2564
        %v3878 = vunpack.c.l.b16 %v2565
        %v3879 = vunpack.c.h.b16 %v2565
        %v3880 = vunpack.c.l.b16 %v2566
        %v3881 = vunpack.c.h.b16 %v2566
        %v3882 = vunpack.c.l.b16 %v2567
        %v3883 = vunpack.c.h.b16 %v2567
        %v3884 = vunpack.c.l.b16 %v2568
        %v3885 = vunpack.c.h.b16 %v2568
        %v3886 = vunpack.c.l.b16 %v2569
        %v3887 = vunpack.c.h.b16 %v2569
        %v3888 = vunpack.c.l.b16 %v2570
        %v3889 = vunpack.c.h.b16 %v2570
        %v3890 = vunpack.c.l.b16 %v2571
        %v3891 = vunpack.c.h.b16 %v2571
        %v3892 = vunpack.c.l.b16 %v2572
        %v3893 = vunpack.c.h.b16 %v2572
        %v3894 = vunpack.c.l.b16 %v2573
        %v3895 = vunpack.c.h.b16 %v2573
        %v3896 = vunpack.c.l.b16 %v2574
        %v3897 = vunpack.c.h.b16 %v2574
        %v3898 = vunpack.c.l.b16 %v2575
        %v3899 = vunpack.c.h.b16 %v2575
        %v3900 = vunpack.c.l.b16 %v2576
        %v3901 = vunpack.c.h.b16 %v2576
        %v3902 = vunpack.c.l.b16 %v2577
        %v3903 = vunpack.c.h.b16 %v2577
        %v3904 = vunpack.c.l.b16 %v2578
        %v3905 = vunpack.c.h.b16 %v2578
        %v3906 = vunpack.c.l.b16 %v2579
        %v3907 = vunpack.c.h.b16 %v2579
        %v3908 = vunpack.c.l.b16 %v2580
        %v3909 = vunpack.c.h.b16 %v2580
        %v3910 = vunpack.c.l.b16 %v2581
        %v3911 = vunpack.c.h.b16 %v2581
        %v3912 = vunpack.c.l.b16 %v2582
        %v3913 = vunpack.c.h.b16 %v2582
        %v3914 = vunpack.c.l.b16 %v2583
        %v3915 = vunpack.c.h.b16 %v2583
        %v3916 = vunpack.c.l.b16 %v2584
        %v3917 = vunpack.c.h.b16 %v2584
        %v3918 = vunpack.c.l.b16 %v2585
        %v3919 = vunpack.c.h.b16 %v2585
        %v3920 = vunpack.c.l.b16 %v2586
        %v3921 = vunpack.c.h.b16 %v2586
        %v3922 = vunpack.c.l.b16 %v2587
        %v3923 = vunpack.c.h.b16 %v2587
        %v3924 = vunpack.c.l.b16 %v2588
        %v3925 = vunpack.c.h.b16 %v2588
        %v3926 = vunpack.c.l.b16 %v2589
        %v3927 = vunpack.c.h.b16 %v2589
        %v3928 = vunpack.c.l.b16 %v2590
        %v3929 = vunpack.c.h.b16 %v2590
        %v3930 = vunpack.c.l.b16 %v2591
        %v3931 = vunpack.c.h.b16 %v2591
        %v3932 = vunpack.c.l.b16 %v2592
        %v3933 = vunpack.c.h.b16 %v2592
        %v3934 = vunpack.c.l.b16 %v2593
        %v3935 = vunpack.c.h.b16 %v2593
        %v3936 = vunpack.c.l.b16 %v2594
        %v3937 = vunpack.c.h.b16 %v2594
        %v3938 = vunpack.c.l.b16 %v2595
        %v3939 = vunpack.c.h.b16 %v2595
        %v3940 = vunpack.c.l.b16 %v2596
        %v3941 = vunpack.c.h.b16 %v2596
        %v3942 = vunpack.c.l.b16 %v2597
        %v3943 = vunpack.c.h.b16 %v2597
        %v3944 = vunpack.c.l.b16 %v2598
        %v3945 = vunpack.c.h.b16 %v2598
        %v3946 = vunpack.c.l.b16 %v2599
        %v3947 = vunpack.c.h.b16 %v2599
        %v3948 = vunpack.c.l.b16 %v2600
        %v3949 = vunpack.c.h.b16 %v2600
        %v3950 = vunpack.c.l.b16 %v2601
        %v3951 = vunpack.c.h.b16 %v2601
        %v3952 = vunpack.c.l.b16 %v2602
        %v3953 = vunpack.c.h.b16 %v2602
        %v3954 = vunpack.c.l.b16 %v2603
        %v3955 = vunpack.c.h.b16 %v2603
        %v3956 = vunpack.c.l.b16 %v2604
        %v3957 = vunpack.c.h.b16 %v2604
        %v3958 = vunpack.c.l.b16 %v2605
        %v3959 = vunpack.c.h.b16 %v2605
        %v3960 = vunpack.c.l.b16 %v2606
        %v3961 = vunpack.c.h.b16 %v2606
        %v3962 = vunpack.c.l.b16 %v2607
        %v3963 = vunpack.c.h.b16 %v2607
        %v3964 = vunpack.c.l.b16 %v2608
        %v3965 = vunpack.c.h.b16 %v2608
        %v3966 = vunpack.c.l.b16 %v2609
        %v3967 = vunpack.c.h.b16 %v2609
        %v3968 = vunpack.c.l.b16 %v2610
        %v3969 = vunpack.c.h.b16 %v2610
        %v3970 = vunpack.c.l.b16 %v2611
        %v3971 = vunpack.c.h.b16 %v2611
        %v3972 = vunpack.c.l.b16 %v2612
        %v3973 = vunpack.c.h.b16 %v2612
        %v3974 = vunpack.c.l.b16 %v2613
        %v3975 = vunpack.c.h.b16 %v2613
        %v3976 = vunpack.c.l.b16 %v2614
        %v3977 = vunpack.c.h.b16 %v2614
        %v3978 = vunpack.c.l.b16 %v2615
        %v3979 = vunpack.c.h.b16 %v2615
        %v3980 = vunpack.c.l.b16 %v2616
        %v3981 = vunpack.c.h.b16 %v2616
        %v3982 = vunpack.c.l.b16 %v2617
        %v3983 = vunpack.c.h.b16 %v2617
        %v3984 = vunpack.c.l.b16 %v2618
        %v3985 = vunpack.c.h.b16 %v2618
        %v3986 = vunpack.c.l.b16 %v2619
        %v3987 = vunpack.c.h.b16 %v2619
        %v3988 = vunpack.c.l.b16 %v2620
        %v3989 = vunpack.c.h.b16 %v2620
        %v3990 = vunpack.c.l.b16 %v2621
        %v3991 = vunpack.c.h.b16 %v2621
        %v3992 = vunpack.c.l.b16 %v2622
        %v3993 = vunpack.c.h.b16 %v2622
        %v3994 = vunpack.c.l.b16 %v2623
        %v3995 = vunpack.c.h.b16 %v2623
        %v3996 = vunpack.c.l.b16 %v2624
        %v3997 = vunpack.c.h.b16 %v2624
        %v3998 = vunpack.c.l.b16 %v2625
        %v3999 = vunpack.c.h.b16 %v2625
        %v4000 = vunpack.c.l.b16 %v2626
        %v4001 = vunpack.c.h.b16 %v2626
        %v4002 = vunpack.c.l.b16 %v2627
        %v4003 = vunpack.c.h.b16 %v2627
        %v4004 = vunpack.c.l.b16 %v2628
        %v4005 = vunpack.c.h.b16 %v2628
        %v4006 = vunpack.c.l.b16 %v2629
        %v4007 = vunpack.c.h.b16 %v2629
        %v4008 = vunpack.c.l.b16 %v2630
        %v4009 = vunpack.c.h.b16 %v2630
        %v4010 = vunpack.c.l.b16 %v2631
        %v4011 = vunpack.c.h.b16 %v2631
        %v4012 = vunpack.c.l.b16 %v2632
        %v4013 = vunpack.c.h.b16 %v2632
        %v4014 = vunpack.c.l.b16 %v2633
        %v4015 = vunpack.c.h.b16 %v2633
        %v4016 = vunpack.c.l.b16 %v2634
        %v4017 = vunpack.c.h.b16 %v2634
        %v4018 = vunpack.c.l.b16 %v2635
        %v4019 = vunpack.c.h.b16 %v2635
        %v4020 = vunpack.c.l.b16 %v2636
        %v4021 = vunpack.c.h.b16 %v2636
        %v4022 = vunpack.c.l.b16 %v2637
        %v4023 = vunpack.c.h.b16 %v2637
        %v4024 = vunpack.c.l.b16 %v2638
        %v4025 = vunpack.c.h.b16 %v2638
        %v4026 = vunpack.c.l.b16 %v2639
        %v4027 = vunpack.c.h.b16 %v2639
        %v4028 = vunpack.c.l.b16 %v2640
        %v4029 = vunpack.c.h.b16 %v2640
        %v4030 = vunpack.c.l.b16 %v2641
        %v4031 = vunpack.c.h.b16 %v2641
        %v4032 = vunpack.c.l.b16 %v2642
        %v4033 = vunpack.c.h.b16 %v2642
        %v4034 = vunpack.c.l.b16 %v2643
        %v4035 = vunpack.c.h.b16 %v2643
        %v4036 = vunpack.c.l.b16 %v2644
        %v4037 = vunpack.c.h.b16 %v2644
        %v4038 = vunpack.c.l.b16 %v2645
        %v4039 = vunpack.c.h.b16 %v2645
        %v4040 = vunpack.c.l.b16 %v2646
        %v4041 = vunpack.c.h.b16 %v2646
        %v4042 = vunpack.c.l.b16 %v2647
        %v4043 = vunpack.c.h.b16 %v2647
        %v4044 = vunpack.c.l.b16 %v2648
        %v4045 = vunpack.c.h.b16 %v2648
        %v4046 = vunpack.c.l.b16 %v2649
        %v4047 = vunpack.c.h.b16 %v2649
        %v4048 = vunpack.c.l.b16 %v2650
        %v4049 = vunpack.c.h.b16 %v2650
        %v4050 = vunpack.c.l.b16 %v2651
        %v4051 = vunpack.c.h.b16 %v2651
        %v4052 = vunpack.c.l.b16 %v2652
        %v4053 = vunpack.c.h.b16 %v2652
        %v4054 = vunpack.c.l.b16 %v2653
        %v4055 = vunpack.c.h.b16 %v2653
        %v4056 = vunpack.c.l.b16 %v2654
        %v4057 = vunpack.c.h.b16 %v2654
        %v4058 = vunpack.c.l.b16 %v2655
        %v4059 = vunpack.c.h.b16 %v2655
        %v4060 = vunpack.c.l.b16 %v2656
        %v4061 = vunpack.c.h.b16 %v2656
        %v4062 = vunpack.c.l.b16 %v2657
        %v4063 = vunpack.c.h.b16 %v2657
        %v4064 = vunpack.c.l.b16 %v2658
        %v4065 = vunpack.c.h.b16 %v2658
        %v4066 = vunpack.c.l.b16 %v2659
        %v4067 = vunpack.c.h.b16 %v2659
        %v4068 = vunpack.c.l.b16 %v2660
        %v4069 = vunpack.c.h.b16 %v2660
        %v4070 = vunpack.c.l.b16 %v2661
        %v4071 = vunpack.c.h.b16 %v2661
        %v4072 = vunpack.c.l.b16 %v2662
        %v4073 = vunpack.c.h.b16 %v2662
        %v4074 = vunpack.c.l.b16 %v2663
        %v4075 = vunpack.c.h.b16 %v2663
        %v4076 = vunpack.c.l.b16 %v2664
        %v4077 = vunpack.c.h.b16 %v2664
        %v4078 = vunpack.c.l.b16 %v2665
        %v4079 = vunpack.c.h.b16 %v2665
        %v4080 = vunpack.c.l.b16 %v2666
        %v4081 = vunpack.c.h.b16 %v2666
        %v4082 = vunpack.c.l.b16 %v2667
        %v4083 = vunpack.c.h.b16 %v2667
        %v4084 = vunpack.c.l.b16 %v2668
        %v4085 = vunpack.c.h.b16 %v2668
        %v4086 = vunpack.c.l.b16 %v2669
        %v4087 = vunpack.c.h.b16 %v2669
        %v4088 = vunpack.c.l.b16 %v2670
        %v4089 = vunpack.c.h.b16 %v2670
        %v4090 = vunpack.c.l.b16 %v2671
        %v4091 = vunpack.c.h.b16 %v2671
        %v4092 = vunpack.c.l.b16 %v2672
        %v4093 = vunpack.c.h.b16 %v2672
        %v4094 = vunpack.c.l.b16 %v2673
        %v4095 = vunpack.c.h.b16 %v2673
        %v4096 = vunpack.c.l.b16 %v2674
        %v4097 = vunpack.c.h.b16 %v2674
        %v4098 = vunpack.c.l.b16 %v2675
        %v4099 = vunpack.c.h.b16 %v2675
        %v4100 = vunpack.c.l.b16 %v2676
        %v4101 = vunpack.c.h.b16 %v2676
        %v4102 = vunpack.c.l.b16 %v2677
        %v4103 = vunpack.c.h.b16 %v2677
        %v4104 = vunpack.c.l.b16 %v2678
        %v4105 = vunpack.c.h.b16 %v2678
        %v4106 = vunpack.c.l.b16 %v2679
        %v4107 = vunpack.c.h.b16 %v2679
        %v4108 = vunpack.c.l.b16 %v2680
        %v4109 = vunpack.c.h.b16 %v2680
        %v4110 = vunpack.c.l.b16 %v2681
        %v4111 = vunpack.c.h.b16 %v2681
        %v4112 = vunpack.c.l.b16 %v2682
        %v4113 = vunpack.c.h.b16 %v2682
        %v4114 = vunpack.c.l.b16 %v2683
        %v4115 = vunpack.c.h.b16 %v2683
        %v4116 = vunpack.c.l.b16 %v2684
        %v4117 = vunpack.c.h.b16 %v2684
        %v4118 = vunpack.c.l.b16 %v2685
        %v4119 = vunpack.c.h.b16 %v2685
        %v4120 = vunpack.c.l.b16 %v2686
        %v4121 = vunpack.c.h.b16 %v2686
        %v4122 = vunpack.c.l.b16 %v2687
        %v4123 = vunpack.c.h.b16 %v2687
        %v4124 = vunpack.c.l.b16 %v2688
        %v4125 = vunpack.c.h.b16 %v2688
        %v4126 = vunpack.c.l.b16 %v2689
        %v4127 = vunpack.c.h.b16 %v2689
        %v4128 = vunpack.c.l.b16 %v2690
        %v4129 = vunpack.c.h.b16 %v2690
        %v4130 = vunpack.c.l.b16 %v2691
        %v4131 = vunpack.c.h.b16 %v2691
        %v4132 = vunpack.c.l.b16 %v2692
        %v4133 = vunpack.c.h.b16 %v2692
        %v4134 = vunpack.c.l.b16 %v2693
        %v4135 = vunpack.c.h.b16 %v2693
        %v4136 = vunpack.c.l.b16 %v2694
        %v4137 = vunpack.c.h.b16 %v2694
        %v4138 = vunpack.c.l.b16 %v2695
        %v4139 = vunpack.c.h.b16 %v2695
        %v4140 = vunpack.c.l.b16 %v2696
        %v4141 = vunpack.c.h.b16 %v2696
        %v4142 = vunpack.c.l.b16 %v2697
        %v4143 = vunpack.c.h.b16 %v2697
        %v4144 = vunpack.c.l.b16 %v2698
        %v4145 = vunpack.c.h.b16 %v2698
        %v4146 = vunpack.c.l.b16 %v2699
        %v4147 = vunpack.c.h.b16 %v2699
        %v4148 = vunpack.c.l.b16 %v2700
        %v4149 = vunpack.c.h.b16 %v2700
        %v4150 = vunpack.c.l.b16 %v2701
        %v4151 = vunpack.c.h.b16 %v2701
        %v4152 = vunpack.c.l.b16 %v2702
        %v4153 = vunpack.c.h.b16 %v2702
        %v4154 = vunpack.c.l.b16 %v2703
        %v4155 = vunpack.c.h.b16 %v2703
        %v4156 = vunpack.c.l.b16 %v2704
        %v4157 = vunpack.c.h.b16 %v2704
        %v4158 = vunpack.c.l.b16 %v2705
        %v4159 = vunpack.c.h.b16 %v2705
        %v4160 = vunpack.c.l.b16 %v2706
        %v4161 = vunpack.c.h.b16 %v2706
        %v4162 = vunpack.c.l.b16 %v2707
        %v4163 = vunpack.c.h.b16 %v2707
        %v4164 = vunpack.c.l.b16 %v2708
        %v4165 = vunpack.c.h.b16 %v2708
        %v4166 = vunpack.c.l.b16 %v2709
        %v4167 = vunpack.c.h.b16 %v2709
        %v4168 = vunpack.c.l.b16 %v2710
        %v4169 = vunpack.c.h.b16 %v2710
        %v4170 = vunpack.c.l.b16 %v2711
        %v4171 = vunpack.c.h.b16 %v2711
        %v4172 = vunpack.c.l.b16 %v2712
        %v4173 = vunpack.c.h.b16 %v2712
        %v4174 = vunpack.c.l.b16 %v2713
        %v4175 = vunpack.c.h.b16 %v2713
        %v4176 = vunpack.c.l.b16 %v2714
        %v4177 = vunpack.c.h.b16 %v2714
        %v4178 = vunpack.c.l.b16 %v2715
        %v4179 = vunpack.c.h.b16 %v2715
        %v4180 = vunpack.c.l.b16 %v2716
        %v4181 = vunpack.c.h.b16 %v2716
        %v4182 = vunpack.c.l.b16 %v2717
        %v4183 = vunpack.c.h.b16 %v2717
        %v4184 = vunpack.c.l.b16 %v2718
        %v4185 = vunpack.c.h.b16 %v2718
        %v4186 = vunpack.c.l.b16 %v2719
        %v4187 = vunpack.c.h.b16 %v2719
        %v4188 = vunpack.c.l.b16 %v2720
        %v4189 = vunpack.c.h.b16 %v2720
        %v4190 = vunpack.c.l.b16 %v2721
        %v4191 = vunpack.c.h.b16 %v2721
        %v4192 = vunpack.c.l.b16 %v2722
        %v4193 = vunpack.c.h.b16 %v2722
        %v4194 = vunpack.c.l.b16 %v2723
        %v4195 = vunpack.c.h.b16 %v2723
        %v4196 = vunpack.c.l.b16 %v2724
        %v4197 = vunpack.c.h.b16 %v2724
        %v4198 = vunpack.c.l.b16 %v2725
        %v4199 = vunpack.c.h.b16 %v2725
        %v4200 = vunpack.c.l.b16 %v2726
        %v4201 = vunpack.c.h.b16 %v2726
        %v4202 = vunpack.c.l.b16 %v2727
        %v4203 = vunpack.c.h.b16 %v2727
        %v4204 = vunpack.c.l.b16 %v2728
        %v4205 = vunpack.c.h.b16 %v2728
        %v4206 = vunpack.c.l.b16 %v2729
        %v4207 = vunpack.c.h.b16 %v2729
        %v4208 = vunpack.c.l.b16 %v2730
        %v4209 = vunpack.c.h.b16 %v2730
        %v4210 = vunpack.c.l.b16 %v2731
        %v4211 = vunpack.c.h.b16 %v2731
        %v4212 = vunpack.c.l.b16 %v2732
        %v4213 = vunpack.c.h.b16 %v2732
        %v4214 = vunpack.c.l.b16 %v2733
        %v4215 = vunpack.c.h.b16 %v2733
        %v4216 = vunpack.c.l.b16 %v2734
        %v4217 = vunpack.c.h.b16 %v2734
        %v4218 = vunpack.c.l.b16 %v2735
        %v4219 = vunpack.c.h.b16 %v2735
        %v4220 = vunpack.c.l.b16 %v2736
        %v4221 = vunpack.c.h.b16 %v2736
        %v4222 = vunpack.c.l.b16 %v2737
        %v4223 = vunpack.c.h.b16 %v2737
        %v4224 = vunpack.c.l.b16 %v2738
        %v4225 = vunpack.c.h.b16 %v2738
        %v4226 = vunpack.c.l.b16 %v2739
        %v4227 = vunpack.c.h.b16 %v2739
        %v4228 = vunpack.c.l.b16 %v2740
        %v4229 = vunpack.c.h.b16 %v2740
        %v4230 = vunpack.c.l.b16 %v2741
        %v4231 = vunpack.c.h.b16 %v2741
        %v4232 = vunpack.c.l.b16 %v2742
        %v4233 = vunpack.c.h.b16 %v2742
        %v4234 = vunpack.c.l.b16 %v2743
        %v4235 = vunpack.c.h.b16 %v2743
        %v4236 = vunpack.c.l.b16 %v2744
        %v4237 = vunpack.c.h.b16 %v2744
        %v4238 = vunpack.c.l.b16 %v2745
        %v4239 = vunpack.c.h.b16 %v2745
        %v4240 = vunpack.c.l.b16 %v2746
        %v4241 = vunpack.c.h.b16 %v2746
        %v4242 = vunpack.c.l.b16 %v2747
        %v4243 = vunpack.c.h.b16 %v2747
        %v4244 = vunpack.c.l.b16 %v2748
        %v4245 = vunpack.c.h.b16 %v2748
        %v4246 = vunpack.c.l.b16 %v2749
        %v4247 = vunpack.c.h.b16 %v2749
        %v4248 = vunpack.c.l.b16 %v2750
        %v4249 = vunpack.c.h.b16 %v2750
        %v4250 = vunpack.c.l.b16 %v2751
        %v4251 = vunpack.c.h.b16 %v2751
        %v4252 = vunpack.c.l.b16 %v2752
        %v4253 = vunpack.c.h.b16 %v2752
        %v4254 = vunpack.c.l.b16 %v2753
        %v4255 = vunpack.c.h.b16 %v2753
        %v4256 = vunpack.c.l.b16 %v2754
        %v4257 = vunpack.c.h.b16 %v2754
        %v4258 = vunpack.c.l.b16 %v2755
        %v4259 = vunpack.c.h.b16 %v2755
        %v4260 = vunpack.c.l.b16 %v2756
        %v4261 = vunpack.c.h.b16 %v2756
        %v4262 = vunpack.c.l.b16 %v2757
        %v4263 = vunpack.c.h.b16 %v2757
        %v4264 = vunpack.c.l.b16 %v2758
        %v4265 = vunpack.c.h.b16 %v2758
        %v4266 = vunpack.c.l.b16 %v2759
        %v4267 = vunpack.c.h.b16 %v2759
        %v4268 = vunpack.c.l.b16 %v2760
        %v4269 = vunpack.c.h.b16 %v2760
        %v4270 = vunpack.c.l.b16 %v2761
        %v4271 = vunpack.c.h.b16 %v2761
        %v4272 = vunpack.c.l.b16 %v2762
        %v4273 = vunpack.c.h.b16 %v2762
        %v4274 = vunpack.c.l.b16 %v2763
        %v4275 = vunpack.c.h.b16 %v2763
        %v4276 = vunpack.c.l.b16 %v2764
        %v4277 = vunpack.c.h.b16 %v2764
        %v4278 = vunpack.c.l.b16 %v2765
        %v4279 = vunpack.c.h.b16 %v2765
        %v4280 = vunpack.c.l.b16 %v2766
        %v4281 = vunpack.c.h.b16 %v2766
        %v4282 = vunpack.c.l.b16 %v2767
        %v4283 = vunpack.c.h.b16 %v2767
        %v4284 = vunpack.c.l.b16 %v2768
        %v4285 = vunpack.c.h.b16 %v2768
        %v4286 = vunpack.c.l.b16 %v2769
        %v4287 = vunpack.c.h.b16 %v2769
        %v4288 = vunpack.c.l.b16 %v2770
        %v4289 = vunpack.c.h.b16 %v2770
        %v4290 = vunpack.c.l.b16 %v2771
        %v4291 = vunpack.c.h.b16 %v2771
        %v4292 = vunpack.c.l.b16 %v2772
        %v4293 = vunpack.c.h.b16 %v2772
        %v4294 = vunpack.c.l.b16 %v2773
        %v4295 = vunpack.c.h.b16 %v2773
        %v4296 = vunpack.c.l.b16 %v2774
        %v4297 = vunpack.c.h.b16 %v2774
        %v4298 = vunpack.c.l.b16 %v2775
        %v4299 = vunpack.c.h.b16 %v2775
        %v4300 = vunpack.c.l.b16 %v2776
        %v4301 = vunpack.c.h.b16 %v2776
        %v4302 = vunpack.c.l.b16 %v2777
        %v4303 = vunpack.c.h.b16 %v2777
        %v4304 = vunpack.c.l.b16 %v2778
        %v4305 = vunpack.c.h.b16 %v2778
        %v4306 = vunpack.c.l.b16 %v2779
        %v4307 = vunpack.c.h.b16 %v2779
        %v4308 = vunpack.c.l.b16 %v2780
        %v4309 = vunpack.c.h.b16 %v2780
        %v4310 = vunpack.c.l.b16 %v2781
        %v4311 = vunpack.c.h.b16 %v2781
        %v4312 = vunpack.c.l.b16 %v2782
        %v4313 = vunpack.c.h.b16 %v2782
        %v4314 = vunpack.c.l.b16 %v2783
        %v4315 = vunpack.c.h.b16 %v2783
        %v4316 = vunpack.c.l.b16 %v2784
        %v4317 = vunpack.c.h.b16 %v2784
        %v4318 = vunpack.c.l.b16 %v2785
        %v4319 = vunpack.c.h.b16 %v2785
        %v4320 = vunpack.c.l.b16 %v2786
        %v4321 = vunpack.c.h.b16 %v2786
        %v4322 = vunpack.c.l.b16 %v2787
        %v4323 = vunpack.c.h.b16 %v2787
        %v4324 = vpack.c.b16 %v3308, %v3300
        %v4325 = vpack.c.b16 %v3309, %v3301
        %v4326 = vpack.c.b16 %v3310, %v3302
        %v4327 = vpack.c.b16 %v3311, %v3303
        %v4328 = vpack.c.b16 %v3312, %v3304
        %v4329 = vpack.c.b16 %v3313, %v3305
        %v4330 = vpack.c.b16 %v3314, %v3306
        %v4331 = vpack.c.b16 %v3315, %v3307
        %v4332 = vpack.c.b16 %v3324, %v3316
        %v4333 = vpack.c.b16 %v3325, %v3317
        %v4334 = vpack.c.b16 %v3326, %v3318
        %v4335 = vpack.c.b16 %v3327, %v3319
        %v4336 = vpack.c.b16 %v3328, %v3320
        %v4337 = vpack.c.b16 %v3329, %v3321
        %v4338 = vpack.c.b16 %v3330, %v3322
        %v4339 = vpack.c.b16 %v3331, %v3323
        %v4340 = vpack.c.b16 %v3340, %v3332
        %v4341 = vpack.c.b16 %v3341, %v3333
        %v4342 = vpack.c.b16 %v3342, %v3334
        %v4343 = vpack.c.b16 %v3343, %v3335
        %v4344 = vpack.c.b16 %v3344, %v3336
        %v4345 = vpack.c.b16 %v3345, %v3337
        %v4346 = vpack.c.b16 %v3346, %v3338
        %v4347 = vpack.c.b16 %v3347, %v3339
        %v4348 = vpack.c.b16 %v3356, %v3348
        %v4349 = vpack.c.b16 %v3357, %v3349
        %v4350 = vpack.c.b16 %v3358, %v3350
        %v4351 = vpack.c.b16 %v3359, %v3351
        %v4352 = vpack.c.b16 %v3360, %v3352
        %v4353 = vpack.c.b16 %v3361, %v3353
        %v4354 = vpack.c.b16 %v3362, %v3354
        %v4355 = vpack.c.b16 %v3363, %v3355
        %v4356 = vpack.c.b16 %v3372, %v3364
        %v4357 = vpack.c.b16 %v3373, %v3365
        %v4358 = vpack.c.b16 %v3374, %v3366
        %v4359 = vpack.c.b16 %v3375, %v3367
        %v4360 = vpack.c.b16 %v3376, %v3368
        %v4361 = vpack.c.b16 %v3377, %v3369
        %v4362 = vpack.c.b16 %v3378, %v3370
        %v4363 = vpack.c.b16 %v3379, %v3371
        %v4364 = vpack.c.b16 %v3388, %v3380
        %v4365 = vpack.c.b16 %v3389, %v3381
        %v4366 = vpack.c.b16 %v3390, %v3382
        %v4367 = vpack.c.b16 %v3391, %v3383
        %v4368 = vpack.c.b16 %v3392, %v3384
        %v4369 = vpack.c.b16 %v3393, %v3385
        %v4370 = vpack.c.b16 %v3394, %v3386
        %v4371 = vpack.c.b16 %v3395, %v3387
        %v4372 = vpack.c.b16 %v3404, %v3396
        %v4373 = vpack.c.b16 %v3405, %v3397
        %v4374 = vpack.c.b16 %v3406, %v3398
        %v4375 = vpack.c.b16 %v3407, %v3399
        %v4376 = vpack.c.b16 %v3408, %v3400
        %v4377 = vpack.c.b16 %v3409, %v3401
        %v4378 = vpack.c.b16 %v3410, %v3402
        %v4379 = vpack.c.b16 %v3411, %v3403
        %v4380 = vpack.c.b16 %v3420, %v3412
        %v4381 = vpack.c.b16 %v3421, %v3413
        %v4382 = vpack.c.b16 %v3422, %v3414
        %v4383 = vpack.c.b16 %v3423, %v3415
        %v4384 = vpack.c.b16 %v3424, %v3416
        %v4385 = vpack.c.b16 %v3425, %v3417
        %v4386 = vpack.c.b16 %v3426, %v3418
        %v4387 = vpack.c.b16 %v3427, %v3419
        %v4388 = vpack.c.b16 %v3436, %v3428
        %v4389 = vpack.c.b16 %v3437, %v3429
        %v4390 = vpack.c.b16 %v3438, %v3430
        %v4391 = vpack.c.b16 %v3439, %v3431
        %v4392 = vpack.c.b16 %v3440, %v3432
        %v4393 = vpack.c.b16 %v3441, %v3433
        %v4394 = vpack.c.b16 %v3442, %v3434
        %v4395 = vpack.c.b16 %v3443, %v3435
        %v4396 = vpack.c.b16 %v3452, %v3444
        %v4397 = vpack.c.b16 %v3453, %v3445
        %v4398 = vpack.c.b16 %v3454, %v3446
        %v4399 = vpack.c.b16 %v3455, %v3447
        %v4400 = vpack.c.b16 %v3456, %v3448
        %v4401 = vpack.c.b16 %v3457, %v3449
        %v4402 = vpack.c.b16 %v3458, %v3450
        %v4403 = vpack.c.b16 %v3459, %v3451
        %v4404 = vpack.c.b16 %v3468, %v3460
        %v4405 = vpack.c.b16 %v3469, %v3461
        %v4406 = vpack.c.b16 %v3470, %v3462
        %v4407 = vpack.c.b16 %v3471, %v3463
        %v4408 = vpack.c.b16 %v3472, %v3464
        %v4409 = vpack.c.b16 %v3473, %v3465
        %v4410 = vpack.c.b16 %v3474, %v3466
        %v4411 = vpack.c.b16 %v3475, %v3467
        %v4412 = vpack.c.b16 %v3484, %v3476
        %v4413 = vpack.c.b16 %v3485, %v3477
        %v4414 = vpack.c.b16 %v3486, %v3478
        %v4415 = vpack.c.b16 %v3487, %v3479
        %v4416 = vpack.c.b16 %v3488, %v3480
        %v4417 = vpack.c.b16 %v3489, %v3481
        %v4418 = vpack.c.b16 %v3490, %v3482
        %v4419 = vpack.c.b16 %v3491, %v3483
        %v4420 = vpack.c.b16 %v3500, %v3492
        %v4421 = vpack.c.b16 %v3501, %v3493
        %v4422 = vpack.c.b16 %v3502, %v3494
        %v4423 = vpack.c.b16 %v3503, %v3495
        %v4424 = vpack.c.b16 %v3504, %v3496
        %v4425 = vpack.c.b16 %v3505, %v3497
        %v4426 = vpack.c.b16 %v3506, %v3498
        %v4427 = vpack.c.b16 %v3507, %v3499
        %v4428 = vpack.c.b16 %v3516, %v3508
        %v4429 = vpack.c.b16 %v3517, %v3509
        %v4430 = vpack.c.b16 %v3518, %v3510
        %v4431 = vpack.c.b16 %v3519, %v3511
        %v4432 = vpack.c.b16 %v3520, %v3512
        %v4433 = vpack.c.b16 %v3521, %v3513
        %v4434 = vpack.c.b16 %v3522, %v3514
        %v4435 = vpack.c.b16 %v3523, %v3515
        %v4436 = vpack.c.b16 %v3532, %v3524
        %v4437 = vpack.c.b16 %v3533, %v3525
        %v4438 = vpack.c.b16 %v3534, %v3526
        %v4439 = vpack.c.b16 %v3535, %v3527
        %v4440 = vpack.c.b16 %v3536, %v3528
        %v4441 = vpack.c.b16 %v3537, %v3529
        %v4442 = vpack.c.b16 %v3538, %v3530
        %v4443 = vpack.c.b16 %v3539, %v3531
        %v4444 = vpack.c.b16 %v3548, %v3540
        %v4445 = vpack.c.b16 %v3549, %v3541
        %v4446 = vpack.c.b16 %v3550, %v3542
        %v4447 = vpack.c.b16 %v3551, %v3543
        %v4448 = vpack.c.b16 %v3552, %v3544
        %v4449 = vpack.c.b16 %v3553, %v3545
        %v4450 = vpack.c.b16 %v3554, %v3546
        %v4451 = vpack.c.b16 %v3555, %v3547
        %v4452 = vpack.c.b16 %v3564, %v3556
        %v4453 = vpack.c.b16 %v3565, %v3557
        %v4454 = vpack.c.b16 %v3566, %v3558
        %v4455 = vpack.c.b16 %v3567, %v3559
        %v4456 = vpack.c.b16 %v3568, %v3560
        %v4457 = vpack.c.b16 %v3569, %v3561
        %v4458 = vpack.c.b16 %v3570, %v3562
        %v4459 = vpack.c.b16 %v3571, %v3563
        %v4460 = vpack.c.b16 %v3580, %v3572
        %v4461 = vpack.c.b16 %v3581, %v3573
        %v4462 = vpack.c.b16 %v3582, %v3574
        %v4463 = vpack.c.b16 %v3583, %v3575
        %v4464 = vpack.c.b16 %v3584, %v3576
        %v4465 = vpack.c.b16 %v3585, %v3577
        %v4466 = vpack.c.b16 %v3586, %v3578
        %v4467 = vpack.c.b16 %v3587, %v3579
        %v4468 = vpack.c.b16 %v3596, %v3588
        %v4469 = vpack.c.b16 %v3597, %v3589
        %v4470 = vpack.c.b16 %v3598, %v3590
        %v4471 = vpack.c.b16 %v3599, %v3591
        %v4472 = vpack.c.b16 %v3600, %v3592
        %v4473 = vpack.c.b16 %v3601, %v3593
        %v4474 = vpack.c.b16 %v3602, %v3594
        %v4475 = vpack.c.b16 %v3603, %v3595
        %v4476 = vpack.c.b16 %v3612, %v3604
        %v4477 = vpack.c.b16 %v3613, %v3605
        %v4478 = vpack.c.b16 %v3614, %v3606
        %v4479 = vpack.c.b16 %v3615, %v3607
        %v4480 = vpack.c.b16 %v3616, %v3608
        %v4481 = vpack.c.b16 %v3617, %v3609
        %v4482 = vpack.c.b16 %v3618, %v3610
        %v4483 = vpack.c.b16 %v3619, %v3611
        %v4484 = vpack.c.b16 %v3628, %v3620
        %v4485 = vpack.c.b16 %v3629, %v3621
        %v4486 = vpack.c.b16 %v3630, %v3622
        %v4487 = vpack.c.b16 %v3631, %v3623
        %v4488 = vpack.c.b16 %v3632, %v3624
        %v4489 = vpack.c.b16 %v3633, %v3625
        %v4490 = vpack.c.b16 %v3634, %v3626
        %v4491 = vpack.c.b16 %v3635, %v3627
        %v4492 = vpack.c.b16 %v3644, %v3636
        %v4493 = vpack.c.b16 %v3645, %v3637
        %v4494 = vpack.c.b16 %v3646, %v3638
        %v4495 = vpack.c.b16 %v3647, %v3639
        %v4496 = vpack.c.b16 %v3648, %v3640
        %v4497 = vpack.c.b16 %v3649, %v3641
        %v4498 = vpack.c.b16 %v3650, %v3642
        %v4499 = vpack.c.b16 %v3651, %v3643
        %v4500 = vpack.c.b16 %v3660, %v3652
        %v4501 = vpack.c.b16 %v3661, %v3653
        %v4502 = vpack.c.b16 %v3662, %v3654
        %v4503 = vpack.c.b16 %v3663, %v3655
        %v4504 = vpack.c.b16 %v3664, %v3656
        %v4505 = vpack.c.b16 %v3665, %v3657
        %v4506 = vpack.c.b16 %v3666, %v3658
        %v4507 = vpack.c.b16 %v3667, %v3659
        %v4508 = vpack.c.b16 %v3676, %v3668
        %v4509 = vpack.c.b16 %v3677, %v3669
        %v4510 = vpack.c.b16 %v3678, %v3670
        %v4511 = vpack.c.b16 %v3679, %v3671
        %v4512 = vpack.c.b16 %v3680, %v3672
        %v4513 = vpack.c.b16 %v3681, %v3673
        %v4514 = vpack.c.b16 %v3682, %v3674
        %v4515 = vpack.c.b16 %v3683, %v3675
        %v4516 = vpack.c.b16 %v3692, %v3684
        %v4517 = vpack.c.b16 %v3693, %v3685
        %v4518 = vpack.c.b16 %v3694, %v3686
        %v4519 = vpack.c.b16 %v3695, %v3687
        %v4520 = vpack.c.b16 %v3696, %v3688
        %v4521 = vpack.c.b16 %v3697, %v3689
        %v4522 = vpack.c.b16 %v3698, %v3690
        %v4523 = vpack.c.b16 %v3699, %v3691
        %v4524 = vpack.c.b16 %v3708, %v3700
        %v4525 = vpack.c.b16 %v3709, %v3701
        %v4526 = vpack.c.b16 %v3710, %v3702
        %v4527 = vpack.c.b16 %v3711, %v3703
        %v4528 = vpack.c.b16 %v3712, %v3704
        %v4529 = vpack.c.b16 %v3713, %v3705
        %v4530 = vpack.c.b16 %v3714, %v3706
        %v4531 = vpack.c.b16 %v3715, %v3707
        %v4532 = vpack.c.b16 %v3724, %v3716
        %v4533 = vpack.c.b16 %v3725, %v3717
        %v4534 = vpack.c.b16 %v3726, %v3718
        %v4535 = vpack.c.b16 %v3727, %v3719
        %v4536 = vpack.c.b16 %v3728, %v3720
        %v4537 = vpack.c.b16 %v3729, %v3721
        %v4538 = vpack.c.b16 %v3730, %v3722
        %v4539 = vpack.c.b16 %v3731, %v3723
        %v4540 = vpack.c.b16 %v3740, %v3732
        %v4541 = vpack.c.b16 %v3741, %v3733
        %v4542 = vpack.c.b16 %v3742, %v3734
        %v4543 = vpack.c.b16 %v3743, %v3735
        %v4544 = vpack.c.b16 %v3744, %v3736
        %v4545 = vpack.c.b16 %v3745, %v3737
        %v4546 = vpack.c.b16 %v3746, %v3738
        %v4547 = vpack.c.b16 %v3747, %v3739
        %v4548 = vpack.c.b16 %v3756, %v3748
        %v4549 = vpack.c.b16 %v3757, %v3749
        %v4550 = vpack.c.b16 %v3758, %v3750
        %v4551 = vpack.c.b16 %v3759, %v3751
        %v4552 = vpack.c.b16 %v3760, %v3752
        %v4553 = vpack.c.b16 %v3761, %v3753
        %v4554 = vpack.c.b16 %v3762, %v3754
        %v4555 = vpack.c.b16 %v3763, %v3755
        %v4556 = vpack.c.b16 %v3772, %v3764
        %v4557 = vpack.c.b16 %v3773, %v3765
        %v4558 = vpack.c.b16 %v3774, %v3766
        %v4559 = vpack.c.b16 %v3775, %v3767
        %v4560 = vpack.c.b16 %v3776, %v3768
        %v4561 = vpack.c.b16 %v3777, %v3769
        %v4562 = vpack.c.b16 %v3778, %v3770
        %v4563 = vpack.c.b16 %v3779, %v3771
        %v4564 = vpack.c.b16 %v3788, %v3780
        %v4565 = vpack.c.b16 %v3789, %v3781
        %v4566 = vpack.c.b16 %v3790, %v3782
        %v4567 = vpack.c.b16 %v3791, %v3783
        %v4568 = vpack.c.b16 %v3792, %v3784
        %v4569 = vpack.c.b16 %v3793, %v3785
        %v4570 = vpack.c.b16 %v3794, %v3786
        %v4571 = vpack.c.b16 %v3795, %v3787
        %v4572 = vpack.c.b16 %v3804, %v3796
        %v4573 = vpack.c.b16 %v3805, %v3797
        %v4574 = vpack.c.b16 %v3806, %v3798
        %v4575 = vpack.c.b16 %v3807, %v3799
        %v4576 = vpack.c.b16 %v3808, %v3800
        %v4577 = vpack.c.b16 %v3809, %v3801
        %v4578 = vpack.c.b16 %v3810, %v3802
        %v4579 = vpack.c.b16 %v3811, %v3803
        %v4580 = vpack.c.b16 %v3820, %v3812
        %v4581 = vpack.c.b16 %v3821, %v3813
        %v4582 = vpack.c.b16 %v3822, %v3814
        %v4583 = vpack.c.b16 %v3823, %v3815
        %v4584 = vpack.c.b16 %v3824, %v3816
        %v4585 = vpack.c.b16 %v3825, %v3817
        %v4586 = vpack.c.b16 %v3826, %v3818
        %v4587 = vpack.c.b16 %v3827, %v3819
        %v4588 = vpack.c.b16 %v3836, %v3828
        %v4589 = vpack.c.b16 %v3837, %v3829
        %v4590 = vpack.c.b16 %v3838, %v3830
        %v4591 = vpack.c.b16 %v3839, %v3831
        %v4592 = vpack.c.b16 %v3840, %v3832
        %v4593 = vpack.c.b16 %v3841, %v3833
        %v4594 = vpack.c.b16 %v3842, %v3834
        %v4595 = vpack.c.b16 %v3843, %v3835
        %v4596 = vpack.c.b16 %v3852, %v3844
        %v4597 = vpack.c.b16 %v3853, %v3845
        %v4598 = vpack.c.b16 %v3854, %v3846
        %v4599 = vpack.c.b16 %v3855, %v3847
        %v4600 = vpack.c.b16 %v3856, %v3848
        %v4601 = vpack.c.b16 %v3857, %v3849
        %v4602 = vpack.c.b16 %v3858, %v3850
        %v4603 = vpack.c.b16 %v3859, %v3851
        %v4604 = vpack.c.b16 %v3868, %v3860
        %v4605 = vpack.c.b16 %v3869, %v3861
        %v4606 = vpack.c.b16 %v3870, %v3862
        %v4607 = vpack.c.b16 %v3871, %v3863
        %v4608 = vpack.c.b16 %v3872, %v3864
        %v4609 = vpack.c.b16 %v3873, %v3865
        %v4610 = vpack.c.b16 %v3874, %v3866
        %v4611 = vpack.c.b16 %v3875, %v3867
        %v4612 = vpack.c.b16 %v3884, %v3876
        %v4613 = vpack.c.b16 %v3885, %v3877
        %v4614 = vpack.c.b16 %v3886, %v3878
        %v4615 = vpack.c.b16 %v3887, %v3879
        %v4616 = vpack.c.b16 %v3888, %v3880
        %v4617 = vpack.c.b16 %v3889, %v3881
        %v4618 = vpack.c.b16 %v3890, %v3882
        %v4619 = vpack.c.b16 %v3891, %v3883
        %v4620 = vpack.c.b16 %v3900, %v3892
        %v4621 = vpack.c.b16 %v3901, %v3893
        %v4622 = vpack.c.b16 %v3902, %v3894
        %v4623 = vpack.c.b16 %v3903, %v3895
        %v4624 = vpack.c.b16 %v3904, %v3896
        %v4625 = vpack.c.b16 %v3905, %v3897
        %v4626 = vpack.c.b16 %v3906, %v3898
        %v4627 = vpack.c.b16 %v3907, %v3899
        %v4628 = vpack.c.b16 %v3916, %v3908
        %v4629 = vpack.c.b16 %v3917, %v3909
        %v4630 = vpack.c.b16 %v3918, %v3910
        %v4631 = vpack.c.b16 %v3919, %v3911
        %v4632 = vpack.c.b16 %v3920, %v3912
        %v4633 = vpack.c.b16 %v3921, %v3913
        %v4634 = vpack.c.b16 %v3922, %v3914
        %v4635 = vpack.c.b16 %v3923, %v3915
        %v4636 = vpack.c.b16 %v3932, %v3924
        %v4637 = vpack.c.b16 %v3933, %v3925
        %v4638 = vpack.c.b16 %v3934, %v3926
        %v4639 = vpack.c.b16 %v3935, %v3927
        %v4640 = vpack.c.b16 %v3936, %v3928
        %v4641 = vpack.c.b16 %v3937, %v3929
        %v4642 = vpack.c.b16 %v3938, %v3930
        %v4643 = vpack.c.b16 %v3939, %v3931
        %v4644 = vpack.c.b16 %v3948, %v3940
        %v4645 = vpack.c.b16 %v3949, %v3941
        %v4646 = vpack.c.b16 %v3950, %v3942
        %v4647 = vpack.c.b16 %v3951, %v3943
        %v4648 = vpack.c.b16 %v3952, %v3944
        %v4649 = vpack.c.b16 %v3953, %v3945
        %v4650 = vpack.c.b16 %v3954, %v3946
        %v4651 = vpack.c.b16 %v3955, %v3947
        %v4652 = vpack.c.b16 %v3964, %v3956
        %v4653 = vpack.c.b16 %v3965, %v3957
        %v4654 = vpack.c.b16 %v3966, %v3958
        %v4655 = vpack.c.b16 %v3967, %v3959
        %v4656 = vpack.c.b16 %v3968, %v3960
        %v4657 = vpack.c.b16 %v3969, %v3961
        %v4658 = vpack.c.b16 %v3970, %v3962
        %v4659 = vpack.c.b16 %v3971, %v3963
        %v4660 = vpack.c.b16 %v3980, %v3972
        %v4661 = vpack.c.b16 %v3981, %v3973
        %v4662 = vpack.c.b16 %v3982, %v3974
        %v4663 = vpack.c.b16 %v3983, %v3975
        %v4664 = vpack.c.b16 %v3984, %v3976
        %v4665 = vpack.c.b16 %v3985, %v3977
        %v4666 = vpack.c.b16 %v3986, %v3978
        %v4667 = vpack.c.b16 %v3987, %v3979
        %v4668 = vpack.c.b16 %v3996, %v3988
        %v4669 = vpack.c.b16 %v3997, %v3989
        %v4670 = vpack.c.b16 %v3998, %v3990
        %v4671 = vpack.c.b16 %v3999, %v3991
        %v4672 = vpack.c.b16 %v4000, %v3992
        %v4673 = vpack.c.b16 %v4001, %v3993
        %v4674 = vpack.c.b16 %v4002, %v3994
        %v4675 = vpack.c.b16 %v4003, %v3995
        %v4676 = vpack.c.b16 %v4012, %v4004
        %v4677 = vpack.c.b16 %v4013, %v4005
        %v4678 = vpack.c.b16 %v4014, %v4006
        %v4679 = vpack.c.b16 %v4015, %v4007
        %v4680 = vpack.c.b16 %v4016, %v4008
        %v4681 = vpack.c.b16 %v4017, %v4009
        %v4682 = vpack.c.b16 %v4018, %v4010
        %v4683 = vpack.c.b16 %v4019, %v4011
        %v4684 = vpack.c.b16 %v4028, %v4020
        %v4685 = vpack.c.b16 %v4029, %v4021
        %v4686 = vpack.c.b16 %v4030, %v4022
        %v4687 = vpack.c.b16 %v4031, %v4023
        %v4688 = vpack.c.b16 %v4032, %v4024
        %v4689 = vpack.c.b16 %v4033, %v4025
        %v4690 = vpack.c.b16 %v4034, %v4026
        %v4691 = vpack.c.b16 %v4035, %v4027
        %v4692 = vpack.c.b16 %v4044, %v4036
        %v4693 = vpack.c.b16 %v4045, %v4037
        %v4694 = vpack.c.b16 %v4046, %v4038
        %v4695 = vpack.c.b16 %v4047, %v4039
        %v4696 = vpack.c.b16 %v4048, %v4040
        %v4697 = vpack.c.b16 %v4049, %v4041
        %v4698 = vpack.c.b16 %v4050, %v4042
        %v4699 = vpack.c.b16 %v4051, %v4043
        %v4700 = vpack.c.b16 %v4060, %v4052
        %v4701 = vpack.c.b16 %v4061, %v4053
        %v4702 = vpack.c.b16 %v4062, %v4054
        %v4703 = vpack.c.b16 %v4063, %v4055
        %v4704 = vpack.c.b16 %v4064, %v4056
        %v4705 = vpack.c.b16 %v4065, %v4057
        %v4706 = vpack.c.b16 %v4066, %v4058
        %v4707 = vpack.c.b16 %v4067, %v4059
        %v4708 = vpack.c.b16 %v4076, %v4068
        %v4709 = vpack.c.b16 %v4077, %v4069
        %v4710 = vpack.c.b16 %v4078, %v4070
        %v4711 = vpack.c.b16 %v4079, %v4071
        %v4712 = vpack.c.b16 %v4080, %v4072
        %v4713 = vpack.c.b16 %v4081, %v4073
        %v4714 = vpack.c.b16 %v4082, %v4074
        %v4715 = vpack.c.b16 %v4083, %v4075
        %v4716 = vpack.c.b16 %v4092, %v4084
        %v4717 = vpack.c.b16 %v4093, %v4085
        %v4718 = vpack.c.b16 %v4094, %v4086
        %v4719 = vpack.c.b16 %v4095, %v4087
        %v4720 = vpack.c.b16 %v4096, %v4088
        %v4721 = vpack.c.b16 %v4097, %v4089
        %v4722 = vpack.c.b16 %v4098, %v4090
        %v4723 = vpack.c.b16 %v4099, %v4091
        %v4724 = vpack.c.b16 %v4108, %v4100
        %v4725 = vpack.c.b16 %v4109, %v4101
        %v4726 = vpack.c.b16 %v4110, %v4102
        %v4727 = vpack.c.b16 %v4111, %v4103
        %v4728 = vpack.c.b16 %v4112, %v4104
        %v4729 = vpack.c.b16 %v4113, %v4105
        %v4730 = vpack.c.b16 %v4114, %v4106
        %v4731 = vpack.c.b16 %v4115, %v4107
        %v4732 = vpack.c.b16 %v4124, %v4116
        %v4733 = vpack.c.b16 %v4125, %v4117
        %v4734 = vpack.c.b16 %v4126, %v4118
        %v4735 = vpack.c.b16 %v4127, %v4119
        %v4736 = vpack.c.b16 %v4128, %v4120
        %v4737 = vpack.c.b16 %v4129, %v4121
        %v4738 = vpack.c.b16 %v4130, %v4122
        %v4739 = vpack.c.b16 %v4131, %v4123
        %v4740 = vpack.c.b16 %v4140, %v4132
        %v4741 = vpack.c.b16 %v4141, %v4133
        %v4742 = vpack.c.b16 %v4142, %v4134
        %v4743 = vpack.c.b16 %v4143, %v4135
        %v4744 = vpack.c.b16 %v4144, %v4136
        %v4745 = vpack.c.b16 %v4145, %v4137
        %v4746 = vpack.c.b16 %v4146, %v4138
        %v4747 = vpack.c.b16 %v4147, %v4139
        %v4748 = vpack.c.b16 %v4156, %v4148
        %v4749 = vpack.c.b16 %v4157, %v4149
        %v4750 = vpack.c.b16 %v4158, %v4150
        %v4751 = vpack.c.b16 %v4159, %v4151
        %v4752 = vpack.c.b16 %v4160, %v4152
        %v4753 = vpack.c.b16 %v4161, %v4153
        %v4754 = vpack.c.b16 %v4162, %v4154
        %v4755 = vpack.c.b16 %v4163, %v4155
        %v4756 = vpack.c.b16 %v4172, %v4164
        %v4757 = vpack.c.b16 %v4173, %v4165
        %v4758 = vpack.c.b16 %v4174, %v4166
        %v4759 = vpack.c.b16 %v4175, %v4167
        %v4760 = vpack.c.b16 %v4176, %v4168
        %v4761 = vpack.c.b16 %v4177, %v4169
        %v4762 = vpack.c.b16 %v4178, %v4170
        %v4763 = vpack.c.b16 %v4179, %v4171
        %v4764 = vpack.c.b16 %v4188, %v4180
        %v4765 = vpack.c.b16 %v4189, %v4181
        %v4766 = vpack.c.b16 %v4190, %v4182
        %v4767 = vpack.c.b16 %v4191, %v4183
        %v4768 = vpack.c.b16 %v4192, %v4184
        %v4769 = vpack.c.b16 %v4193, %v4185
        %v4770 = vpack.c.b16 %v4194, %v4186
        %v4771 = vpack.c.b16 %v4195, %v4187
        %v4772 = vpack.c.b16 %v4204, %v4196
        %v4773 = vpack.c.b16 %v4205, %v4197
        %v4774 = vpack.c.b16 %v4206, %v4198
        %v4775 = vpack.c.b16 %v4207, %v4199
        %v4776 = vpack.c.b16 %v4208, %v4200
        %v4777 = vpack.c.b16 %v4209, %v4201
        %v4778 = vpack.c.b16 %v4210, %v4202
        %v4779 = vpack.c.b16 %v4211, %v4203
        %v4780 = vpack.c.b16 %v4220, %v4212
        %v4781 = vpack.c.b16 %v4221, %v4213
        %v4782 = vpack.c.b16 %v4222, %v4214
        %v4783 = vpack.c.b16 %v4223, %v4215
        %v4784 = vpack.c.b16 %v4224, %v4216
        %v4785 = vpack.c.b16 %v4225, %v4217
        %v4786 = vpack.c.b16 %v4226, %v4218
        %v4787 = vpack.c.b16 %v4227, %v4219
        %v4788 = vpack.c.b16 %v4236, %v4228
        %v4789 = vpack.c.b16 %v4237, %v4229
        %v4790 = vpack.c.b16 %v4238, %v4230
        %v4791 = vpack.c.b16 %v4239, %v4231
        %v4792 = vpack.c.b16 %v4240, %v4232
        %v4793 = vpack.c.b16 %v4241, %v4233
        %v4794 = vpack.c.b16 %v4242, %v4234
        %v4795 = vpack.c.b16 %v4243, %v4235
        %v4796 = vpack.c.b16 %v4252, %v4244
        %v4797 = vpack.c.b16 %v4253, %v4245
        %v4798 = vpack.c.b16 %v4254, %v4246
        %v4799 = vpack.c.b16 %v4255, %v4247
        %v4800 = vpack.c.b16 %v4256, %v4248
        %v4801 = vpack.c.b16 %v4257, %v4249
        %v4802 = vpack.c.b16 %v4258, %v4250
        %v4803 = vpack.c.b16 %v4259, %v4251
        %v4804 = vpack.c.b16 %v4268, %v4260
        %v4805 = vpack.c.b16 %v4269, %v4261
        %v4806 = vpack.c.b16 %v4270, %v4262
        %v4807 = vpack.c.b16 %v4271, %v4263
        %v4808 = vpack.c.b16 %v4272, %v4264
        %v4809 = vpack.c.b16 %v4273, %v4265
        %v4810 = vpack.c.b16 %v4274, %v4266
        %v4811 = vpack.c.b16 %v4275, %v4267
        %v4812 = vpack.c.b16 %v4284, %v4276
        %v4813 = vpack.c.b16 %v4285, %v4277
        %v4814 = vpack.c.b16 %v4286, %v4278
        %v4815 = vpack.c.b16 %v4287, %v4279
        %v4816 = vpack.c.b16 %v4288, %v4280
        %v4817 = vpack.c.b16 %v4289, %v4281
        %v4818 = vpack.c.b16 %v4290, %v4282
        %v4819 = vpack.c.b16 %v4291, %v4283
        %v4820 = vpack.c.b16 %v4300, %v4292
        %v4821 = vpack.c.b16 %v4301, %v4293
        %v4822 = vpack.c.b16 %v4302, %v4294
        %v4823 = vpack.c.b16 %v4303, %v4295
        %v4824 = vpack.c.b16 %v4304, %v4296
        %v4825 = vpack.c.b16 %v4305, %v4297
        %v4826 = vpack.c.b16 %v4306, %v4298
        %v4827 = vpack.c.b16 %v4307, %v4299
        %v4828 = vpack.c.b16 %v4316, %v4308
        %v4829 = vpack.c.b16 %v4317, %v4309
        %v4830 = vpack.c.b16 %v4318, %v4310
        %v4831 = vpack.c.b16 %v4319, %v4311
        %v4832 = vpack.c.b16 %v4320, %v4312
        %v4833 = vpack.c.b16 %v4321, %v4313
        %v4834 = vpack.c.b16 %v4322, %v4314
        %v4835 = vpack.c.b16 %v4323, %v4315
        %5348 = vmatprep.subr.bf16.mxu0 %v4325
        %5349 = vmatpush1.bf16.msra.mxu0 %v4324
        %5350 = vmatprep.subr.bf16.mxu0 %v4333
        %5351 = vmatpush1.bf16.msra.mxu0 %v4332
        %5352 = vmatprep.subr.bf16.mxu0 %v4341
        %5353 = vmatpush1.bf16.msra.mxu0 %v4340
        %5354 = vmatprep.subr.bf16.mxu0 %v4349
        %5355 = vmatpush1.bf16.msra.mxu0 %v4348
        %5356 = vmatprep.subr.bf16.mxu0 %v4357
        %5357 = vmatpush1.bf16.msra.mxu0 %v4356
        %5358 = vmatprep.subr.bf16.mxu0 %v4365
        %5359 = vmatpush1.bf16.msra.mxu0 %v4364
        %5360 = vmatprep.subr.bf16.mxu0 %v4373
        %5361 = vmatpush1.bf16.msra.mxu0 %v4372
        %5362 = vmatprep.subr.bf16.mxu0 %v4381
        %5363 = vmatpush1.bf16.msra.mxu0 %v4380
        %5364 = vmatprep.subr.bf16.mxu0 %v4389
        %5365 = vmatpush1.bf16.msra.mxu0 %v4388
        %5366 = vmatprep.subr.bf16.mxu0 %v4397
        %5367 = vmatpush1.bf16.msra.mxu0 %v4396
        %5368 = vmatprep.subr.bf16.mxu0 %v4405
        %5369 = vmatpush1.bf16.msra.mxu0 %v4404
        %5370 = vmatprep.subr.bf16.mxu0 %v4413
        %5371 = vmatpush1.bf16.msra.mxu0 %v4412
        %5372 = vmatprep.subr.bf16.mxu0 %v4421
        %5373 = vmatpush1.bf16.msra.mxu0 %v4420
        %5374 = vmatprep.subr.bf16.mxu0 %v4429
        %5375 = vmatpush1.bf16.msra.mxu0 %v4428
        %5376 = vmatprep.subr.bf16.mxu0 %v4437
        %5377 = vmatpush1.bf16.msra.mxu0 %v4436
        %5378 = vmatprep.subr.bf16.mxu0 %v4445
        %5379 = vmatpush1.bf16.msra.mxu0 %v4444
        %5380 = vmatprep.mubr.bf16.mxu0 %v2269
        %5381 = vmatmul.mubr.bf16.gmra.mrb[0].mxu0 %v2268
        %v5382 = vpop.f32.mrb[0].mxu0
        %v5383 = vadd.f32 0.0, %v5382
        %v5384 = vpop.f32.mrb[0].mxu0
        %v5385 = vadd.f32 0.0, %v5384
        %v5386 = vpop.f32.mrb[0].mxu0
        %v5387 = vpop.f32.mrb[0].mxu0
        %5388 = vdwg.mxu0
        %5389 = vmatprep.subr.bf16.mxu0 %v4453
        %5390 = vmatpush1.bf16.msra.mxu0 %v4452
        %5391 = vmatprep.subr.bf16.mxu0 %v4461
        %5392 = vmatpush1.bf16.msra.mxu0 %v4460
        %5393 = vmatprep.subr.bf16.mxu0 %v4469
        %5394 = vmatpush1.bf16.msra.mxu0 %v4468
        %5395 = vmatprep.subr.bf16.mxu0 %v4477
        %5396 = vmatpush1.bf16.msra.mxu0 %v4476
        %5397 = vmatprep.subr.bf16.mxu0 %v4485
        %5398 = vmatpush1.bf16.msra.mxu0 %v4484
        %5399 = vmatprep.subr.bf16.mxu0 %v4493
        %5400 = vmatpush1.bf16.msra.mxu0 %v4492
        %5401 = vmatprep.subr.bf16.mxu0 %v4501
        %5402 = vmatpush1.bf16.msra.mxu0 %v4500
        %5403 = vmatprep.subr.bf16.mxu0 %v4509
        %5404 = vmatpush1.bf16.msra.mxu0 %v4508
        %5405 = vmatprep.subr.bf16.mxu0 %v4517
        %5406 = vmatpush1.bf16.msra.mxu0 %v4516
        %5407 = vmatprep.subr.bf16.mxu0 %v4525
        %5408 = vmatpush1.bf16.msra.mxu0 %v4524
        %5409 = vmatprep.subr.bf16.mxu0 %v4533
        %5410 = vmatpush1.bf16.msra.mxu0 %v4532
        %5411 = vmatprep.subr.bf16.mxu0 %v4541
        %5412 = vmatpush1.bf16.msra.mxu0 %v4540
        %5413 = vmatprep.subr.bf16.mxu0 %v4549
        %5414 = vmatpush1.bf16.msra.mxu0 %v4548
        %5415 = vmatprep.subr.bf16.mxu0 %v4557
        %5416 = vmatpush1.bf16.msra.mxu0 %v4556
        %5417 = vmatprep.subr.bf16.mxu0 %v4565
        %5418 = vmatpush1.bf16.msra.mxu0 %v4564
        %5419 = vmatprep.subr.bf16.mxu0 %v4573
        %5420 = vmatpush1.bf16.msra.mxu0 %v4572
        %5421 = vmatprep.mubr.bf16.mxu0 %v2271
        %5422 = vmatmul.mubr.bf16.gmra.mrb[0].mxu0 %v2270
        %v5423 = vpop.f32.mrb[0].mxu0
        %v5424 = vadd.f32 %v5383, %v5423
        %v5425 = vpop.f32.mrb[0].mxu0
        %v5426 = vadd.f32 %v5385, %v5425
        %v5427 = vpop.f32.mrb[0].mxu0
        %v5428 = vpop.f32.mrb[0].mxu0
        %5429 = vdwg.mxu0
        %5430 = vmatprep.subr.bf16.mxu0 %v4581
        %5431 = vmatpush1.bf16.msra.mxu0 %v4580
        %5432 = vmatprep.subr.bf16.mxu0 %v4589
        %5433 = vmatpush1.bf16.msra.mxu0 %v4588
        %5434 = vmatprep.subr.bf16.mxu0 %v4597
        %5435 = vmatpush1.bf16.msra.mxu0 %v4596
        %5436 = vmatprep.subr.bf16.mxu0 %v4605
        %5437 = vmatpush1.bf16.msra.mxu0 %v4604
        %5438 = vmatprep.subr.bf16.mxu0 %v4613
        %5439 = vmatpush1.bf16.msra.mxu0 %v4612
        %5440 = vmatprep.subr.bf16.mxu0 %v4621
        %5441 = vmatpush1.bf16.msra.mxu0 %v4620
        %5442 = vmatprep.subr.bf16.mxu0 %v4629
        %5443 = vmatpush1.bf16.msra.mxu0 %v4628
        %5444 = vmatprep.subr.bf16.mxu0 %v4637
        %5445 = vmatpush1.bf16.msra.mxu0 %v4636
        %5446 = vmatprep.subr.bf16.mxu0 %v4645
        %5447 = vmatpush1.bf16.msra.mxu0 %v4644
        %5448 = vmatprep.subr.bf16.mxu0 %v4653
        %5449 = vmatpush1.bf16.msra.mxu0 %v4652
        %5450 = vmatprep.subr.bf16.mxu0 %v4661
        %5451 = vmatpush1.bf16.msra.mxu0 %v4660
        %5452 = vmatprep.subr.bf16.mxu0 %v4669
        %5453 = vmatpush1.bf16.msra.mxu0 %v4668
        %5454 = vmatprep.subr.bf16.mxu0 %v4677
        %5455 = vmatpush1.bf16.msra.mxu0 %v4676
        %5456 = vmatprep.subr.bf16.mxu0 %v4685
        %5457 = vmatpush1.bf16.msra.mxu0 %v4684
        %5458 = vmatprep.subr.bf16.mxu0 %v4693
        %5459 = vmatpush1.bf16.msra.mxu0 %v4692
        %5460 = vmatprep.subr.bf16.mxu0 %v4701
        %5461 = vmatpush1.bf16.msra.mxu0 %v4700
        %5462 = vmatprep.mubr.bf16.mxu0 %v2273
        %5463 = vmatmul.mubr.bf16.gmra.mrb[0].mxu0 %v2272
        %v5464 = vpop.f32.mrb[0].mxu0
        %v5465 = vadd.f32 %v5424, %v5464
        %v5466 = vpop.f32.mrb[0].mxu0
        %v5467 = vadd.f32 %v5426, %v5466
        %v5468 = vpop.f32.mrb[0].mxu0
        %v5469 = vpop.f32.mrb[0].mxu0
        %5470 = vdwg.mxu0
        %5471 = vmatprep.subr.bf16.mxu0 %v4709
        %5472 = vmatpush1.bf16.msra.mxu0 %v4708
        %5473 = vmatprep.subr.bf16.mxu0 %v4717
        %5474 = vmatpush1.bf16.msra.mxu0 %v4716
        %5475 = vmatprep.subr.bf16.mxu0 %v4725
        %5476 = vmatpush1.bf16.msra.mxu0 %v4724
        %5477 = vmatprep.subr.bf16.mxu0 %v4733
        %5478 = vmatpush1.bf16.msra.mxu0 %v4732
        %5479 = vmatprep.subr.bf16.mxu0 %v4741
        %5480 = vmatpush1.bf16.msra.mxu0 %v4740
        %5481 = vmatprep.subr.bf16.mxu0 %v4749
        %5482 = vmatpush1.bf16.msra.mxu0 %v4748
        %5483 = vmatprep.subr.bf16.mxu0 %v4757
        %5484 = vmatpush1.bf16.msra.mxu0 %v4756
        %5485 = vmatprep.subr.bf16.mxu0 %v4765
        %5486 = vmatpush1.bf16.msra.mxu0 %v4764
        %5487 = vmatprep.subr.bf16.mxu0 %v4773
        %5488 = vmatpush1.bf16.msra.mxu0 %v4772
        %5489 = vmatprep.subr.bf16.mxu0 %v4781
        %5490 = vmatpush1.bf16.msra.mxu0 %v4780
        %5491 = vmatprep.subr.bf16.mxu0 %v4789
        %5492 = vmatpush1.bf16.msra.mxu0 %v4788
        %5493 = vmatprep.subr.bf16.mxu0 %v4797
        %5494 = vmatpush1.bf16.msra.mxu0 %v4796
        %5495 = vmatprep.subr.bf16.mxu0 %v4805
        %5496 = vmatpush1.bf16.msra.mxu0 %v4804
        %5497 = vmatprep.subr.bf16.mxu0 %v4813
        %5498 = vmatpush1.bf16.msra.mxu0 %v4812
        %5499 = vmatprep.subr.bf16.mxu0 %v4821
        %5500 = vmatpush1.bf16.msra.mxu0 %v4820
        %5501 = vmatprep.subr.bf16.mxu0 %v4829
        %5502 = vmatpush1.bf16.msra.mxu0 %v4828
        %5503 = vmatprep.mubr.bf16.mxu0 %v2275
        %5504 = vmatmul.mubr.bf16.gmra.mrb[0].mxu0 %v2274
        %v5505 = vpop.f32.mrb[0].mxu0
        %v5506 = vadd.f32 %v5465, %v5505
        %v5507 = vpop.f32.mrb[0].mxu0
        %v5508 = vadd.f32 %v5467, %v5507
        %v5509 = vpop.f32.mrb[0].mxu0
        %v5510 = vpop.f32.mrb[0].mxu0
        %5511 = vdwg.mxu0
        %5512 = vmatprep.subr.bf16.mxu0 %v4327
        %5513 = vmatpush1.bf16.msra.mxu0 %v4326
        %5514 = vmatprep.subr.bf16.mxu0 %v4335
        %5515 = vmatpush1.bf16.msra.mxu0 %v4334
        %5516 = vmatprep.subr.bf16.mxu0 %v4343
        %5517 = vmatpush1.bf16.msra.mxu0 %v4342
        %5518 = vmatprep.subr.bf16.mxu0 %v4351
        %5519 = vmatpush1.bf16.msra.mxu0 %v4350
        %5520 = vmatprep.subr.bf16.mxu0 %v4359
        %5521 = vmatpush1.bf16.msra.mxu0 %v4358
        %5522 = vmatprep.subr.bf16.mxu0 %v4367
        %5523 = vmatpush1.bf16.msra.mxu0 %v4366
        %5524 = vmatprep.subr.bf16.mxu0 %v4375
        %5525 = vmatpush1.bf16.msra.mxu0 %v4374
        %5526 = vmatprep.subr.bf16.mxu0 %v4383
        %5527 = vmatpush1.bf16.msra.mxu0 %v4382
        %5528 = vmatprep.subr.bf16.mxu0 %v4391
        %5529 = vmatpush1.bf16.msra.mxu0 %v4390
        %5530 = vmatprep.subr.bf16.mxu0 %v4399
        %5531 = vmatpush1.bf16.msra.mxu0 %v4398
        %5532 = vmatprep.subr.bf16.mxu0 %v4407
        %5533 = vmatpush1.bf16.msra.mxu0 %v4406
        %5534 = vmatprep.subr.bf16.mxu0 %v4415
        %5535 = vmatpush1.bf16.msra.mxu0 %v4414
        %5536 = vmatprep.subr.bf16.mxu0 %v4423
        %5537 = vmatpush1.bf16.msra.mxu0 %v4422
        %5538 = vmatprep.subr.bf16.mxu0 %v4431
        %5539 = vmatpush1.bf16.msra.mxu0 %v4430
        %5540 = vmatprep.subr.bf16.mxu0 %v4439
        %5541 = vmatpush1.bf16.msra.mxu0 %v4438
        %5542 = vmatprep.subr.bf16.mxu0 %v4447
        %5543 = vmatpush1.bf16.msra.mxu0 %v4446
        %5544 = vmatprep.mubr.bf16.mxu0 %v2269
        %5545 = vmatmul.mubr.bf16.gmra.mrb[0].mxu0 %v2268
        %v5546 = vpop.f32.mrb[0].mxu0
        %v5547 = vadd.f32 0.0, %v5546
        %v5548 = vpop.f32.mrb[0].mxu0
        %v5549 = vadd.f32 0.0, %v5548
        %v5550 = vpop.f32.mrb[0].mxu0
        %v5551 = vpop.f32.mrb[0].mxu0
        %5552 = vdwg.mxu0
        %5553 = vmatprep.subr.bf16.mxu0 %v4455
        %5554 = vmatpush1.bf16.msra.mxu0 %v4454
        %5555 = vmatprep.subr.bf16.mxu0 %v4463
        %5556 = vmatpush1.bf16.msra.mxu0 %v4462
        %5557 = vmatprep.subr.bf16.mxu0 %v4471
        %5558 = vmatpush1.bf16.msra.mxu0 %v4470
        %5559 = vmatprep.subr.bf16.mxu0 %v4479
        %5560 = vmatpush1.bf16.msra.mxu0 %v4478
        %5561 = vmatprep.subr.bf16.mxu0 %v4487
        %5562 = vmatpush1.bf16.msra.mxu0 %v4486
        %5563 = vmatprep.subr.bf16.mxu0 %v4495
        %5564 = vmatpush1.bf16.msra.mxu0 %v4494
        %5565 = vmatprep.subr.bf16.mxu0 %v4503
        %5566 = vmatpush1.bf16.msra.mxu0 %v4502
        %5567 = vmatprep.subr.bf16.mxu0 %v4511
        %5568 = vmatpush1.bf16.msra.mxu0 %v4510
        %5569 = vmatprep.subr.bf16.mxu0 %v4519
        %5570 = vmatpush1.bf16.msra.mxu0 %v4518
        %5571 = vmatprep.subr.bf16.mxu0 %v4527
        %5572 = vmatpush1.bf16.msra.mxu0 %v4526
        %5573 = vmatprep.subr.bf16.mxu0 %v4535
        %5574 = vmatpush1.bf16.msra.mxu0 %v4534
        %5575 = vmatprep.subr.bf16.mxu0 %v4543
        %5576 = vmatpush1.bf16.msra.mxu0 %v4542
        %5577 = vmatprep.subr.bf16.mxu0 %v4551
        %5578 = vmatpush1.bf16.msra.mxu0 %v4550
        %5579 = vmatprep.subr.bf16.mxu0 %v4559
        %5580 = vmatpush1.bf16.msra.mxu0 %v4558
        %5581 = vmatprep.subr.bf16.mxu0 %v4567
        %5582 = vmatpush1.bf16.msra.mxu0 %v4566
        %5583 = vmatprep.subr.bf16.mxu0 %v4575
        %5584 = vmatpush1.bf16.msra.mxu0 %v4574
        %5585 = vmatprep.mubr.bf16.mxu0 %v2271
        %5586 = vmatmul.mubr.bf16.gmra.mrb[0].mxu0 %v2270
        %v5587 = vpop.f32.mrb[0].mxu0
        %v5588 = vadd.f32 %v5547, %v5587
        %v5589 = vpop.f32.mrb[0].mxu0
        %v5590 = vadd.f32 %v5549, %v5589
        %v5591 = vpop.f32.mrb[0].mxu0
        %v5592 = vpop.f32.mrb[0].mxu0
        %5593 = vdwg.mxu0
        %5594 = vmatprep.subr.bf16.mxu0 %v4583
        %5595 = vmatpush1.bf16.msra.mxu0 %v4582
        %5596 = vmatprep.subr.bf16.mxu0 %v4591
        %5597 = vmatpush1.bf16.msra.mxu0 %v4590
        %5598 = vmatprep.subr.bf16.mxu0 %v4599
        %5599 = vmatpush1.bf16.msra.mxu0 %v4598
        %5600 = vmatprep.subr.bf16.mxu0 %v4607
        %5601 = vmatpush1.bf16.msra.mxu0 %v4606
        %5602 = vmatprep.subr.bf16.mxu0 %v4615
        %5603 = vmatpush1.bf16.msra.mxu0 %v4614
        %5604 = vmatprep.subr.bf16.mxu0 %v4623
        %5605 = vmatpush1.bf16.msra.mxu0 %v4622
        %5606 = vmatprep.subr.bf16.mxu0 %v4631
        %5607 = vmatpush1.bf16.msra.mxu0 %v4630
        %5608 = vmatprep.subr.bf16.mxu0 %v4639
        %5609 = vmatpush1.bf16.msra.mxu0 %v4638
        %5610 = vmatprep.subr.bf16.mxu0 %v4647
        %5611 = vmatpush1.bf16.msra.mxu0 %v4646
        %5612 = vmatprep.subr.bf16.mxu0 %v4655
        %5613 = vmatpush1.bf16.msra.mxu0 %v4654
        %5614 = vmatprep.subr.bf16.mxu0 %v4663
        %5615 = vmatpush1.bf16.msra.mxu0 %v4662
        %5616 = vmatprep.subr.bf16.mxu0 %v4671
        %5617 = vmatpush1.bf16.msra.mxu0 %v4670
        %5618 = vmatprep.subr.bf16.mxu0 %v4679
        %5619 = vmatpush1.bf16.msra.mxu0 %v4678
        %5620 = vmatprep.subr.bf16.mxu0 %v4687
        %5621 = vmatpush1.bf16.msra.mxu0 %v4686
        %5622 = vmatprep.subr.bf16.mxu0 %v4695
        %5623 = vmatpush1.bf16.msra.mxu0 %v4694
        %5624 = vmatprep.subr.bf16.mxu0 %v4703
        %5625 = vmatpush1.bf16.msra.mxu0 %v4702
        %5626 = vmatprep.mubr.bf16.mxu0 %v2273
        %5627 = vmatmul.mubr.bf16.gmra.mrb[0].mxu0 %v2272
        %v5628 = vpop.f32.mrb[0].mxu0
        %v5629 = vadd.f32 %v5588, %v5628
        %v5630 = vpop.f32.mrb[0].mxu0
        %v5631 = vadd.f32 %v5590, %v5630
        %v5632 = vpop.f32.mrb[0].mxu0
        %v5633 = vpop.f32.mrb[0].mxu0
        %5634 = vdwg.mxu0
        %5635 = vmatprep.subr.bf16.mxu0 %v4711
        %5636 = vmatpush1.bf16.msra.mxu0 %v4710
        %5637 = vmatprep.subr.bf16.mxu0 %v4719
        %5638 = vmatpush1.bf16.msra.mxu0 %v4718
        %5639 = vmatprep.subr.bf16.mxu0 %v4727
        %5640 = vmatpush1.bf16.msra.mxu0 %v4726
        %5641 = vmatprep.subr.bf16.mxu0 %v4735
        %5642 = vmatpush1.bf16.msra.mxu0 %v4734
        %5643 = vmatprep.subr.bf16.mxu0 %v4743
        %5644 = vmatpush1.bf16.msra.mxu0 %v4742
        %5645 = vmatprep.subr.bf16.mxu0 %v4751
        %5646 = vmatpush1.bf16.msra.mxu0 %v4750
        %5647 = vmatprep.subr.bf16.mxu0 %v4759
        %5648 = vmatpush1.bf16.msra.mxu0 %v4758
        %5649 = vmatprep.subr.bf16.mxu0 %v4767
        %5650 = vmatpush1.bf16.msra.mxu0 %v4766
        %5651 = vmatprep.subr.bf16.mxu0 %v4775
        %5652 = vmatpush1.bf16.msra.mxu0 %v4774
        %5653 = vmatprep.subr.bf16.mxu0 %v4783
        %5654 = vmatpush1.bf16.msra.mxu0 %v4782
        %5655 = vmatprep.subr.bf16.mxu0 %v4791
        %5656 = vmatpush1.bf16.msra.mxu0 %v4790
        %5657 = vmatprep.subr.bf16.mxu0 %v4799
        %5658 = vmatpush1.bf16.msra.mxu0 %v4798
        %5659 = vmatprep.subr.bf16.mxu0 %v4807
        %5660 = vmatpush1.bf16.msra.mxu0 %v4806
        %5661 = vmatprep.subr.bf16.mxu0 %v4815
        %5662 = vmatpush1.bf16.msra.mxu0 %v4814
        %5663 = vmatprep.subr.bf16.mxu0 %v4823
        %5664 = vmatpush1.bf16.msra.mxu0 %v4822
        %5665 = vmatprep.subr.bf16.mxu0 %v4831
        %5666 = vmatpush1.bf16.msra.mxu0 %v4830
        %5667 = vmatprep.mubr.bf16.mxu0 %v2275
        %5668 = vmatmul.mubr.bf16.gmra.mrb[0].mxu0 %v2274
        %v5669 = vpop.f32.mrb[0].mxu0
        %v5670 = vadd.f32 %v5629, %v5669
        %v5671 = vpop.f32.mrb[0].mxu0
        %v5672 = vadd.f32 %v5631, %v5671
        %v5673 = vpop.f32.mrb[0].mxu0
        %v5674 = vpop.f32.mrb[0].mxu0
        %5675 = vdwg.mxu0
        %5676 = vmatprep.subr.bf16.mxu0 %v4329
        %5677 = vmatpush1.bf16.msra.mxu0 %v4328
        %5678 = vmatprep.subr.bf16.mxu0 %v4337
        %5679 = vmatpush1.bf16.msra.mxu0 %v4336
        %5680 = vmatprep.subr.bf16.mxu0 %v4345
        %5681 = vmatpush1.bf16.msra.mxu0 %v4344
        %5682 = vmatprep.subr.bf16.mxu0 %v4353
        %5683 = vmatpush1.bf16.msra.mxu0 %v4352
        %5684 = vmatprep.subr.bf16.mxu0 %v4361
        %5685 = vmatpush1.bf16.msra.mxu0 %v4360
        %5686 = vmatprep.subr.bf16.mxu0 %v4369
        %5687 = vmatpush1.bf16.msra.mxu0 %v4368
        %5688 = vmatprep.subr.bf16.mxu0 %v4377
        %5689 = vmatpush1.bf16.msra.mxu0 %v4376
        %5690 = vmatprep.subr.bf16.mxu0 %v4385
        %5691 = vmatpush1.bf16.msra.mxu0 %v4384
        %5692 = vmatprep.subr.bf16.mxu0 %v4393
        %5693 = vmatpush1.bf16.msra.mxu0 %v4392
        %5694 = vmatprep.subr.bf16.mxu0 %v4401
        %5695 = vmatpush1.bf16.msra.mxu0 %v4400
        %5696 = vmatprep.subr.bf16.mxu0 %v4409
        %5697 = vmatpush1.bf16.msra.mxu0 %v4408
        %5698 = vmatprep.subr.bf16.mxu0 %v4417
        %5699 = vmatpush1.bf16.msra.mxu0 %v4416
        %5700 = vmatprep.subr.bf16.mxu0 %v4425
        %5701 = vmatpush1.bf16.msra.mxu0 %v4424
        %5702 = vmatprep.subr.bf16.mxu0 %v4433
        %5703 = vmatpush1.bf16.msra.mxu0 %v4432
        %5704 = vmatprep.subr.bf16.mxu0 %v4441
        %5705 = vmatpush1.bf16.msra.mxu0 %v4440
        %5706 = vmatprep.subr.bf16.mxu0 %v4449
        %5707 = vmatpush1.bf16.msra.mxu0 %v4448
        %5708 = vmatprep.mubr.bf16.mxu0 %v2269
        %5709 = vmatmul.mubr.bf16.gmra.mrb[0].mxu0 %v2268
        %v5710 = vpop.f32.mrb[0].mxu0
        %v5711 = vadd.f32 0.0, %v5710
        %v5712 = vpop.f32.mrb[0].mxu0
        %v5713 = vadd.f32 0.0, %v5712
        %v5714 = vpop.f32.mrb[0].mxu0
        %v5715 = vpop.f32.mrb[0].mxu0
        %5716 = vdwg.mxu0
        %5717 = vmatprep.subr.bf16.mxu0 %v4457
        %5718 = vmatpush1.bf16.msra.mxu0 %v4456
        %5719 = vmatprep.subr.bf16.mxu0 %v4465
        %5720 = vmatpush1.bf16.msra.mxu0 %v4464
        %5721 = vmatprep.subr.bf16.mxu0 %v4473
        %5722 = vmatpush1.bf16.msra.mxu0 %v4472
        %5723 = vmatprep.subr.bf16.mxu0 %v4481
        %5724 = vmatpush1.bf16.msra.mxu0 %v4480
        %5725 = vmatprep.subr.bf16.mxu0 %v4489
        %5726 = vmatpush1.bf16.msra.mxu0 %v4488
        %5727 = vmatprep.subr.bf16.mxu0 %v4497
        %5728 = vmatpush1.bf16.msra.mxu0 %v4496
        %5729 = vmatprep.subr.bf16.mxu0 %v4505
        %5730 = vmatpush1.bf16.msra.mxu0 %v4504
        %5731 = vmatprep.subr.bf16.mxu0 %v4513
        %5732 = vmatpush1.bf16.msra.mxu0 %v4512
        %5733 = vmatprep.subr.bf16.mxu0 %v4521
        %5734 = vmatpush1.bf16.msra.mxu0 %v4520
        %5735 = vmatprep.subr.bf16.mxu0 %v4529
        %5736 = vmatpush1.bf16.msra.mxu0 %v4528
        %5737 = vmatprep.subr.bf16.mxu0 %v4537
        %5738 = vmatpush1.bf16.msra.mxu0 %v4536
        %5739 = vmatprep.subr.bf16.mxu0 %v4545
        %5740 = vmatpush1.bf16.msra.mxu0 %v4544
        %5741 = vmatprep.subr.bf16.mxu0 %v4553
        %5742 = vmatpush1.bf16.msra.mxu0 %v4552
        %5743 = vmatprep.subr.bf16.mxu0 %v4561
        %5744 = vmatpush1.bf16.msra.mxu0 %v4560
        %5745 = vmatprep.subr.bf16.mxu0 %v4569
        %5746 = vmatpush1.bf16.msra.mxu0 %v4568
        %5747 = vmatprep.subr.bf16.mxu0 %v4577
        %5748 = vmatpush1.bf16.msra.mxu0 %v4576
        %5749 = vmatprep.mubr.bf16.mxu0 %v2271
        %5750 = vmatmul.mubr.bf16.gmra.mrb[0].mxu0 %v2270
        %v5751 = vpop.f32.mrb[0].mxu0
        %v5752 = vadd.f32 %v5711, %v5751
        %v5753 = vpop.f32.mrb[0].mxu0
        %v5754 = vadd.f32 %v5713, %v5753
        %v5755 = vpop.f32.mrb[0].mxu0
        %v5756 = vpop.f32.mrb[0].mxu0
        %5757 = vdwg.mxu0
        %5758 = vmatprep.subr.bf16.mxu0 %v4585
        %5759 = vmatpush1.bf16.msra.mxu0 %v4584
        %5760 = vmatprep.subr.bf16.mxu0 %v4593
        %5761 = vmatpush1.bf16.msra.mxu0 %v4592
        %5762 = vmatprep.subr.bf16.mxu0 %v4601
        %5763 = vmatpush1.bf16.msra.mxu0 %v4600
        %5764 = vmatprep.subr.bf16.mxu0 %v4609
        %5765 = vmatpush1.bf16.msra.mxu0 %v4608
        %5766 = vmatprep.subr.bf16.mxu0 %v4617
        %5767 = vmatpush1.bf16.msra.mxu0 %v4616
        %5768 = vmatprep.subr.bf16.mxu0 %v4625
        %5769 = vmatpush1.bf16.msra.mxu0 %v4624
        %5770 = vmatprep.subr.bf16.mxu0 %v4633
        %5771 = vmatpush1.bf16.msra.mxu0 %v4632
        %5772 = vmatprep.subr.bf16.mxu0 %v4641
        %5773 = vmatpush1.bf16.msra.mxu0 %v4640
        %5774 = vmatprep.subr.bf16.mxu0 %v4649
        %5775 = vmatpush1.bf16.msra.mxu0 %v4648
        %5776 = vmatprep.subr.bf16.mxu0 %v4657
        %5777 = vmatpush1.bf16.msra.mxu0 %v4656
        %5778 = vmatprep.subr.bf16.mxu0 %v4665
        %5779 = vmatpush1.bf16.msra.mxu0 %v4664
        %5780 = vmatprep.subr.bf16.mxu0 %v4673
        %5781 = vmatpush1.bf16.msra.mxu0 %v4672
        %5782 = vmatprep.subr.bf16.mxu0 %v4681
        %5783 = vmatpush1.bf16.msra.mxu0 %v4680
        %5784 = vmatprep.subr.bf16.mxu0 %v4689
        %5785 = vmatpush1.bf16.msra.mxu0 %v4688
        %5786 = vmatprep.subr.bf16.mxu0 %v4697
        %5787 = vmatpush1.bf16.msra.mxu0 %v4696
        %5788 = vmatprep.subr.bf16.mxu0 %v4705
        %5789 = vmatpush1.bf16.msra.mxu0 %v4704
        %5790 = vmatprep.mubr.bf16.mxu0 %v2273
        %5791 = vmatmul.mubr.bf16.gmra.mrb[0].mxu0 %v2272
        %v5792 = vpop.f32.mrb[0].mxu0
        %v5793 = vadd.f32 %v5752, %v5792
        %v5794 = vpop.f32.mrb[0].mxu0
        %v5795 = vadd.f32 %v5754, %v5794
        %v5796 = vpop.f32.mrb[0].mxu0
        %v5797 = vpop.f32.mrb[0].mxu0
        %5798 = vdwg.mxu0
        %5799 = vmatprep.subr.bf16.mxu0 %v4713
        %5800 = vmatpush1.bf16.msra.mxu0 %v4712
        %5801 = vmatprep.subr.bf16.mxu0 %v4721
        %5802 = vmatpush1.bf16.msra.mxu0 %v4720
        %5803 = vmatprep.subr.bf16.mxu0 %v4729
        %5804 = vmatpush1.bf16.msra.mxu0 %v4728
        %5805 = vmatprep.subr.bf16.mxu0 %v4737
        %5806 = vmatpush1.bf16.msra.mxu0 %v4736
        %5807 = vmatprep.subr.bf16.mxu0 %v4745
        %5808 = vmatpush1.bf16.msra.mxu0 %v4744
        %5809 = vmatprep.subr.bf16.mxu0 %v4753
        %5810 = vmatpush1.bf16.msra.mxu0 %v4752
        %5811 = vmatprep.subr.bf16.mxu0 %v4761
        %5812 = vmatpush1.bf16.msra.mxu0 %v4760
        %5813 = vmatprep.subr.bf16.mxu0 %v4769
        %5814 = vmatpush1.bf16.msra.mxu0 %v4768
        %5815 = vmatprep.subr.bf16.mxu0 %v4777
        %5816 = vmatpush1.bf16.msra.mxu0 %v4776
        %5817 = vmatprep.subr.bf16.mxu0 %v4785
        %5818 = vmatpush1.bf16.msra.mxu0 %v4784
        %5819 = vmatprep.subr.bf16.mxu0 %v4793
        %5820 = vmatpush1.bf16.msra.mxu0 %v4792
        %5821 = vmatprep.subr.bf16.mxu0 %v4801
        %5822 = vmatpush1.bf16.msra.mxu0 %v4800
        %5823 = vmatprep.subr.bf16.mxu0 %v4809
        %5824 = vmatpush1.bf16.msra.mxu0 %v4808
        %5825 = vmatprep.subr.bf16.mxu0 %v4817
        %5826 = vmatpush1.bf16.msra.mxu0 %v4816
        %5827 = vmatprep.subr.bf16.mxu0 %v4825
        %5828 = vmatpush1.bf16.msra.mxu0 %v4824
        %5829 = vmatprep.subr.bf16.mxu0 %v4833
        %5830 = vmatpush1.bf16.msra.mxu0 %v4832
        %5831 = vmatprep.mubr.bf16.mxu0 %v2275
        %5832 = vmatmul.mubr.bf16.gmra.mrb[0].mxu0 %v2274
        %v5833 = vpop.f32.mrb[0].mxu0
        %v5834 = vadd.f32 %v5793, %v5833
        %v5835 = vpop.f32.mrb[0].mxu0
        %v5836 = vadd.f32 %v5795, %v5835
        %v5837 = vpop.f32.mrb[0].mxu0
        %v5838 = vpop.f32.mrb[0].mxu0
        %5839 = vdwg.mxu0
        %5840 = vmatprep.subr.bf16.mxu0 %v4331
        %5841 = vmatpush1.bf16.msra.mxu0 %v4330
        %5842 = vmatprep.subr.bf16.mxu0 %v4339
        %5843 = vmatpush1.bf16.msra.mxu0 %v4338
        %5844 = vmatprep.subr.bf16.mxu0 %v4347
        %5845 = vmatpush1.bf16.msra.mxu0 %v4346
        %5846 = vmatprep.subr.bf16.mxu0 %v4355
        %5847 = vmatpush1.bf16.msra.mxu0 %v4354
        %5848 = vmatprep.subr.bf16.mxu0 %v4363
        %5849 = vmatpush1.bf16.msra.mxu0 %v4362
        %5850 = vmatprep.subr.bf16.mxu0 %v4371
        %5851 = vmatpush1.bf16.msra.mxu0 %v4370
        %5852 = vmatprep.subr.bf16.mxu0 %v4379
        %5853 = vmatpush1.bf16.msra.mxu0 %v4378
        %5854 = vmatprep.subr.bf16.mxu0 %v4387
        %5855 = vmatpush1.bf16.msra.mxu0 %v4386
        %5856 = vmatprep.subr.bf16.mxu0 %v4395
        %5857 = vmatpush1.bf16.msra.mxu0 %v4394
        %5858 = vmatprep.subr.bf16.mxu0 %v4403
        %5859 = vmatpush1.bf16.msra.mxu0 %v4402
        %5860 = vmatprep.subr.bf16.mxu0 %v4411
        %5861 = vmatpush1.bf16.msra.mxu0 %v4410
        %5862 = vmatprep.subr.bf16.mxu0 %v4419
        %5863 = vmatpush1.bf16.msra.mxu0 %v4418
        %5864 = vmatprep.subr.bf16.mxu0 %v4427
        %5865 = vmatpush1.bf16.msra.mxu0 %v4426
        %5866 = vmatprep.subr.bf16.mxu0 %v4435
        %5867 = vmatpush1.bf16.msra.mxu0 %v4434
        %5868 = vmatprep.subr.bf16.mxu0 %v4443
        %5869 = vmatpush1.bf16.msra.mxu0 %v4442
        %5870 = vmatprep.subr.bf16.mxu0 %v4451
        %5871 = vmatpush1.bf16.msra.mxu0 %v4450
        %5872 = vmatprep.mubr.bf16.mxu0 %v2269
        %5873 = vmatmul.mubr.bf16.gmra.mrb[0].mxu0 %v2268
        %v5874 = vpop.f32.mrb[0].mxu0
        %v5875 = vadd.f32 0.0, %v5874
        %v5876 = vpop.f32.mrb[0].mxu0
        %v5877 = vadd.f32 0.0, %v5876
        %v5878 = vpop.f32.mrb[0].mxu0
        %v5879 = vpop.f32.mrb[0].mxu0
        %5880 = vdwg.mxu0
        %5881 = vmatprep.subr.bf16.mxu0 %v4459
        %5882 = vmatpush1.bf16.msra.mxu0 %v4458
        %5883 = vmatprep.subr.bf16.mxu0 %v4467
        %5884 = vmatpush1.bf16.msra.mxu0 %v4466
        %5885 = vmatprep.subr.bf16.mxu0 %v4475
        %5886 = vmatpush1.bf16.msra.mxu0 %v4474
        %5887 = vmatprep.subr.bf16.mxu0 %v4483
        %5888 = vmatpush1.bf16.msra.mxu0 %v4482
        %5889 = vmatprep.subr.bf16.mxu0 %v4491
        %5890 = vmatpush1.bf16.msra.mxu0 %v4490
        %5891 = vmatprep.subr.bf16.mxu0 %v4499
        %5892 = vmatpush1.bf16.msra.mxu0 %v4498
        %5893 = vmatprep.subr.bf16.mxu0 %v4507
        %5894 = vmatpush1.bf16.msra.mxu0 %v4506
        %5895 = vmatprep.subr.bf16.mxu0 %v4515
        %5896 = vmatpush1.bf16.msra.mxu0 %v4514
        %5897 = vmatprep.subr.bf16.mxu0 %v4523
        %5898 = vmatpush1.bf16.msra.mxu0 %v4522
        %5899 = vmatprep.subr.bf16.mxu0 %v4531
        %5900 = vmatpush1.bf16.msra.mxu0 %v4530
        %5901 = vmatprep.subr.bf16.mxu0 %v4539
        %5902 = vmatpush1.bf16.msra.mxu0 %v4538
        %5903 = vmatprep.subr.bf16.mxu0 %v4547
        %5904 = vmatpush1.bf16.msra.mxu0 %v4546
        %5905 = vmatprep.subr.bf16.mxu0 %v4555
        %5906 = vmatpush1.bf16.msra.mxu0 %v4554
        %5907 = vmatprep.subr.bf16.mxu0 %v4563
        %5908 = vmatpush1.bf16.msra.mxu0 %v4562
        %5909 = vmatprep.subr.bf16.mxu0 %v4571
        %5910 = vmatpush1.bf16.msra.mxu0 %v4570
        %5911 = vmatprep.subr.bf16.mxu0 %v4579
        %5912 = vmatpush1.bf16.msra.mxu0 %v4578
        %5913 = vmatprep.mubr.bf16.mxu0 %v2271
        %5914 = vmatmul.mubr.bf16.gmra.mrb[0].mxu0 %v2270
        %v5915 = vpop.f32.mrb[0].mxu0
        %v5916 = vadd.f32 %v5875, %v5915
        %v5917 = vpop.f32.mrb[0].mxu0
        %v5918 = vadd.f32 %v5877, %v5917
        %v5919 = vpop.f32.mrb[0].mxu0
        %v5920 = vpop.f32.mrb[0].mxu0
        %5921 = vdwg.mxu0
        %5922 = vmatprep.subr.bf16.mxu0 %v4587
        %5923 = vmatpush1.bf16.msra.mxu0 %v4586
        %5924 = vmatprep.subr.bf16.mxu0 %v4595
        %5925 = vmatpush1.bf16.msra.mxu0 %v4594
        %5926 = vmatprep.subr.bf16.mxu0 %v4603
        %5927 = vmatpush1.bf16.msra.mxu0 %v4602
        %5928 = vmatprep.subr.bf16.mxu0 %v4611
        %5929 = vmatpush1.bf16.msra.mxu0 %v4610
        %5930 = vmatprep.subr.bf16.mxu0 %v4619
        %5931 = vmatpush1.bf16.msra.mxu0 %v4618
        %5932 = vmatprep.subr.bf16.mxu0 %v4627
        %5933 = vmatpush1.bf16.msra.mxu0 %v4626
        %5934 = vmatprep.subr.bf16.mxu0 %v4635
        %5935 = vmatpush1.bf16.msra.mxu0 %v4634
        %5936 = vmatprep.subr.bf16.mxu0 %v4643
        %5937 = vmatpush1.bf16.msra.mxu0 %v4642
        %5938 = vmatprep.subr.bf16.mxu0 %v4651
        %5939 = vmatpush1.bf16.msra.mxu0 %v4650
        %5940 = vmatprep.subr.bf16.mxu0 %v4659
        %5941 = vmatpush1.bf16.msra.mxu0 %v4658
        %5942 = vmatprep.subr.bf16.mxu0 %v4667
        %5943 = vmatpush1.bf16.msra.mxu0 %v4666
        %5944 = vmatprep.subr.bf16.mxu0 %v4675
        %5945 = vmatpush1.bf16.msra.mxu0 %v4674
        %5946 = vmatprep.subr.bf16.mxu0 %v4683
        %5947 = vmatpush1.bf16.msra.mxu0 %v4682
        %5948 = vmatprep.subr.bf16.mxu0 %v4691
        %5949 = vmatpush1.bf16.msra.mxu0 %v4690
        %5950 = vmatprep.subr.bf16.mxu0 %v4699
        %5951 = vmatpush1.bf16.msra.mxu0 %v4698
        %5952 = vmatprep.subr.bf16.mxu0 %v4707
        %5953 = vmatpush1.bf16.msra.mxu0 %v4706
        %5954 = vmatprep.mubr.bf16.mxu0 %v2273
        %5955 = vmatmul.mubr.bf16.gmra.mrb[0].mxu0 %v2272
        %v5956 = vpop.f32.mrb[0].mxu0
        %v5957 = vadd.f32 %v5916, %v5956
        %v5958 = vpop.f32.mrb[0].mxu0
        %v5959 = vadd.f32 %v5918, %v5958
        %v5960 = vpop.f32.mrb[0].mxu0
        %v5961 = vpop.f32.mrb[0].mxu0
        %5962 = vdwg.mxu0
        %5963 = vmatprep.subr.bf16.mxu0 %v4715
        %5964 = vmatpush1.bf16.msra.mxu0 %v4714
        %5965 = vmatprep.subr.bf16.mxu0 %v4723
        %5966 = vmatpush1.bf16.msra.mxu0 %v4722
        %5967 = vmatprep.subr.bf16.mxu0 %v4731
        %5968 = vmatpush1.bf16.msra.mxu0 %v4730
        %5969 = vmatprep.subr.bf16.mxu0 %v4739
        %5970 = vmatpush1.bf16.msra.mxu0 %v4738
        %5971 = vmatprep.subr.bf16.mxu0 %v4747
        %5972 = vmatpush1.bf16.msra.mxu0 %v4746
        %5973 = vmatprep.subr.bf16.mxu0 %v4755
        %5974 = vmatpush1.bf16.msra.mxu0 %v4754
        %5975 = vmatprep.subr.bf16.mxu0 %v4763
        %5976 = vmatpush1.bf16.msra.mxu0 %v4762
        %5977 = vmatprep.subr.bf16.mxu0 %v4771
        %5978 = vmatpush1.bf16.msra.mxu0 %v4770
        %5979 = vmatprep.subr.bf16.mxu0 %v4779
        %5980 = vmatpush1.bf16.msra.mxu0 %v4778
        %5981 = vmatprep.subr.bf16.mxu0 %v4787
        %5982 = vmatpush1.bf16.msra.mxu0 %v4786
        %5983 = vmatprep.subr.bf16.mxu0 %v4795
        %5984 = vmatpush1.bf16.msra.mxu0 %v4794
        %5985 = vmatprep.subr.bf16.mxu0 %v4803
        %5986 = vmatpush1.bf16.msra.mxu0 %v4802
        %5987 = vmatprep.subr.bf16.mxu0 %v4811
        %5988 = vmatpush1.bf16.msra.mxu0 %v4810
        %5989 = vmatprep.subr.bf16.mxu0 %v4819
        %5990 = vmatpush1.bf16.msra.mxu0 %v4818
        %5991 = vmatprep.subr.bf16.mxu0 %v4827
        %5992 = vmatpush1.bf16.msra.mxu0 %v4826
        %5993 = vmatprep.subr.bf16.mxu0 %v4835
        %5994 = vmatpush1.bf16.msra.mxu0 %v4834
        %5995 = vmatprep.mubr.bf16.mxu0 %v2275
        %5996 = vmatmul.mubr.bf16.gmra.mrb[0].mxu0 %v2274
        %v5997 = vpop.f32.mrb[0].mxu0
        %v5998 = vadd.f32 %v5957, %v5997
        %v5999 = vpop.f32.mrb[0].mxu0
        %v6000 = vadd.f32 %v5959, %v5999
        %v6001 = vpop.f32.mrb[0].mxu0
        %v6002 = vpop.f32.mrb[0].mxu0
        %6003 = vdwg.mxu0
        %v6516 = vunpack.c.l.b16 %v1745
        %v6517 = vunpack.c.h.b16 %v1745
        %v6518 = vunpack.c.l.b16 %v1746
        %v6519 = vunpack.c.h.b16 %v1746
        %v6520 = vunpack.c.l.b16 %v1747
        %v6521 = vunpack.c.h.b16 %v1747
        %v6522 = vunpack.c.l.b16 %v1748
        %v6523 = vunpack.c.h.b16 %v1748
        %v6524 = vunpack.c.l.b16 %v1749
        %v6525 = vunpack.c.h.b16 %v1749
        %v6526 = vunpack.c.l.b16 %v1750
        %v6527 = vunpack.c.h.b16 %v1750
        %v6528 = vunpack.c.l.b16 %v1751
        %v6529 = vunpack.c.h.b16 %v1751
        %v6530 = vunpack.c.l.b16 %v1752
        %v6531 = vunpack.c.h.b16 %v1752
        %v6532 = vunpack.c.l.b16 %v1753
        %v6533 = vunpack.c.h.b16 %v1753
        %v6534 = vunpack.c.l.b16 %v1754
        %v6535 = vunpack.c.h.b16 %v1754
        %v6536 = vunpack.c.l.b16 %v1755
        %v6537 = vunpack.c.h.b16 %v1755
        %v6538 = vunpack.c.l.b16 %v1756
        %v6539 = vunpack.c.h.b16 %v1756
        %v6540 = vunpack.c.l.b16 %v1757
        %v6541 = vunpack.c.h.b16 %v1757
        %v6542 = vunpack.c.l.b16 %v1758
        %v6543 = vunpack.c.h.b16 %v1758
        %v6544 = vunpack.c.l.b16 %v1759
        %v6545 = vunpack.c.h.b16 %v1759
        %v6546 = vunpack.c.l.b16 %v1760
        %v6547 = vunpack.c.h.b16 %v1760
        %v6548 = vunpack.c.l.b16 %v1761
        %v6549 = vunpack.c.h.b16 %v1761
        %v6550 = vunpack.c.l.b16 %v1762
        %v6551 = vunpack.c.h.b16 %v1762
        %v6552 = vunpack.c.l.b16 %v1763
        %v6553 = vunpack.c.h.b16 %v1763
        %v6554 = vunpack.c.l.b16 %v1764
        %v6555 = vunpack.c.h.b16 %v1764
        %v6556 = vunpack.c.l.b16 %v1765
        %v6557 = vunpack.c.h.b16 %v1765
        %v6558 = vunpack.c.l.b16 %v1766
        %v6559 = vunpack.c.h.b16 %v1766
        %v6560 = vunpack.c.l.b16 %v1767
        %v6561 = vunpack.c.h.b16 %v1767
        %v6562 = vunpack.c.l.b16 %v1768
        %v6563 = vunpack.c.h.b16 %v1768
        %v6564 = vunpack.c.l.b16 %v1769
        %v6565 = vunpack.c.h.b16 %v1769
        %v6566 = vunpack.c.l.b16 %v1770
        %v6567 = vunpack.c.h.b16 %v1770
        %v6568 = vunpack.c.l.b16 %v1771
        %v6569 = vunpack.c.h.b16 %v1771
        %v6570 = vunpack.c.l.b16 %v1772
        %v6571 = vunpack.c.h.b16 %v1772
        %v6572 = vunpack.c.l.b16 %v1773
        %v6573 = vunpack.c.h.b16 %v1773
        %v6574 = vunpack.c.l.b16 %v1774
        %v6575 = vunpack.c.h.b16 %v1774
        %v6576 = vunpack.c.l.b16 %v1775
        %v6577 = vunpack.c.h.b16 %v1775
        %v6578 = vunpack.c.l.b16 %v1776
        %v6579 = vunpack.c.h.b16 %v1776
        %v6580 = vunpack.c.l.b16 %v1777
        %v6581 = vunpack.c.h.b16 %v1777
        %v6582 = vunpack.c.l.b16 %v1778
        %v6583 = vunpack.c.h.b16 %v1778
        %v6584 = vunpack.c.l.b16 %v1779
        %v6585 = vunpack.c.h.b16 %v1779
        %v6586 = vunpack.c.l.b16 %v1780
        %v6587 = vunpack.c.h.b16 %v1780
        %v6588 = vunpack.c.l.b16 %v1781
        %v6589 = vunpack.c.h.b16 %v1781
        %v6590 = vunpack.c.l.b16 %v1782
        %v6591 = vunpack.c.h.b16 %v1782
        %v6592 = vunpack.c.l.b16 %v1783
        %v6593 = vunpack.c.h.b16 %v1783
        %v6594 = vunpack.c.l.b16 %v1784
        %v6595 = vunpack.c.h.b16 %v1784
        %v6596 = vunpack.c.l.b16 %v1785
        %v6597 = vunpack.c.h.b16 %v1785
        %v6598 = vunpack.c.l.b16 %v1786
        %v6599 = vunpack.c.h.b16 %v1786
        %v6600 = vunpack.c.l.b16 %v1787
        %v6601 = vunpack.c.h.b16 %v1787
        %v6602 = vunpack.c.l.b16 %v1788
        %v6603 = vunpack.c.h.b16 %v1788
        %v6604 = vunpack.c.l.b16 %v1789
        %v6605 = vunpack.c.h.b16 %v1789
        %v6606 = vunpack.c.l.b16 %v1790
        %v6607 = vunpack.c.h.b16 %v1790
        %v6608 = vunpack.c.l.b16 %v1791
        %v6609 = vunpack.c.h.b16 %v1791
        %v6610 = vunpack.c.l.b16 %v1792
        %v6611 = vunpack.c.h.b16 %v1792
        %v6612 = vunpack.c.l.b16 %v1793
        %v6613 = vunpack.c.h.b16 %v1793
        %v6614 = vunpack.c.l.b16 %v1794
        %v6615 = vunpack.c.h.b16 %v1794
        %v6616 = vunpack.c.l.b16 %v1795
        %v6617 = vunpack.c.h.b16 %v1795
        %v6618 = vunpack.c.l.b16 %v1796
        %v6619 = vunpack.c.h.b16 %v1796
        %v6620 = vunpack.c.l.b16 %v1797
        %v6621 = vunpack.c.h.b16 %v1797
        %v6622 = vunpack.c.l.b16 %v1798
        %v6623 = vunpack.c.h.b16 %v1798
        %v6624 = vunpack.c.l.b16 %v1799
        %v6625 = vunpack.c.h.b16 %v1799
        %v6626 = vunpack.c.l.b16 %v1800
        %v6627 = vunpack.c.h.b16 %v1800
        %v6628 = vunpack.c.l.b16 %v1801
        %v6629 = vunpack.c.h.b16 %v1801
        %v6630 = vunpack.c.l.b16 %v1802
        %v6631 = vunpack.c.h.b16 %v1802
        %v6632 = vunpack.c.l.b16 %v1803
        %v6633 = vunpack.c.h.b16 %v1803
        %v6634 = vunpack.c.l.b16 %v1804
        %v6635 = vunpack.c.h.b16 %v1804
        %v6636 = vunpack.c.l.b16 %v1805
        %v6637 = vunpack.c.h.b16 %v1805
        %v6638 = vunpack.c.l.b16 %v1806
        %v6639 = vunpack.c.h.b16 %v1806
        %v6640 = vunpack.c.l.b16 %v1807
        %v6641 = vunpack.c.h.b16 %v1807
        %v6642 = vunpack.c.l.b16 %v1808
        %v6643 = vunpack.c.h.b16 %v1808
        %v6644 = vunpack.c.l.b16 %v1809
        %v6645 = vunpack.c.h.b16 %v1809
        %v6646 = vunpack.c.l.b16 %v1810
        %v6647 = vunpack.c.h.b16 %v1810
        %v6648 = vunpack.c.l.b16 %v1811
        %v6649 = vunpack.c.h.b16 %v1811
        %v6650 = vunpack.c.l.b16 %v1812
        %v6651 = vunpack.c.h.b16 %v1812
        %v6652 = vunpack.c.l.b16 %v1813
        %v6653 = vunpack.c.h.b16 %v1813
        %v6654 = vunpack.c.l.b16 %v1814
        %v6655 = vunpack.c.h.b16 %v1814
        %v6656 = vunpack.c.l.b16 %v1815
        %v6657 = vunpack.c.h.b16 %v1815
        %v6658 = vunpack.c.l.b16 %v1816
        %v6659 = vunpack.c.h.b16 %v1816
        %v6660 = vunpack.c.l.b16 %v1817
        %v6661 = vunpack.c.h.b16 %v1817
        %v6662 = vunpack.c.l.b16 %v1818
        %v6663 = vunpack.c.h.b16 %v1818
        %v6664 = vunpack.c.l.b16 %v1819
        %v6665 = vunpack.c.h.b16 %v1819
        %v6666 = vunpack.c.l.b16 %v1820
        %v6667 = vunpack.c.h.b16 %v1820
        %v6668 = vunpack.c.l.b16 %v1821
        %v6669 = vunpack.c.h.b16 %v1821
        %v6670 = vunpack.c.l.b16 %v1822
        %v6671 = vunpack.c.h.b16 %v1822
        %v6672 = vunpack.c.l.b16 %v1823
        %v6673 = vunpack.c.h.b16 %v1823
        %v6674 = vunpack.c.l.b16 %v1824
        %v6675 = vunpack.c.h.b16 %v1824
        %v6676 = vunpack.c.l.b16 %v1825
        %v6677 = vunpack.c.h.b16 %v1825
        %v6678 = vunpack.c.l.b16 %v1826
        %v6679 = vunpack.c.h.b16 %v1826
        %v6680 = vunpack.c.l.b16 %v1827
        %v6681 = vunpack.c.h.b16 %v1827
        %v6682 = vunpack.c.l.b16 %v1828
        %v6683 = vunpack.c.h.b16 %v1828
        %v6684 = vunpack.c.l.b16 %v1829
        %v6685 = vunpack.c.h.b16 %v1829
        %v6686 = vunpack.c.l.b16 %v1830
        %v6687 = vunpack.c.h.b16 %v1830
        %v6688 = vunpack.c.l.b16 %v1831
        %v6689 = vunpack.c.h.b16 %v1831
        %v6690 = vunpack.c.l.b16 %v1832
        %v6691 = vunpack.c.h.b16 %v1832
        %v6692 = vunpack.c.l.b16 %v1833
        %v6693 = vunpack.c.h.b16 %v1833
        %v6694 = vunpack.c.l.b16 %v1834
        %v6695 = vunpack.c.h.b16 %v1834
        %v6696 = vunpack.c.l.b16 %v1835
        %v6697 = vunpack.c.h.b16 %v1835
        %v6698 = vunpack.c.l.b16 %v1836
        %v6699 = vunpack.c.h.b16 %v1836
        %v6700 = vunpack.c.l.b16 %v1837
        %v6701 = vunpack.c.h.b16 %v1837
        %v6702 = vunpack.c.l.b16 %v1838
        %v6703 = vunpack.c.h.b16 %v1838
        %v6704 = vunpack.c.l.b16 %v1839
        %v6705 = vunpack.c.h.b16 %v1839
        %v6706 = vunpack.c.l.b16 %v1840
        %v6707 = vunpack.c.h.b16 %v1840
        %v6708 = vunpack.c.l.b16 %v1841
        %v6709 = vunpack.c.h.b16 %v1841
        %v6710 = vunpack.c.l.b16 %v1842
        %v6711 = vunpack.c.h.b16 %v1842
        %v6712 = vunpack.c.l.b16 %v1843
        %v6713 = vunpack.c.h.b16 %v1843
        %v6714 = vunpack.c.l.b16 %v1844
        %v6715 = vunpack.c.h.b16 %v1844
        %v6716 = vunpack.c.l.b16 %v1845
        %v6717 = vunpack.c.h.b16 %v1845
        %v6718 = vunpack.c.l.b16 %v1846
        %v6719 = vunpack.c.h.b16 %v1846
        %v6720 = vunpack.c.l.b16 %v1847
        %v6721 = vunpack.c.h.b16 %v1847
        %v6722 = vunpack.c.l.b16 %v1848
        %v6723 = vunpack.c.h.b16 %v1848
        %v6724 = vunpack.c.l.b16 %v1849
        %v6725 = vunpack.c.h.b16 %v1849
        %v6726 = vunpack.c.l.b16 %v1850
        %v6727 = vunpack.c.h.b16 %v1850
        %v6728 = vunpack.c.l.b16 %v1851
        %v6729 = vunpack.c.h.b16 %v1851
        %v6730 = vunpack.c.l.b16 %v1852
        %v6731 = vunpack.c.h.b16 %v1852
        %v6732 = vunpack.c.l.b16 %v1853
        %v6733 = vunpack.c.h.b16 %v1853
        %v6734 = vunpack.c.l.b16 %v1854
        %v6735 = vunpack.c.h.b16 %v1854
        %v6736 = vunpack.c.l.b16 %v1855
        %v6737 = vunpack.c.h.b16 %v1855
        %v6738 = vunpack.c.l.b16 %v1856
        %v6739 = vunpack.c.h.b16 %v1856
        %v6740 = vunpack.c.l.b16 %v1857
        %v6741 = vunpack.c.h.b16 %v1857
        %v6742 = vunpack.c.l.b16 %v1858
        %v6743 = vunpack.c.h.b16 %v1858
        %v6744 = vunpack.c.l.b16 %v1859
        %v6745 = vunpack.c.h.b16 %v1859
        %v6746 = vunpack.c.l.b16 %v1860
        %v6747 = vunpack.c.h.b16 %v1860
        %v6748 = vunpack.c.l.b16 %v1861
        %v6749 = vunpack.c.h.b16 %v1861
        %v6750 = vunpack.c.l.b16 %v1862
        %v6751 = vunpack.c.h.b16 %v1862
        %v6752 = vunpack.c.l.b16 %v1863
        %v6753 = vunpack.c.h.b16 %v1863
        %v6754 = vunpack.c.l.b16 %v1864
        %v6755 = vunpack.c.h.b16 %v1864
        %v6756 = vunpack.c.l.b16 %v1865
        %v6757 = vunpack.c.h.b16 %v1865
        %v6758 = vunpack.c.l.b16 %v1866
        %v6759 = vunpack.c.h.b16 %v1866
        %v6760 = vunpack.c.l.b16 %v1867
        %v6761 = vunpack.c.h.b16 %v1867
        %v6762 = vunpack.c.l.b16 %v1868
        %v6763 = vunpack.c.h.b16 %v1868
        %v6764 = vunpack.c.l.b16 %v1869
        %v6765 = vunpack.c.h.b16 %v1869
        %v6766 = vunpack.c.l.b16 %v1870
        %v6767 = vunpack.c.h.b16 %v1870
        %v6768 = vunpack.c.l.b16 %v1871
        %v6769 = vunpack.c.h.b16 %v1871
        %v6770 = vunpack.c.l.b16 %v1872
        %v6771 = vunpack.c.h.b16 %v1872
        %v6772 = vunpack.c.l.b16 %v1873
        %v6773 = vunpack.c.h.b16 %v1873
        %v6774 = vunpack.c.l.b16 %v1874
        %v6775 = vunpack.c.h.b16 %v1874
        %v6776 = vunpack.c.l.b16 %v1875
        %v6777 = vunpack.c.h.b16 %v1875
        %v6778 = vunpack.c.l.b16 %v1876
        %v6779 = vunpack.c.h.b16 %v1876
        %v6780 = vunpack.c.l.b16 %v1877
        %v6781 = vunpack.c.h.b16 %v1877
        %v6782 = vunpack.c.l.b16 %v1878
        %v6783 = vunpack.c.h.b16 %v1878
        %v6784 = vunpack.c.l.b16 %v1879
        %v6785 = vunpack.c.h.b16 %v1879
        %v6786 = vunpack.c.l.b16 %v1880
        %v6787 = vunpack.c.h.b16 %v1880
        %v6788 = vunpack.c.l.b16 %v1881
        %v6789 = vunpack.c.h.b16 %v1881
        %v6790 = vunpack.c.l.b16 %v1882
        %v6791 = vunpack.c.h.b16 %v1882
        %v6792 = vunpack.c.l.b16 %v1883
        %v6793 = vunpack.c.h.b16 %v1883
        %v6794 = vunpack.c.l.b16 %v1884
        %v6795 = vunpack.c.h.b16 %v1884
        %v6796 = vunpack.c.l.b16 %v1885
        %v6797 = vunpack.c.h.b16 %v1885
        %v6798 = vunpack.c.l.b16 %v1886
        %v6799 = vunpack.c.h.b16 %v1886
        %v6800 = vunpack.c.l.b16 %v1887
        %v6801 = vunpack.c.h.b16 %v1887
        %v6802 = vunpack.c.l.b16 %v1888
        %v6803 = vunpack.c.h.b16 %v1888
        %v6804 = vunpack.c.l.b16 %v1889
        %v6805 = vunpack.c.h.b16 %v1889
        %v6806 = vunpack.c.l.b16 %v1890
        %v6807 = vunpack.c.h.b16 %v1890
        %v6808 = vunpack.c.l.b16 %v1891
        %v6809 = vunpack.c.h.b16 %v1891
        %v6810 = vunpack.c.l.b16 %v1892
        %v6811 = vunpack.c.h.b16 %v1892
        %v6812 = vunpack.c.l.b16 %v1893
        %v6813 = vunpack.c.h.b16 %v1893
        %v6814 = vunpack.c.l.b16 %v1894
        %v6815 = vunpack.c.h.b16 %v1894
        %v6816 = vunpack.c.l.b16 %v1895
        %v6817 = vunpack.c.h.b16 %v1895
        %v6818 = vunpack.c.l.b16 %v1896
        %v6819 = vunpack.c.h.b16 %v1896
        %v6820 = vunpack.c.l.b16 %v1897
        %v6821 = vunpack.c.h.b16 %v1897
        %v6822 = vunpack.c.l.b16 %v1898
        %v6823 = vunpack.c.h.b16 %v1898
        %v6824 = vunpack.c.l.b16 %v1899
        %v6825 = vunpack.c.h.b16 %v1899
        %v6826 = vunpack.c.l.b16 %v1900
        %v6827 = vunpack.c.h.b16 %v1900
        %v6828 = vunpack.c.l.b16 %v1901
        %v6829 = vunpack.c.h.b16 %v1901
        %v6830 = vunpack.c.l.b16 %v1902
        %v6831 = vunpack.c.h.b16 %v1902
        %v6832 = vunpack.c.l.b16 %v1903
        %v6833 = vunpack.c.h.b16 %v1903
        %v6834 = vunpack.c.l.b16 %v1904
        %v6835 = vunpack.c.h.b16 %v1904
        %v6836 = vunpack.c.l.b16 %v1905
        %v6837 = vunpack.c.h.b16 %v1905
        %v6838 = vunpack.c.l.b16 %v1906
        %v6839 = vunpack.c.h.b16 %v1906
        %v6840 = vunpack.c.l.b16 %v1907
        %v6841 = vunpack.c.h.b16 %v1907
        %v6842 = vunpack.c.l.b16 %v1908
        %v6843 = vunpack.c.h.b16 %v1908
        %v6844 = vunpack.c.l.b16 %v1909
        %v6845 = vunpack.c.h.b16 %v1909
        %v6846 = vunpack.c.l.b16 %v1910
        %v6847 = vunpack.c.h.b16 %v1910
        %v6848 = vunpack.c.l.b16 %v1911
        %v6849 = vunpack.c.h.b16 %v1911
        %v6850 = vunpack.c.l.b16 %v1912
        %v6851 = vunpack.c.h.b16 %v1912
        %v6852 = vunpack.c.l.b16 %v1913
        %v6853 = vunpack.c.h.b16 %v1913
        %v6854 = vunpack.c.l.b16 %v1914
        %v6855 = vunpack.c.h.b16 %v1914
        %v6856 = vunpack.c.l.b16 %v1915
        %v6857 = vunpack.c.h.b16 %v1915
        %v6858 = vunpack.c.l.b16 %v1916
        %v6859 = vunpack.c.h.b16 %v1916
        %v6860 = vunpack.c.l.b16 %v1917
        %v6861 = vunpack.c.h.b16 %v1917
        %v6862 = vunpack.c.l.b16 %v1918
        %v6863 = vunpack.c.h.b16 %v1918
        %v6864 = vunpack.c.l.b16 %v1919
        %v6865 = vunpack.c.h.b16 %v1919
        %v6866 = vunpack.c.l.b16 %v1920
        %v6867 = vunpack.c.h.b16 %v1920
        %v6868 = vunpack.c.l.b16 %v1921
        %v6869 = vunpack.c.h.b16 %v1921
        %v6870 = vunpack.c.l.b16 %v1922
        %v6871 = vunpack.c.h.b16 %v1922
        %v6872 = vunpack.c.l.b16 %v1923
        %v6873 = vunpack.c.h.b16 %v1923
        %v6874 = vunpack.c.l.b16 %v1924
        %v6875 = vunpack.c.h.b16 %v1924
        %v6876 = vunpack.c.l.b16 %v1925
        %v6877 = vunpack.c.h.b16 %v1925
        %v6878 = vunpack.c.l.b16 %v1926
        %v6879 = vunpack.c.h.b16 %v1926
        %v6880 = vunpack.c.l.b16 %v1927
        %v6881 = vunpack.c.h.b16 %v1927
        %v6882 = vunpack.c.l.b16 %v1928
        %v6883 = vunpack.c.h.b16 %v1928
        %v6884 = vunpack.c.l.b16 %v1929
        %v6885 = vunpack.c.h.b16 %v1929
        %v6886 = vunpack.c.l.b16 %v1930
        %v6887 = vunpack.c.h.b16 %v1930
        %v6888 = vunpack.c.l.b16 %v1931
        %v6889 = vunpack.c.h.b16 %v1931
        %v6890 = vunpack.c.l.b16 %v1932
        %v6891 = vunpack.c.h.b16 %v1932
        %v6892 = vunpack.c.l.b16 %v1933
        %v6893 = vunpack.c.h.b16 %v1933
        %v6894 = vunpack.c.l.b16 %v1934
        %v6895 = vunpack.c.h.b16 %v1934
        %v6896 = vunpack.c.l.b16 %v1935
        %v6897 = vunpack.c.h.b16 %v1935
        %v6898 = vunpack.c.l.b16 %v1936
        %v6899 = vunpack.c.h.b16 %v1936
        %v6900 = vunpack.c.l.b16 %v1937
        %v6901 = vunpack.c.h.b16 %v1937
        %v6902 = vunpack.c.l.b16 %v1938
        %v6903 = vunpack.c.h.b16 %v1938
        %v6904 = vunpack.c.l.b16 %v1939
        %v6905 = vunpack.c.h.b16 %v1939
        %v6906 = vunpack.c.l.b16 %v1940
        %v6907 = vunpack.c.h.b16 %v1940
        %v6908 = vunpack.c.l.b16 %v1941
        %v6909 = vunpack.c.h.b16 %v1941
        %v6910 = vunpack.c.l.b16 %v1942
        %v6911 = vunpack.c.h.b16 %v1942
        %v6912 = vunpack.c.l.b16 %v1943
        %v6913 = vunpack.c.h.b16 %v1943
        %v6914 = vunpack.c.l.b16 %v1944
        %v6915 = vunpack.c.h.b16 %v1944
        %v6916 = vunpack.c.l.b16 %v1945
        %v6917 = vunpack.c.h.b16 %v1945
        %v6918 = vunpack.c.l.b16 %v1946
        %v6919 = vunpack.c.h.b16 %v1946
        %v6920 = vunpack.c.l.b16 %v1947
        %v6921 = vunpack.c.h.b16 %v1947
        %v6922 = vunpack.c.l.b16 %v1948
        %v6923 = vunpack.c.h.b16 %v1948
        %v6924 = vunpack.c.l.b16 %v1949
        %v6925 = vunpack.c.h.b16 %v1949
        %v6926 = vunpack.c.l.b16 %v1950
        %v6927 = vunpack.c.h.b16 %v1950
        %v6928 = vunpack.c.l.b16 %v1951
        %v6929 = vunpack.c.h.b16 %v1951
        %v6930 = vunpack.c.l.b16 %v1952
        %v6931 = vunpack.c.h.b16 %v1952
        %v6932 = vunpack.c.l.b16 %v1953
        %v6933 = vunpack.c.h.b16 %v1953
        %v6934 = vunpack.c.l.b16 %v1954
        %v6935 = vunpack.c.h.b16 %v1954
        %v6936 = vunpack.c.l.b16 %v1955
        %v6937 = vunpack.c.h.b16 %v1955
        %v6938 = vunpack.c.l.b16 %v1956
        %v6939 = vunpack.c.h.b16 %v1956
        %v6940 = vunpack.c.l.b16 %v1957
        %v6941 = vunpack.c.h.b16 %v1957
        %v6942 = vunpack.c.l.b16 %v1958
        %v6943 = vunpack.c.h.b16 %v1958
        %v6944 = vunpack.c.l.b16 %v1959
        %v6945 = vunpack.c.h.b16 %v1959
        %v6946 = vunpack.c.l.b16 %v1960
        %v6947 = vunpack.c.h.b16 %v1960
        %v6948 = vunpack.c.l.b16 %v1961
        %v6949 = vunpack.c.h.b16 %v1961
        %v6950 = vunpack.c.l.b16 %v1962
        %v6951 = vunpack.c.h.b16 %v1962
        %v6952 = vunpack.c.l.b16 %v1963
        %v6953 = vunpack.c.h.b16 %v1963
        %v6954 = vunpack.c.l.b16 %v1964
        %v6955 = vunpack.c.h.b16 %v1964
        %v6956 = vunpack.c.l.b16 %v1965
        %v6957 = vunpack.c.h.b16 %v1965
        %v6958 = vunpack.c.l.b16 %v1966
        %v6959 = vunpack.c.h.b16 %v1966
        %v6960 = vunpack.c.l.b16 %v1967
        %v6961 = vunpack.c.h.b16 %v1967
        %v6962 = vunpack.c.l.b16 %v1968
        %v6963 = vunpack.c.h.b16 %v1968
        %v6964 = vunpack.c.l.b16 %v1969
        %v6965 = vunpack.c.h.b16 %v1969
        %v6966 = vunpack.c.l.b16 %v1970
        %v6967 = vunpack.c.h.b16 %v1970
        %v6968 = vunpack.c.l.b16 %v1971
        %v6969 = vunpack.c.h.b16 %v1971
        %v6970 = vunpack.c.l.b16 %v1972
        %v6971 = vunpack.c.h.b16 %v1972
        %v6972 = vunpack.c.l.b16 %v1973
        %v6973 = vunpack.c.h.b16 %v1973
        %v6974 = vunpack.c.l.b16 %v1974
        %v6975 = vunpack.c.h.b16 %v1974
        %v6976 = vunpack.c.l.b16 %v1975
        %v6977 = vunpack.c.h.b16 %v1975
        %v6978 = vunpack.c.l.b16 %v1976
        %v6979 = vunpack.c.h.b16 %v1976
        %v6980 = vunpack.c.l.b16 %v1977
        %v6981 = vunpack.c.h.b16 %v1977
        %v6982 = vunpack.c.l.b16 %v1978
        %v6983 = vunpack.c.h.b16 %v1978
        %v6984 = vunpack.c.l.b16 %v1979
        %v6985 = vunpack.c.h.b16 %v1979
        %v6986 = vunpack.c.l.b16 %v1980
        %v6987 = vunpack.c.h.b16 %v1980
        %v6988 = vunpack.c.l.b16 %v1981
        %v6989 = vunpack.c.h.b16 %v1981
        %v6990 = vunpack.c.l.b16 %v1982
        %v6991 = vunpack.c.h.b16 %v1982
        %v6992 = vunpack.c.l.b16 %v1983
        %v6993 = vunpack.c.h.b16 %v1983
        %v6994 = vunpack.c.l.b16 %v1984
        %v6995 = vunpack.c.h.b16 %v1984
        %v6996 = vunpack.c.l.b16 %v1985
        %v6997 = vunpack.c.h.b16 %v1985
        %v6998 = vunpack.c.l.b16 %v1986
        %v6999 = vunpack.c.h.b16 %v1986
        %v7000 = vunpack.c.l.b16 %v1987
        %v7001 = vunpack.c.h.b16 %v1987
        %v7002 = vunpack.c.l.b16 %v1988
        %v7003 = vunpack.c.h.b16 %v1988
        %v7004 = vunpack.c.l.b16 %v1989
        %v7005 = vunpack.c.h.b16 %v1989
        %v7006 = vunpack.c.l.b16 %v1990
        %v7007 = vunpack.c.h.b16 %v1990
        %v7008 = vunpack.c.l.b16 %v1991
        %v7009 = vunpack.c.h.b16 %v1991
        %v7010 = vunpack.c.l.b16 %v1992
        %v7011 = vunpack.c.h.b16 %v1992
        %v7012 = vunpack.c.l.b16 %v1993
        %v7013 = vunpack.c.h.b16 %v1993
        %v7014 = vunpack.c.l.b16 %v1994
        %v7015 = vunpack.c.h.b16 %v1994
        %v7016 = vunpack.c.l.b16 %v1995
        %v7017 = vunpack.c.h.b16 %v1995
        %v7018 = vunpack.c.l.b16 %v1996
        %v7019 = vunpack.c.h.b16 %v1996
        %v7020 = vunpack.c.l.b16 %v1997
        %v7021 = vunpack.c.h.b16 %v1997
        %v7022 = vunpack.c.l.b16 %v1998
        %v7023 = vunpack.c.h.b16 %v1998
        %v7024 = vunpack.c.l.b16 %v1999
        %v7025 = vunpack.c.h.b16 %v1999
        %v7026 = vunpack.c.l.b16 %v2000
        %v7027 = vunpack.c.h.b16 %v2000
        %v7028 = vunpack.c.l.b16 %v2001
        %v7029 = vunpack.c.h.b16 %v2001
        %v7030 = vunpack.c.l.b16 %v2002
        %v7031 = vunpack.c.h.b16 %v2002
        %v7032 = vunpack.c.l.b16 %v2003
        %v7033 = vunpack.c.h.b16 %v2003
        %v7034 = vunpack.c.l.b16 %v2004
        %v7035 = vunpack.c.h.b16 %v2004
        %v7036 = vunpack.c.l.b16 %v2005
        %v7037 = vunpack.c.h.b16 %v2005
        %v7038 = vunpack.c.l.b16 %v2006
        %v7039 = vunpack.c.h.b16 %v2006
        %v7040 = vunpack.c.l.b16 %v2007
        %v7041 = vunpack.c.h.b16 %v2007
        %v7042 = vunpack.c.l.b16 %v2008
        %v7043 = vunpack.c.h.b16 %v2008
        %v7044 = vunpack.c.l.b16 %v2009
        %v7045 = vunpack.c.h.b16 %v2009
        %v7046 = vunpack.c.l.b16 %v2010
        %v7047 = vunpack.c.h.b16 %v2010
        %v7048 = vunpack.c.l.b16 %v2011
        %v7049 = vunpack.c.h.b16 %v2011
        %v7050 = vunpack.c.l.b16 %v2012
        %v7051 = vunpack.c.h.b16 %v2012
        %v7052 = vunpack.c.l.b16 %v2013
        %v7053 = vunpack.c.h.b16 %v2013
        %v7054 = vunpack.c.l.b16 %v2014
        %v7055 = vunpack.c.h.b16 %v2014
        %v7056 = vunpack.c.l.b16 %v2015
        %v7057 = vunpack.c.h.b16 %v2015
        %v7058 = vunpack.c.l.b16 %v2016
        %v7059 = vunpack.c.h.b16 %v2016
        %v7060 = vunpack.c.l.b16 %v2017
        %v7061 = vunpack.c.h.b16 %v2017
        %v7062 = vunpack.c.l.b16 %v2018
        %v7063 = vunpack.c.h.b16 %v2018
        %v7064 = vunpack.c.l.b16 %v2019
        %v7065 = vunpack.c.h.b16 %v2019
        %v7066 = vunpack.c.l.b16 %v2020
        %v7067 = vunpack.c.h.b16 %v2020
        %v7068 = vunpack.c.l.b16 %v2021
        %v7069 = vunpack.c.h.b16 %v2021
        %v7070 = vunpack.c.l.b16 %v2022
        %v7071 = vunpack.c.h.b16 %v2022
        %v7072 = vunpack.c.l.b16 %v2023
        %v7073 = vunpack.c.h.b16 %v2023
        %v7074 = vunpack.c.l.b16 %v2024
        %v7075 = vunpack.c.h.b16 %v2024
        %v7076 = vunpack.c.l.b16 %v2025
        %v7077 = vunpack.c.h.b16 %v2025
        %v7078 = vunpack.c.l.b16 %v2026
        %v7079 = vunpack.c.h.b16 %v2026
        %v7080 = vunpack.c.l.b16 %v2027
        %v7081 = vunpack.c.h.b16 %v2027
        %v7082 = vunpack.c.l.b16 %v2028
        %v7083 = vunpack.c.h.b16 %v2028
        %v7084 = vunpack.c.l.b16 %v2029
        %v7085 = vunpack.c.h.b16 %v2029
        %v7086 = vunpack.c.l.b16 %v2030
        %v7087 = vunpack.c.h.b16 %v2030
        %v7088 = vunpack.c.l.b16 %v2031
        %v7089 = vunpack.c.h.b16 %v2031
        %v7090 = vunpack.c.l.b16 %v2032
        %v7091 = vunpack.c.h.b16 %v2032
        %v7092 = vunpack.c.l.b16 %v2033
        %v7093 = vunpack.c.h.b16 %v2033
        %v7094 = vunpack.c.l.b16 %v2034
        %v7095 = vunpack.c.h.b16 %v2034
        %v7096 = vunpack.c.l.b16 %v2035
        %v7097 = vunpack.c.h.b16 %v2035
        %v7098 = vunpack.c.l.b16 %v2036
        %v7099 = vunpack.c.h.b16 %v2036
        %v7100 = vunpack.c.l.b16 %v2037
        %v7101 = vunpack.c.h.b16 %v2037
        %v7102 = vunpack.c.l.b16 %v2038
        %v7103 = vunpack.c.h.b16 %v2038
        %v7104 = vunpack.c.l.b16 %v2039
        %v7105 = vunpack.c.h.b16 %v2039
        %v7106 = vunpack.c.l.b16 %v2040
        %v7107 = vunpack.c.h.b16 %v2040
        %v7108 = vunpack.c.l.b16 %v2041
        %v7109 = vunpack.c.h.b16 %v2041
        %v7110 = vunpack.c.l.b16 %v2042
        %v7111 = vunpack.c.h.b16 %v2042
        %v7112 = vunpack.c.l.b16 %v2043
        %v7113 = vunpack.c.h.b16 %v2043
        %v7114 = vunpack.c.l.b16 %v2044
        %v7115 = vunpack.c.h.b16 %v2044
        %v7116 = vunpack.c.l.b16 %v2045
        %v7117 = vunpack.c.h.b16 %v2045
        %v7118 = vunpack.c.l.b16 %v2046
        %v7119 = vunpack.c.h.b16 %v2046
        %v7120 = vunpack.c.l.b16 %v2047
        %v7121 = vunpack.c.h.b16 %v2047
        %v7122 = vunpack.c.l.b16 %v2048
        %v7123 = vunpack.c.h.b16 %v2048
        %v7124 = vunpack.c.l.b16 %v2049
        %v7125 = vunpack.c.h.b16 %v2049
        %v7126 = vunpack.c.l.b16 %v2050
        %v7127 = vunpack.c.h.b16 %v2050
        %v7128 = vunpack.c.l.b16 %v2051
        %v7129 = vunpack.c.h.b16 %v2051
        %v7130 = vunpack.c.l.b16 %v2052
        %v7131 = vunpack.c.h.b16 %v2052
        %v7132 = vunpack.c.l.b16 %v2053
        %v7133 = vunpack.c.h.b16 %v2053
        %v7134 = vunpack.c.l.b16 %v2054
        %v7135 = vunpack.c.h.b16 %v2054
        %v7136 = vunpack.c.l.b16 %v2055
        %v7137 = vunpack.c.h.b16 %v2055
        %v7138 = vunpack.c.l.b16 %v2056
        %v7139 = vunpack.c.h.b16 %v2056
        %v7140 = vunpack.c.l.b16 %v2057
        %v7141 = vunpack.c.h.b16 %v2057
        %v7142 = vunpack.c.l.b16 %v2058
        %v7143 = vunpack.c.h.b16 %v2058
        %v7144 = vunpack.c.l.b16 %v2059
        %v7145 = vunpack.c.h.b16 %v2059
        %v7146 = vunpack.c.l.b16 %v2060
        %v7147 = vunpack.c.h.b16 %v2060
        %v7148 = vunpack.c.l.b16 %v2061
        %v7149 = vunpack.c.h.b16 %v2061
        %v7150 = vunpack.c.l.b16 %v2062
        %v7151 = vunpack.c.h.b16 %v2062
        %v7152 = vunpack.c.l.b16 %v2063
        %v7153 = vunpack.c.h.b16 %v2063
        %v7154 = vunpack.c.l.b16 %v2064
        %v7155 = vunpack.c.h.b16 %v2064
        %v7156 = vunpack.c.l.b16 %v2065
        %v7157 = vunpack.c.h.b16 %v2065
        %v7158 = vunpack.c.l.b16 %v2066
        %v7159 = vunpack.c.h.b16 %v2066
        %v7160 = vunpack.c.l.b16 %v2067
        %v7161 = vunpack.c.h.b16 %v2067
        %v7162 = vunpack.c.l.b16 %v2068
        %v7163 = vunpack.c.h.b16 %v2068
        %v7164 = vunpack.c.l.b16 %v2069
        %v7165 = vunpack.c.h.b16 %v2069
        %v7166 = vunpack.c.l.b16 %v2070
        %v7167 = vunpack.c.h.b16 %v2070
        %v7168 = vunpack.c.l.b16 %v2071
        %v7169 = vunpack.c.h.b16 %v2071
        %v7170 = vunpack.c.l.b16 %v2072
        %v7171 = vunpack.c.h.b16 %v2072
        %v7172 = vunpack.c.l.b16 %v2073
        %v7173 = vunpack.c.h.b16 %v2073
        %v7174 = vunpack.c.l.b16 %v2074
        %v7175 = vunpack.c.h.b16 %v2074
        %v7176 = vunpack.c.l.b16 %v2075
        %v7177 = vunpack.c.h.b16 %v2075
        %v7178 = vunpack.c.l.b16 %v2076
        %v7179 = vunpack.c.h.b16 %v2076
        %v7180 = vunpack.c.l.b16 %v2077
        %v7181 = vunpack.c.h.b16 %v2077
        %v7182 = vunpack.c.l.b16 %v2078
        %v7183 = vunpack.c.h.b16 %v2078
        %v7184 = vunpack.c.l.b16 %v2079
        %v7185 = vunpack.c.h.b16 %v2079
        %v7186 = vunpack.c.l.b16 %v2080
        %v7187 = vunpack.c.h.b16 %v2080
        %v7188 = vunpack.c.l.b16 %v2081
        %v7189 = vunpack.c.h.b16 %v2081
        %v7190 = vunpack.c.l.b16 %v2082
        %v7191 = vunpack.c.h.b16 %v2082
        %v7192 = vunpack.c.l.b16 %v2083
        %v7193 = vunpack.c.h.b16 %v2083
        %v7194 = vunpack.c.l.b16 %v2084
        %v7195 = vunpack.c.h.b16 %v2084
        %v7196 = vunpack.c.l.b16 %v2085
        %v7197 = vunpack.c.h.b16 %v2085
        %v7198 = vunpack.c.l.b16 %v2086
        %v7199 = vunpack.c.h.b16 %v2086
        %v7200 = vunpack.c.l.b16 %v2087
        %v7201 = vunpack.c.h.b16 %v2087
        %v7202 = vunpack.c.l.b16 %v2088
        %v7203 = vunpack.c.h.b16 %v2088
        %v7204 = vunpack.c.l.b16 %v2089
        %v7205 = vunpack.c.h.b16 %v2089
        %v7206 = vunpack.c.l.b16 %v2090
        %v7207 = vunpack.c.h.b16 %v2090
        %v7208 = vunpack.c.l.b16 %v2091
        %v7209 = vunpack.c.h.b16 %v2091
        %v7210 = vunpack.c.l.b16 %v2092
        %v7211 = vunpack.c.h.b16 %v2092
        %v7212 = vunpack.c.l.b16 %v2093
        %v7213 = vunpack.c.h.b16 %v2093
        %v7214 = vunpack.c.l.b16 %v2094
        %v7215 = vunpack.c.h.b16 %v2094
        %v7216 = vunpack.c.l.b16 %v2095
        %v7217 = vunpack.c.h.b16 %v2095
        %v7218 = vunpack.c.l.b16 %v2096
        %v7219 = vunpack.c.h.b16 %v2096
        %v7220 = vunpack.c.l.b16 %v2097
        %v7221 = vunpack.c.h.b16 %v2097
        %v7222 = vunpack.c.l.b16 %v2098
        %v7223 = vunpack.c.h.b16 %v2098
        %v7224 = vunpack.c.l.b16 %v2099
        %v7225 = vunpack.c.h.b16 %v2099
        %v7226 = vunpack.c.l.b16 %v2100
        %v7227 = vunpack.c.h.b16 %v2100
        %v7228 = vunpack.c.l.b16 %v2101
        %v7229 = vunpack.c.h.b16 %v2101
        %v7230 = vunpack.c.l.b16 %v2102
        %v7231 = vunpack.c.h.b16 %v2102
        %v7232 = vunpack.c.l.b16 %v2103
        %v7233 = vunpack.c.h.b16 %v2103
        %v7234 = vunpack.c.l.b16 %v2104
        %v7235 = vunpack.c.h.b16 %v2104
        %v7236 = vunpack.c.l.b16 %v2105
        %v7237 = vunpack.c.h.b16 %v2105
        %v7238 = vunpack.c.l.b16 %v2106
        %v7239 = vunpack.c.h.b16 %v2106
        %v7240 = vunpack.c.l.b16 %v2107
        %v7241 = vunpack.c.h.b16 %v2107
        %v7242 = vunpack.c.l.b16 %v2108
        %v7243 = vunpack.c.h.b16 %v2108
        %v7244 = vunpack.c.l.b16 %v2109
        %v7245 = vunpack.c.h.b16 %v2109
        %v7246 = vunpack.c.l.b16 %v2110
        %v7247 = vunpack.c.h.b16 %v2110
        %v7248 = vunpack.c.l.b16 %v2111
        %v7249 = vunpack.c.h.b16 %v2111
        %v7250 = vunpack.c.l.b16 %v2112
        %v7251 = vunpack.c.h.b16 %v2112
        %v7252 = vunpack.c.l.b16 %v2113
        %v7253 = vunpack.c.h.b16 %v2113
        %v7254 = vunpack.c.l.b16 %v2114
        %v7255 = vunpack.c.h.b16 %v2114
        %v7256 = vunpack.c.l.b16 %v2115
        %v7257 = vunpack.c.h.b16 %v2115
        %v7258 = vunpack.c.l.b16 %v2116
        %v7259 = vunpack.c.h.b16 %v2116
        %v7260 = vunpack.c.l.b16 %v2117
        %v7261 = vunpack.c.h.b16 %v2117
        %v7262 = vunpack.c.l.b16 %v2118
        %v7263 = vunpack.c.h.b16 %v2118
        %v7264 = vunpack.c.l.b16 %v2119
        %v7265 = vunpack.c.h.b16 %v2119
        %v7266 = vunpack.c.l.b16 %v2120
        %v7267 = vunpack.c.h.b16 %v2120
        %v7268 = vunpack.c.l.b16 %v2121
        %v7269 = vunpack.c.h.b16 %v2121
        %v7270 = vunpack.c.l.b16 %v2122
        %v7271 = vunpack.c.h.b16 %v2122
        %v7272 = vunpack.c.l.b16 %v2123
        %v7273 = vunpack.c.h.b16 %v2123
        %v7274 = vunpack.c.l.b16 %v2124
        %v7275 = vunpack.c.h.b16 %v2124
        %v7276 = vunpack.c.l.b16 %v2125
        %v7277 = vunpack.c.h.b16 %v2125
        %v7278 = vunpack.c.l.b16 %v2126
        %v7279 = vunpack.c.h.b16 %v2126
        %v7280 = vunpack.c.l.b16 %v2127
        %v7281 = vunpack.c.h.b16 %v2127
        %v7282 = vunpack.c.l.b16 %v2128
        %v7283 = vunpack.c.h.b16 %v2128
        %v7284 = vunpack.c.l.b16 %v2129
        %v7285 = vunpack.c.h.b16 %v2129
        %v7286 = vunpack.c.l.b16 %v2130
        %v7287 = vunpack.c.h.b16 %v2130
        %v7288 = vunpack.c.l.b16 %v2131
        %v7289 = vunpack.c.h.b16 %v2131
        %v7290 = vunpack.c.l.b16 %v2132
        %v7291 = vunpack.c.h.b16 %v2132
        %v7292 = vunpack.c.l.b16 %v2133
        %v7293 = vunpack.c.h.b16 %v2133
        %v7294 = vunpack.c.l.b16 %v2134
        %v7295 = vunpack.c.h.b16 %v2134
        %v7296 = vunpack.c.l.b16 %v2135
        %v7297 = vunpack.c.h.b16 %v2135
        %v7298 = vunpack.c.l.b16 %v2136
        %v7299 = vunpack.c.h.b16 %v2136
        %v7300 = vunpack.c.l.b16 %v2137
        %v7301 = vunpack.c.h.b16 %v2137
        %v7302 = vunpack.c.l.b16 %v2138
        %v7303 = vunpack.c.h.b16 %v2138
        %v7304 = vunpack.c.l.b16 %v2139
        %v7305 = vunpack.c.h.b16 %v2139
        %v7306 = vunpack.c.l.b16 %v2140
        %v7307 = vunpack.c.h.b16 %v2140
        %v7308 = vunpack.c.l.b16 %v2141
        %v7309 = vunpack.c.h.b16 %v2141
        %v7310 = vunpack.c.l.b16 %v2142
        %v7311 = vunpack.c.h.b16 %v2142
        %v7312 = vunpack.c.l.b16 %v2143
        %v7313 = vunpack.c.h.b16 %v2143
        %v7314 = vunpack.c.l.b16 %v2144
        %v7315 = vunpack.c.h.b16 %v2144
        %v7316 = vunpack.c.l.b16 %v2145
        %v7317 = vunpack.c.h.b16 %v2145
        %v7318 = vunpack.c.l.b16 %v2146
        %v7319 = vunpack.c.h.b16 %v2146
        %v7320 = vunpack.c.l.b16 %v2147
        %v7321 = vunpack.c.h.b16 %v2147
        %v7322 = vunpack.c.l.b16 %v2148
        %v7323 = vunpack.c.h.b16 %v2148
        %v7324 = vunpack.c.l.b16 %v2149
        %v7325 = vunpack.c.h.b16 %v2149
        %v7326 = vunpack.c.l.b16 %v2150
        %v7327 = vunpack.c.h.b16 %v2150
        %v7328 = vunpack.c.l.b16 %v2151
        %v7329 = vunpack.c.h.b16 %v2151
        %v7330 = vunpack.c.l.b16 %v2152
        %v7331 = vunpack.c.h.b16 %v2152
        %v7332 = vunpack.c.l.b16 %v2153
        %v7333 = vunpack.c.h.b16 %v2153
        %v7334 = vunpack.c.l.b16 %v2154
        %v7335 = vunpack.c.h.b16 %v2154
        %v7336 = vunpack.c.l.b16 %v2155
        %v7337 = vunpack.c.h.b16 %v2155
        %v7338 = vunpack.c.l.b16 %v2156
        %v7339 = vunpack.c.h.b16 %v2156
        %v7340 = vunpack.c.l.b16 %v2157
        %v7341 = vunpack.c.h.b16 %v2157
        %v7342 = vunpack.c.l.b16 %v2158
        %v7343 = vunpack.c.h.b16 %v2158
        %v7344 = vunpack.c.l.b16 %v2159
        %v7345 = vunpack.c.h.b16 %v2159
        %v7346 = vunpack.c.l.b16 %v2160
        %v7347 = vunpack.c.h.b16 %v2160
        %v7348 = vunpack.c.l.b16 %v2161
        %v7349 = vunpack.c.h.b16 %v2161
        %v7350 = vunpack.c.l.b16 %v2162
        %v7351 = vunpack.c.h.b16 %v2162
        %v7352 = vunpack.c.l.b16 %v2163
        %v7353 = vunpack.c.h.b16 %v2163
        %v7354 = vunpack.c.l.b16 %v2164
        %v7355 = vunpack.c.h.b16 %v2164
        %v7356 = vunpack.c.l.b16 %v2165
        %v7357 = vunpack.c.h.b16 %v2165
        %v7358 = vunpack.c.l.b16 %v2166
        %v7359 = vunpack.c.h.b16 %v2166
        %v7360 = vunpack.c.l.b16 %v2167
        %v7361 = vunpack.c.h.b16 %v2167
        %v7362 = vunpack.c.l.b16 %v2168
        %v7363 = vunpack.c.h.b16 %v2168
        %v7364 = vunpack.c.l.b16 %v2169
        %v7365 = vunpack.c.h.b16 %v2169
        %v7366 = vunpack.c.l.b16 %v2170
        %v7367 = vunpack.c.h.b16 %v2170
        %v7368 = vunpack.c.l.b16 %v2171
        %v7369 = vunpack.c.h.b16 %v2171
        %v7370 = vunpack.c.l.b16 %v2172
        %v7371 = vunpack.c.h.b16 %v2172
        %v7372 = vunpack.c.l.b16 %v2173
        %v7373 = vunpack.c.h.b16 %v2173
        %v7374 = vunpack.c.l.b16 %v2174
        %v7375 = vunpack.c.h.b16 %v2174
        %v7376 = vunpack.c.l.b16 %v2175
        %v7377 = vunpack.c.h.b16 %v2175
        %v7378 = vunpack.c.l.b16 %v2176
        %v7379 = vunpack.c.h.b16 %v2176
        %v7380 = vunpack.c.l.b16 %v2177
        %v7381 = vunpack.c.h.b16 %v2177
        %v7382 = vunpack.c.l.b16 %v2178
        %v7383 = vunpack.c.h.b16 %v2178
        %v7384 = vunpack.c.l.b16 %v2179
        %v7385 = vunpack.c.h.b16 %v2179
        %v7386 = vunpack.c.l.b16 %v2180
        %v7387 = vunpack.c.h.b16 %v2180
        %v7388 = vunpack.c.l.b16 %v2181
        %v7389 = vunpack.c.h.b16 %v2181
        %v7390 = vunpack.c.l.b16 %v2182
        %v7391 = vunpack.c.h.b16 %v2182
        %v7392 = vunpack.c.l.b16 %v2183
        %v7393 = vunpack.c.h.b16 %v2183
        %v7394 = vunpack.c.l.b16 %v2184
        %v7395 = vunpack.c.h.b16 %v2184
        %v7396 = vunpack.c.l.b16 %v2185
        %v7397 = vunpack.c.h.b16 %v2185
        %v7398 = vunpack.c.l.b16 %v2186
        %v7399 = vunpack.c.h.b16 %v2186
        %v7400 = vunpack.c.l.b16 %v2187
        %v7401 = vunpack.c.h.b16 %v2187
        %v7402 = vunpack.c.l.b16 %v2188
        %v7403 = vunpack.c.h.b16 %v2188
        %v7404 = vunpack.c.l.b16 %v2189
        %v7405 = vunpack.c.h.b16 %v2189
        %v7406 = vunpack.c.l.b16 %v2190
        %v7407 = vunpack.c.h.b16 %v2190
        %v7408 = vunpack.c.l.b16 %v2191
        %v7409 = vunpack.c.h.b16 %v2191
        %v7410 = vunpack.c.l.b16 %v2192
        %v7411 = vunpack.c.h.b16 %v2192
        %v7412 = vunpack.c.l.b16 %v2193
        %v7413 = vunpack.c.h.b16 %v2193
        %v7414 = vunpack.c.l.b16 %v2194
        %v7415 = vunpack.c.h.b16 %v2194
        %v7416 = vunpack.c.l.b16 %v2195
        %v7417 = vunpack.c.h.b16 %v2195
        %v7418 = vunpack.c.l.b16 %v2196
        %v7419 = vunpack.c.h.b16 %v2196
        %v7420 = vunpack.c.l.b16 %v2197
        %v7421 = vunpack.c.h.b16 %v2197
        %v7422 = vunpack.c.l.b16 %v2198
        %v7423 = vunpack.c.h.b16 %v2198
        %v7424 = vunpack.c.l.b16 %v2199
        %v7425 = vunpack.c.h.b16 %v2199
        %v7426 = vunpack.c.l.b16 %v2200
        %v7427 = vunpack.c.h.b16 %v2200
        %v7428 = vunpack.c.l.b16 %v2201
        %v7429 = vunpack.c.h.b16 %v2201
        %v7430 = vunpack.c.l.b16 %v2202
        %v7431 = vunpack.c.h.b16 %v2202
        %v7432 = vunpack.c.l.b16 %v2203
        %v7433 = vunpack.c.h.b16 %v2203
        %v7434 = vunpack.c.l.b16 %v2204
        %v7435 = vunpack.c.h.b16 %v2204
        %v7436 = vunpack.c.l.b16 %v2205
        %v7437 = vunpack.c.h.b16 %v2205
        %v7438 = vunpack.c.l.b16 %v2206
        %v7439 = vunpack.c.h.b16 %v2206
        %v7440 = vunpack.c.l.b16 %v2207
        %v7441 = vunpack.c.h.b16 %v2207
        %v7442 = vunpack.c.l.b16 %v2208
        %v7443 = vunpack.c.h.b16 %v2208
        %v7444 = vunpack.c.l.b16 %v2209
        %v7445 = vunpack.c.h.b16 %v2209
        %v7446 = vunpack.c.l.b16 %v2210
        %v7447 = vunpack.c.h.b16 %v2210
        %v7448 = vunpack.c.l.b16 %v2211
        %v7449 = vunpack.c.h.b16 %v2211
        %v7450 = vunpack.c.l.b16 %v2212
        %v7451 = vunpack.c.h.b16 %v2212
        %v7452 = vunpack.c.l.b16 %v2213
        %v7453 = vunpack.c.h.b16 %v2213
        %v7454 = vunpack.c.l.b16 %v2214
        %v7455 = vunpack.c.h.b16 %v2214
        %v7456 = vunpack.c.l.b16 %v2215
        %v7457 = vunpack.c.h.b16 %v2215
        %v7458 = vunpack.c.l.b16 %v2216
        %v7459 = vunpack.c.h.b16 %v2216
        %v7460 = vunpack.c.l.b16 %v2217
        %v7461 = vunpack.c.h.b16 %v2217
        %v7462 = vunpack.c.l.b16 %v2218
        %v7463 = vunpack.c.h.b16 %v2218
        %v7464 = vunpack.c.l.b16 %v2219
        %v7465 = vunpack.c.h.b16 %v2219
        %v7466 = vunpack.c.l.b16 %v2220
        %v7467 = vunpack.c.h.b16 %v2220
        %v7468 = vunpack.c.l.b16 %v2221
        %v7469 = vunpack.c.h.b16 %v2221
        %v7470 = vunpack.c.l.b16 %v2222
        %v7471 = vunpack.c.h.b16 %v2222
        %v7472 = vunpack.c.l.b16 %v2223
        %v7473 = vunpack.c.h.b16 %v2223
        %v7474 = vunpack.c.l.b16 %v2224
        %v7475 = vunpack.c.h.b16 %v2224
        %v7476 = vunpack.c.l.b16 %v2225
        %v7477 = vunpack.c.h.b16 %v2225
        %v7478 = vunpack.c.l.b16 %v2226
        %v7479 = vunpack.c.h.b16 %v2226
        %v7480 = vunpack.c.l.b16 %v2227
        %v7481 = vunpack.c.h.b16 %v2227
        %v7482 = vunpack.c.l.b16 %v2228
        %v7483 = vunpack.c.h.b16 %v2228
        %v7484 = vunpack.c.l.b16 %v2229
        %v7485 = vunpack.c.h.b16 %v2229
        %v7486 = vunpack.c.l.b16 %v2230
        %v7487 = vunpack.c.h.b16 %v2230
        %v7488 = vunpack.c.l.b16 %v2231
        %v7489 = vunpack.c.h.b16 %v2231
        %v7490 = vunpack.c.l.b16 %v2232
        %v7491 = vunpack.c.h.b16 %v2232
        %v7492 = vunpack.c.l.b16 %v2233
        %v7493 = vunpack.c.h.b16 %v2233
        %v7494 = vunpack.c.l.b16 %v2234
        %v7495 = vunpack.c.h.b16 %v2234
        %v7496 = vunpack.c.l.b16 %v2235
        %v7497 = vunpack.c.h.b16 %v2235
        %v7498 = vunpack.c.l.b16 %v2236
        %v7499 = vunpack.c.h.b16 %v2236
        %v7500 = vunpack.c.l.b16 %v2237
        %v7501 = vunpack.c.h.b16 %v2237
        %v7502 = vunpack.c.l.b16 %v2238
        %v7503 = vunpack.c.h.b16 %v2238
        %v7504 = vunpack.c.l.b16 %v2239
        %v7505 = vunpack.c.h.b16 %v2239
        %v7506 = vunpack.c.l.b16 %v2240
        %v7507 = vunpack.c.h.b16 %v2240
        %v7508 = vunpack.c.l.b16 %v2241
        %v7509 = vunpack.c.h.b16 %v2241
        %v7510 = vunpack.c.l.b16 %v2242
        %v7511 = vunpack.c.h.b16 %v2242
        %v7512 = vunpack.c.l.b16 %v2243
        %v7513 = vunpack.c.h.b16 %v2243
        %v7514 = vunpack.c.l.b16 %v2244
        %v7515 = vunpack.c.h.b16 %v2244
        %v7516 = vunpack.c.l.b16 %v2245
        %v7517 = vunpack.c.h.b16 %v2245
        %v7518 = vunpack.c.l.b16 %v2246
        %v7519 = vunpack.c.h.b16 %v2246
        %v7520 = vunpack.c.l.b16 %v2247
        %v7521 = vunpack.c.h.b16 %v2247
        %v7522 = vunpack.c.l.b16 %v2248
        %v7523 = vunpack.c.h.b16 %v2248
        %v7524 = vunpack.c.l.b16 %v2249
        %v7525 = vunpack.c.h.b16 %v2249
        %v7526 = vunpack.c.l.b16 %v2250
        %v7527 = vunpack.c.h.b16 %v2250
        %v7528 = vunpack.c.l.b16 %v2251
        %v7529 = vunpack.c.h.b16 %v2251
        %v7530 = vunpack.c.l.b16 %v2252
        %v7531 = vunpack.c.h.b16 %v2252
        %v7532 = vunpack.c.l.b16 %v2253
        %v7533 = vunpack.c.h.b16 %v2253
        %v7534 = vunpack.c.l.b16 %v2254
        %v7535 = vunpack.c.h.b16 %v2254
        %v7536 = vunpack.c.l.b16 %v2255
        %v7537 = vunpack.c.h.b16 %v2255
        %v7538 = vunpack.c.l.b16 %v2256
        %v7539 = vunpack.c.h.b16 %v2256
        %v7540 = vpack.c.b16 %v6524, %v6516
        %v7541 = vpack.c.b16 %v6525, %v6517
        %v7542 = vpack.c.b16 %v6526, %v6518
        %v7543 = vpack.c.b16 %v6527, %v6519
        %v7544 = vpack.c.b16 %v6528, %v6520
        %v7545 = vpack.c.b16 %v6529, %v6521
        %v7546 = vpack.c.b16 %v6530, %v6522
        %v7547 = vpack.c.b16 %v6531, %v6523
        %v7548 = vpack.c.b16 %v6540, %v6532
        %v7549 = vpack.c.b16 %v6541, %v6533
        %v7550 = vpack.c.b16 %v6542, %v6534
        %v7551 = vpack.c.b16 %v6543, %v6535
        %v7552 = vpack.c.b16 %v6544, %v6536
        %v7553 = vpack.c.b16 %v6545, %v6537
        %v7554 = vpack.c.b16 %v6546, %v6538
        %v7555 = vpack.c.b16 %v6547, %v6539
        %v7556 = vpack.c.b16 %v6556, %v6548
        %v7557 = vpack.c.b16 %v6557, %v6549
        %v7558 = vpack.c.b16 %v6558, %v6550
        %v7559 = vpack.c.b16 %v6559, %v6551
        %v7560 = vpack.c.b16 %v6560, %v6552
        %v7561 = vpack.c.b16 %v6561, %v6553
        %v7562 = vpack.c.b16 %v6562, %v6554
        %v7563 = vpack.c.b16 %v6563, %v6555
        %v7564 = vpack.c.b16 %v6572, %v6564
        %v7565 = vpack.c.b16 %v6573, %v6565
        %v7566 = vpack.c.b16 %v6574, %v6566
        %v7567 = vpack.c.b16 %v6575, %v6567
        %v7568 = vpack.c.b16 %v6576, %v6568
        %v7569 = vpack.c.b16 %v6577, %v6569
        %v7570 = vpack.c.b16 %v6578, %v6570
        %v7571 = vpack.c.b16 %v6579, %v6571
        %v7572 = vpack.c.b16 %v6588, %v6580
        %v7573 = vpack.c.b16 %v6589, %v6581
        %v7574 = vpack.c.b16 %v6590, %v6582
        %v7575 = vpack.c.b16 %v6591, %v6583
        %v7576 = vpack.c.b16 %v6592, %v6584
        %v7577 = vpack.c.b16 %v6593, %v6585
        %v7578 = vpack.c.b16 %v6594, %v6586
        %v7579 = vpack.c.b16 %v6595, %v6587
        %v7580 = vpack.c.b16 %v6604, %v6596
        %v7581 = vpack.c.b16 %v6605, %v6597
        %v7582 = vpack.c.b16 %v6606, %v6598
        %v7583 = vpack.c.b16 %v6607, %v6599
        %v7584 = vpack.c.b16 %v6608, %v6600
        %v7585 = vpack.c.b16 %v6609, %v6601
        %v7586 = vpack.c.b16 %v6610, %v6602
        %v7587 = vpack.c.b16 %v6611, %v6603
        %v7588 = vpack.c.b16 %v6620, %v6612
        %v7589 = vpack.c.b16 %v6621, %v6613
        %v7590 = vpack.c.b16 %v6622, %v6614
        %v7591 = vpack.c.b16 %v6623, %v6615
        %v7592 = vpack.c.b16 %v6624, %v6616
        %v7593 = vpack.c.b16 %v6625, %v6617
        %v7594 = vpack.c.b16 %v6626, %v6618
        %v7595 = vpack.c.b16 %v6627, %v6619
        %v7596 = vpack.c.b16 %v6636, %v6628
        %v7597 = vpack.c.b16 %v6637, %v6629
        %v7598 = vpack.c.b16 %v6638, %v6630
        %v7599 = vpack.c.b16 %v6639, %v6631
        %v7600 = vpack.c.b16 %v6640, %v6632
        %v7601 = vpack.c.b16 %v6641, %v6633
        %v7602 = vpack.c.b16 %v6642, %v6634
        %v7603 = vpack.c.b16 %v6643, %v6635
        %v7604 = vpack.c.b16 %v6652, %v6644
        %v7605 = vpack.c.b16 %v6653, %v6645
        %v7606 = vpack.c.b16 %v6654, %v6646
        %v7607 = vpack.c.b16 %v6655, %v6647
        %v7608 = vpack.c.b16 %v6656, %v6648
        %v7609 = vpack.c.b16 %v6657, %v6649
        %v7610 = vpack.c.b16 %v6658, %v6650
        %v7611 = vpack.c.b16 %v6659, %v6651
        %v7612 = vpack.c.b16 %v6668, %v6660
        %v7613 = vpack.c.b16 %v6669, %v6661
        %v7614 = vpack.c.b16 %v6670, %v6662
        %v7615 = vpack.c.b16 %v6671, %v6663
        %v7616 = vpack.c.b16 %v6672, %v6664
        %v7617 = vpack.c.b16 %v6673, %v6665
        %v7618 = vpack.c.b16 %v6674, %v6666
        %v7619 = vpack.c.b16 %v6675, %v6667
        %v7620 = vpack.c.b16 %v6684, %v6676
        %v7621 = vpack.c.b16 %v6685, %v6677
        %v7622 = vpack.c.b16 %v6686, %v6678
        %v7623 = vpack.c.b16 %v6687, %v6679
        %v7624 = vpack.c.b16 %v6688, %v6680
        %v7625 = vpack.c.b16 %v6689, %v6681
        %v7626 = vpack.c.b16 %v6690, %v6682
        %v7627 = vpack.c.b16 %v6691, %v6683
        %v7628 = vpack.c.b16 %v6700, %v6692
        %v7629 = vpack.c.b16 %v6701, %v6693
        %v7630 = vpack.c.b16 %v6702, %v6694
        %v7631 = vpack.c.b16 %v6703, %v6695
        %v7632 = vpack.c.b16 %v6704, %v6696
        %v7633 = vpack.c.b16 %v6705, %v6697
        %v7634 = vpack.c.b16 %v6706, %v6698
        %v7635 = vpack.c.b16 %v6707, %v6699
        %v7636 = vpack.c.b16 %v6716, %v6708
        %v7637 = vpack.c.b16 %v6717, %v6709
        %v7638 = vpack.c.b16 %v6718, %v6710
        %v7639 = vpack.c.b16 %v6719, %v6711
        %v7640 = vpack.c.b16 %v6720, %v6712
        %v7641 = vpack.c.b16 %v6721, %v6713
        %v7642 = vpack.c.b16 %v6722, %v6714
        %v7643 = vpack.c.b16 %v6723, %v6715
        %v7644 = vpack.c.b16 %v6732, %v6724
        %v7645 = vpack.c.b16 %v6733, %v6725
        %v7646 = vpack.c.b16 %v6734, %v6726
        %v7647 = vpack.c.b16 %v6735, %v6727
        %v7648 = vpack.c.b16 %v6736, %v6728
        %v7649 = vpack.c.b16 %v6737, %v6729
        %v7650 = vpack.c.b16 %v6738, %v6730
        %v7651 = vpack.c.b16 %v6739, %v6731
        %v7652 = vpack.c.b16 %v6748, %v6740
        %v7653 = vpack.c.b16 %v6749, %v6741
        %v7654 = vpack.c.b16 %v6750, %v6742
        %v7655 = vpack.c.b16 %v6751, %v6743
        %v7656 = vpack.c.b16 %v6752, %v6744
        %v7657 = vpack.c.b16 %v6753, %v6745
        %v7658 = vpack.c.b16 %v6754, %v6746
        %v7659 = vpack.c.b16 %v6755, %v6747
        %v7660 = vpack.c.b16 %v6764, %v6756
        %v7661 = vpack.c.b16 %v6765, %v6757
        %v7662 = vpack.c.b16 %v6766, %v6758
        %v7663 = vpack.c.b16 %v6767, %v6759
        %v7664 = vpack.c.b16 %v6768, %v6760
        %v7665 = vpack.c.b16 %v6769, %v6761
        %v7666 = vpack.c.b16 %v6770, %v6762
        %v7667 = vpack.c.b16 %v6771, %v6763
        %v7668 = vpack.c.b16 %v6780, %v6772
        %v7669 = vpack.c.b16 %v6781, %v6773
        %v7670 = vpack.c.b16 %v6782, %v6774
        %v7671 = vpack.c.b16 %v6783, %v6775
        %v7672 = vpack.c.b16 %v6784, %v6776
        %v7673 = vpack.c.b16 %v6785, %v6777
        %v7674 = vpack.c.b16 %v6786, %v6778
        %v7675 = vpack.c.b16 %v6787, %v6779
        %v7676 = vpack.c.b16 %v6796, %v6788
        %v7677 = vpack.c.b16 %v6797, %v6789
        %v7678 = vpack.c.b16 %v6798, %v6790
        %v7679 = vpack.c.b16 %v6799, %v6791
        %v7680 = vpack.c.b16 %v6800, %v6792
        %v7681 = vpack.c.b16 %v6801, %v6793
        %v7682 = vpack.c.b16 %v6802, %v6794
        %v7683 = vpack.c.b16 %v6803, %v6795
        %v7684 = vpack.c.b16 %v6812, %v6804
        %v7685 = vpack.c.b16 %v6813, %v6805
        %v7686 = vpack.c.b16 %v6814, %v6806
        %v7687 = vpack.c.b16 %v6815, %v6807
        %v7688 = vpack.c.b16 %v6816, %v6808
        %v7689 = vpack.c.b16 %v6817, %v6809
        %v7690 = vpack.c.b16 %v6818, %v6810
        %v7691 = vpack.c.b16 %v6819, %v6811
        %v7692 = vpack.c.b16 %v6828, %v6820
        %v7693 = vpack.c.b16 %v6829, %v6821
        %v7694 = vpack.c.b16 %v6830, %v6822
        %v7695 = vpack.c.b16 %v6831, %v6823
        %v7696 = vpack.c.b16 %v6832, %v6824
        %v7697 = vpack.c.b16 %v6833, %v6825
        %v7698 = vpack.c.b16 %v6834, %v6826
        %v7699 = vpack.c.b16 %v6835, %v6827
        %v7700 = vpack.c.b16 %v6844, %v6836
        %v7701 = vpack.c.b16 %v6845, %v6837
        %v7702 = vpack.c.b16 %v6846, %v6838
        %v7703 = vpack.c.b16 %v6847, %v6839
        %v7704 = vpack.c.b16 %v6848, %v6840
        %v7705 = vpack.c.b16 %v6849, %v6841
        %v7706 = vpack.c.b16 %v6850, %v6842
        %v7707 = vpack.c.b16 %v6851, %v6843
        %v7708 = vpack.c.b16 %v6860, %v6852
        %v7709 = vpack.c.b16 %v6861, %v6853
        %v7710 = vpack.c.b16 %v6862, %v6854
        %v7711 = vpack.c.b16 %v6863, %v6855
        %v7712 = vpack.c.b16 %v6864, %v6856
        %v7713 = vpack.c.b16 %v6865, %v6857
        %v7714 = vpack.c.b16 %v6866, %v6858
        %v7715 = vpack.c.b16 %v6867, %v6859
        %v7716 = vpack.c.b16 %v6876, %v6868
        %v7717 = vpack.c.b16 %v6877, %v6869
        %v7718 = vpack.c.b16 %v6878, %v6870
        %v7719 = vpack.c.b16 %v6879, %v6871
        %v7720 = vpack.c.b16 %v6880, %v6872
        %v7721 = vpack.c.b16 %v6881, %v6873
        %v7722 = vpack.c.b16 %v6882, %v6874
        %v7723 = vpack.c.b16 %v6883, %v6875
        %v7724 = vpack.c.b16 %v6892, %v6884
        %v7725 = vpack.c.b16 %v6893, %v6885
        %v7726 = vpack.c.b16 %v6894, %v6886
        %v7727 = vpack.c.b16 %v6895, %v6887
        %v7728 = vpack.c.b16 %v6896, %v6888
        %v7729 = vpack.c.b16 %v6897, %v6889
        %v7730 = vpack.c.b16 %v6898, %v6890
        %v7731 = vpack.c.b16 %v6899, %v6891
        %v7732 = vpack.c.b16 %v6908, %v6900
        %v7733 = vpack.c.b16 %v6909, %v6901
        %v7734 = vpack.c.b16 %v6910, %v6902
        %v7735 = vpack.c.b16 %v6911, %v6903
        %v7736 = vpack.c.b16 %v6912, %v6904
        %v7737 = vpack.c.b16 %v6913, %v6905
        %v7738 = vpack.c.b16 %v6914, %v6906
        %v7739 = vpack.c.b16 %v6915, %v6907
        %v7740 = vpack.c.b16 %v6924, %v6916
        %v7741 = vpack.c.b16 %v6925, %v6917
        %v7742 = vpack.c.b16 %v6926, %v6918
        %v7743 = vpack.c.b16 %v6927, %v6919
        %v7744 = vpack.c.b16 %v6928, %v6920
        %v7745 = vpack.c.b16 %v6929, %v6921
        %v7746 = vpack.c.b16 %v6930, %v6922
        %v7747 = vpack.c.b16 %v6931, %v6923
        %v7748 = vpack.c.b16 %v6940, %v6932
        %v7749 = vpack.c.b16 %v6941, %v6933
        %v7750 = vpack.c.b16 %v6942, %v6934
        %v7751 = vpack.c.b16 %v6943, %v6935
        %v7752 = vpack.c.b16 %v6944, %v6936
        %v7753 = vpack.c.b16 %v6945, %v6937
        %v7754 = vpack.c.b16 %v6946, %v6938
        %v7755 = vpack.c.b16 %v6947, %v6939
        %v7756 = vpack.c.b16 %v6956, %v6948
        %v7757 = vpack.c.b16 %v6957, %v6949
        %v7758 = vpack.c.b16 %v6958, %v6950
        %v7759 = vpack.c.b16 %v6959, %v6951
        %v7760 = vpack.c.b16 %v6960, %v6952
        %v7761 = vpack.c.b16 %v6961, %v6953
        %v7762 = vpack.c.b16 %v6962, %v6954
        %v7763 = vpack.c.b16 %v6963, %v6955
        %v7764 = vpack.c.b16 %v6972, %v6964
        %v7765 = vpack.c.b16 %v6973, %v6965
        %v7766 = vpack.c.b16 %v6974, %v6966
        %v7767 = vpack.c.b16 %v6975, %v6967
        %v7768 = vpack.c.b16 %v6976, %v6968
        %v7769 = vpack.c.b16 %v6977, %v6969
        %v7770 = vpack.c.b16 %v6978, %v6970
        %v7771 = vpack.c.b16 %v6979, %v6971
        %v7772 = vpack.c.b16 %v6988, %v6980
        %v7773 = vpack.c.b16 %v6989, %v6981
        %v7774 = vpack.c.b16 %v6990, %v6982
        %v7775 = vpack.c.b16 %v6991, %v6983
        %v7776 = vpack.c.b16 %v6992, %v6984
        %v7777 = vpack.c.b16 %v6993, %v6985
        %v7778 = vpack.c.b16 %v6994, %v6986
        %v7779 = vpack.c.b16 %v6995, %v6987
        %v7780 = vpack.c.b16 %v7004, %v6996
        %v7781 = vpack.c.b16 %v7005, %v6997
        %v7782 = vpack.c.b16 %v7006, %v6998
        %v7783 = vpack.c.b16 %v7007, %v6999
        %v7784 = vpack.c.b16 %v7008, %v7000
        %v7785 = vpack.c.b16 %v7009, %v7001
        %v7786 = vpack.c.b16 %v7010, %v7002
        %v7787 = vpack.c.b16 %v7011, %v7003
        %v7788 = vpack.c.b16 %v7020, %v7012
        %v7789 = vpack.c.b16 %v7021, %v7013
        %v7790 = vpack.c.b16 %v7022, %v7014
        %v7791 = vpack.c.b16 %v7023, %v7015
        %v7792 = vpack.c.b16 %v7024, %v7016
        %v7793 = vpack.c.b16 %v7025, %v7017
        %v7794 = vpack.c.b16 %v7026, %v7018
        %v7795 = vpack.c.b16 %v7027, %v7019
        %v7796 = vpack.c.b16 %v7036, %v7028
        %v7797 = vpack.c.b16 %v7037, %v7029
        %v7798 = vpack.c.b16 %v7038, %v7030
        %v7799 = vpack.c.b16 %v7039, %v7031
        %v7800 = vpack.c.b16 %v7040, %v7032
        %v7801 = vpack.c.b16 %v7041, %v7033
        %v7802 = vpack.c.b16 %v7042, %v7034
        %v7803 = vpack.c.b16 %v7043, %v7035
        %v7804 = vpack.c.b16 %v7052, %v7044
        %v7805 = vpack.c.b16 %v7053, %v7045
        %v7806 = vpack.c.b16 %v7054, %v7046
        %v7807 = vpack.c.b16 %v7055, %v7047
        %v7808 = vpack.c.b16 %v7056, %v7048
        %v7809 = vpack.c.b16 %v7057, %v7049
        %v7810 = vpack.c.b16 %v7058, %v7050
        %v7811 = vpack.c.b16 %v7059, %v7051
        %v7812 = vpack.c.b16 %v7068, %v7060
        %v7813 = vpack.c.b16 %v7069, %v7061
        %v7814 = vpack.c.b16 %v7070, %v7062
        %v7815 = vpack.c.b16 %v7071, %v7063
        %v7816 = vpack.c.b16 %v7072, %v7064
        %v7817 = vpack.c.b16 %v7073, %v7065
        %v7818 = vpack.c.b16 %v7074, %v7066
        %v7819 = vpack.c.b16 %v7075, %v7067
        %v7820 = vpack.c.b16 %v7084, %v7076
        %v7821 = vpack.c.b16 %v7085, %v7077
        %v7822 = vpack.c.b16 %v7086, %v7078
        %v7823 = vpack.c.b16 %v7087, %v7079
        %v7824 = vpack.c.b16 %v7088, %v7080
        %v7825 = vpack.c.b16 %v7089, %v7081
        %v7826 = vpack.c.b16 %v7090, %v7082
        %v7827 = vpack.c.b16 %v7091, %v7083
        %v7828 = vpack.c.b16 %v7100, %v7092
        %v7829 = vpack.c.b16 %v7101, %v7093
        %v7830 = vpack.c.b16 %v7102, %v7094
        %v7831 = vpack.c.b16 %v7103, %v7095
        %v7832 = vpack.c.b16 %v7104, %v7096
        %v7833 = vpack.c.b16 %v7105, %v7097
        %v7834 = vpack.c.b16 %v7106, %v7098
        %v7835 = vpack.c.b16 %v7107, %v7099
        %v7836 = vpack.c.b16 %v7116, %v7108
        %v7837 = vpack.c.b16 %v7117, %v7109
        %v7838 = vpack.c.b16 %v7118, %v7110
        %v7839 = vpack.c.b16 %v7119, %v7111
        %v7840 = vpack.c.b16 %v7120, %v7112
        %v7841 = vpack.c.b16 %v7121, %v7113
        %v7842 = vpack.c.b16 %v7122, %v7114
        %v7843 = vpack.c.b16 %v7123, %v7115
        %v7844 = vpack.c.b16 %v7132, %v7124
        %v7845 = vpack.c.b16 %v7133, %v7125
        %v7846 = vpack.c.b16 %v7134, %v7126
        %v7847 = vpack.c.b16 %v7135, %v7127
        %v7848 = vpack.c.b16 %v7136, %v7128
        %v7849 = vpack.c.b16 %v7137, %v7129
        %v7850 = vpack.c.b16 %v7138, %v7130
        %v7851 = vpack.c.b16 %v7139, %v7131
        %v7852 = vpack.c.b16 %v7148, %v7140
        %v7853 = vpack.c.b16 %v7149, %v7141
        %v7854 = vpack.c.b16 %v7150, %v7142
        %v7855 = vpack.c.b16 %v7151, %v7143
        %v7856 = vpack.c.b16 %v7152, %v7144
        %v7857 = vpack.c.b16 %v7153, %v7145
        %v7858 = vpack.c.b16 %v7154, %v7146
        %v7859 = vpack.c.b16 %v7155, %v7147
        %v7860 = vpack.c.b16 %v7164, %v7156
        %v7861 = vpack.c.b16 %v7165, %v7157
        %v7862 = vpack.c.b16 %v7166, %v7158
        %v7863 = vpack.c.b16 %v7167, %v7159
        %v7864 = vpack.c.b16 %v7168, %v7160
        %v7865 = vpack.c.b16 %v7169, %v7161
        %v7866 = vpack.c.b16 %v7170, %v7162
        %v7867 = vpack.c.b16 %v7171, %v7163
        %v7868 = vpack.c.b16 %v7180, %v7172
        %v7869 = vpack.c.b16 %v7181, %v7173
        %v7870 = vpack.c.b16 %v7182, %v7174
        %v7871 = vpack.c.b16 %v7183, %v7175
        %v7872 = vpack.c.b16 %v7184, %v7176
        %v7873 = vpack.c.b16 %v7185, %v7177
        %v7874 = vpack.c.b16 %v7186, %v7178
        %v7875 = vpack.c.b16 %v7187, %v7179
        %v7876 = vpack.c.b16 %v7196, %v7188
        %v7877 = vpack.c.b16 %v7197, %v7189
        %v7878 = vpack.c.b16 %v7198, %v7190
        %v7879 = vpack.c.b16 %v7199, %v7191
        %v7880 = vpack.c.b16 %v7200, %v7192
        %v7881 = vpack.c.b16 %v7201, %v7193
        %v7882 = vpack.c.b16 %v7202, %v7194
        %v7883 = vpack.c.b16 %v7203, %v7195
        %v7884 = vpack.c.b16 %v7212, %v7204
        %v7885 = vpack.c.b16 %v7213, %v7205
        %v7886 = vpack.c.b16 %v7214, %v7206
        %v7887 = vpack.c.b16 %v7215, %v7207
        %v7888 = vpack.c.b16 %v7216, %v7208
        %v7889 = vpack.c.b16 %v7217, %v7209
        %v7890 = vpack.c.b16 %v7218, %v7210
        %v7891 = vpack.c.b16 %v7219, %v7211
        %v7892 = vpack.c.b16 %v7228, %v7220
        %v7893 = vpack.c.b16 %v7229, %v7221
        %v7894 = vpack.c.b16 %v7230, %v7222
        %v7895 = vpack.c.b16 %v7231, %v7223
        %v7896 = vpack.c.b16 %v7232, %v7224
        %v7897 = vpack.c.b16 %v7233, %v7225
        %v7898 = vpack.c.b16 %v7234, %v7226
        %v7899 = vpack.c.b16 %v7235, %v7227
        %v7900 = vpack.c.b16 %v7244, %v7236
        %v7901 = vpack.c.b16 %v7245, %v7237
        %v7902 = vpack.c.b16 %v7246, %v7238
        %v7903 = vpack.c.b16 %v7247, %v7239
        %v7904 = vpack.c.b16 %v7248, %v7240
        %v7905 = vpack.c.b16 %v7249, %v7241
        %v7906 = vpack.c.b16 %v7250, %v7242
        %v7907 = vpack.c.b16 %v7251, %v7243
        %v7908 = vpack.c.b16 %v7260, %v7252
        %v7909 = vpack.c.b16 %v7261, %v7253
        %v7910 = vpack.c.b16 %v7262, %v7254
        %v7911 = vpack.c.b16 %v7263, %v7255
        %v7912 = vpack.c.b16 %v7264, %v7256
        %v7913 = vpack.c.b16 %v7265, %v7257
        %v7914 = vpack.c.b16 %v7266, %v7258
        %v7915 = vpack.c.b16 %v7267, %v7259
        %v7916 = vpack.c.b16 %v7276, %v7268
        %v7917 = vpack.c.b16 %v7277, %v7269
        %v7918 = vpack.c.b16 %v7278, %v7270
        %v7919 = vpack.c.b16 %v7279, %v7271
        %v7920 = vpack.c.b16 %v7280, %v7272
        %v7921 = vpack.c.b16 %v7281, %v7273
        %v7922 = vpack.c.b16 %v7282, %v7274
        %v7923 = vpack.c.b16 %v7283, %v7275
        %v7924 = vpack.c.b16 %v7292, %v7284
        %v7925 = vpack.c.b16 %v7293, %v7285
        %v7926 = vpack.c.b16 %v7294, %v7286
        %v7927 = vpack.c.b16 %v7295, %v7287
        %v7928 = vpack.c.b16 %v7296, %v7288
        %v7929 = vpack.c.b16 %v7297, %v7289
        %v7930 = vpack.c.b16 %v7298, %v7290
        %v7931 = vpack.c.b16 %v7299, %v7291
        %v7932 = vpack.c.b16 %v7308, %v7300
        %v7933 = vpack.c.b16 %v7309, %v7301
        %v7934 = vpack.c.b16 %v7310, %v7302
        %v7935 = vpack.c.b16 %v7311, %v7303
        %v7936 = vpack.c.b16 %v7312, %v7304
        %v7937 = vpack.c.b16 %v7313, %v7305
        %v7938 = vpack.c.b16 %v7314, %v7306
        %v7939 = vpack.c.b16 %v7315, %v7307
        %v7940 = vpack.c.b16 %v7324, %v7316
        %v7941 = vpack.c.b16 %v7325, %v7317
        %v7942 = vpack.c.b16 %v7326, %v7318
        %v7943 = vpack.c.b16 %v7327, %v7319
        %v7944 = vpack.c.b16 %v7328, %v7320
        %v7945 = vpack.c.b16 %v7329, %v7321
        %v7946 = vpack.c.b16 %v7330, %v7322
        %v7947 = vpack.c.b16 %v7331, %v7323
        %v7948 = vpack.c.b16 %v7340, %v7332
        %v7949 = vpack.c.b16 %v7341, %v7333
        %v7950 = vpack.c.b16 %v7342, %v7334
        %v7951 = vpack.c.b16 %v7343, %v7335
        %v7952 = vpack.c.b16 %v7344, %v7336
        %v7953 = vpack.c.b16 %v7345, %v7337
        %v7954 = vpack.c.b16 %v7346, %v7338
        %v7955 = vpack.c.b16 %v7347, %v7339
        %v7956 = vpack.c.b16 %v7356, %v7348
        %v7957 = vpack.c.b16 %v7357, %v7349
        %v7958 = vpack.c.b16 %v7358, %v7350
        %v7959 = vpack.c.b16 %v7359, %v7351
        %v7960 = vpack.c.b16 %v7360, %v7352
        %v7961 = vpack.c.b16 %v7361, %v7353
        %v7962 = vpack.c.b16 %v7362, %v7354
        %v7963 = vpack.c.b16 %v7363, %v7355
        %v7964 = vpack.c.b16 %v7372, %v7364
        %v7965 = vpack.c.b16 %v7373, %v7365
        %v7966 = vpack.c.b16 %v7374, %v7366
        %v7967 = vpack.c.b16 %v7375, %v7367
        %v7968 = vpack.c.b16 %v7376, %v7368
        %v7969 = vpack.c.b16 %v7377, %v7369
        %v7970 = vpack.c.b16 %v7378, %v7370
        %v7971 = vpack.c.b16 %v7379, %v7371
        %v7972 = vpack.c.b16 %v7388, %v7380
        %v7973 = vpack.c.b16 %v7389, %v7381
        %v7974 = vpack.c.b16 %v7390, %v7382
        %v7975 = vpack.c.b16 %v7391, %v7383
        %v7976 = vpack.c.b16 %v7392, %v7384
        %v7977 = vpack.c.b16 %v7393, %v7385
        %v7978 = vpack.c.b16 %v7394, %v7386
        %v7979 = vpack.c.b16 %v7395, %v7387
        %v7980 = vpack.c.b16 %v7404, %v7396
        %v7981 = vpack.c.b16 %v7405, %v7397
        %v7982 = vpack.c.b16 %v7406, %v7398
        %v7983 = vpack.c.b16 %v7407, %v7399
        %v7984 = vpack.c.b16 %v7408, %v7400
        %v7985 = vpack.c.b16 %v7409, %v7401
        %v7986 = vpack.c.b16 %v7410, %v7402
        %v7987 = vpack.c.b16 %v7411, %v7403
        %v7988 = vpack.c.b16 %v7420, %v7412
        %v7989 = vpack.c.b16 %v7421, %v7413
        %v7990 = vpack.c.b16 %v7422, %v7414
        %v7991 = vpack.c.b16 %v7423, %v7415
        %v7992 = vpack.c.b16 %v7424, %v7416
        %v7993 = vpack.c.b16 %v7425, %v7417
        %v7994 = vpack.c.b16 %v7426, %v7418
        %v7995 = vpack.c.b16 %v7427, %v7419
        %v7996 = vpack.c.b16 %v7436, %v7428
        %v7997 = vpack.c.b16 %v7437, %v7429
        %v7998 = vpack.c.b16 %v7438, %v7430
        %v7999 = vpack.c.b16 %v7439, %v7431
        %v8000 = vpack.c.b16 %v7440, %v7432
        %v8001 = vpack.c.b16 %v7441, %v7433
        %v8002 = vpack.c.b16 %v7442, %v7434
        %v8003 = vpack.c.b16 %v7443, %v7435
        %v8004 = vpack.c.b16 %v7452, %v7444
        %v8005 = vpack.c.b16 %v7453, %v7445
        %v8006 = vpack.c.b16 %v7454, %v7446
        %v8007 = vpack.c.b16 %v7455, %v7447
        %v8008 = vpack.c.b16 %v7456, %v7448
        %v8009 = vpack.c.b16 %v7457, %v7449
        %v8010 = vpack.c.b16 %v7458, %v7450
        %v8011 = vpack.c.b16 %v7459, %v7451
        %v8012 = vpack.c.b16 %v7468, %v7460
        %v8013 = vpack.c.b16 %v7469, %v7461
        %v8014 = vpack.c.b16 %v7470, %v7462
        %v8015 = vpack.c.b16 %v7471, %v7463
        %v8016 = vpack.c.b16 %v7472, %v7464
        %v8017 = vpack.c.b16 %v7473, %v7465
        %v8018 = vpack.c.b16 %v7474, %v7466
        %v8019 = vpack.c.b16 %v7475, %v7467
        %v8020 = vpack.c.b16 %v7484, %v7476
        %v8021 = vpack.c.b16 %v7485, %v7477
        %v8022 = vpack.c.b16 %v7486, %v7478
        %v8023 = vpack.c.b16 %v7487, %v7479
        %v8024 = vpack.c.b16 %v7488, %v7480
        %v8025 = vpack.c.b16 %v7489, %v7481
        %v8026 = vpack.c.b16 %v7490, %v7482
        %v8027 = vpack.c.b16 %v7491, %v7483
        %v8028 = vpack.c.b16 %v7500, %v7492
        %v8029 = vpack.c.b16 %v7501, %v7493
        %v8030 = vpack.c.b16 %v7502, %v7494
        %v8031 = vpack.c.b16 %v7503, %v7495
        %v8032 = vpack.c.b16 %v7504, %v7496
        %v8033 = vpack.c.b16 %v7505, %v7497
        %v8034 = vpack.c.b16 %v7506, %v7498
        %v8035 = vpack.c.b16 %v7507, %v7499
        %v8036 = vpack.c.b16 %v7516, %v7508
        %v8037 = vpack.c.b16 %v7517, %v7509
        %v8038 = vpack.c.b16 %v7518, %v7510
        %v8039 = vpack.c.b16 %v7519, %v7511
        %v8040 = vpack.c.b16 %v7520, %v7512
        %v8041 = vpack.c.b16 %v7521, %v7513
        %v8042 = vpack.c.b16 %v7522, %v7514
        %v8043 = vpack.c.b16 %v7523, %v7515
        %v8044 = vpack.c.b16 %v7532, %v7524
        %v8045 = vpack.c.b16 %v7533, %v7525
        %v8046 = vpack.c.b16 %v7534, %v7526
        %v8047 = vpack.c.b16 %v7535, %v7527
        %v8048 = vpack.c.b16 %v7536, %v7528
        %v8049 = vpack.c.b16 %v7537, %v7529
        %v8050 = vpack.c.b16 %v7538, %v7530
        %v8051 = vpack.c.b16 %v7539, %v7531
        %8564 = vmatprep.subr.bf16.mxu0 %v7541
        %8565 = vmatpush1.bf16.msra.mxu0 %v7540
        %8566 = vmatprep.subr.bf16.mxu0 %v7549
        %8567 = vmatpush1.bf16.msra.mxu0 %v7548
        %8568 = vmatprep.subr.bf16.mxu0 %v7557
        %8569 = vmatpush1.bf16.msra.mxu0 %v7556
        %8570 = vmatprep.subr.bf16.mxu0 %v7565
        %8571 = vmatpush1.bf16.msra.mxu0 %v7564
        %8572 = vmatprep.subr.bf16.mxu0 %v7573
        %8573 = vmatpush1.bf16.msra.mxu0 %v7572
        %8574 = vmatprep.subr.bf16.mxu0 %v7581
        %8575 = vmatpush1.bf16.msra.mxu0 %v7580
        %8576 = vmatprep.subr.bf16.mxu0 %v7589
        %8577 = vmatpush1.bf16.msra.mxu0 %v7588
        %8578 = vmatprep.subr.bf16.mxu0 %v7597
        %8579 = vmatpush1.bf16.msra.mxu0 %v7596
        %8580 = vmatprep.subr.bf16.mxu0 %v7605
        %8581 = vmatpush1.bf16.msra.mxu0 %v7604
        %8582 = vmatprep.subr.bf16.mxu0 %v7613
        %8583 = vmatpush1.bf16.msra.mxu0 %v7612
        %8584 = vmatprep.subr.bf16.mxu0 %v7621
        %8585 = vmatpush1.bf16.msra.mxu0 %v7620
        %8586 = vmatprep.subr.bf16.mxu0 %v7629
        %8587 = vmatpush1.bf16.msra.mxu0 %v7628
        %8588 = vmatprep.subr.bf16.mxu0 %v7637
        %8589 = vmatpush1.bf16.msra.mxu0 %v7636
        %8590 = vmatprep.subr.bf16.mxu0 %v7645
        %8591 = vmatpush1.bf16.msra.mxu0 %v7644
        %8592 = vmatprep.subr.bf16.mxu0 %v7653
        %8593 = vmatpush1.bf16.msra.mxu0 %v7652
        %8594 = vmatprep.subr.bf16.mxu0 %v7661
        %8595 = vmatpush1.bf16.msra.mxu0 %v7660
        %8596 = vmatprep.mubr.bf16.mxu0 %v1738
        %8597 = vmatmul.mubr.bf16.gmra.mrb[0].mxu0 %v1737
        %v8598 = vpop.f32.mrb[0].mxu0
        %v8599 = vadd.f32 %v5506, %v8598
        %v8600 = vpop.f32.mrb[0].mxu0
        %v8601 = vadd.f32 %v5508, %v8600
        %v8602 = vpop.f32.mrb[0].mxu0
        %v8603 = vpop.f32.mrb[0].mxu0
        %8604 = vdwg.mxu0
        %8605 = vmatprep.subr.bf16.mxu0 %v7669
        %8606 = vmatpush1.bf16.msra.mxu0 %v7668
        %8607 = vmatprep.subr.bf16.mxu0 %v7677
        %8608 = vmatpush1.bf16.msra.mxu0 %v7676
        %8609 = vmatprep.subr.bf16.mxu0 %v7685
        %8610 = vmatpush1.bf16.msra.mxu0 %v7684
        %8611 = vmatprep.subr.bf16.mxu0 %v7693
        %8612 = vmatpush1.bf16.msra.mxu0 %v7692
        %8613 = vmatprep.subr.bf16.mxu0 %v7701
        %8614 = vmatpush1.bf16.msra.mxu0 %v7700
        %8615 = vmatprep.subr.bf16.mxu0 %v7709
        %8616 = vmatpush1.bf16.msra.mxu0 %v7708
        %8617 = vmatprep.subr.bf16.mxu0 %v7717
        %8618 = vmatpush1.bf16.msra.mxu0 %v7716
        %8619 = vmatprep.subr.bf16.mxu0 %v7725
        %8620 = vmatpush1.bf16.msra.mxu0 %v7724
        %8621 = vmatprep.subr.bf16.mxu0 %v7733
        %8622 = vmatpush1.bf16.msra.mxu0 %v7732
        %8623 = vmatprep.subr.bf16.mxu0 %v7741
        %8624 = vmatpush1.bf16.msra.mxu0 %v7740
        %8625 = vmatprep.subr.bf16.mxu0 %v7749
        %8626 = vmatpush1.bf16.msra.mxu0 %v7748
        %8627 = vmatprep.subr.bf16.mxu0 %v7757
        %8628 = vmatpush1.bf16.msra.mxu0 %v7756
        %8629 = vmatprep.subr.bf16.mxu0 %v7765
        %8630 = vmatpush1.bf16.msra.mxu0 %v7764
        %8631 = vmatprep.subr.bf16.mxu0 %v7773
        %8632 = vmatpush1.bf16.msra.mxu0 %v7772
        %8633 = vmatprep.subr.bf16.mxu0 %v7781
        %8634 = vmatpush1.bf16.msra.mxu0 %v7780
        %8635 = vmatprep.subr.bf16.mxu0 %v7789
        %8636 = vmatpush1.bf16.msra.mxu0 %v7788
        %8637 = vmatprep.mubr.bf16.mxu0 %v1740
        %8638 = vmatmul.mubr.bf16.gmra.mrb[0].mxu0 %v1739
        %v8639 = vpop.f32.mrb[0].mxu0
        %v8640 = vadd.f32 %v8599, %v8639
        %v8641 = vpop.f32.mrb[0].mxu0
        %v8642 = vadd.f32 %v8601, %v8641
        %v8643 = vpop.f32.mrb[0].mxu0
        %v8644 = vpop.f32.mrb[0].mxu0
        %8645 = vdwg.mxu0
        %8646 = vmatprep.subr.bf16.mxu0 %v7797
        %8647 = vmatpush1.bf16.msra.mxu0 %v7796
        %8648 = vmatprep.subr.bf16.mxu0 %v7805
        %8649 = vmatpush1.bf16.msra.mxu0 %v7804
        %8650 = vmatprep.subr.bf16.mxu0 %v7813
        %8651 = vmatpush1.bf16.msra.mxu0 %v7812
        %8652 = vmatprep.subr.bf16.mxu0 %v7821
        %8653 = vmatpush1.bf16.msra.mxu0 %v7820
        %8654 = vmatprep.subr.bf16.mxu0 %v7829
        %8655 = vmatpush1.bf16.msra.mxu0 %v7828
        %8656 = vmatprep.subr.bf16.mxu0 %v7837
        %8657 = vmatpush1.bf16.msra.mxu0 %v7836
        %8658 = vmatprep.subr.bf16.mxu0 %v7845
        %8659 = vmatpush1.bf16.msra.mxu0 %v7844
        %8660 = vmatprep.subr.bf16.mxu0 %v7853
        %8661 = vmatpush1.bf16.msra.mxu0 %v7852
        %8662 = vmatprep.subr.bf16.mxu0 %v7861
        %8663 = vmatpush1.bf16.msra.mxu0 %v7860
        %8664 = vmatprep.subr.bf16.mxu0 %v7869
        %8665 = vmatpush1.bf16.msra.mxu0 %v7868
        %8666 = vmatprep.subr.bf16.mxu0 %v7877
        %8667 = vmatpush1.bf16.msra.mxu0 %v7876
        %8668 = vmatprep.subr.bf16.mxu0 %v7885
        %8669 = vmatpush1.bf16.msra.mxu0 %v7884
        %8670 = vmatprep.subr.bf16.mxu0 %v7893
        %8671 = vmatpush1.bf16.msra.mxu0 %v7892
        %8672 = vmatprep.subr.bf16.mxu0 %v7901
        %8673 = vmatpush1.bf16.msra.mxu0 %v7900
        %8674 = vmatprep.subr.bf16.mxu0 %v7909
        %8675 = vmatpush1.bf16.msra.mxu0 %v7908
        %8676 = vmatprep.subr.bf16.mxu0 %v7917
        %8677 = vmatpush1.bf16.msra.mxu0 %v7916
        %8678 = vmatprep.mubr.bf16.mxu0 %v1742
        %8679 = vmatmul.mubr.bf16.gmra.mrb[0].mxu0 %v1741
        %v8680 = vpop.f32.mrb[0].mxu0
        %v8681 = vadd.f32 %v8640, %v8680
        %v8682 = vpop.f32.mrb[0].mxu0
        %v8683 = vadd.f32 %v8642, %v8682
        %v8684 = vpop.f32.mrb[0].mxu0
        %v8685 = vpop.f32.mrb[0].mxu0
        %8686 = vdwg.mxu0
        %8687 = vmatprep.subr.bf16.mxu0 %v7925
        %8688 = vmatpush1.bf16.msra.mxu0 %v7924
        %8689 = vmatprep.subr.bf16.mxu0 %v7933
        %8690 = vmatpush1.bf16.msra.mxu0 %v7932
        %8691 = vmatprep.subr.bf16.mxu0 %v7941
        %8692 = vmatpush1.bf16.msra.mxu0 %v7940
        %8693 = vmatprep.subr.bf16.mxu0 %v7949
        %8694 = vmatpush1.bf16.msra.mxu0 %v7948
        %8695 = vmatprep.subr.bf16.mxu0 %v7957
        %8696 = vmatpush1.bf16.msra.mxu0 %v7956
        %8697 = vmatprep.subr.bf16.mxu0 %v7965
        %8698 = vmatpush1.bf16.msra.mxu0 %v7964
        %8699 = vmatprep.subr.bf16.mxu0 %v7973
        %8700 = vmatpush1.bf16.msra.mxu0 %v7972
        %8701 = vmatprep.subr.bf16.mxu0 %v7981
        %8702 = vmatpush1.bf16.msra.mxu0 %v7980
        %8703 = vmatprep.subr.bf16.mxu0 %v7989
        %8704 = vmatpush1.bf16.msra.mxu0 %v7988
        %8705 = vmatprep.subr.bf16.mxu0 %v7997
        %8706 = vmatpush1.bf16.msra.mxu0 %v7996
        %8707 = vmatprep.subr.bf16.mxu0 %v8005
        %8708 = vmatpush1.bf16.msra.mxu0 %v8004
        %8709 = vmatprep.subr.bf16.mxu0 %v8013
        %8710 = vmatpush1.bf16.msra.mxu0 %v8012
        %8711 = vmatprep.subr.bf16.mxu0 %v8021
        %8712 = vmatpush1.bf16.msra.mxu0 %v8020
        %8713 = vmatprep.subr.bf16.mxu0 %v8029
        %8714 = vmatpush1.bf16.msra.mxu0 %v8028
        %8715 = vmatprep.subr.bf16.mxu0 %v8037
        %8716 = vmatpush1.bf16.msra.mxu0 %v8036
        %8717 = vmatprep.subr.bf16.mxu0 %v8045
        %8718 = vmatpush1.bf16.msra.mxu0 %v8044
        %8719 = vmatprep.mubr.bf16.mxu0 %v1744
        %8720 = vmatmul.mubr.bf16.gmra.mrb[0].mxu0 %v1743
        %v8721 = vpop.f32.mrb[0].mxu0
        %v8722 = vadd.f32 %v8681, %v8721
        %v8723 = vpop.f32.mrb[0].mxu0
        %v8724 = vadd.f32 %v8683, %v8723
        %v8725 = vpop.f32.mrb[0].mxu0
        %v8726 = vpop.f32.mrb[0].mxu0
        %8727 = vdwg.mxu0
        %8728 = vmatprep.subr.bf16.mxu0 %v7543
        %8729 = vmatpush1.bf16.msra.mxu0 %v7542
        %8730 = vmatprep.subr.bf16.mxu0 %v7551
        %8731 = vmatpush1.bf16.msra.mxu0 %v7550
        %8732 = vmatprep.subr.bf16.mxu0 %v7559
        %8733 = vmatpush1.bf16.msra.mxu0 %v7558
        %8734 = vmatprep.subr.bf16.mxu0 %v7567
        %8735 = vmatpush1.bf16.msra.mxu0 %v7566
        %8736 = vmatprep.subr.bf16.mxu0 %v7575
        %8737 = vmatpush1.bf16.msra.mxu0 %v7574
        %8738 = vmatprep.subr.bf16.mxu0 %v7583
        %8739 = vmatpush1.bf16.msra.mxu0 %v7582
        %8740 = vmatprep.subr.bf16.mxu0 %v7591
        %8741 = vmatpush1.bf16.msra.mxu0 %v7590
        %8742 = vmatprep.subr.bf16.mxu0 %v7599
        %8743 = vmatpush1.bf16.msra.mxu0 %v7598
        %8744 = vmatprep.subr.bf16.mxu0 %v7607
        %8745 = vmatpush1.bf16.msra.mxu0 %v7606
        %8746 = vmatprep.subr.bf16.mxu0 %v7615
        %8747 = vmatpush1.bf16.msra.mxu0 %v7614
        %8748 = vmatprep.subr.bf16.mxu0 %v7623
        %8749 = vmatpush1.bf16.msra.mxu0 %v7622
        %8750 = vmatprep.subr.bf16.mxu0 %v7631
        %8751 = vmatpush1.bf16.msra.mxu0 %v7630
        %8752 = vmatprep.subr.bf16.mxu0 %v7639
        %8753 = vmatpush1.bf16.msra.mxu0 %v7638
        %8754 = vmatprep.subr.bf16.mxu0 %v7647
        %8755 = vmatpush1.bf16.msra.mxu0 %v7646
        %8756 = vmatprep.subr.bf16.mxu0 %v7655
        %8757 = vmatpush1.bf16.msra.mxu0 %v7654
        %8758 = vmatprep.subr.bf16.mxu0 %v7663
        %8759 = vmatpush1.bf16.msra.mxu0 %v7662
        %8760 = vmatprep.mubr.bf16.mxu0 %v1738
        %8761 = vmatmul.mubr.bf16.gmra.mrb[0].mxu0 %v1737
        %v8762 = vpop.f32.mrb[0].mxu0
        %v8763 = vadd.f32 %v5670, %v8762
        %v8764 = vpop.f32.mrb[0].mxu0
        %v8765 = vadd.f32 %v5672, %v8764
        %v8766 = vpop.f32.mrb[0].mxu0
        %v8767 = vpop.f32.mrb[0].mxu0
        %8768 = vdwg.mxu0
        %8769 = vmatprep.subr.bf16.mxu0 %v7671
        %8770 = vmatpush1.bf16.msra.mxu0 %v7670
        %8771 = vmatprep.subr.bf16.mxu0 %v7679
        %8772 = vmatpush1.bf16.msra.mxu0 %v7678
        %8773 = vmatprep.subr.bf16.mxu0 %v7687
        %8774 = vmatpush1.bf16.msra.mxu0 %v7686
        %8775 = vmatprep.subr.bf16.mxu0 %v7695
        %8776 = vmatpush1.bf16.msra.mxu0 %v7694
        %8777 = vmatprep.subr.bf16.mxu0 %v7703
        %8778 = vmatpush1.bf16.msra.mxu0 %v7702
        %8779 = vmatprep.subr.bf16.mxu0 %v7711
        %8780 = vmatpush1.bf16.msra.mxu0 %v7710
        %8781 = vmatprep.subr.bf16.mxu0 %v7719
        %8782 = vmatpush1.bf16.msra.mxu0 %v7718
        %8783 = vmatprep.subr.bf16.mxu0 %v7727
        %8784 = vmatpush1.bf16.msra.mxu0 %v7726
        %8785 = vmatprep.subr.bf16.mxu0 %v7735
        %8786 = vmatpush1.bf16.msra.mxu0 %v7734
        %8787 = vmatprep.subr.bf16.mxu0 %v7743
        %8788 = vmatpush1.bf16.msra.mxu0 %v7742
        %8789 = vmatprep.subr.bf16.mxu0 %v7751
        %8790 = vmatpush1.bf16.msra.mxu0 %v7750
        %8791 = vmatprep.subr.bf16.mxu0 %v7759
        %8792 = vmatpush1.bf16.msra.mxu0 %v7758
        %8793 = vmatprep.subr.bf16.mxu0 %v7767
        %8794 = vmatpush1.bf16.msra.mxu0 %v7766
        %8795 = vmatprep.subr.bf16.mxu0 %v7775
        %8796 = vmatpush1.bf16.msra.mxu0 %v7774
        %8797 = vmatprep.subr.bf16.mxu0 %v7783
        %8798 = vmatpush1.bf16.msra.mxu0 %v7782
        %8799 = vmatprep.subr.bf16.mxu0 %v7791
        %8800 = vmatpush1.bf16.msra.mxu0 %v7790
        %8801 = vmatprep.mubr.bf16.mxu0 %v1740
        %8802 = vmatmul.mubr.bf16.gmra.mrb[0].mxu0 %v1739
        %v8803 = vpop.f32.mrb[0].mxu0
        %v8804 = vadd.f32 %v8763, %v8803
        %v8805 = vpop.f32.mrb[0].mxu0
        %v8806 = vadd.f32 %v8765, %v8805
        %v8807 = vpop.f32.mrb[0].mxu0
        %v8808 = vpop.f32.mrb[0].mxu0
        %8809 = vdwg.mxu0
        %8810 = vmatprep.subr.bf16.mxu0 %v7799
        %8811 = vmatpush1.bf16.msra.mxu0 %v7798
        %8812 = vmatprep.subr.bf16.mxu0 %v7807
        %8813 = vmatpush1.bf16.msra.mxu0 %v7806
        %8814 = vmatprep.subr.bf16.mxu0 %v7815
        %8815 = vmatpush1.bf16.msra.mxu0 %v7814
        %8816 = vmatprep.subr.bf16.mxu0 %v7823
        %8817 = vmatpush1.bf16.msra.mxu0 %v7822
        %8818 = vmatprep.subr.bf16.mxu0 %v7831
        %8819 = vmatpush1.bf16.msra.mxu0 %v7830
        %8820 = vmatprep.subr.bf16.mxu0 %v7839
        %8821 = vmatpush1.bf16.msra.mxu0 %v7838
        %8822 = vmatprep.subr.bf16.mxu0 %v7847
        %8823 = vmatpush1.bf16.msra.mxu0 %v7846
        %8824 = vmatprep.subr.bf16.mxu0 %v7855
        %8825 = vmatpush1.bf16.msra.mxu0 %v7854
        %8826 = vmatprep.subr.bf16.mxu0 %v7863
        %8827 = vmatpush1.bf16.msra.mxu0 %v7862
        %8828 = vmatprep.subr.bf16.mxu0 %v7871
        %8829 = vmatpush1.bf16.msra.mxu0 %v7870
        %8830 = vmatprep.subr.bf16.mxu0 %v7879
        %8831 = vmatpush1.bf16.msra.mxu0 %v7878
        %8832 = vmatprep.subr.bf16.mxu0 %v7887
        %8833 = vmatpush1.bf16.msra.mxu0 %v7886
        %8834 = vmatprep.subr.bf16.mxu0 %v7895
        %8835 = vmatpush1.bf16.msra.mxu0 %v7894
        %8836 = vmatprep.subr.bf16.mxu0 %v7903
        %8837 = vmatpush1.bf16.msra.mxu0 %v7902
        %8838 = vmatprep.subr.bf16.mxu0 %v7911
        %8839 = vmatpush1.bf16.msra.mxu0 %v7910
        %8840 = vmatprep.subr.bf16.mxu0 %v7919
        %8841 = vmatpush1.bf16.msra.mxu0 %v7918
        %8842 = vmatprep.mubr.bf16.mxu0 %v1742
        %8843 = vmatmul.mubr.bf16.gmra.mrb[0].mxu0 %v1741
        %v8844 = vpop.f32.mrb[0].mxu0
        %v8845 = vadd.f32 %v8804, %v8844
        %v8846 = vpop.f32.mrb[0].mxu0
        %v8847 = vadd.f32 %v8806, %v8846
        %v8848 = vpop.f32.mrb[0].mxu0
        %v8849 = vpop.f32.mrb[0].mxu0
        %8850 = vdwg.mxu0
        %8851 = vmatprep.subr.bf16.mxu0 %v7927
        %8852 = vmatpush1.bf16.msra.mxu0 %v7926
        %8853 = vmatprep.subr.bf16.mxu0 %v7935
        %8854 = vmatpush1.bf16.msra.mxu0 %v7934
        %8855 = vmatprep.subr.bf16.mxu0 %v7943
        %8856 = vmatpush1.bf16.msra.mxu0 %v7942
        %8857 = vmatprep.subr.bf16.mxu0 %v7951
        %8858 = vmatpush1.bf16.msra.mxu0 %v7950
        %8859 = vmatprep.subr.bf16.mxu0 %v7959
        %8860 = vmatpush1.bf16.msra.mxu0 %v7958
        %8861 = vmatprep.subr.bf16.mxu0 %v7967
        %8862 = vmatpush1.bf16.msra.mxu0 %v7966
        %8863 = vmatprep.subr.bf16.mxu0 %v7975
        %8864 = vmatpush1.bf16.msra.mxu0 %v7974
        %8865 = vmatprep.subr.bf16.mxu0 %v7983
        %8866 = vmatpush1.bf16.msra.mxu0 %v7982
        %8867 = vmatprep.subr.bf16.mxu0 %v7991
        %8868 = vmatpush1.bf16.msra.mxu0 %v7990
        %8869 = vmatprep.subr.bf16.mxu0 %v7999
        %8870 = vmatpush1.bf16.msra.mxu0 %v7998
        %8871 = vmatprep.subr.bf16.mxu0 %v8007
        %8872 = vmatpush1.bf16.msra.mxu0 %v8006
        %8873 = vmatprep.subr.bf16.mxu0 %v8015
        %8874 = vmatpush1.bf16.msra.mxu0 %v8014
        %8875 = vmatprep.subr.bf16.mxu0 %v8023
        %8876 = vmatpush1.bf16.msra.mxu0 %v8022
        %8877 = vmatprep.subr.bf16.mxu0 %v8031
        %8878 = vmatpush1.bf16.msra.mxu0 %v8030
        %8879 = vmatprep.subr.bf16.mxu0 %v8039
        %8880 = vmatpush1.bf16.msra.mxu0 %v8038
        %8881 = vmatprep.subr.bf16.mxu0 %v8047
        %8882 = vmatpush1.bf16.msra.mxu0 %v8046
        %8883 = vmatprep.mubr.bf16.mxu0 %v1744
        %8884 = vmatmul.mubr.bf16.gmra.mrb[0].mxu0 %v1743
        %v8885 = vpop.f32.mrb[0].mxu0
        %v8886 = vadd.f32 %v8845, %v8885
        %v8887 = vpop.f32.mrb[0].mxu0
        %v8888 = vadd.f32 %v8847, %v8887
        %v8889 = vpop.f32.mrb[0].mxu0
        %v8890 = vpop.f32.mrb[0].mxu0
        %8891 = vdwg.mxu0
        %8892 = vmatprep.subr.bf16.mxu0 %v7545
        %8893 = vmatpush1.bf16.msra.mxu0 %v7544
        %8894 = vmatprep.subr.bf16.mxu0 %v7553
        %8895 = vmatpush1.bf16.msra.mxu0 %v7552
        %8896 = vmatprep.subr.bf16.mxu0 %v7561
        %8897 = vmatpush1.bf16.msra.mxu0 %v7560
        %8898 = vmatprep.subr.bf16.mxu0 %v7569
        %8899 = vmatpush1.bf16.msra.mxu0 %v7568
        %8900 = vmatprep.subr.bf16.mxu0 %v7577
        %8901 = vmatpush1.bf16.msra.mxu0 %v7576
        %8902 = vmatprep.subr.bf16.mxu0 %v7585
        %8903 = vmatpush1.bf16.msra.mxu0 %v7584
        %8904 = vmatprep.subr.bf16.mxu0 %v7593
        %8905 = vmatpush1.bf16.msra.mxu0 %v7592
        %8906 = vmatprep.subr.bf16.mxu0 %v7601
        %8907 = vmatpush1.bf16.msra.mxu0 %v7600
        %8908 = vmatprep.subr.bf16.mxu0 %v7609
        %8909 = vmatpush1.bf16.msra.mxu0 %v7608
        %8910 = vmatprep.subr.bf16.mxu0 %v7617
        %8911 = vmatpush1.bf16.msra.mxu0 %v7616
        %8912 = vmatprep.subr.bf16.mxu0 %v7625
        %8913 = vmatpush1.bf16.msra.mxu0 %v7624
        %8914 = vmatprep.subr.bf16.mxu0 %v7633
        %8915 = vmatpush1.bf16.msra.mxu0 %v7632
        %8916 = vmatprep.subr.bf16.mxu0 %v7641
        %8917 = vmatpush1.bf16.msra.mxu0 %v7640
        %8918 = vmatprep.subr.bf16.mxu0 %v7649
        %8919 = vmatpush1.bf16.msra.mxu0 %v7648
        %8920 = vmatprep.subr.bf16.mxu0 %v7657
        %8921 = vmatpush1.bf16.msra.mxu0 %v7656
        %8922 = vmatprep.subr.bf16.mxu0 %v7665
        %8923 = vmatpush1.bf16.msra.mxu0 %v7664
        %8924 = vmatprep.mubr.bf16.mxu0 %v1738
        %8925 = vmatmul.mubr.bf16.gmra.mrb[0].mxu0 %v1737
        %v8926 = vpop.f32.mrb[0].mxu0
        %v8927 = vadd.f32 %v5834, %v8926
        %v8928 = vpop.f32.mrb[0].mxu0
        %v8929 = vadd.f32 %v5836, %v8928
        %v8930 = vpop.f32.mrb[0].mxu0
        %v8931 = vpop.f32.mrb[0].mxu0
        %8932 = vdwg.mxu0
        %8933 = vmatprep.subr.bf16.mxu0 %v7673
        %8934 = vmatpush1.bf16.msra.mxu0 %v7672
        %8935 = vmatprep.subr.bf16.mxu0 %v7681
        %8936 = vmatpush1.bf16.msra.mxu0 %v7680
        %8937 = vmatprep.subr.bf16.mxu0 %v7689
        %8938 = vmatpush1.bf16.msra.mxu0 %v7688
        %8939 = vmatprep.subr.bf16.mxu0 %v7697
        %8940 = vmatpush1.bf16.msra.mxu0 %v7696
        %8941 = vmatprep.subr.bf16.mxu0 %v7705
        %8942 = vmatpush1.bf16.msra.mxu0 %v7704
        %8943 = vmatprep.subr.bf16.mxu0 %v7713
        %8944 = vmatpush1.bf16.msra.mxu0 %v7712
        %8945 = vmatprep.subr.bf16.mxu0 %v7721
        %8946 = vmatpush1.bf16.msra.mxu0 %v7720
        %8947 = vmatprep.subr.bf16.mxu0 %v7729
        %8948 = vmatpush1.bf16.msra.mxu0 %v7728
        %8949 = vmatprep.subr.bf16.mxu0 %v7737
        %8950 = vmatpush1.bf16.msra.mxu0 %v7736
        %8951 = vmatprep.subr.bf16.mxu0 %v7745
        %8952 = vmatpush1.bf16.msra.mxu0 %v7744
        %8953 = vmatprep.subr.bf16.mxu0 %v7753
        %8954 = vmatpush1.bf16.msra.mxu0 %v7752
        %8955 = vmatprep.subr.bf16.mxu0 %v7761
        %8956 = vmatpush1.bf16.msra.mxu0 %v7760
        %8957 = vmatprep.subr.bf16.mxu0 %v7769
        %8958 = vmatpush1.bf16.msra.mxu0 %v7768
        %8959 = vmatprep.subr.bf16.mxu0 %v7777
        %8960 = vmatpush1.bf16.msra.mxu0 %v7776
        %8961 = vmatprep.subr.bf16.mxu0 %v7785
        %8962 = vmatpush1.bf16.msra.mxu0 %v7784
        %8963 = vmatprep.subr.bf16.mxu0 %v7793
        %8964 = vmatpush1.bf16.msra.mxu0 %v7792
        %8965 = vmatprep.mubr.bf16.mxu0 %v1740
        %8966 = vmatmul.mubr.bf16.gmra.mrb[0].mxu0 %v1739
        %v8967 = vpop.f32.mrb[0].mxu0
        %v8968 = vadd.f32 %v8927, %v8967
        %v8969 = vpop.f32.mrb[0].mxu0
        %v8970 = vadd.f32 %v8929, %v8969
        %v8971 = vpop.f32.mrb[0].mxu0
        %v8972 = vpop.f32.mrb[0].mxu0
        %8973 = vdwg.mxu0
        %8974 = vmatprep.subr.bf16.mxu0 %v7801
        %8975 = vmatpush1.bf16.msra.mxu0 %v7800
        %8976 = vmatprep.subr.bf16.mxu0 %v7809
        %8977 = vmatpush1.bf16.msra.mxu0 %v7808
        %8978 = vmatprep.subr.bf16.mxu0 %v7817
        %8979 = vmatpush1.bf16.msra.mxu0 %v7816
        %8980 = vmatprep.subr.bf16.mxu0 %v7825
        %8981 = vmatpush1.bf16.msra.mxu0 %v7824
        %8982 = vmatprep.subr.bf16.mxu0 %v7833
        %8983 = vmatpush1.bf16.msra.mxu0 %v7832
        %8984 = vmatprep.subr.bf16.mxu0 %v7841
        %8985 = vmatpush1.bf16.msra.mxu0 %v7840
        %8986 = vmatprep.subr.bf16.mxu0 %v7849
        %8987 = vmatpush1.bf16.msra.mxu0 %v7848
        %8988 = vmatprep.subr.bf16.mxu0 %v7857
        %8989 = vmatpush1.bf16.msra.mxu0 %v7856
        %8990 = vmatprep.subr.bf16.mxu0 %v7865
        %8991 = vmatpush1.bf16.msra.mxu0 %v7864
        %8992 = vmatprep.subr.bf16.mxu0 %v7873
        %8993 = vmatpush1.bf16.msra.mxu0 %v7872
        %8994 = vmatprep.subr.bf16.mxu0 %v7881
        %8995 = vmatpush1.bf16.msra.mxu0 %v7880
        %8996 = vmatprep.subr.bf16.mxu0 %v7889
        %8997 = vmatpush1.bf16.msra.mxu0 %v7888
        %8998 = vmatprep.subr.bf16.mxu0 %v7897
        %8999 = vmatpush1.bf16.msra.mxu0 %v7896
        %9000 = vmatprep.subr.bf16.mxu0 %v7905
        %9001 = vmatpush1.bf16.msra.mxu0 %v7904
        %9002 = vmatprep.subr.bf16.mxu0 %v7913
        %9003 = vmatpush1.bf16.msra.mxu0 %v7912
        %9004 = vmatprep.subr.bf16.mxu0 %v7921
        %9005 = vmatpush1.bf16.msra.mxu0 %v7920
        %9006 = vmatprep.mubr.bf16.mxu0 %v1742
        %9007 = vmatmul.mubr.bf16.gmra.mrb[0].mxu0 %v1741
        %v9008 = vpop.f32.mrb[0].mxu0
        %v9009 = vadd.f32 %v8968, %v9008
        %v9010 = vpop.f32.mrb[0].mxu0
        %v9011 = vadd.f32 %v8970, %v9010
        %v9012 = vpop.f32.mrb[0].mxu0
        %v9013 = vpop.f32.mrb[0].mxu0
        %9014 = vdwg.mxu0
        %9015 = vmatprep.subr.bf16.mxu0 %v7929
        %9016 = vmatpush1.bf16.msra.mxu0 %v7928
        %9017 = vmatprep.subr.bf16.mxu0 %v7937
        %9018 = vmatpush1.bf16.msra.mxu0 %v7936
        %9019 = vmatprep.subr.bf16.mxu0 %v7945
        %9020 = vmatpush1.bf16.msra.mxu0 %v7944
        %9021 = vmatprep.subr.bf16.mxu0 %v7953
        %9022 = vmatpush1.bf16.msra.mxu0 %v7952
        %9023 = vmatprep.subr.bf16.mxu0 %v7961
        %9024 = vmatpush1.bf16.msra.mxu0 %v7960
        %9025 = vmatprep.subr.bf16.mxu0 %v7969
        %9026 = vmatpush1.bf16.msra.mxu0 %v7968
        %9027 = vmatprep.subr.bf16.mxu0 %v7977
        %9028 = vmatpush1.bf16.msra.mxu0 %v7976
        %9029 = vmatprep.subr.bf16.mxu0 %v7985
        %9030 = vmatpush1.bf16.msra.mxu0 %v7984
        %9031 = vmatprep.subr.bf16.mxu0 %v7993
        %9032 = vmatpush1.bf16.msra.mxu0 %v7992
        %9033 = vmatprep.subr.bf16.mxu0 %v8001
        %9034 = vmatpush1.bf16.msra.mxu0 %v8000
        %9035 = vmatprep.subr.bf16.mxu0 %v8009
        %9036 = vmatpush1.bf16.msra.mxu0 %v8008
        %9037 = vmatprep.subr.bf16.mxu0 %v8017
        %9038 = vmatpush1.bf16.msra.mxu0 %v8016
        %9039 = vmatprep.subr.bf16.mxu0 %v8025
        %9040 = vmatpush1.bf16.msra.mxu0 %v8024
        %9041 = vmatprep.subr.bf16.mxu0 %v8033
        %9042 = vmatpush1.bf16.msra.mxu0 %v8032
        %9043 = vmatprep.subr.bf16.mxu0 %v8041
        %9044 = vmatpush1.bf16.msra.mxu0 %v8040
        %9045 = vmatprep.subr.bf16.mxu0 %v8049
        %9046 = vmatpush1.bf16.msra.mxu0 %v8048
        %9047 = vmatprep.mubr.bf16.mxu0 %v1744
        %9048 = vmatmul.mubr.bf16.gmra.mrb[0].mxu0 %v1743
        %v9049 = vpop.f32.mrb[0].mxu0
        %v9050 = vadd.f32 %v9009, %v9049
        %v9051 = vpop.f32.mrb[0].mxu0
        %v9052 = vadd.f32 %v9011, %v9051
        %v9053 = vpop.f32.mrb[0].mxu0
        %v9054 = vpop.f32.mrb[0].mxu0
        %9055 = vdwg.mxu0
        %9056 = vmatprep.subr.bf16.mxu0 %v7547
        %9057 = vmatpush1.bf16.msra.mxu0 %v7546
        %9058 = vmatprep.subr.bf16.mxu0 %v7555
        %9059 = vmatpush1.bf16.msra.mxu0 %v7554
        %9060 = vmatprep.subr.bf16.mxu0 %v7563
        %9061 = vmatpush1.bf16.msra.mxu0 %v7562
        %9062 = vmatprep.subr.bf16.mxu0 %v7571
        %9063 = vmatpush1.bf16.msra.mxu0 %v7570
        %9064 = vmatprep.subr.bf16.mxu0 %v7579
        %9065 = vmatpush1.bf16.msra.mxu0 %v7578
        %9066 = vmatprep.subr.bf16.mxu0 %v7587
        %9067 = vmatpush1.bf16.msra.mxu0 %v7586
        %9068 = vmatprep.subr.bf16.mxu0 %v7595
        %9069 = vmatpush1.bf16.msra.mxu0 %v7594
        %9070 = vmatprep.subr.bf16.mxu0 %v7603
        %9071 = vmatpush1.bf16.msra.mxu0 %v7602
        %9072 = vmatprep.subr.bf16.mxu0 %v7611
        %9073 = vmatpush1.bf16.msra.mxu0 %v7610
        %9074 = vmatprep.subr.bf16.mxu0 %v7619
        %9075 = vmatpush1.bf16.msra.mxu0 %v7618
        %9076 = vmatprep.subr.bf16.mxu0 %v7627
        %9077 = vmatpush1.bf16.msra.mxu0 %v7626
        %9078 = vmatprep.subr.bf16.mxu0 %v7635
        %9079 = vmatpush1.bf16.msra.mxu0 %v7634
        %9080 = vmatprep.subr.bf16.mxu0 %v7643
        %9081 = vmatpush1.bf16.msra.mxu0 %v7642
        %9082 = vmatprep.subr.bf16.mxu0 %v7651
        %9083 = vmatpush1.bf16.msra.mxu0 %v7650
        %9084 = vmatprep.subr.bf16.mxu0 %v7659
        %9085 = vmatpush1.bf16.msra.mxu0 %v7658
        %9086 = vmatprep.subr.bf16.mxu0 %v7667
        %9087 = vmatpush1.bf16.msra.mxu0 %v7666
        %9088 = vmatprep.mubr.bf16.mxu0 %v1738
        %9089 = vmatmul.mubr.bf16.gmra.mrb[0].mxu0 %v1737
        %v9090 = vpop.f32.mrb[0].mxu0
        %v9091 = vadd.f32 %v5998, %v9090
        %v9092 = vpop.f32.mrb[0].mxu0
        %v9093 = vadd.f32 %v6000, %v9092
        %v9094 = vpop.f32.mrb[0].mxu0
        %v9095 = vpop.f32.mrb[0].mxu0
        %9096 = vdwg.mxu0
        %9097 = vmatprep.subr.bf16.mxu0 %v7675
        %9098 = vmatpush1.bf16.msra.mxu0 %v7674
        %9099 = vmatprep.subr.bf16.mxu0 %v7683
        %9100 = vmatpush1.bf16.msra.mxu0 %v7682
        %9101 = vmatprep.subr.bf16.mxu0 %v7691
        %9102 = vmatpush1.bf16.msra.mxu0 %v7690
        %9103 = vmatprep.subr.bf16.mxu0 %v7699
        %9104 = vmatpush1.bf16.msra.mxu0 %v7698
        %9105 = vmatprep.subr.bf16.mxu0 %v7707
        %9106 = vmatpush1.bf16.msra.mxu0 %v7706
        %9107 = vmatprep.subr.bf16.mxu0 %v7715
        %9108 = vmatpush1.bf16.msra.mxu0 %v7714
        %9109 = vmatprep.subr.bf16.mxu0 %v7723
        %9110 = vmatpush1.bf16.msra.mxu0 %v7722
        %9111 = vmatprep.subr.bf16.mxu0 %v7731
        %9112 = vmatpush1.bf16.msra.mxu0 %v7730
        %9113 = vmatprep.subr.bf16.mxu0 %v7739
        %9114 = vmatpush1.bf16.msra.mxu0 %v7738
        %9115 = vmatprep.subr.bf16.mxu0 %v7747
        %9116 = vmatpush1.bf16.msra.mxu0 %v7746
        %9117 = vmatprep.subr.bf16.mxu0 %v7755
        %9118 = vmatpush1.bf16.msra.mxu0 %v7754
        %9119 = vmatprep.subr.bf16.mxu0 %v7763
        %9120 = vmatpush1.bf16.msra.mxu0 %v7762
        %9121 = vmatprep.subr.bf16.mxu0 %v7771
        %9122 = vmatpush1.bf16.msra.mxu0 %v7770
        %9123 = vmatprep.subr.bf16.mxu0 %v7779
        %9124 = vmatpush1.bf16.msra.mxu0 %v7778
        %9125 = vmatprep.subr.bf16.mxu0 %v7787
        %9126 = vmatpush1.bf16.msra.mxu0 %v7786
        %9127 = vmatprep.subr.bf16.mxu0 %v7795
        %9128 = vmatpush1.bf16.msra.mxu0 %v7794
        %9129 = vmatprep.mubr.bf16.mxu0 %v1740
        %9130 = vmatmul.mubr.bf16.gmra.mrb[0].mxu0 %v1739
        %v9131 = vpop.f32.mrb[0].mxu0
        %v9132 = vadd.f32 %v9091, %v9131
        %v9133 = vpop.f32.mrb[0].mxu0
        %v9134 = vadd.f32 %v9093, %v9133
        %v9135 = vpop.f32.mrb[0].mxu0
        %v9136 = vpop.f32.mrb[0].mxu0
        %9137 = vdwg.mxu0
        %9138 = vmatprep.subr.bf16.mxu0 %v7803
        %9139 = vmatpush1.bf16.msra.mxu0 %v7802
        %9140 = vmatprep.subr.bf16.mxu0 %v7811
        %9141 = vmatpush1.bf16.msra.mxu0 %v7810
        %9142 = vmatprep.subr.bf16.mxu0 %v7819
        %9143 = vmatpush1.bf16.msra.mxu0 %v7818
        %9144 = vmatprep.subr.bf16.mxu0 %v7827
        %9145 = vmatpush1.bf16.msra.mxu0 %v7826
        %9146 = vmatprep.subr.bf16.mxu0 %v7835
        %9147 = vmatpush1.bf16.msra.mxu0 %v7834
        %9148 = vmatprep.subr.bf16.mxu0 %v7843
        %9149 = vmatpush1.bf16.msra.mxu0 %v7842
        %9150 = vmatprep.subr.bf16.mxu0 %v7851
        %9151 = vmatpush1.bf16.msra.mxu0 %v7850
        %9152 = vmatprep.subr.bf16.mxu0 %v7859
        %9153 = vmatpush1.bf16.msra.mxu0 %v7858
        %9154 = vmatprep.subr.bf16.mxu0 %v7867
        %9155 = vmatpush1.bf16.msra.mxu0 %v7866
        %9156 = vmatprep.subr.bf16.mxu0 %v7875
        %9157 = vmatpush1.bf16.msra.mxu0 %v7874
        %9158 = vmatprep.subr.bf16.mxu0 %v7883
        %9159 = vmatpush1.bf16.msra.mxu0 %v7882
        %9160 = vmatprep.subr.bf16.mxu0 %v7891
        %9161 = vmatpush1.bf16.msra.mxu0 %v7890
        %9162 = vmatprep.subr.bf16.mxu0 %v7899
        %9163 = vmatpush1.bf16.msra.mxu0 %v7898
        %9164 = vmatprep.subr.bf16.mxu0 %v7907
        %9165 = vmatpush1.bf16.msra.mxu0 %v7906
        %9166 = vmatprep.subr.bf16.mxu0 %v7915
        %9167 = vmatpush1.bf16.msra.mxu0 %v7914
        %9168 = vmatprep.subr.bf16.mxu0 %v7923
        %9169 = vmatpush1.bf16.msra.mxu0 %v7922
        %9170 = vmatprep.mubr.bf16.mxu0 %v1742
        %9171 = vmatmul.mubr.bf16.gmra.mrb[0].mxu0 %v1741
        %v9172 = vpop.f32.mrb[0].mxu0
        %v9173 = vadd.f32 %v9132, %v9172
        %v9174 = vpop.f32.mrb[0].mxu0
        %v9175 = vadd.f32 %v9134, %v9174
        %v9176 = vpop.f32.mrb[0].mxu0
        %v9177 = vpop.f32.mrb[0].mxu0
        %9178 = vdwg.mxu0
        %9179 = vmatprep.subr.bf16.mxu0 %v7931
        %9180 = vmatpush1.bf16.msra.mxu0 %v7930
        %9181 = vmatprep.subr.bf16.mxu0 %v7939
        %9182 = vmatpush1.bf16.msra.mxu0 %v7938
        %9183 = vmatprep.subr.bf16.mxu0 %v7947
        %9184 = vmatpush1.bf16.msra.mxu0 %v7946
        %9185 = vmatprep.subr.bf16.mxu0 %v7955
        %9186 = vmatpush1.bf16.msra.mxu0 %v7954
        %9187 = vmatprep.subr.bf16.mxu0 %v7963
        %9188 = vmatpush1.bf16.msra.mxu0 %v7962
        %9189 = vmatprep.subr.bf16.mxu0 %v7971
        %9190 = vmatpush1.bf16.msra.mxu0 %v7970
        %9191 = vmatprep.subr.bf16.mxu0 %v7979
        %9192 = vmatpush1.bf16.msra.mxu0 %v7978
        %9193 = vmatprep.subr.bf16.mxu0 %v7987
        %9194 = vmatpush1.bf16.msra.mxu0 %v7986
        %9195 = vmatprep.subr.bf16.mxu0 %v7995
        %9196 = vmatpush1.bf16.msra.mxu0 %v7994
        %9197 = vmatprep.subr.bf16.mxu0 %v8003
        %9198 = vmatpush1.bf16.msra.mxu0 %v8002
        %9199 = vmatprep.subr.bf16.mxu0 %v8011
        %9200 = vmatpush1.bf16.msra.mxu0 %v8010
        %9201 = vmatprep.subr.bf16.mxu0 %v8019
        %9202 = vmatpush1.bf16.msra.mxu0 %v8018
        %9203 = vmatprep.subr.bf16.mxu0 %v8027
        %9204 = vmatpush1.bf16.msra.mxu0 %v8026
        %9205 = vmatprep.subr.bf16.mxu0 %v8035
        %9206 = vmatpush1.bf16.msra.mxu0 %v8034
        %9207 = vmatprep.subr.bf16.mxu0 %v8043
        %9208 = vmatpush1.bf16.msra.mxu0 %v8042
        %9209 = vmatprep.subr.bf16.mxu0 %v8051
        %9210 = vmatpush1.bf16.msra.mxu0 %v8050
        %9211 = vmatprep.mubr.bf16.mxu0 %v1744
        %9212 = vmatmul.mubr.bf16.gmra.mrb[0].mxu0 %v1743
        %v9213 = vpop.f32.mrb[0].mxu0
        %v9214 = vadd.f32 %v9173, %v9213
        %v9215 = vpop.f32.mrb[0].mxu0
        %v9216 = vadd.f32 %v9175, %v9215
        %v9217 = vpop.f32.mrb[0].mxu0
        %v9218 = vpop.f32.mrb[0].mxu0
        %9219 = vdwg.mxu0
        %s9220 = sadd.s32 16, %s1726
        %s9221 = smul.addr %s9220, 8
        %s9222 = scalar_lea.vmem [#allocation2], %s9221
        %v9223 = vld [vmem:[%s9222] sm:$0xff]
        %v9224 = vld [vmem:[%s9222 + $0x8] sm:$0xff]
        %v9225 = vld [vmem:[%s9222 + $0x10] sm:$0xff]
        %v9226 = vld [vmem:[%s9222 + $0x18] sm:$0xff]
        %v9227 = vld [vmem:[%s9222 + $0x20] sm:$0xff]
        %v9228 = vld [vmem:[%s9222 + $0x28] sm:$0xff]
        %v9229 = vld [vmem:[%s9222 + $0x30] sm:$0xff]
        %v9230 = vld [vmem:[%s9222 + $0x38] sm:$0xff]
        %v9231 = vpack.c.bf16 %v9223, %v9223
        %v9232 = vpack.c.bf16 %v9224, %v9224
        %v9233 = vpack.c.bf16 %v9225, %v9225
        %v9234 = vpack.c.bf16 %v9226, %v9226
        %v9235 = vpack.c.bf16 %v9227, %v9227
        %v9236 = vpack.c.bf16 %v9228, %v9228
        %v9237 = vpack.c.bf16 %v9229, %v9229
        %v9238 = vpack.c.bf16 %v9230, %v9230
        %v9239 = vld [vmem:[%s437 + $0x2000] sm:$0xff]
        %v9240 = vld [vmem:[%s437 + $0x2008] sm:$0xff]
        %v9241 = vld [vmem:[%s437 + $0x2010] sm:$0xff]
        %v9242 = vld [vmem:[%s437 + $0x2018] sm:$0xff]
        %v9243 = vld [vmem:[%s437 + $0x2020] sm:$0xff]
        %v9244 = vld [vmem:[%s437 + $0x2028] sm:$0xff]
        %v9245 = vld [vmem:[%s437 + $0x2030] sm:$0xff]
        %v9246 = vld [vmem:[%s437 + $0x2038] sm:$0xff]
        %v9247 = vld [vmem:[%s437 + $0x2040] sm:$0xff]
        %v9248 = vld [vmem:[%s437 + $0x2048] sm:$0xff]
        %v9249 = vld [vmem:[%s437 + $0x2050] sm:$0xff]
        %v9250 = vld [vmem:[%s437 + $0x2058] sm:$0xff]
        %v9251 = vld [vmem:[%s437 + $0x2060] sm:$0xff]
        %v9252 = vld [vmem:[%s437 + $0x2068] sm:$0xff]
        %v9253 = vld [vmem:[%s437 + $0x2070] sm:$0xff]
        %v9254 = vld [vmem:[%s437 + $0x2078] sm:$0xff]
        %v9255 = vld [vmem:[%s437 + $0x2080] sm:$0xff]
        %v9256 = vld [vmem:[%s437 + $0x2088] sm:$0xff]
        %v9257 = vld [vmem:[%s437 + $0x2090] sm:$0xff]
        %v9258 = vld [vmem:[%s437 + $0x2098] sm:$0xff]
        %v9259 = vld [vmem:[%s437 + $0x20a0] sm:$0xff]
        %v9260 = vld [vmem:[%s437 + $0x20a8] sm:$0xff]
        %v9261 = vld [vmem:[%s437 + $0x20b0] sm:$0xff]
        %v9262 = vld [vmem:[%s437 + $0x20b8] sm:$0xff]
        %v9263 = vld [vmem:[%s437 + $0x20c0] sm:$0xff]
        %v9264 = vld [vmem:[%s437 + $0x20c8] sm:$0xff]
        %v9265 = vld [vmem:[%s437 + $0x20d0] sm:$0xff]
        %v9266 = vld [vmem:[%s437 + $0x20d8] sm:$0xff]
        %v9267 = vld [vmem:[%s437 + $0x20e0] sm:$0xff]
        %v9268 = vld [vmem:[%s437 + $0x20e8] sm:$0xff]
        %v9269 = vld [vmem:[%s437 + $0x20f0] sm:$0xff]
        %v9270 = vld [vmem:[%s437 + $0x20f8] sm:$0xff]
        %v9271 = vld [vmem:[%s437 + $0x2100] sm:$0xff]
        %v9272 = vld [vmem:[%s437 + $0x2108] sm:$0xff]
        %v9273 = vld [vmem:[%s437 + $0x2110] sm:$0xff]
        %v9274 = vld [vmem:[%s437 + $0x2118] sm:$0xff]
        %v9275 = vld [vmem:[%s437 + $0x2120] sm:$0xff]
        %v9276 = vld [vmem:[%s437 + $0x2128] sm:$0xff]
        %v9277 = vld [vmem:[%s437 + $0x2130] sm:$0xff]
        %v9278 = vld [vmem:[%s437 + $0x2138] sm:$0xff]
        %v9279 = vld [vmem:[%s437 + $0x2140] sm:$0xff]
        %v9280 = vld [vmem:[%s437 + $0x2148] sm:$0xff]
        %v9281 = vld [vmem:[%s437 + $0x2150] sm:$0xff]
        %v9282 = vld [vmem:[%s437 + $0x2158] sm:$0xff]
        %v9283 = vld [vmem:[%s437 + $0x2160] sm:$0xff]
        %v9284 = vld [vmem:[%s437 + $0x2168] sm:$0xff]
        %v9285 = vld [vmem:[%s437 + $0x2170] sm:$0xff]
        %v9286 = vld [vmem:[%s437 + $0x2178] sm:$0xff]
        %v9287 = vld [vmem:[%s437 + $0x2180] sm:$0xff]
        %v9288 = vld [vmem:[%s437 + $0x2188] sm:$0xff]
        %v9289 = vld [vmem:[%s437 + $0x2190] sm:$0xff]
        %v9290 = vld [vmem:[%s437 + $0x2198] sm:$0xff]
        %v9291 = vld [vmem:[%s437 + $0x21a0] sm:$0xff]
        %v9292 = vld [vmem:[%s437 + $0x21a8] sm:$0xff]
        %v9293 = vld [vmem:[%s437 + $0x21b0] sm:$0xff]
        %v9294 = vld [vmem:[%s437 + $0x21b8] sm:$0xff]
        %v9295 = vld [vmem:[%s437 + $0x21c0] sm:$0xff]
        %v9296 = vld [vmem:[%s437 + $0x21c8] sm:$0xff]
        %v9297 = vld [vmem:[%s437 + $0x21d0] sm:$0xff]
        %v9298 = vld [vmem:[%s437 + $0x21d8] sm:$0xff]
        %v9299 = vld [vmem:[%s437 + $0x21e0] sm:$0xff]
        %v9300 = vld [vmem:[%s437 + $0x21e8] sm:$0xff]
        %v9301 = vld [vmem:[%s437 + $0x21f0] sm:$0xff]
        %v9302 = vld [vmem:[%s437 + $0x21f8] sm:$0xff]
        %v9303 = vld [vmem:[%s437 + $0x2200] sm:$0xff]
        %v9304 = vld [vmem:[%s437 + $0x2208] sm:$0xff]
        %v9305 = vld [vmem:[%s437 + $0x2210] sm:$0xff]
        %v9306 = vld [vmem:[%s437 + $0x2218] sm:$0xff]
        %v9307 = vld [vmem:[%s437 + $0x2220] sm:$0xff]
        %v9308 = vld [vmem:[%s437 + $0x2228] sm:$0xff]
        %v9309 = vld [vmem:[%s437 + $0x2230] sm:$0xff]
        %v9310 = vld [vmem:[%s437 + $0x2238] sm:$0xff]
        %v9311 = vld [vmem:[%s437 + $0x2240] sm:$0xff]
        %v9312 = vld [vmem:[%s437 + $0x2248] sm:$0xff]
        %v9313 = vld [vmem:[%s437 + $0x2250] sm:$0xff]
        %v9314 = vld [vmem:[%s437 + $0x2258] sm:$0xff]
        %v9315 = vld [vmem:[%s437 + $0x2260] sm:$0xff]
        %v9316 = vld [vmem:[%s437 + $0x2268] sm:$0xff]
        %v9317 = vld [vmem:[%s437 + $0x2270] sm:$0xff]
        %v9318 = vld [vmem:[%s437 + $0x2278] sm:$0xff]
        %v9319 = vld [vmem:[%s437 + $0x2280] sm:$0xff]
        %v9320 = vld [vmem:[%s437 + $0x2288] sm:$0xff]
        %v9321 = vld [vmem:[%s437 + $0x2290] sm:$0xff]
        %v9322 = vld [vmem:[%s437 + $0x2298] sm:$0xff]
        %v9323 = vld [vmem:[%s437 + $0x22a0] sm:$0xff]
        %v9324 = vld [vmem:[%s437 + $0x22a8] sm:$0xff]
        %v9325 = vld [vmem:[%s437 + $0x22b0] sm:$0xff]
        %v9326 = vld [vmem:[%s437 + $0x22b8] sm:$0xff]
        %v9327 = vld [vmem:[%s437 + $0x22c0] sm:$0xff]
        %v9328 = vld [vmem:[%s437 + $0x22c8] sm:$0xff]
        %v9329 = vld [vmem:[%s437 + $0x22d0] sm:$0xff]
        %v9330 = vld [vmem:[%s437 + $0x22d8] sm:$0xff]
        %v9331 = vld [vmem:[%s437 + $0x22e0] sm:$0xff]
        %v9332 = vld [vmem:[%s437 + $0x22e8] sm:$0xff]
        %v9333 = vld [vmem:[%s437 + $0x22f0] sm:$0xff]
        %v9334 = vld [vmem:[%s437 + $0x22f8] sm:$0xff]
        %v9335 = vld [vmem:[%s437 + $0x2300] sm:$0xff]
        %v9336 = vld [vmem:[%s437 + $0x2308] sm:$0xff]
        %v9337 = vld [vmem:[%s437 + $0x2310] sm:$0xff]
        %v9338 = vld [vmem:[%s437 + $0x2318] sm:$0xff]
        %v9339 = vld [vmem:[%s437 + $0x2320] sm:$0xff]
        %v9340 = vld [vmem:[%s437 + $0x2328] sm:$0xff]
        %v9341 = vld [vmem:[%s437 + $0x2330] sm:$0xff]
        %v9342 = vld [vmem:[%s437 + $0x2338] sm:$0xff]
        %v9343 = vld [vmem:[%s437 + $0x2340] sm:$0xff]
        %v9344 = vld [vmem:[%s437 + $0x2348] sm:$0xff]
        %v9345 = vld [vmem:[%s437 + $0x2350] sm:$0xff]
        %v9346 = vld [vmem:[%s437 + $0x2358] sm:$0xff]
        %v9347 = vld [vmem:[%s437 + $0x2360] sm:$0xff]
        %v9348 = vld [vmem:[%s437 + $0x2368] sm:$0xff]
        %v9349 = vld [vmem:[%s437 + $0x2370] sm:$0xff]
        %v9350 = vld [vmem:[%s437 + $0x2378] sm:$0xff]
        %v9351 = vld [vmem:[%s437 + $0x2380] sm:$0xff]
        %v9352 = vld [vmem:[%s437 + $0x2388] sm:$0xff]
        %v9353 = vld [vmem:[%s437 + $0x2390] sm:$0xff]
        %v9354 = vld [vmem:[%s437 + $0x2398] sm:$0xff]
        %v9355 = vld [vmem:[%s437 + $0x23a0] sm:$0xff]
        %v9356 = vld [vmem:[%s437 + $0x23a8] sm:$0xff]
        %v9357 = vld [vmem:[%s437 + $0x23b0] sm:$0xff]
        %v9358 = vld [vmem:[%s437 + $0x23b8] sm:$0xff]
        %v9359 = vld [vmem:[%s437 + $0x23c0] sm:$0xff]
        %v9360 = vld [vmem:[%s437 + $0x23c8] sm:$0xff]
        %v9361 = vld [vmem:[%s437 + $0x23d0] sm:$0xff]
        %v9362 = vld [vmem:[%s437 + $0x23d8] sm:$0xff]
        %v9363 = vld [vmem:[%s437 + $0x23e0] sm:$0xff]
        %v9364 = vld [vmem:[%s437 + $0x23e8] sm:$0xff]
        %v9365 = vld [vmem:[%s437 + $0x23f0] sm:$0xff]
        %v9366 = vld [vmem:[%s437 + $0x23f8] sm:$0xff]
        %v9367 = vld [vmem:[%s437 + $0x2400] sm:$0xff]
        %v9368 = vld [vmem:[%s437 + $0x2408] sm:$0xff]
        %v9369 = vld [vmem:[%s437 + $0x2410] sm:$0xff]
        %v9370 = vld [vmem:[%s437 + $0x2418] sm:$0xff]
        %v9371 = vld [vmem:[%s437 + $0x2420] sm:$0xff]
        %v9372 = vld [vmem:[%s437 + $0x2428] sm:$0xff]
        %v9373 = vld [vmem:[%s437 + $0x2430] sm:$0xff]
        %v9374 = vld [vmem:[%s437 + $0x2438] sm:$0xff]
        %v9375 = vld [vmem:[%s437 + $0x2440] sm:$0xff]
        %v9376 = vld [vmem:[%s437 + $0x2448] sm:$0xff]
        %v9377 = vld [vmem:[%s437 + $0x2450] sm:$0xff]
        %v9378 = vld [vmem:[%s437 + $0x2458] sm:$0xff]
        %v9379 = vld [vmem:[%s437 + $0x2460] sm:$0xff]
        %v9380 = vld [vmem:[%s437 + $0x2468] sm:$0xff]
        %v9381 = vld [vmem:[%s437 + $0x2470] sm:$0xff]
        %v9382 = vld [vmem:[%s437 + $0x2478] sm:$0xff]
        %v9383 = vld [vmem:[%s437 + $0x2480] sm:$0xff]
        %v9384 = vld [vmem:[%s437 + $0x2488] sm:$0xff]
        %v9385 = vld [vmem:[%s437 + $0x2490] sm:$0xff]
        %v9386 = vld [vmem:[%s437 + $0x2498] sm:$0xff]
        %v9387 = vld [vmem:[%s437 + $0x24a0] sm:$0xff]
        %v9388 = vld [vmem:[%s437 + $0x24a8] sm:$0xff]
        %v9389 = vld [vmem:[%s437 + $0x24b0] sm:$0xff]
        %v9390 = vld [vmem:[%s437 + $0x24b8] sm:$0xff]
        %v9391 = vld [vmem:[%s437 + $0x24c0] sm:$0xff]
        %v9392 = vld [vmem:[%s437 + $0x24c8] sm:$0xff]
        %v9393 = vld [vmem:[%s437 + $0x24d0] sm:$0xff]
        %v9394 = vld [vmem:[%s437 + $0x24d8] sm:$0xff]
        %v9395 = vld [vmem:[%s437 + $0x24e0] sm:$0xff]
        %v9396 = vld [vmem:[%s437 + $0x24e8] sm:$0xff]
        %v9397 = vld [vmem:[%s437 + $0x24f0] sm:$0xff]
        %v9398 = vld [vmem:[%s437 + $0x24f8] sm:$0xff]
        %v9399 = vld [vmem:[%s437 + $0x2500] sm:$0xff]
        %v9400 = vld [vmem:[%s437 + $0x2508] sm:$0xff]
        %v9401 = vld [vmem:[%s437 + $0x2510] sm:$0xff]
        %v9402 = vld [vmem:[%s437 + $0x2518] sm:$0xff]
        %v9403 = vld [vmem:[%s437 + $0x2520] sm:$0xff]
        %v9404 = vld [vmem:[%s437 + $0x2528] sm:$0xff]
        %v9405 = vld [vmem:[%s437 + $0x2530] sm:$0xff]
        %v9406 = vld [vmem:[%s437 + $0x2538] sm:$0xff]
        %v9407 = vld [vmem:[%s437 + $0x2540] sm:$0xff]
        %v9408 = vld [vmem:[%s437 + $0x2548] sm:$0xff]
        %v9409 = vld [vmem:[%s437 + $0x2550] sm:$0xff]
        %v9410 = vld [vmem:[%s437 + $0x2558] sm:$0xff]
        %v9411 = vld [vmem:[%s437 + $0x2560] sm:$0xff]
        %v9412 = vld [vmem:[%s437 + $0x2568] sm:$0xff]
        %v9413 = vld [vmem:[%s437 + $0x2570] sm:$0xff]
        %v9414 = vld [vmem:[%s437 + $0x2578] sm:$0xff]
        %v9415 = vld [vmem:[%s437 + $0x2580] sm:$0xff]
        %v9416 = vld [vmem:[%s437 + $0x2588] sm:$0xff]
        %v9417 = vld [vmem:[%s437 + $0x2590] sm:$0xff]
        %v9418 = vld [vmem:[%s437 + $0x2598] sm:$0xff]
        %v9419 = vld [vmem:[%s437 + $0x25a0] sm:$0xff]
        %v9420 = vld [vmem:[%s437 + $0x25a8] sm:$0xff]
        %v9421 = vld [vmem:[%s437 + $0x25b0] sm:$0xff]
        %v9422 = vld [vmem:[%s437 + $0x25b8] sm:$0xff]
        %v9423 = vld [vmem:[%s437 + $0x25c0] sm:$0xff]
        %v9424 = vld [vmem:[%s437 + $0x25c8] sm:$0xff]
        %v9425 = vld [vmem:[%s437 + $0x25d0] sm:$0xff]
        %v9426 = vld [vmem:[%s437 + $0x25d8] sm:$0xff]
        %v9427 = vld [vmem:[%s437 + $0x25e0] sm:$0xff]
        %v9428 = vld [vmem:[%s437 + $0x25e8] sm:$0xff]
        %v9429 = vld [vmem:[%s437 + $0x25f0] sm:$0xff]
        %v9430 = vld [vmem:[%s437 + $0x25f8] sm:$0xff]
        %v9431 = vld [vmem:[%s437 + $0x2600] sm:$0xff]
        %v9432 = vld [vmem:[%s437 + $0x2608] sm:$0xff]
        %v9433 = vld [vmem:[%s437 + $0x2610] sm:$0xff]
        %v9434 = vld [vmem:[%s437 + $0x2618] sm:$0xff]
        %v9435 = vld [vmem:[%s437 + $0x2620] sm:$0xff]
        %v9436 = vld [vmem:[%s437 + $0x2628] sm:$0xff]
        %v9437 = vld [vmem:[%s437 + $0x2630] sm:$0xff]
        %v9438 = vld [vmem:[%s437 + $0x2638] sm:$0xff]
        %v9439 = vld [vmem:[%s437 + $0x2640] sm:$0xff]
        %v9440 = vld [vmem:[%s437 + $0x2648] sm:$0xff]
        %v9441 = vld [vmem:[%s437 + $0x2650] sm:$0xff]
        %v9442 = vld [vmem:[%s437 + $0x2658] sm:$0xff]
        %v9443 = vld [vmem:[%s437 + $0x2660] sm:$0xff]
        %v9444 = vld [vmem:[%s437 + $0x2668] sm:$0xff]
        %v9445 = vld [vmem:[%s437 + $0x2670] sm:$0xff]
        %v9446 = vld [vmem:[%s437 + $0x2678] sm:$0xff]
        %v9447 = vld [vmem:[%s437 + $0x2680] sm:$0xff]
        %v9448 = vld [vmem:[%s437 + $0x2688] sm:$0xff]
        %v9449 = vld [vmem:[%s437 + $0x2690] sm:$0xff]
        %v9450 = vld [vmem:[%s437 + $0x2698] sm:$0xff]
        %v9451 = vld [vmem:[%s437 + $0x26a0] sm:$0xff]
        %v9452 = vld [vmem:[%s437 + $0x26a8] sm:$0xff]
        %v9453 = vld [vmem:[%s437 + $0x26b0] sm:$0xff]
        %v9454 = vld [vmem:[%s437 + $0x26b8] sm:$0xff]
        %v9455 = vld [vmem:[%s437 + $0x26c0] sm:$0xff]
        %v9456 = vld [vmem:[%s437 + $0x26c8] sm:$0xff]
        %v9457 = vld [vmem:[%s437 + $0x26d0] sm:$0xff]
        %v9458 = vld [vmem:[%s437 + $0x26d8] sm:$0xff]
        %v9459 = vld [vmem:[%s437 + $0x26e0] sm:$0xff]
        %v9460 = vld [vmem:[%s437 + $0x26e8] sm:$0xff]
        %v9461 = vld [vmem:[%s437 + $0x26f0] sm:$0xff]
        %v9462 = vld [vmem:[%s437 + $0x26f8] sm:$0xff]
        %v9463 = vld [vmem:[%s437 + $0x2700] sm:$0xff]
        %v9464 = vld [vmem:[%s437 + $0x2708] sm:$0xff]
        %v9465 = vld [vmem:[%s437 + $0x2710] sm:$0xff]
        %v9466 = vld [vmem:[%s437 + $0x2718] sm:$0xff]
        %v9467 = vld [vmem:[%s437 + $0x2720] sm:$0xff]
        %v9468 = vld [vmem:[%s437 + $0x2728] sm:$0xff]
        %v9469 = vld [vmem:[%s437 + $0x2730] sm:$0xff]
        %v9470 = vld [vmem:[%s437 + $0x2738] sm:$0xff]
        %v9471 = vld [vmem:[%s437 + $0x2740] sm:$0xff]
        %v9472 = vld [vmem:[%s437 + $0x2748] sm:$0xff]
        %v9473 = vld [vmem:[%s437 + $0x2750] sm:$0xff]
        %v9474 = vld [vmem:[%s437 + $0x2758] sm:$0xff]
        %v9475 = vld [vmem:[%s437 + $0x2760] sm:$0xff]
        %v9476 = vld [vmem:[%s437 + $0x2768] sm:$0xff]
        %v9477 = vld [vmem:[%s437 + $0x2770] sm:$0xff]
        %v9478 = vld [vmem:[%s437 + $0x2778] sm:$0xff]
        %v9479 = vld [vmem:[%s437 + $0x2780] sm:$0xff]
        %v9480 = vld [vmem:[%s437 + $0x2788] sm:$0xff]
        %v9481 = vld [vmem:[%s437 + $0x2790] sm:$0xff]
        %v9482 = vld [vmem:[%s437 + $0x2798] sm:$0xff]
        %v9483 = vld [vmem:[%s437 + $0x27a0] sm:$0xff]
        %v9484 = vld [vmem:[%s437 + $0x27a8] sm:$0xff]
        %v9485 = vld [vmem:[%s437 + $0x27b0] sm:$0xff]
        %v9486 = vld [vmem:[%s437 + $0x27b8] sm:$0xff]
        %v9487 = vld [vmem:[%s437 + $0x27c0] sm:$0xff]
        %v9488 = vld [vmem:[%s437 + $0x27c8] sm:$0xff]
        %v9489 = vld [vmem:[%s437 + $0x27d0] sm:$0xff]
        %v9490 = vld [vmem:[%s437 + $0x27d8] sm:$0xff]
        %v9491 = vld [vmem:[%s437 + $0x27e0] sm:$0xff]
        %v9492 = vld [vmem:[%s437 + $0x27e8] sm:$0xff]
        %v9493 = vld [vmem:[%s437 + $0x27f0] sm:$0xff]
        %v9494 = vld [vmem:[%s437 + $0x27f8] sm:$0xff]
        %v9495 = vld [vmem:[%s437 + $0x2800] sm:$0xff]
        %v9496 = vld [vmem:[%s437 + $0x2808] sm:$0xff]
        %v9497 = vld [vmem:[%s437 + $0x2810] sm:$0xff]
        %v9498 = vld [vmem:[%s437 + $0x2818] sm:$0xff]
        %v9499 = vld [vmem:[%s437 + $0x2820] sm:$0xff]
        %v9500 = vld [vmem:[%s437 + $0x2828] sm:$0xff]
        %v9501 = vld [vmem:[%s437 + $0x2830] sm:$0xff]
        %v9502 = vld [vmem:[%s437 + $0x2838] sm:$0xff]
        %v9503 = vld [vmem:[%s437 + $0x2840] sm:$0xff]
        %v9504 = vld [vmem:[%s437 + $0x2848] sm:$0xff]
        %v9505 = vld [vmem:[%s437 + $0x2850] sm:$0xff]
        %v9506 = vld [vmem:[%s437 + $0x2858] sm:$0xff]
        %v9507 = vld [vmem:[%s437 + $0x2860] sm:$0xff]
        %v9508 = vld [vmem:[%s437 + $0x2868] sm:$0xff]
        %v9509 = vld [vmem:[%s437 + $0x2870] sm:$0xff]
        %v9510 = vld [vmem:[%s437 + $0x2878] sm:$0xff]
        %v9511 = vld [vmem:[%s437 + $0x2880] sm:$0xff]
        %v9512 = vld [vmem:[%s437 + $0x2888] sm:$0xff]
        %v9513 = vld [vmem:[%s437 + $0x2890] sm:$0xff]
        %v9514 = vld [vmem:[%s437 + $0x2898] sm:$0xff]
        %v9515 = vld [vmem:[%s437 + $0x28a0] sm:$0xff]
        %v9516 = vld [vmem:[%s437 + $0x28a8] sm:$0xff]
        %v9517 = vld [vmem:[%s437 + $0x28b0] sm:$0xff]
        %v9518 = vld [vmem:[%s437 + $0x28b8] sm:$0xff]
        %v9519 = vld [vmem:[%s437 + $0x28c0] sm:$0xff]
        %v9520 = vld [vmem:[%s437 + $0x28c8] sm:$0xff]
        %v9521 = vld [vmem:[%s437 + $0x28d0] sm:$0xff]
        %v9522 = vld [vmem:[%s437 + $0x28d8] sm:$0xff]
        %v9523 = vld [vmem:[%s437 + $0x28e0] sm:$0xff]
        %v9524 = vld [vmem:[%s437 + $0x28e8] sm:$0xff]
        %v9525 = vld [vmem:[%s437 + $0x28f0] sm:$0xff]
        %v9526 = vld [vmem:[%s437 + $0x28f8] sm:$0xff]
        %v9527 = vld [vmem:[%s437 + $0x2900] sm:$0xff]
        %v9528 = vld [vmem:[%s437 + $0x2908] sm:$0xff]
        %v9529 = vld [vmem:[%s437 + $0x2910] sm:$0xff]
        %v9530 = vld [vmem:[%s437 + $0x2918] sm:$0xff]
        %v9531 = vld [vmem:[%s437 + $0x2920] sm:$0xff]
        %v9532 = vld [vmem:[%s437 + $0x2928] sm:$0xff]
        %v9533 = vld [vmem:[%s437 + $0x2930] sm:$0xff]
        %v9534 = vld [vmem:[%s437 + $0x2938] sm:$0xff]
        %v9535 = vld [vmem:[%s437 + $0x2940] sm:$0xff]
        %v9536 = vld [vmem:[%s437 + $0x2948] sm:$0xff]
        %v9537 = vld [vmem:[%s437 + $0x2950] sm:$0xff]
        %v9538 = vld [vmem:[%s437 + $0x2958] sm:$0xff]
        %v9539 = vld [vmem:[%s437 + $0x2960] sm:$0xff]
        %v9540 = vld [vmem:[%s437 + $0x2968] sm:$0xff]
        %v9541 = vld [vmem:[%s437 + $0x2970] sm:$0xff]
        %v9542 = vld [vmem:[%s437 + $0x2978] sm:$0xff]
        %v9543 = vld [vmem:[%s437 + $0x2980] sm:$0xff]
        %v9544 = vld [vmem:[%s437 + $0x2988] sm:$0xff]
        %v9545 = vld [vmem:[%s437 + $0x2990] sm:$0xff]
        %v9546 = vld [vmem:[%s437 + $0x2998] sm:$0xff]
        %v9547 = vld [vmem:[%s437 + $0x29a0] sm:$0xff]
        %v9548 = vld [vmem:[%s437 + $0x29a8] sm:$0xff]
        %v9549 = vld [vmem:[%s437 + $0x29b0] sm:$0xff]
        %v9550 = vld [vmem:[%s437 + $0x29b8] sm:$0xff]
        %v9551 = vld [vmem:[%s437 + $0x29c0] sm:$0xff]
        %v9552 = vld [vmem:[%s437 + $0x29c8] sm:$0xff]
        %v9553 = vld [vmem:[%s437 + $0x29d0] sm:$0xff]
        %v9554 = vld [vmem:[%s437 + $0x29d8] sm:$0xff]
        %v9555 = vld [vmem:[%s437 + $0x29e0] sm:$0xff]
        %v9556 = vld [vmem:[%s437 + $0x29e8] sm:$0xff]
        %v9557 = vld [vmem:[%s437 + $0x29f0] sm:$0xff]
        %v9558 = vld [vmem:[%s437 + $0x29f8] sm:$0xff]
        %v9559 = vld [vmem:[%s437 + $0x2a00] sm:$0xff]
        %v9560 = vld [vmem:[%s437 + $0x2a08] sm:$0xff]
        %v9561 = vld [vmem:[%s437 + $0x2a10] sm:$0xff]
        %v9562 = vld [vmem:[%s437 + $0x2a18] sm:$0xff]
        %v9563 = vld [vmem:[%s437 + $0x2a20] sm:$0xff]
        %v9564 = vld [vmem:[%s437 + $0x2a28] sm:$0xff]
        %v9565 = vld [vmem:[%s437 + $0x2a30] sm:$0xff]
        %v9566 = vld [vmem:[%s437 + $0x2a38] sm:$0xff]
        %v9567 = vld [vmem:[%s437 + $0x2a40] sm:$0xff]
        %v9568 = vld [vmem:[%s437 + $0x2a48] sm:$0xff]
        %v9569 = vld [vmem:[%s437 + $0x2a50] sm:$0xff]
        %v9570 = vld [vmem:[%s437 + $0x2a58] sm:$0xff]
        %v9571 = vld [vmem:[%s437 + $0x2a60] sm:$0xff]
        %v9572 = vld [vmem:[%s437 + $0x2a68] sm:$0xff]
        %v9573 = vld [vmem:[%s437 + $0x2a70] sm:$0xff]
        %v9574 = vld [vmem:[%s437 + $0x2a78] sm:$0xff]
        %v9575 = vld [vmem:[%s437 + $0x2a80] sm:$0xff]
        %v9576 = vld [vmem:[%s437 + $0x2a88] sm:$0xff]
        %v9577 = vld [vmem:[%s437 + $0x2a90] sm:$0xff]
        %v9578 = vld [vmem:[%s437 + $0x2a98] sm:$0xff]
        %v9579 = vld [vmem:[%s437 + $0x2aa0] sm:$0xff]
        %v9580 = vld [vmem:[%s437 + $0x2aa8] sm:$0xff]
        %v9581 = vld [vmem:[%s437 + $0x2ab0] sm:$0xff]
        %v9582 = vld [vmem:[%s437 + $0x2ab8] sm:$0xff]
        %v9583 = vld [vmem:[%s437 + $0x2ac0] sm:$0xff]
        %v9584 = vld [vmem:[%s437 + $0x2ac8] sm:$0xff]
        %v9585 = vld [vmem:[%s437 + $0x2ad0] sm:$0xff]
        %v9586 = vld [vmem:[%s437 + $0x2ad8] sm:$0xff]
        %v9587 = vld [vmem:[%s437 + $0x2ae0] sm:$0xff]
        %v9588 = vld [vmem:[%s437 + $0x2ae8] sm:$0xff]
        %v9589 = vld [vmem:[%s437 + $0x2af0] sm:$0xff]
        %v9590 = vld [vmem:[%s437 + $0x2af8] sm:$0xff]
        %v9591 = vld [vmem:[%s437 + $0x2b00] sm:$0xff]
        %v9592 = vld [vmem:[%s437 + $0x2b08] sm:$0xff]
        %v9593 = vld [vmem:[%s437 + $0x2b10] sm:$0xff]
        %v9594 = vld [vmem:[%s437 + $0x2b18] sm:$0xff]
        %v9595 = vld [vmem:[%s437 + $0x2b20] sm:$0xff]
        %v9596 = vld [vmem:[%s437 + $0x2b28] sm:$0xff]
        %v9597 = vld [vmem:[%s437 + $0x2b30] sm:$0xff]
        %v9598 = vld [vmem:[%s437 + $0x2b38] sm:$0xff]
        %v9599 = vld [vmem:[%s437 + $0x2b40] sm:$0xff]
        %v9600 = vld [vmem:[%s437 + $0x2b48] sm:$0xff]
        %v9601 = vld [vmem:[%s437 + $0x2b50] sm:$0xff]
        %v9602 = vld [vmem:[%s437 + $0x2b58] sm:$0xff]
        %v9603 = vld [vmem:[%s437 + $0x2b60] sm:$0xff]
        %v9604 = vld [vmem:[%s437 + $0x2b68] sm:$0xff]
        %v9605 = vld [vmem:[%s437 + $0x2b70] sm:$0xff]
        %v9606 = vld [vmem:[%s437 + $0x2b78] sm:$0xff]
        %v9607 = vld [vmem:[%s437 + $0x2b80] sm:$0xff]
        %v9608 = vld [vmem:[%s437 + $0x2b88] sm:$0xff]
        %v9609 = vld [vmem:[%s437 + $0x2b90] sm:$0xff]
        %v9610 = vld [vmem:[%s437 + $0x2b98] sm:$0xff]
        %v9611 = vld [vmem:[%s437 + $0x2ba0] sm:$0xff]
        %v9612 = vld [vmem:[%s437 + $0x2ba8] sm:$0xff]
        %v9613 = vld [vmem:[%s437 + $0x2bb0] sm:$0xff]
        %v9614 = vld [vmem:[%s437 + $0x2bb8] sm:$0xff]
        %v9615 = vld [vmem:[%s437 + $0x2bc0] sm:$0xff]
        %v9616 = vld [vmem:[%s437 + $0x2bc8] sm:$0xff]
        %v9617 = vld [vmem:[%s437 + $0x2bd0] sm:$0xff]
        %v9618 = vld [vmem:[%s437 + $0x2bd8] sm:$0xff]
        %v9619 = vld [vmem:[%s437 + $0x2be0] sm:$0xff]
        %v9620 = vld [vmem:[%s437 + $0x2be8] sm:$0xff]
        %v9621 = vld [vmem:[%s437 + $0x2bf0] sm:$0xff]
        %v9622 = vld [vmem:[%s437 + $0x2bf8] sm:$0xff]
        %v9623 = vld [vmem:[%s437 + $0x2c00] sm:$0xff]
        %v9624 = vld [vmem:[%s437 + $0x2c08] sm:$0xff]
        %v9625 = vld [vmem:[%s437 + $0x2c10] sm:$0xff]
        %v9626 = vld [vmem:[%s437 + $0x2c18] sm:$0xff]
        %v9627 = vld [vmem:[%s437 + $0x2c20] sm:$0xff]
        %v9628 = vld [vmem:[%s437 + $0x2c28] sm:$0xff]
        %v9629 = vld [vmem:[%s437 + $0x2c30] sm:$0xff]
        %v9630 = vld [vmem:[%s437 + $0x2c38] sm:$0xff]
        %v9631 = vld [vmem:[%s437 + $0x2c40] sm:$0xff]
        %v9632 = vld [vmem:[%s437 + $0x2c48] sm:$0xff]
        %v9633 = vld [vmem:[%s437 + $0x2c50] sm:$0xff]
        %v9634 = vld [vmem:[%s437 + $0x2c58] sm:$0xff]
        %v9635 = vld [vmem:[%s437 + $0x2c60] sm:$0xff]
        %v9636 = vld [vmem:[%s437 + $0x2c68] sm:$0xff]
        %v9637 = vld [vmem:[%s437 + $0x2c70] sm:$0xff]
        %v9638 = vld [vmem:[%s437 + $0x2c78] sm:$0xff]
        %v9639 = vld [vmem:[%s437 + $0x2c80] sm:$0xff]
        %v9640 = vld [vmem:[%s437 + $0x2c88] sm:$0xff]
        %v9641 = vld [vmem:[%s437 + $0x2c90] sm:$0xff]
        %v9642 = vld [vmem:[%s437 + $0x2c98] sm:$0xff]
        %v9643 = vld [vmem:[%s437 + $0x2ca0] sm:$0xff]
        %v9644 = vld [vmem:[%s437 + $0x2ca8] sm:$0xff]
        %v9645 = vld [vmem:[%s437 + $0x2cb0] sm:$0xff]
        %v9646 = vld [vmem:[%s437 + $0x2cb8] sm:$0xff]
        %v9647 = vld [vmem:[%s437 + $0x2cc0] sm:$0xff]
        %v9648 = vld [vmem:[%s437 + $0x2cc8] sm:$0xff]
        %v9649 = vld [vmem:[%s437 + $0x2cd0] sm:$0xff]
        %v9650 = vld [vmem:[%s437 + $0x2cd8] sm:$0xff]
        %v9651 = vld [vmem:[%s437 + $0x2ce0] sm:$0xff]
        %v9652 = vld [vmem:[%s437 + $0x2ce8] sm:$0xff]
        %v9653 = vld [vmem:[%s437 + $0x2cf0] sm:$0xff]
        %v9654 = vld [vmem:[%s437 + $0x2cf8] sm:$0xff]
        %v9655 = vld [vmem:[%s437 + $0x2d00] sm:$0xff]
        %v9656 = vld [vmem:[%s437 + $0x2d08] sm:$0xff]
        %v9657 = vld [vmem:[%s437 + $0x2d10] sm:$0xff]
        %v9658 = vld [vmem:[%s437 + $0x2d18] sm:$0xff]
        %v9659 = vld [vmem:[%s437 + $0x2d20] sm:$0xff]
        %v9660 = vld [vmem:[%s437 + $0x2d28] sm:$0xff]
        %v9661 = vld [vmem:[%s437 + $0x2d30] sm:$0xff]
        %v9662 = vld [vmem:[%s437 + $0x2d38] sm:$0xff]
        %v9663 = vld [vmem:[%s437 + $0x2d40] sm:$0xff]
        %v9664 = vld [vmem:[%s437 + $0x2d48] sm:$0xff]
        %v9665 = vld [vmem:[%s437 + $0x2d50] sm:$0xff]
        %v9666 = vld [vmem:[%s437 + $0x2d58] sm:$0xff]
        %v9667 = vld [vmem:[%s437 + $0x2d60] sm:$0xff]
        %v9668 = vld [vmem:[%s437 + $0x2d68] sm:$0xff]
        %v9669 = vld [vmem:[%s437 + $0x2d70] sm:$0xff]
        %v9670 = vld [vmem:[%s437 + $0x2d78] sm:$0xff]
        %v9671 = vld [vmem:[%s437 + $0x2d80] sm:$0xff]
        %v9672 = vld [vmem:[%s437 + $0x2d88] sm:$0xff]
        %v9673 = vld [vmem:[%s437 + $0x2d90] sm:$0xff]
        %v9674 = vld [vmem:[%s437 + $0x2d98] sm:$0xff]
        %v9675 = vld [vmem:[%s437 + $0x2da0] sm:$0xff]
        %v9676 = vld [vmem:[%s437 + $0x2da8] sm:$0xff]
        %v9677 = vld [vmem:[%s437 + $0x2db0] sm:$0xff]
        %v9678 = vld [vmem:[%s437 + $0x2db8] sm:$0xff]
        %v9679 = vld [vmem:[%s437 + $0x2dc0] sm:$0xff]
        %v9680 = vld [vmem:[%s437 + $0x2dc8] sm:$0xff]
        %v9681 = vld [vmem:[%s437 + $0x2dd0] sm:$0xff]
        %v9682 = vld [vmem:[%s437 + $0x2dd8] sm:$0xff]
        %v9683 = vld [vmem:[%s437 + $0x2de0] sm:$0xff]
        %v9684 = vld [vmem:[%s437 + $0x2de8] sm:$0xff]
        %v9685 = vld [vmem:[%s437 + $0x2df0] sm:$0xff]
        %v9686 = vld [vmem:[%s437 + $0x2df8] sm:$0xff]
        %v9687 = vld [vmem:[%s437 + $0x2e00] sm:$0xff]
        %v9688 = vld [vmem:[%s437 + $0x2e08] sm:$0xff]
        %v9689 = vld [vmem:[%s437 + $0x2e10] sm:$0xff]
        %v9690 = vld [vmem:[%s437 + $0x2e18] sm:$0xff]
        %v9691 = vld [vmem:[%s437 + $0x2e20] sm:$0xff]
        %v9692 = vld [vmem:[%s437 + $0x2e28] sm:$0xff]
        %v9693 = vld [vmem:[%s437 + $0x2e30] sm:$0xff]
        %v9694 = vld [vmem:[%s437 + $0x2e38] sm:$0xff]
        %v9695 = vld [vmem:[%s437 + $0x2e40] sm:$0xff]
        %v9696 = vld [vmem:[%s437 + $0x2e48] sm:$0xff]
        %v9697 = vld [vmem:[%s437 + $0x2e50] sm:$0xff]
        %v9698 = vld [vmem:[%s437 + $0x2e58] sm:$0xff]
        %v9699 = vld [vmem:[%s437 + $0x2e60] sm:$0xff]
        %v9700 = vld [vmem:[%s437 + $0x2e68] sm:$0xff]
        %v9701 = vld [vmem:[%s437 + $0x2e70] sm:$0xff]
        %v9702 = vld [vmem:[%s437 + $0x2e78] sm:$0xff]
        %v9703 = vld [vmem:[%s437 + $0x2e80] sm:$0xff]
        %v9704 = vld [vmem:[%s437 + $0x2e88] sm:$0xff]
        %v9705 = vld [vmem:[%s437 + $0x2e90] sm:$0xff]
        %v9706 = vld [vmem:[%s437 + $0x2e98] sm:$0xff]
        %v9707 = vld [vmem:[%s437 + $0x2ea0] sm:$0xff]
        %v9708 = vld [vmem:[%s437 + $0x2ea8] sm:$0xff]
        %v9709 = vld [vmem:[%s437 + $0x2eb0] sm:$0xff]
        %v9710 = vld [vmem:[%s437 + $0x2eb8] sm:$0xff]
        %v9711 = vld [vmem:[%s437 + $0x2ec0] sm:$0xff]
        %v9712 = vld [vmem:[%s437 + $0x2ec8] sm:$0xff]
        %v9713 = vld [vmem:[%s437 + $0x2ed0] sm:$0xff]
        %v9714 = vld [vmem:[%s437 + $0x2ed8] sm:$0xff]
        %v9715 = vld [vmem:[%s437 + $0x2ee0] sm:$0xff]
        %v9716 = vld [vmem:[%s437 + $0x2ee8] sm:$0xff]
        %v9717 = vld [vmem:[%s437 + $0x2ef0] sm:$0xff]
        %v9718 = vld [vmem:[%s437 + $0x2ef8] sm:$0xff]
        %v9719 = vld [vmem:[%s437 + $0x2f00] sm:$0xff]
        %v9720 = vld [vmem:[%s437 + $0x2f08] sm:$0xff]
        %v9721 = vld [vmem:[%s437 + $0x2f10] sm:$0xff]
        %v9722 = vld [vmem:[%s437 + $0x2f18] sm:$0xff]
        %v9723 = vld [vmem:[%s437 + $0x2f20] sm:$0xff]
        %v9724 = vld [vmem:[%s437 + $0x2f28] sm:$0xff]
        %v9725 = vld [vmem:[%s437 + $0x2f30] sm:$0xff]
        %v9726 = vld [vmem:[%s437 + $0x2f38] sm:$0xff]
        %v9727 = vld [vmem:[%s437 + $0x2f40] sm:$0xff]
        %v9728 = vld [vmem:[%s437 + $0x2f48] sm:$0xff]
        %v9729 = vld [vmem:[%s437 + $0x2f50] sm:$0xff]
        %v9730 = vld [vmem:[%s437 + $0x2f58] sm:$0xff]
        %v9731 = vld [vmem:[%s437 + $0x2f60] sm:$0xff]
        %v9732 = vld [vmem:[%s437 + $0x2f68] sm:$0xff]
        %v9733 = vld [vmem:[%s437 + $0x2f70] sm:$0xff]
        %v9734 = vld [vmem:[%s437 + $0x2f78] sm:$0xff]
        %v9735 = vld [vmem:[%s437 + $0x2f80] sm:$0xff]
        %v9736 = vld [vmem:[%s437 + $0x2f88] sm:$0xff]
        %v9737 = vld [vmem:[%s437 + $0x2f90] sm:$0xff]
        %v9738 = vld [vmem:[%s437 + $0x2f98] sm:$0xff]
        %v9739 = vld [vmem:[%s437 + $0x2fa0] sm:$0xff]
        %v9740 = vld [vmem:[%s437 + $0x2fa8] sm:$0xff]
        %v9741 = vld [vmem:[%s437 + $0x2fb0] sm:$0xff]
        %v9742 = vld [vmem:[%s437 + $0x2fb8] sm:$0xff]
        %v9743 = vld [vmem:[%s437 + $0x2fc0] sm:$0xff]
        %v9744 = vld [vmem:[%s437 + $0x2fc8] sm:$0xff]
        %v9745 = vld [vmem:[%s437 + $0x2fd0] sm:$0xff]
        %v9746 = vld [vmem:[%s437 + $0x2fd8] sm:$0xff]
        %v9747 = vld [vmem:[%s437 + $0x2fe0] sm:$0xff]
        %v9748 = vld [vmem:[%s437 + $0x2fe8] sm:$0xff]
        %v9749 = vld [vmem:[%s437 + $0x2ff0] sm:$0xff]
        %v9750 = vld [vmem:[%s437 + $0x2ff8] sm:$0xff]
        %v10263 = vunpack.c.l.b16 %v9239
        %v10264 = vunpack.c.h.b16 %v9239
        %v10265 = vunpack.c.l.b16 %v9240
        %v10266 = vunpack.c.h.b16 %v9240
        %v10267 = vunpack.c.l.b16 %v9241
        %v10268 = vunpack.c.h.b16 %v9241
        %v10269 = vunpack.c.l.b16 %v9242
        %v10270 = vunpack.c.h.b16 %v9242
        %v10271 = vunpack.c.l.b16 %v9243
        %v10272 = vunpack.c.h.b16 %v9243
        %v10273 = vunpack.c.l.b16 %v9244
        %v10274 = vunpack.c.h.b16 %v9244
        %v10275 = vunpack.c.l.b16 %v9245
        %v10276 = vunpack.c.h.b16 %v9245
        %v10277 = vunpack.c.l.b16 %v9246
        %v10278 = vunpack.c.h.b16 %v9246
        %v10279 = vunpack.c.l.b16 %v9247
        %v10280 = vunpack.c.h.b16 %v9247
        %v10281 = vunpack.c.l.b16 %v9248
        %v10282 = vunpack.c.h.b16 %v9248
        %v10283 = vunpack.c.l.b16 %v9249
        %v10284 = vunpack.c.h.b16 %v9249
        %v10285 = vunpack.c.l.b16 %v9250
        %v10286 = vunpack.c.h.b16 %v9250
        %v10287 = vunpack.c.l.b16 %v9251
        %v10288 = vunpack.c.h.b16 %v9251
        %v10289 = vunpack.c.l.b16 %v9252
        %v10290 = vunpack.c.h.b16 %v9252
        %v10291 = vunpack.c.l.b16 %v9253
        %v10292 = vunpack.c.h.b16 %v9253
        %v10293 = vunpack.c.l.b16 %v9254
        %v10294 = vunpack.c.h.b16 %v9254
        %v10295 = vunpack.c.l.b16 %v9255
        %v10296 = vunpack.c.h.b16 %v9255
        %v10297 = vunpack.c.l.b16 %v9256
        %v10298 = vunpack.c.h.b16 %v9256
        %v10299 = vunpack.c.l.b16 %v9257
        %v10300 = vunpack.c.h.b16 %v9257
        %v10301 = vunpack.c.l.b16 %v9258
        %v10302 = vunpack.c.h.b16 %v9258
        %v10303 = vunpack.c.l.b16 %v9259
        %v10304 = vunpack.c.h.b16 %v9259
        %v10305 = vunpack.c.l.b16 %v9260
        %v10306 = vunpack.c.h.b16 %v9260
        %v10307 = vunpack.c.l.b16 %v9261
        %v10308 = vunpack.c.h.b16 %v9261
        %v10309 = vunpack.c.l.b16 %v9262
        %v10310 = vunpack.c.h.b16 %v9262
        %v10311 = vunpack.c.l.b16 %v9263
        %v10312 = vunpack.c.h.b16 %v9263
        %v10313 = vunpack.c.l.b16 %v9264
        %v10314 = vunpack.c.h.b16 %v9264
        %v10315 = vunpack.c.l.b16 %v9265
        %v10316 = vunpack.c.h.b16 %v9265
        %v10317 = vunpack.c.l.b16 %v9266
        %v10318 = vunpack.c.h.b16 %v9266
        %v10319 = vunpack.c.l.b16 %v9267
        %v10320 = vunpack.c.h.b16 %v9267
        %v10321 = vunpack.c.l.b16 %v9268
        %v10322 = vunpack.c.h.b16 %v9268
        %v10323 = vunpack.c.l.b16 %v9269
        %v10324 = vunpack.c.h.b16 %v9269
        %v10325 = vunpack.c.l.b16 %v9270
        %v10326 = vunpack.c.h.b16 %v9270
        %v10327 = vunpack.c.l.b16 %v9271
        %v10328 = vunpack.c.h.b16 %v9271
        %v10329 = vunpack.c.l.b16 %v9272
        %v10330 = vunpack.c.h.b16 %v9272
        %v10331 = vunpack.c.l.b16 %v9273
        %v10332 = vunpack.c.h.b16 %v9273
        %v10333 = vunpack.c.l.b16 %v9274
        %v10334 = vunpack.c.h.b16 %v9274
        %v10335 = vunpack.c.l.b16 %v9275
        %v10336 = vunpack.c.h.b16 %v9275
        %v10337 = vunpack.c.l.b16 %v9276
        %v10338 = vunpack.c.h.b16 %v9276
        %v10339 = vunpack.c.l.b16 %v9277
        %v10340 = vunpack.c.h.b16 %v9277
        %v10341 = vunpack.c.l.b16 %v9278
        %v10342 = vunpack.c.h.b16 %v9278
        %v10343 = vunpack.c.l.b16 %v9279
        %v10344 = vunpack.c.h.b16 %v9279
        %v10345 = vunpack.c.l.b16 %v9280
        %v10346 = vunpack.c.h.b16 %v9280
        %v10347 = vunpack.c.l.b16 %v9281
        %v10348 = vunpack.c.h.b16 %v9281
        %v10349 = vunpack.c.l.b16 %v9282
        %v10350 = vunpack.c.h.b16 %v9282
        %v10351 = vunpack.c.l.b16 %v9283
        %v10352 = vunpack.c.h.b16 %v9283
        %v10353 = vunpack.c.l.b16 %v9284
        %v10354 = vunpack.c.h.b16 %v9284
        %v10355 = vunpack.c.l.b16 %v9285
        %v10356 = vunpack.c.h.b16 %v9285
        %v10357 = vunpack.c.l.b16 %v9286
        %v10358 = vunpack.c.h.b16 %v9286
        %v10359 = vunpack.c.l.b16 %v9287
        %v10360 = vunpack.c.h.b16 %v9287
        %v10361 = vunpack.c.l.b16 %v9288
        %v10362 = vunpack.c.h.b16 %v9288
        %v10363 = vunpack.c.l.b16 %v9289
        %v10364 = vunpack.c.h.b16 %v9289
        %v10365 = vunpack.c.l.b16 %v9290
        %v10366 = vunpack.c.h.b16 %v9290
        %v10367 = vunpack.c.l.b16 %v9291
        %v10368 = vunpack.c.h.b16 %v9291
        %v10369 = vunpack.c.l.b16 %v9292
        %v10370 = vunpack.c.h.b16 %v9292
        %v10371 = vunpack.c.l.b16 %v9293
        %v10372 = vunpack.c.h.b16 %v9293
        %v10373 = vunpack.c.l.b16 %v9294
        %v10374 = vunpack.c.h.b16 %v9294
        %v10375 = vunpack.c.l.b16 %v9295
        %v10376 = vunpack.c.h.b16 %v9295
        %v10377 = vunpack.c.l.b16 %v9296
        %v10378 = vunpack.c.h.b16 %v9296
        %v10379 = vunpack.c.l.b16 %v9297
        %v10380 = vunpack.c.h.b16 %v9297
        %v10381 = vunpack.c.l.b16 %v9298
        %v10382 = vunpack.c.h.b16 %v9298
        %v10383 = vunpack.c.l.b16 %v9299
        %v10384 = vunpack.c.h.b16 %v9299
        %v10385 = vunpack.c.l.b16 %v9300
        %v10386 = vunpack.c.h.b16 %v9300
        %v10387 = vunpack.c.l.b16 %v9301
        %v10388 = vunpack.c.h.b16 %v9301
        %v10389 = vunpack.c.l.b16 %v9302
        %v10390 = vunpack.c.h.b16 %v9302
        %v10391 = vunpack.c.l.b16 %v9303
        %v10392 = vunpack.c.h.b16 %v9303
        %v10393 = vunpack.c.l.b16 %v9304
        %v10394 = vunpack.c.h.b16 %v9304
        %v10395 = vunpack.c.l.b16 %v9305
        %v10396 = vunpack.c.h.b16 %v9305
        %v10397 = vunpack.c.l.b16 %v9306
        %v10398 = vunpack.c.h.b16 %v9306
        %v10399 = vunpack.c.l.b16 %v9307
        %v10400 = vunpack.c.h.b16 %v9307
        %v10401 = vunpack.c.l.b16 %v9308
        %v10402 = vunpack.c.h.b16 %v9308
        %v10403 = vunpack.c.l.b16 %v9309
        %v10404 = vunpack.c.h.b16 %v9309
        %v10405 = vunpack.c.l.b16 %v9310
        %v10406 = vunpack.c.h.b16 %v9310
        %v10407 = vunpack.c.l.b16 %v9311
        %v10408 = vunpack.c.h.b16 %v9311
        %v10409 = vunpack.c.l.b16 %v9312
        %v10410 = vunpack.c.h.b16 %v9312
        %v10411 = vunpack.c.l.b16 %v9313
        %v10412 = vunpack.c.h.b16 %v9313
        %v10413 = vunpack.c.l.b16 %v9314
        %v10414 = vunpack.c.h.b16 %v9314
        %v10415 = vunpack.c.l.b16 %v9315
        %v10416 = vunpack.c.h.b16 %v9315
        %v10417 = vunpack.c.l.b16 %v9316
        %v10418 = vunpack.c.h.b16 %v9316
        %v10419 = vunpack.c.l.b16 %v9317
        %v10420 = vunpack.c.h.b16 %v9317
        %v10421 = vunpack.c.l.b16 %v9318
        %v10422 = vunpack.c.h.b16 %v9318
        %v10423 = vunpack.c.l.b16 %v9319
        %v10424 = vunpack.c.h.b16 %v9319
        %v10425 = vunpack.c.l.b16 %v9320
        %v10426 = vunpack.c.h.b16 %v9320
        %v10427 = vunpack.c.l.b16 %v9321
        %v10428 = vunpack.c.h.b16 %v9321
        %v10429 = vunpack.c.l.b16 %v9322
        %v10430 = vunpack.c.h.b16 %v9322
        %v10431 = vunpack.c.l.b16 %v9323
        %v10432 = vunpack.c.h.b16 %v9323
        %v10433 = vunpack.c.l.b16 %v9324
        %v10434 = vunpack.c.h.b16 %v9324
        %v10435 = vunpack.c.l.b16 %v9325
        %v10436 = vunpack.c.h.b16 %v9325
        %v10437 = vunpack.c.l.b16 %v9326
        %v10438 = vunpack.c.h.b16 %v9326
        %v10439 = vunpack.c.l.b16 %v9327
        %v10440 = vunpack.c.h.b16 %v9327
        %v10441 = vunpack.c.l.b16 %v9328
        %v10442 = vunpack.c.h.b16 %v9328
        %v10443 = vunpack.c.l.b16 %v9329
        %v10444 = vunpack.c.h.b16 %v9329
        %v10445 = vunpack.c.l.b16 %v9330
        %v10446 = vunpack.c.h.b16 %v9330
        %v10447 = vunpack.c.l.b16 %v9331
        %v10448 = vunpack.c.h.b16 %v9331
        %v10449 = vunpack.c.l.b16 %v9332
        %v10450 = vunpack.c.h.b16 %v9332
        %v10451 = vunpack.c.l.b16 %v9333
        %v10452 = vunpack.c.h.b16 %v9333
        %v10453 = vunpack.c.l.b16 %v9334
        %v10454 = vunpack.c.h.b16 %v9334
        %v10455 = vunpack.c.l.b16 %v9335
        %v10456 = vunpack.c.h.b16 %v9335
        %v10457 = vunpack.c.l.b16 %v9336
        %v10458 = vunpack.c.h.b16 %v9336
        %v10459 = vunpack.c.l.b16 %v9337
        %v10460 = vunpack.c.h.b16 %v9337
        %v10461 = vunpack.c.l.b16 %v9338
        %v10462 = vunpack.c.h.b16 %v9338
        %v10463 = vunpack.c.l.b16 %v9339
        %v10464 = vunpack.c.h.b16 %v9339
        %v10465 = vunpack.c.l.b16 %v9340
        %v10466 = vunpack.c.h.b16 %v9340
        %v10467 = vunpack.c.l.b16 %v9341
        %v10468 = vunpack.c.h.b16 %v9341
        %v10469 = vunpack.c.l.b16 %v9342
        %v10470 = vunpack.c.h.b16 %v9342
        %v10471 = vunpack.c.l.b16 %v9343
        %v10472 = vunpack.c.h.b16 %v9343
        %v10473 = vunpack.c.l.b16 %v9344
        %v10474 = vunpack.c.h.b16 %v9344
        %v10475 = vunpack.c.l.b16 %v9345
        %v10476 = vunpack.c.h.b16 %v9345
        %v10477 = vunpack.c.l.b16 %v9346
        %v10478 = vunpack.c.h.b16 %v9346
        %v10479 = vunpack.c.l.b16 %v9347
        %v10480 = vunpack.c.h.b16 %v9347
        %v10481 = vunpack.c.l.b16 %v9348
        %v10482 = vunpack.c.h.b16 %v9348
        %v10483 = vunpack.c.l.b16 %v9349
        %v10484 = vunpack.c.h.b16 %v9349
        %v10485 = vunpack.c.l.b16 %v9350
        %v10486 = vunpack.c.h.b16 %v9350
        %v10487 = vunpack.c.l.b16 %v9351
        %v10488 = vunpack.c.h.b16 %v9351
        %v10489 = vunpack.c.l.b16 %v9352
        %v10490 = vunpack.c.h.b16 %v9352
        %v10491 = vunpack.c.l.b16 %v9353
        %v10492 = vunpack.c.h.b16 %v9353
        %v10493 = vunpack.c.l.b16 %v9354
        %v10494 = vunpack.c.h.b16 %v9354
        %v10495 = vunpack.c.l.b16 %v9355
        %v10496 = vunpack.c.h.b16 %v9355
        %v10497 = vunpack.c.l.b16 %v9356
        %v10498 = vunpack.c.h.b16 %v9356
        %v10499 = vunpack.c.l.b16 %v9357
        %v10500 = vunpack.c.h.b16 %v9357
        %v10501 = vunpack.c.l.b16 %v9358
        %v10502 = vunpack.c.h.b16 %v9358
        %v10503 = vunpack.c.l.b16 %v9359
        %v10504 = vunpack.c.h.b16 %v9359
        %v10505 = vunpack.c.l.b16 %v9360
        %v10506 = vunpack.c.h.b16 %v9360
        %v10507 = vunpack.c.l.b16 %v9361
        %v10508 = vunpack.c.h.b16 %v9361
        %v10509 = vunpack.c.l.b16 %v9362
        %v10510 = vunpack.c.h.b16 %v9362
        %v10511 = vunpack.c.l.b16 %v9363
        %v10512 = vunpack.c.h.b16 %v9363
        %v10513 = vunpack.c.l.b16 %v9364
        %v10514 = vunpack.c.h.b16 %v9364
        %v10515 = vunpack.c.l.b16 %v9365
        %v10516 = vunpack.c.h.b16 %v9365
        %v10517 = vunpack.c.l.b16 %v9366
        %v10518 = vunpack.c.h.b16 %v9366
        %v10519 = vunpack.c.l.b16 %v9367
        %v10520 = vunpack.c.h.b16 %v9367
        %v10521 = vunpack.c.l.b16 %v9368
        %v10522 = vunpack.c.h.b16 %v9368
        %v10523 = vunpack.c.l.b16 %v9369
        %v10524 = vunpack.c.h.b16 %v9369
        %v10525 = vunpack.c.l.b16 %v9370
        %v10526 = vunpack.c.h.b16 %v9370
        %v10527 = vunpack.c.l.b16 %v9371
        %v10528 = vunpack.c.h.b16 %v9371
        %v10529 = vunpack.c.l.b16 %v9372
        %v10530 = vunpack.c.h.b16 %v9372
        %v10531 = vunpack.c.l.b16 %v9373
        %v10532 = vunpack.c.h.b16 %v9373
        %v10533 = vunpack.c.l.b16 %v9374
        %v10534 = vunpack.c.h.b16 %v9374
        %v10535 = vunpack.c.l.b16 %v9375
        %v10536 = vunpack.c.h.b16 %v9375
        %v10537 = vunpack.c.l.b16 %v9376
        %v10538 = vunpack.c.h.b16 %v9376
        %v10539 = vunpack.c.l.b16 %v9377
        %v10540 = vunpack.c.h.b16 %v9377
        %v10541 = vunpack.c.l.b16 %v9378
        %v10542 = vunpack.c.h.b16 %v9378
        %v10543 = vunpack.c.l.b16 %v9379
        %v10544 = vunpack.c.h.b16 %v9379
        %v10545 = vunpack.c.l.b16 %v9380
        %v10546 = vunpack.c.h.b16 %v9380
        %v10547 = vunpack.c.l.b16 %v9381
        %v10548 = vunpack.c.h.b16 %v9381
        %v10549 = vunpack.c.l.b16 %v9382
        %v10550 = vunpack.c.h.b16 %v9382
        %v10551 = vunpack.c.l.b16 %v9383
        %v10552 = vunpack.c.h.b16 %v9383
        %v10553 = vunpack.c.l.b16 %v9384
        %v10554 = vunpack.c.h.b16 %v9384
        %v10555 = vunpack.c.l.b16 %v9385
        %v10556 = vunpack.c.h.b16 %v9385
        %v10557 = vunpack.c.l.b16 %v9386
        %v10558 = vunpack.c.h.b16 %v9386
        %v10559 = vunpack.c.l.b16 %v9387
        %v10560 = vunpack.c.h.b16 %v9387
        %v10561 = vunpack.c.l.b16 %v9388
        %v10562 = vunpack.c.h.b16 %v9388
        %v10563 = vunpack.c.l.b16 %v9389
        %v10564 = vunpack.c.h.b16 %v9389
        %v10565 = vunpack.c.l.b16 %v9390
        %v10566 = vunpack.c.h.b16 %v9390
        %v10567 = vunpack.c.l.b16 %v9391
        %v10568 = vunpack.c.h.b16 %v9391
        %v10569 = vunpack.c.l.b16 %v9392
        %v10570 = vunpack.c.h.b16 %v9392
        %v10571 = vunpack.c.l.b16 %v9393
        %v10572 = vunpack.c.h.b16 %v9393
        %v10573 = vunpack.c.l.b16 %v9394
        %v10574 = vunpack.c.h.b16 %v9394
        %v10575 = vunpack.c.l.b16 %v9395
        %v10576 = vunpack.c.h.b16 %v9395
        %v10577 = vunpack.c.l.b16 %v9396
        %v10578 = vunpack.c.h.b16 %v9396
        %v10579 = vunpack.c.l.b16 %v9397
        %v10580 = vunpack.c.h.b16 %v9397
        %v10581 = vunpack.c.l.b16 %v9398
        %v10582 = vunpack.c.h.b16 %v9398
        %v10583 = vunpack.c.l.b16 %v9399
        %v10584 = vunpack.c.h.b16 %v9399
        %v10585 = vunpack.c.l.b16 %v9400
        %v10586 = vunpack.c.h.b16 %v9400
        %v10587 = vunpack.c.l.b16 %v9401
        %v10588 = vunpack.c.h.b16 %v9401
        %v10589 = vunpack.c.l.b16 %v9402
        %v10590 = vunpack.c.h.b16 %v9402
        %v10591 = vunpack.c.l.b16 %v9403
        %v10592 = vunpack.c.h.b16 %v9403
        %v10593 = vunpack.c.l.b16 %v9404
        %v10594 = vunpack.c.h.b16 %v9404
        %v10595 = vunpack.c.l.b16 %v9405
        %v10596 = vunpack.c.h.b16 %v9405
        %v10597 = vunpack.c.l.b16 %v9406
        %v10598 = vunpack.c.h.b16 %v9406
        %v10599 = vunpack.c.l.b16 %v9407
        %v10600 = vunpack.c.h.b16 %v9407
        %v10601 = vunpack.c.l.b16 %v9408
        %v10602 = vunpack.c.h.b16 %v9408
        %v10603 = vunpack.c.l.b16 %v9409
        %v10604 = vunpack.c.h.b16 %v9409
        %v10605 = vunpack.c.l.b16 %v9410
        %v10606 = vunpack.c.h.b16 %v9410
        %v10607 = vunpack.c.l.b16 %v9411
        %v10608 = vunpack.c.h.b16 %v9411
        %v10609 = vunpack.c.l.b16 %v9412
        %v10610 = vunpack.c.h.b16 %v9412
        %v10611 = vunpack.c.l.b16 %v9413
        %v10612 = vunpack.c.h.b16 %v9413
        %v10613 = vunpack.c.l.b16 %v9414
        %v10614 = vunpack.c.h.b16 %v9414
        %v10615 = vunpack.c.l.b16 %v9415
        %v10616 = vunpack.c.h.b16 %v9415
        %v10617 = vunpack.c.l.b16 %v9416
        %v10618 = vunpack.c.h.b16 %v9416
        %v10619 = vunpack.c.l.b16 %v9417
        %v10620 = vunpack.c.h.b16 %v9417
        %v10621 = vunpack.c.l.b16 %v9418
        %v10622 = vunpack.c.h.b16 %v9418
        %v10623 = vunpack.c.l.b16 %v9419
        %v10624 = vunpack.c.h.b16 %v9419
        %v10625 = vunpack.c.l.b16 %v9420
        %v10626 = vunpack.c.h.b16 %v9420
        %v10627 = vunpack.c.l.b16 %v9421
        %v10628 = vunpack.c.h.b16 %v9421
        %v10629 = vunpack.c.l.b16 %v9422
        %v10630 = vunpack.c.h.b16 %v9422
        %v10631 = vunpack.c.l.b16 %v9423
        %v10632 = vunpack.c.h.b16 %v9423
        %v10633 = vunpack.c.l.b16 %v9424
        %v10634 = vunpack.c.h.b16 %v9424
        %v10635 = vunpack.c.l.b16 %v9425
        %v10636 = vunpack.c.h.b16 %v9425
        %v10637 = vunpack.c.l.b16 %v9426
        %v10638 = vunpack.c.h.b16 %v9426
        %v10639 = vunpack.c.l.b16 %v9427
        %v10640 = vunpack.c.h.b16 %v9427
        %v10641 = vunpack.c.l.b16 %v9428
        %v10642 = vunpack.c.h.b16 %v9428
        %v10643 = vunpack.c.l.b16 %v9429
        %v10644 = vunpack.c.h.b16 %v9429
        %v10645 = vunpack.c.l.b16 %v9430
        %v10646 = vunpack.c.h.b16 %v9430
        %v10647 = vunpack.c.l.b16 %v9431
        %v10648 = vunpack.c.h.b16 %v9431
        %v10649 = vunpack.c.l.b16 %v9432
        %v10650 = vunpack.c.h.b16 %v9432
        %v10651 = vunpack.c.l.b16 %v9433
        %v10652 = vunpack.c.h.b16 %v9433
        %v10653 = vunpack.c.l.b16 %v9434
        %v10654 = vunpack.c.h.b16 %v9434
        %v10655 = vunpack.c.l.b16 %v9435
        %v10656 = vunpack.c.h.b16 %v9435
        %v10657 = vunpack.c.l.b16 %v9436
        %v10658 = vunpack.c.h.b16 %v9436
        %v10659 = vunpack.c.l.b16 %v9437
        %v10660 = vunpack.c.h.b16 %v9437
        %v10661 = vunpack.c.l.b16 %v9438
        %v10662 = vunpack.c.h.b16 %v9438
        %v10663 = vunpack.c.l.b16 %v9439
        %v10664 = vunpack.c.h.b16 %v9439
        %v10665 = vunpack.c.l.b16 %v9440
        %v10666 = vunpack.c.h.b16 %v9440
        %v10667 = vunpack.c.l.b16 %v9441
        %v10668 = vunpack.c.h.b16 %v9441
        %v10669 = vunpack.c.l.b16 %v9442
        %v10670 = vunpack.c.h.b16 %v9442
        %v10671 = vunpack.c.l.b16 %v9443
        %v10672 = vunpack.c.h.b16 %v9443
        %v10673 = vunpack.c.l.b16 %v9444
        %v10674 = vunpack.c.h.b16 %v9444
        %v10675 = vunpack.c.l.b16 %v9445
        %v10676 = vunpack.c.h.b16 %v9445
        %v10677 = vunpack.c.l.b16 %v9446
        %v10678 = vunpack.c.h.b16 %v9446
        %v10679 = vunpack.c.l.b16 %v9447
        %v10680 = vunpack.c.h.b16 %v9447
        %v10681 = vunpack.c.l.b16 %v9448
        %v10682 = vunpack.c.h.b16 %v9448
        %v10683 = vunpack.c.l.b16 %v9449
        %v10684 = vunpack.c.h.b16 %v9449
        %v10685 = vunpack.c.l.b16 %v9450
        %v10686 = vunpack.c.h.b16 %v9450
        %v10687 = vunpack.c.l.b16 %v9451
        %v10688 = vunpack.c.h.b16 %v9451
        %v10689 = vunpack.c.l.b16 %v9452
        %v10690 = vunpack.c.h.b16 %v9452
        %v10691 = vunpack.c.l.b16 %v9453
        %v10692 = vunpack.c.h.b16 %v9453
        %v10693 = vunpack.c.l.b16 %v9454
        %v10694 = vunpack.c.h.b16 %v9454
        %v10695 = vunpack.c.l.b16 %v9455
        %v10696 = vunpack.c.h.b16 %v9455
        %v10697 = vunpack.c.l.b16 %v9456
        %v10698 = vunpack.c.h.b16 %v9456
        %v10699 = vunpack.c.l.b16 %v9457
        %v10700 = vunpack.c.h.b16 %v9457
        %v10701 = vunpack.c.l.b16 %v9458
        %v10702 = vunpack.c.h.b16 %v9458
        %v10703 = vunpack.c.l.b16 %v9459
        %v10704 = vunpack.c.h.b16 %v9459
        %v10705 = vunpack.c.l.b16 %v9460
        %v10706 = vunpack.c.h.b16 %v9460
        %v10707 = vunpack.c.l.b16 %v9461
        %v10708 = vunpack.c.h.b16 %v9461
        %v10709 = vunpack.c.l.b16 %v9462
        %v10710 = vunpack.c.h.b16 %v9462
        %v10711 = vunpack.c.l.b16 %v9463
        %v10712 = vunpack.c.h.b16 %v9463
        %v10713 = vunpack.c.l.b16 %v9464
        %v10714 = vunpack.c.h.b16 %v9464
        %v10715 = vunpack.c.l.b16 %v9465
        %v10716 = vunpack.c.h.b16 %v9465
        %v10717 = vunpack.c.l.b16 %v9466
        %v10718 = vunpack.c.h.b16 %v9466
        %v10719 = vunpack.c.l.b16 %v9467
        %v10720 = vunpack.c.h.b16 %v9467
        %v10721 = vunpack.c.l.b16 %v9468
        %v10722 = vunpack.c.h.b16 %v9468
        %v10723 = vunpack.c.l.b16 %v9469
        %v10724 = vunpack.c.h.b16 %v9469
        %v10725 = vunpack.c.l.b16 %v9470
        %v10726 = vunpack.c.h.b16 %v9470
        %v10727 = vunpack.c.l.b16 %v9471
        %v10728 = vunpack.c.h.b16 %v9471
        %v10729 = vunpack.c.l.b16 %v9472
        %v10730 = vunpack.c.h.b16 %v9472
        %v10731 = vunpack.c.l.b16 %v9473
        %v10732 = vunpack.c.h.b16 %v9473
        %v10733 = vunpack.c.l.b16 %v9474
        %v10734 = vunpack.c.h.b16 %v9474
        %v10735 = vunpack.c.l.b16 %v9475
        %v10736 = vunpack.c.h.b16 %v9475
        %v10737 = vunpack.c.l.b16 %v9476
        %v10738 = vunpack.c.h.b16 %v9476
        %v10739 = vunpack.c.l.b16 %v9477
        %v10740 = vunpack.c.h.b16 %v9477
        %v10741 = vunpack.c.l.b16 %v9478
        %v10742 = vunpack.c.h.b16 %v9478
        %v10743 = vunpack.c.l.b16 %v9479
        %v10744 = vunpack.c.h.b16 %v9479
        %v10745 = vunpack.c.l.b16 %v9480
        %v10746 = vunpack.c.h.b16 %v9480
        %v10747 = vunpack.c.l.b16 %v9481
        %v10748 = vunpack.c.h.b16 %v9481
        %v10749 = vunpack.c.l.b16 %v9482
        %v10750 = vunpack.c.h.b16 %v9482
        %v10751 = vunpack.c.l.b16 %v9483
        %v10752 = vunpack.c.h.b16 %v9483
        %v10753 = vunpack.c.l.b16 %v9484
        %v10754 = vunpack.c.h.b16 %v9484
        %v10755 = vunpack.c.l.b16 %v9485
        %v10756 = vunpack.c.h.b16 %v9485
        %v10757 = vunpack.c.l.b16 %v9486
        %v10758 = vunpack.c.h.b16 %v9486
        %v10759 = vunpack.c.l.b16 %v9487
        %v10760 = vunpack.c.h.b16 %v9487
        %v10761 = vunpack.c.l.b16 %v9488
        %v10762 = vunpack.c.h.b16 %v9488
        %v10763 = vunpack.c.l.b16 %v9489
        %v10764 = vunpack.c.h.b16 %v9489
        %v10765 = vunpack.c.l.b16 %v9490
        %v10766 = vunpack.c.h.b16 %v9490
        %v10767 = vunpack.c.l.b16 %v9491
        %v10768 = vunpack.c.h.b16 %v9491
        %v10769 = vunpack.c.l.b16 %v9492
        %v10770 = vunpack.c.h.b16 %v9492
        %v10771 = vunpack.c.l.b16 %v9493
        %v10772 = vunpack.c.h.b16 %v9493
        %v10773 = vunpack.c.l.b16 %v9494
        %v10774 = vunpack.c.h.b16 %v9494
        %v10775 = vunpack.c.l.b16 %v9495
        %v10776 = vunpack.c.h.b16 %v9495
        %v10777 = vunpack.c.l.b16 %v9496
        %v10778 = vunpack.c.h.b16 %v9496
        %v10779 = vunpack.c.l.b16 %v9497
        %v10780 = vunpack.c.h.b16 %v9497
        %v10781 = vunpack.c.l.b16 %v9498
        %v10782 = vunpack.c.h.b16 %v9498
        %v10783 = vunpack.c.l.b16 %v9499
        %v10784 = vunpack.c.h.b16 %v9499
        %v10785 = vunpack.c.l.b16 %v9500
        %v10786 = vunpack.c.h.b16 %v9500
        %v10787 = vunpack.c.l.b16 %v9501
        %v10788 = vunpack.c.h.b16 %v9501
        %v10789 = vunpack.c.l.b16 %v9502
        %v10790 = vunpack.c.h.b16 %v9502
        %v10791 = vunpack.c.l.b16 %v9503
        %v10792 = vunpack.c.h.b16 %v9503
        %v10793 = vunpack.c.l.b16 %v9504
        %v10794 = vunpack.c.h.b16 %v9504
        %v10795 = vunpack.c.l.b16 %v9505
        %v10796 = vunpack.c.h.b16 %v9505
        %v10797 = vunpack.c.l.b16 %v9506
        %v10798 = vunpack.c.h.b16 %v9506
        %v10799 = vunpack.c.l.b16 %v9507
        %v10800 = vunpack.c.h.b16 %v9507
        %v10801 = vunpack.c.l.b16 %v9508
        %v10802 = vunpack.c.h.b16 %v9508
        %v10803 = vunpack.c.l.b16 %v9509
        %v10804 = vunpack.c.h.b16 %v9509
        %v10805 = vunpack.c.l.b16 %v9510
        %v10806 = vunpack.c.h.b16 %v9510
        %v10807 = vunpack.c.l.b16 %v9511
        %v10808 = vunpack.c.h.b16 %v9511
        %v10809 = vunpack.c.l.b16 %v9512
        %v10810 = vunpack.c.h.b16 %v9512
        %v10811 = vunpack.c.l.b16 %v9513
        %v10812 = vunpack.c.h.b16 %v9513
        %v10813 = vunpack.c.l.b16 %v9514
        %v10814 = vunpack.c.h.b16 %v9514
        %v10815 = vunpack.c.l.b16 %v9515
        %v10816 = vunpack.c.h.b16 %v9515
        %v10817 = vunpack.c.l.b16 %v9516
        %v10818 = vunpack.c.h.b16 %v9516
        %v10819 = vunpack.c.l.b16 %v9517
        %v10820 = vunpack.c.h.b16 %v9517
        %v10821 = vunpack.c.l.b16 %v9518
        %v10822 = vunpack.c.h.b16 %v9518
        %v10823 = vunpack.c.l.b16 %v9519
        %v10824 = vunpack.c.h.b16 %v9519
        %v10825 = vunpack.c.l.b16 %v9520
        %v10826 = vunpack.c.h.b16 %v9520
        %v10827 = vunpack.c.l.b16 %v9521
        %v10828 = vunpack.c.h.b16 %v9521
        %v10829 = vunpack.c.l.b16 %v9522
        %v10830 = vunpack.c.h.b16 %v9522
        %v10831 = vunpack.c.l.b16 %v9523
        %v10832 = vunpack.c.h.b16 %v9523
        %v10833 = vunpack.c.l.b16 %v9524
        %v10834 = vunpack.c.h.b16 %v9524
        %v10835 = vunpack.c.l.b16 %v9525
        %v10836 = vunpack.c.h.b16 %v9525
        %v10837 = vunpack.c.l.b16 %v9526
        %v10838 = vunpack.c.h.b16 %v9526
        %v10839 = vunpack.c.l.b16 %v9527
        %v10840 = vunpack.c.h.b16 %v9527
        %v10841 = vunpack.c.l.b16 %v9528
        %v10842 = vunpack.c.h.b16 %v9528
        %v10843 = vunpack.c.l.b16 %v9529
        %v10844 = vunpack.c.h.b16 %v9529
        %v10845 = vunpack.c.l.b16 %v9530
        %v10846 = vunpack.c.h.b16 %v9530
        %v10847 = vunpack.c.l.b16 %v9531
        %v10848 = vunpack.c.h.b16 %v9531
        %v10849 = vunpack.c.l.b16 %v9532
        %v10850 = vunpack.c.h.b16 %v9532
        %v10851 = vunpack.c.l.b16 %v9533
        %v10852 = vunpack.c.h.b16 %v9533
        %v10853 = vunpack.c.l.b16 %v9534
        %v10854 = vunpack.c.h.b16 %v9534
        %v10855 = vunpack.c.l.b16 %v9535
        %v10856 = vunpack.c.h.b16 %v9535
        %v10857 = vunpack.c.l.b16 %v9536
        %v10858 = vunpack.c.h.b16 %v9536
        %v10859 = vunpack.c.l.b16 %v9537
        %v10860 = vunpack.c.h.b16 %v9537
        %v10861 = vunpack.c.l.b16 %v9538
        %v10862 = vunpack.c.h.b16 %v9538
        %v10863 = vunpack.c.l.b16 %v9539
        %v10864 = vunpack.c.h.b16 %v9539
        %v10865 = vunpack.c.l.b16 %v9540
        %v10866 = vunpack.c.h.b16 %v9540
        %v10867 = vunpack.c.l.b16 %v9541
        %v10868 = vunpack.c.h.b16 %v9541
        %v10869 = vunpack.c.l.b16 %v9542
        %v10870 = vunpack.c.h.b16 %v9542
        %v10871 = vunpack.c.l.b16 %v9543
        %v10872 = vunpack.c.h.b16 %v9543
        %v10873 = vunpack.c.l.b16 %v9544
        %v10874 = vunpack.c.h.b16 %v9544
        %v10875 = vunpack.c.l.b16 %v9545
        %v10876 = vunpack.c.h.b16 %v9545
        %v10877 = vunpack.c.l.b16 %v9546
        %v10878 = vunpack.c.h.b16 %v9546
        %v10879 = vunpack.c.l.b16 %v9547
        %v10880 = vunpack.c.h.b16 %v9547
        %v10881 = vunpack.c.l.b16 %v9548
        %v10882 = vunpack.c.h.b16 %v9548
        %v10883 = vunpack.c.l.b16 %v9549
        %v10884 = vunpack.c.h.b16 %v9549
        %v10885 = vunpack.c.l.b16 %v9550
        %v10886 = vunpack.c.h.b16 %v9550
        %v10887 = vunpack.c.l.b16 %v9551
        %v10888 = vunpack.c.h.b16 %v9551
        %v10889 = vunpack.c.l.b16 %v9552
        %v10890 = vunpack.c.h.b16 %v9552
        %v10891 = vunpack.c.l.b16 %v9553
        %v10892 = vunpack.c.h.b16 %v9553
        %v10893 = vunpack.c.l.b16 %v9554
        %v10894 = vunpack.c.h.b16 %v9554
        %v10895 = vunpack.c.l.b16 %v9555
        %v10896 = vunpack.c.h.b16 %v9555
        %v10897 = vunpack.c.l.b16 %v9556
        %v10898 = vunpack.c.h.b16 %v9556
        %v10899 = vunpack.c.l.b16 %v9557
        %v10900 = vunpack.c.h.b16 %v9557
        %v10901 = vunpack.c.l.b16 %v9558
        %v10902 = vunpack.c.h.b16 %v9558
        %v10903 = vunpack.c.l.b16 %v9559
        %v10904 = vunpack.c.h.b16 %v9559
        %v10905 = vunpack.c.l.b16 %v9560
        %v10906 = vunpack.c.h.b16 %v9560
        %v10907 = vunpack.c.l.b16 %v9561
        %v10908 = vunpack.c.h.b16 %v9561
        %v10909 = vunpack.c.l.b16 %v9562
        %v10910 = vunpack.c.h.b16 %v9562
        %v10911 = vunpack.c.l.b16 %v9563
        %v10912 = vunpack.c.h.b16 %v9563
        %v10913 = vunpack.c.l.b16 %v9564
        %v10914 = vunpack.c.h.b16 %v9564
        %v10915 = vunpack.c.l.b16 %v9565
        %v10916 = vunpack.c.h.b16 %v9565
        %v10917 = vunpack.c.l.b16 %v9566
        %v10918 = vunpack.c.h.b16 %v9566
        %v10919 = vunpack.c.l.b16 %v9567
        %v10920 = vunpack.c.h.b16 %v9567
        %v10921 = vunpack.c.l.b16 %v9568
        %v10922 = vunpack.c.h.b16 %v9568
        %v10923 = vunpack.c.l.b16 %v9569
        %v10924 = vunpack.c.h.b16 %v9569
        %v10925 = vunpack.c.l.b16 %v9570
        %v10926 = vunpack.c.h.b16 %v9570
        %v10927 = vunpack.c.l.b16 %v9571
        %v10928 = vunpack.c.h.b16 %v9571
        %v10929 = vunpack.c.l.b16 %v9572
        %v10930 = vunpack.c.h.b16 %v9572
        %v10931 = vunpack.c.l.b16 %v9573
        %v10932 = vunpack.c.h.b16 %v9573
        %v10933 = vunpack.c.l.b16 %v9574
        %v10934 = vunpack.c.h.b16 %v9574
        %v10935 = vunpack.c.l.b16 %v9575
        %v10936 = vunpack.c.h.b16 %v9575
        %v10937 = vunpack.c.l.b16 %v9576
        %v10938 = vunpack.c.h.b16 %v9576
        %v10939 = vunpack.c.l.b16 %v9577
        %v10940 = vunpack.c.h.b16 %v9577
        %v10941 = vunpack.c.l.b16 %v9578
        %v10942 = vunpack.c.h.b16 %v9578
        %v10943 = vunpack.c.l.b16 %v9579
        %v10944 = vunpack.c.h.b16 %v9579
        %v10945 = vunpack.c.l.b16 %v9580
        %v10946 = vunpack.c.h.b16 %v9580
        %v10947 = vunpack.c.l.b16 %v9581
        %v10948 = vunpack.c.h.b16 %v9581
        %v10949 = vunpack.c.l.b16 %v9582
        %v10950 = vunpack.c.h.b16 %v9582
        %v10951 = vunpack.c.l.b16 %v9583
        %v10952 = vunpack.c.h.b16 %v9583
        %v10953 = vunpack.c.l.b16 %v9584
        %v10954 = vunpack.c.h.b16 %v9584
        %v10955 = vunpack.c.l.b16 %v9585
        %v10956 = vunpack.c.h.b16 %v9585
        %v10957 = vunpack.c.l.b16 %v9586
        %v10958 = vunpack.c.h.b16 %v9586
        %v10959 = vunpack.c.l.b16 %v9587
        %v10960 = vunpack.c.h.b16 %v9587
        %v10961 = vunpack.c.l.b16 %v9588
        %v10962 = vunpack.c.h.b16 %v9588
        %v10963 = vunpack.c.l.b16 %v9589
        %v10964 = vunpack.c.h.b16 %v9589
        %v10965 = vunpack.c.l.b16 %v9590
        %v10966 = vunpack.c.h.b16 %v9590
        %v10967 = vunpack.c.l.b16 %v9591
        %v10968 = vunpack.c.h.b16 %v9591
        %v10969 = vunpack.c.l.b16 %v9592
        %v10970 = vunpack.c.h.b16 %v9592
        %v10971 = vunpack.c.l.b16 %v9593
        %v10972 = vunpack.c.h.b16 %v9593
        %v10973 = vunpack.c.l.b16 %v9594
        %v10974 = vunpack.c.h.b16 %v9594
        %v10975 = vunpack.c.l.b16 %v9595
        %v10976 = vunpack.c.h.b16 %v9595
        %v10977 = vunpack.c.l.b16 %v9596
        %v10978 = vunpack.c.h.b16 %v9596
        %v10979 = vunpack.c.l.b16 %v9597
        %v10980 = vunpack.c.h.b16 %v9597
        %v10981 = vunpack.c.l.b16 %v9598
        %v10982 = vunpack.c.h.b16 %v9598
        %v10983 = vunpack.c.l.b16 %v9599
        %v10984 = vunpack.c.h.b16 %v9599
        %v10985 = vunpack.c.l.b16 %v9600
        %v10986 = vunpack.c.h.b16 %v9600
        %v10987 = vunpack.c.l.b16 %v9601
        %v10988 = vunpack.c.h.b16 %v9601
        %v10989 = vunpack.c.l.b16 %v9602
        %v10990 = vunpack.c.h.b16 %v9602
        %v10991 = vunpack.c.l.b16 %v9603
        %v10992 = vunpack.c.h.b16 %v9603
        %v10993 = vunpack.c.l.b16 %v9604
        %v10994 = vunpack.c.h.b16 %v9604
        %v10995 = vunpack.c.l.b16 %v9605
        %v10996 = vunpack.c.h.b16 %v9605
        %v10997 = vunpack.c.l.b16 %v9606
        %v10998 = vunpack.c.h.b16 %v9606
        %v10999 = vunpack.c.l.b16 %v9607
        %v11000 = vunpack.c.h.b16 %v9607
        %v11001 = vunpack.c.l.b16 %v9608
        %v11002 = vunpack.c.h.b16 %v9608
        %v11003 = vunpack.c.l.b16 %v9609
        %v11004 = vunpack.c.h.b16 %v9609
        %v11005 = vunpack.c.l.b16 %v9610
        %v11006 = vunpack.c.h.b16 %v9610
        %v11007 = vunpack.c.l.b16 %v9611
        %v11008 = vunpack.c.h.b16 %v9611
        %v11009 = vunpack.c.l.b16 %v9612
        %v11010 = vunpack.c.h.b16 %v9612
        %v11011 = vunpack.c.l.b16 %v9613
        %v11012 = vunpack.c.h.b16 %v9613
        %v11013 = vunpack.c.l.b16 %v9614
        %v11014 = vunpack.c.h.b16 %v9614
        %v11015 = vunpack.c.l.b16 %v9615
        %v11016 = vunpack.c.h.b16 %v9615
        %v11017 = vunpack.c.l.b16 %v9616
        %v11018 = vunpack.c.h.b16 %v9616
        %v11019 = vunpack.c.l.b16 %v9617
        %v11020 = vunpack.c.h.b16 %v9617
        %v11021 = vunpack.c.l.b16 %v9618
        %v11022 = vunpack.c.h.b16 %v9618
        %v11023 = vunpack.c.l.b16 %v9619
        %v11024 = vunpack.c.h.b16 %v9619
        %v11025 = vunpack.c.l.b16 %v9620
        %v11026 = vunpack.c.h.b16 %v9620
        %v11027 = vunpack.c.l.b16 %v9621
        %v11028 = vunpack.c.h.b16 %v9621
        %v11029 = vunpack.c.l.b16 %v9622
        %v11030 = vunpack.c.h.b16 %v9622
        %v11031 = vunpack.c.l.b16 %v9623
        %v11032 = vunpack.c.h.b16 %v9623
        %v11033 = vunpack.c.l.b16 %v9624
        %v11034 = vunpack.c.h.b16 %v9624
        %v11035 = vunpack.c.l.b16 %v9625
        %v11036 = vunpack.c.h.b16 %v9625
        %v11037 = vunpack.c.l.b16 %v9626
        %v11038 = vunpack.c.h.b16 %v9626
        %v11039 = vunpack.c.l.b16 %v9627
        %v11040 = vunpack.c.h.b16 %v9627
        %v11041 = vunpack.c.l.b16 %v9628
        %v11042 = vunpack.c.h.b16 %v9628
        %v11043 = vunpack.c.l.b16 %v9629
        %v11044 = vunpack.c.h.b16 %v9629
        %v11045 = vunpack.c.l.b16 %v9630
        %v11046 = vunpack.c.h.b16 %v9630
        %v11047 = vunpack.c.l.b16 %v9631
        %v11048 = vunpack.c.h.b16 %v9631
        %v11049 = vunpack.c.l.b16 %v9632
        %v11050 = vunpack.c.h.b16 %v9632
        %v11051 = vunpack.c.l.b16 %v9633
        %v11052 = vunpack.c.h.b16 %v9633
        %v11053 = vunpack.c.l.b16 %v9634
        %v11054 = vunpack.c.h.b16 %v9634
        %v11055 = vunpack.c.l.b16 %v9635
        %v11056 = vunpack.c.h.b16 %v9635
        %v11057 = vunpack.c.l.b16 %v9636
        %v11058 = vunpack.c.h.b16 %v9636
        %v11059 = vunpack.c.l.b16 %v9637
        %v11060 = vunpack.c.h.b16 %v9637
        %v11061 = vunpack.c.l.b16 %v9638
        %v11062 = vunpack.c.h.b16 %v9638
        %v11063 = vunpack.c.l.b16 %v9639
        %v11064 = vunpack.c.h.b16 %v9639
        %v11065 = vunpack.c.l.b16 %v9640
        %v11066 = vunpack.c.h.b16 %v9640
        %v11067 = vunpack.c.l.b16 %v9641
        %v11068 = vunpack.c.h.b16 %v9641
        %v11069 = vunpack.c.l.b16 %v9642
        %v11070 = vunpack.c.h.b16 %v9642
        %v11071 = vunpack.c.l.b16 %v9643
        %v11072 = vunpack.c.h.b16 %v9643
        %v11073 = vunpack.c.l.b16 %v9644
        %v11074 = vunpack.c.h.b16 %v9644
        %v11075 = vunpack.c.l.b16 %v9645
        %v11076 = vunpack.c.h.b16 %v9645
        %v11077 = vunpack.c.l.b16 %v9646
        %v11078 = vunpack.c.h.b16 %v9646
        %v11079 = vunpack.c.l.b16 %v9647
        %v11080 = vunpack.c.h.b16 %v9647
        %v11081 = vunpack.c.l.b16 %v9648
        %v11082 = vunpack.c.h.b16 %v9648
        %v11083 = vunpack.c.l.b16 %v9649
        %v11084 = vunpack.c.h.b16 %v9649
        %v11085 = vunpack.c.l.b16 %v9650
        %v11086 = vunpack.c.h.b16 %v9650
        %v11087 = vunpack.c.l.b16 %v9651
        %v11088 = vunpack.c.h.b16 %v9651
        %v11089 = vunpack.c.l.b16 %v9652
        %v11090 = vunpack.c.h.b16 %v9652
        %v11091 = vunpack.c.l.b16 %v9653
        %v11092 = vunpack.c.h.b16 %v9653
        %v11093 = vunpack.c.l.b16 %v9654
        %v11094 = vunpack.c.h.b16 %v9654
        %v11095 = vunpack.c.l.b16 %v9655
        %v11096 = vunpack.c.h.b16 %v9655
        %v11097 = vunpack.c.l.b16 %v9656
        %v11098 = vunpack.c.h.b16 %v9656
        %v11099 = vunpack.c.l.b16 %v9657
        %v11100 = vunpack.c.h.b16 %v9657
        %v11101 = vunpack.c.l.b16 %v9658
        %v11102 = vunpack.c.h.b16 %v9658
        %v11103 = vunpack.c.l.b16 %v9659
        %v11104 = vunpack.c.h.b16 %v9659
        %v11105 = vunpack.c.l.b16 %v9660
        %v11106 = vunpack.c.h.b16 %v9660
        %v11107 = vunpack.c.l.b16 %v9661
        %v11108 = vunpack.c.h.b16 %v9661
        %v11109 = vunpack.c.l.b16 %v9662
        %v11110 = vunpack.c.h.b16 %v9662
        %v11111 = vunpack.c.l.b16 %v9663
        %v11112 = vunpack.c.h.b16 %v9663
        %v11113 = vunpack.c.l.b16 %v9664
        %v11114 = vunpack.c.h.b16 %v9664
        %v11115 = vunpack.c.l.b16 %v9665
        %v11116 = vunpack.c.h.b16 %v9665
        %v11117 = vunpack.c.l.b16 %v9666
        %v11118 = vunpack.c.h.b16 %v9666
        %v11119 = vunpack.c.l.b16 %v9667
        %v11120 = vunpack.c.h.b16 %v9667
        %v11121 = vunpack.c.l.b16 %v9668
        %v11122 = vunpack.c.h.b16 %v9668
        %v11123 = vunpack.c.l.b16 %v9669
        %v11124 = vunpack.c.h.b16 %v9669
        %v11125 = vunpack.c.l.b16 %v9670
        %v11126 = vunpack.c.h.b16 %v9670
        %v11127 = vunpack.c.l.b16 %v9671
        %v11128 = vunpack.c.h.b16 %v9671
        %v11129 = vunpack.c.l.b16 %v9672
        %v11130 = vunpack.c.h.b16 %v9672
        %v11131 = vunpack.c.l.b16 %v9673
        %v11132 = vunpack.c.h.b16 %v9673
        %v11133 = vunpack.c.l.b16 %v9674
        %v11134 = vunpack.c.h.b16 %v9674
        %v11135 = vunpack.c.l.b16 %v9675
        %v11136 = vunpack.c.h.b16 %v9675
        %v11137 = vunpack.c.l.b16 %v9676
        %v11138 = vunpack.c.h.b16 %v9676
        %v11139 = vunpack.c.l.b16 %v9677
        %v11140 = vunpack.c.h.b16 %v9677
        %v11141 = vunpack.c.l.b16 %v9678
        %v11142 = vunpack.c.h.b16 %v9678
        %v11143 = vunpack.c.l.b16 %v9679
        %v11144 = vunpack.c.h.b16 %v9679
        %v11145 = vunpack.c.l.b16 %v9680
        %v11146 = vunpack.c.h.b16 %v9680
        %v11147 = vunpack.c.l.b16 %v9681
        %v11148 = vunpack.c.h.b16 %v9681
        %v11149 = vunpack.c.l.b16 %v9682
        %v11150 = vunpack.c.h.b16 %v9682
        %v11151 = vunpack.c.l.b16 %v9683
        %v11152 = vunpack.c.h.b16 %v9683
        %v11153 = vunpack.c.l.b16 %v9684
        %v11154 = vunpack.c.h.b16 %v9684
        %v11155 = vunpack.c.l.b16 %v9685
        %v11156 = vunpack.c.h.b16 %v9685
        %v11157 = vunpack.c.l.b16 %v9686
        %v11158 = vunpack.c.h.b16 %v9686
        %v11159 = vunpack.c.l.b16 %v9687
        %v11160 = vunpack.c.h.b16 %v9687
        %v11161 = vunpack.c.l.b16 %v9688
        %v11162 = vunpack.c.h.b16 %v9688
        %v11163 = vunpack.c.l.b16 %v9689
        %v11164 = vunpack.c.h.b16 %v9689
        %v11165 = vunpack.c.l.b16 %v9690
        %v11166 = vunpack.c.h.b16 %v9690
        %v11167 = vunpack.c.l.b16 %v9691
        %v11168 = vunpack.c.h.b16 %v9691
        %v11169 = vunpack.c.l.b16 %v9692
        %v11170 = vunpack.c.h.b16 %v9692
        %v11171 = vunpack.c.l.b16 %v9693
        %v11172 = vunpack.c.h.b16 %v9693
        %v11173 = vunpack.c.l.b16 %v9694
        %v11174 = vunpack.c.h.b16 %v9694
        %v11175 = vunpack.c.l.b16 %v9695
        %v11176 = vunpack.c.h.b16 %v9695
        %v11177 = vunpack.c.l.b16 %v9696
        %v11178 = vunpack.c.h.b16 %v9696
        %v11179 = vunpack.c.l.b16 %v9697
        %v11180 = vunpack.c.h.b16 %v9697
        %v11181 = vunpack.c.l.b16 %v9698
        %v11182 = vunpack.c.h.b16 %v9698
        %v11183 = vunpack.c.l.b16 %v9699
        %v11184 = vunpack.c.h.b16 %v9699
        %v11185 = vunpack.c.l.b16 %v9700
        %v11186 = vunpack.c.h.b16 %v9700
        %v11187 = vunpack.c.l.b16 %v9701
        %v11188 = vunpack.c.h.b16 %v9701
        %v11189 = vunpack.c.l.b16 %v9702
        %v11190 = vunpack.c.h.b16 %v9702
        %v11191 = vunpack.c.l.b16 %v9703
        %v11192 = vunpack.c.h.b16 %v9703
        %v11193 = vunpack.c.l.b16 %v9704
        %v11194 = vunpack.c.h.b16 %v9704
        %v11195 = vunpack.c.l.b16 %v9705
        %v11196 = vunpack.c.h.b16 %v9705
        %v11197 = vunpack.c.l.b16 %v9706
        %v11198 = vunpack.c.h.b16 %v9706
        %v11199 = vunpack.c.l.b16 %v9707
        %v11200 = vunpack.c.h.b16 %v9707
        %v11201 = vunpack.c.l.b16 %v9708
        %v11202 = vunpack.c.h.b16 %v9708
        %v11203 = vunpack.c.l.b16 %v9709
        %v11204 = vunpack.c.h.b16 %v9709
        %v11205 = vunpack.c.l.b16 %v9710
        %v11206 = vunpack.c.h.b16 %v9710
        %v11207 = vunpack.c.l.b16 %v9711
        %v11208 = vunpack.c.h.b16 %v9711
        %v11209 = vunpack.c.l.b16 %v9712
        %v11210 = vunpack.c.h.b16 %v9712
        %v11211 = vunpack.c.l.b16 %v9713
        %v11212 = vunpack.c.h.b16 %v9713
        %v11213 = vunpack.c.l.b16 %v9714
        %v11214 = vunpack.c.h.b16 %v9714
        %v11215 = vunpack.c.l.b16 %v9715
        %v11216 = vunpack.c.h.b16 %v9715
        %v11217 = vunpack.c.l.b16 %v9716
        %v11218 = vunpack.c.h.b16 %v9716
        %v11219 = vunpack.c.l.b16 %v9717
        %v11220 = vunpack.c.h.b16 %v9717
        %v11221 = vunpack.c.l.b16 %v9718
        %v11222 = vunpack.c.h.b16 %v9718
        %v11223 = vunpack.c.l.b16 %v9719
        %v11224 = vunpack.c.h.b16 %v9719
        %v11225 = vunpack.c.l.b16 %v9720
        %v11226 = vunpack.c.h.b16 %v9720
        %v11227 = vunpack.c.l.b16 %v9721
        %v11228 = vunpack.c.h.b16 %v9721
        %v11229 = vunpack.c.l.b16 %v9722
        %v11230 = vunpack.c.h.b16 %v9722
        %v11231 = vunpack.c.l.b16 %v9723
        %v11232 = vunpack.c.h.b16 %v9723
        %v11233 = vunpack.c.l.b16 %v9724
        %v11234 = vunpack.c.h.b16 %v9724
        %v11235 = vunpack.c.l.b16 %v9725
        %v11236 = vunpack.c.h.b16 %v9725
        %v11237 = vunpack.c.l.b16 %v9726
        %v11238 = vunpack.c.h.b16 %v9726
        %v11239 = vunpack.c.l.b16 %v9727
        %v11240 = vunpack.c.h.b16 %v9727
        %v11241 = vunpack.c.l.b16 %v9728
        %v11242 = vunpack.c.h.b16 %v9728
        %v11243 = vunpack.c.l.b16 %v9729
        %v11244 = vunpack.c.h.b16 %v9729
        %v11245 = vunpack.c.l.b16 %v9730
        %v11246 = vunpack.c.h.b16 %v9730
        %v11247 = vunpack.c.l.b16 %v9731
        %v11248 = vunpack.c.h.b16 %v9731
        %v11249 = vunpack.c.l.b16 %v9732
        %v11250 = vunpack.c.h.b16 %v9732
        %v11251 = vunpack.c.l.b16 %v9733
        %v11252 = vunpack.c.h.b16 %v9733
        %v11253 = vunpack.c.l.b16 %v9734
        %v11254 = vunpack.c.h.b16 %v9734
        %v11255 = vunpack.c.l.b16 %v9735
        %v11256 = vunpack.c.h.b16 %v9735
        %v11257 = vunpack.c.l.b16 %v9736
        %v11258 = vunpack.c.h.b16 %v9736
        %v11259 = vunpack.c.l.b16 %v9737
        %v11260 = vunpack.c.h.b16 %v9737
        %v11261 = vunpack.c.l.b16 %v9738
        %v11262 = vunpack.c.h.b16 %v9738
        %v11263 = vunpack.c.l.b16 %v9739
        %v11264 = vunpack.c.h.b16 %v9739
        %v11265 = vunpack.c.l.b16 %v9740
        %v11266 = vunpack.c.h.b16 %v9740
        %v11267 = vunpack.c.l.b16 %v9741
        %v11268 = vunpack.c.h.b16 %v9741
        %v11269 = vunpack.c.l.b16 %v9742
        %v11270 = vunpack.c.h.b16 %v9742
        %v11271 = vunpack.c.l.b16 %v9743
        %v11272 = vunpack.c.h.b16 %v9743
        %v11273 = vunpack.c.l.b16 %v9744
        %v11274 = vunpack.c.h.b16 %v9744
        %v11275 = vunpack.c.l.b16 %v9745
        %v11276 = vunpack.c.h.b16 %v9745
        %v11277 = vunpack.c.l.b16 %v9746
        %v11278 = vunpack.c.h.b16 %v9746
        %v11279 = vunpack.c.l.b16 %v9747
        %v11280 = vunpack.c.h.b16 %v9747
        %v11281 = vunpack.c.l.b16 %v9748
        %v11282 = vunpack.c.h.b16 %v9748
        %v11283 = vunpack.c.l.b16 %v9749
        %v11284 = vunpack.c.h.b16 %v9749
        %v11285 = vunpack.c.l.b16 %v9750
        %v11286 = vunpack.c.h.b16 %v9750
        %v11287 = vpack.c.b16 %v10271, %v10263
        %v11288 = vpack.c.b16 %v10272, %v10264
        %v11289 = vpack.c.b16 %v10273, %v10265
        %v11290 = vpack.c.b16 %v10274, %v10266
        %v11291 = vpack.c.b16 %v10275, %v10267
        %v11292 = vpack.c.b16 %v10276, %v10268
        %v11293 = vpack.c.b16 %v10277, %v10269
        %v11294 = vpack.c.b16 %v10278, %v10270
        %v11295 = vpack.c.b16 %v10287, %v10279
        %v11296 = vpack.c.b16 %v10288, %v10280
        %v11297 = vpack.c.b16 %v10289, %v10281
        %v11298 = vpack.c.b16 %v10290, %v10282
        %v11299 = vpack.c.b16 %v10291, %v10283
        %v11300 = vpack.c.b16 %v10292, %v10284
        %v11301 = vpack.c.b16 %v10293, %v10285
        %v11302 = vpack.c.b16 %v10294, %v10286
        %v11303 = vpack.c.b16 %v10303, %v10295
        %v11304 = vpack.c.b16 %v10304, %v10296
        %v11305 = vpack.c.b16 %v10305, %v10297
        %v11306 = vpack.c.b16 %v10306, %v10298
        %v11307 = vpack.c.b16 %v10307, %v10299
        %v11308 = vpack.c.b16 %v10308, %v10300
        %v11309 = vpack.c.b16 %v10309, %v10301
        %v11310 = vpack.c.b16 %v10310, %v10302
        %v11311 = vpack.c.b16 %v10319, %v10311
        %v11312 = vpack.c.b16 %v10320, %v10312
        %v11313 = vpack.c.b16 %v10321, %v10313
        %v11314 = vpack.c.b16 %v10322, %v10314
        %v11315 = vpack.c.b16 %v10323, %v10315
        %v11316 = vpack.c.b16 %v10324, %v10316
        %v11317 = vpack.c.b16 %v10325, %v10317
        %v11318 = vpack.c.b16 %v10326, %v10318
        %v11319 = vpack.c.b16 %v10335, %v10327
        %v11320 = vpack.c.b16 %v10336, %v10328
        %v11321 = vpack.c.b16 %v10337, %v10329
        %v11322 = vpack.c.b16 %v10338, %v10330
        %v11323 = vpack.c.b16 %v10339, %v10331
        %v11324 = vpack.c.b16 %v10340, %v10332
        %v11325 = vpack.c.b16 %v10341, %v10333
        %v11326 = vpack.c.b16 %v10342, %v10334
        %v11327 = vpack.c.b16 %v10351, %v10343
        %v11328 = vpack.c.b16 %v10352, %v10344
        %v11329 = vpack.c.b16 %v10353, %v10345
        %v11330 = vpack.c.b16 %v10354, %v10346
        %v11331 = vpack.c.b16 %v10355, %v10347
        %v11332 = vpack.c.b16 %v10356, %v10348
        %v11333 = vpack.c.b16 %v10357, %v10349
        %v11334 = vpack.c.b16 %v10358, %v10350
        %v11335 = vpack.c.b16 %v10367, %v10359
        %v11336 = vpack.c.b16 %v10368, %v10360
        %v11337 = vpack.c.b16 %v10369, %v10361
        %v11338 = vpack.c.b16 %v10370, %v10362
        %v11339 = vpack.c.b16 %v10371, %v10363
        %v11340 = vpack.c.b16 %v10372, %v10364
        %v11341 = vpack.c.b16 %v10373, %v10365
        %v11342 = vpack.c.b16 %v10374, %v10366
        %v11343 = vpack.c.b16 %v10383, %v10375
        %v11344 = vpack.c.b16 %v10384, %v10376
        %v11345 = vpack.c.b16 %v10385, %v10377
        %v11346 = vpack.c.b16 %v10386, %v10378
        %v11347 = vpack.c.b16 %v10387, %v10379
        %v11348 = vpack.c.b16 %v10388, %v10380
        %v11349 = vpack.c.b16 %v10389, %v10381
        %v11350 = vpack.c.b16 %v10390, %v10382
        %v11351 = vpack.c.b16 %v10399, %v10391
        %v11352 = vpack.c.b16 %v10400, %v10392
        %v11353 = vpack.c.b16 %v10401, %v10393
        %v11354 = vpack.c.b16 %v10402, %v10394
        %v11355 = vpack.c.b16 %v10403, %v10395
        %v11356 = vpack.c.b16 %v10404, %v10396
        %v11357 = vpack.c.b16 %v10405, %v10397
        %v11358 = vpack.c.b16 %v10406, %v10398
        %v11359 = vpack.c.b16 %v10415, %v10407
        %v11360 = vpack.c.b16 %v10416, %v10408
        %v11361 = vpack.c.b16 %v10417, %v10409
        %v11362 = vpack.c.b16 %v10418, %v10410
        %v11363 = vpack.c.b16 %v10419, %v10411
        %v11364 = vpack.c.b16 %v10420, %v10412
        %v11365 = vpack.c.b16 %v10421, %v10413
        %v11366 = vpack.c.b16 %v10422, %v10414
        %v11367 = vpack.c.b16 %v10431, %v10423
        %v11368 = vpack.c.b16 %v10432, %v10424
        %v11369 = vpack.c.b16 %v10433, %v10425
        %v11370 = vpack.c.b16 %v10434, %v10426
        %v11371 = vpack.c.b16 %v10435, %v10427
        %v11372 = vpack.c.b16 %v10436, %v10428
        %v11373 = vpack.c.b16 %v10437, %v10429
        %v11374 = vpack.c.b16 %v10438, %v10430
        %v11375 = vpack.c.b16 %v10447, %v10439
        %v11376 = vpack.c.b16 %v10448, %v10440
        %v11377 = vpack.c.b16 %v10449, %v10441
        %v11378 = vpack.c.b16 %v10450, %v10442
        %v11379 = vpack.c.b16 %v10451, %v10443
        %v11380 = vpack.c.b16 %v10452, %v10444
        %v11381 = vpack.c.b16 %v10453, %v10445
        %v11382 = vpack.c.b16 %v10454, %v10446
        %v11383 = vpack.c.b16 %v10463, %v10455
        %v11384 = vpack.c.b16 %v10464, %v10456
        %v11385 = vpack.c.b16 %v10465, %v10457
        %v11386 = vpack.c.b16 %v10466, %v10458
        %v11387 = vpack.c.b16 %v10467, %v10459
        %v11388 = vpack.c.b16 %v10468, %v10460
        %v11389 = vpack.c.b16 %v10469, %v10461
        %v11390 = vpack.c.b16 %v10470, %v10462
        %v11391 = vpack.c.b16 %v10479, %v10471
        %v11392 = vpack.c.b16 %v10480, %v10472
        %v11393 = vpack.c.b16 %v10481, %v10473
        %v11394 = vpack.c.b16 %v10482, %v10474
        %v11395 = vpack.c.b16 %v10483, %v10475
        %v11396 = vpack.c.b16 %v10484, %v10476
        %v11397 = vpack.c.b16 %v10485, %v10477
        %v11398 = vpack.c.b16 %v10486, %v10478
        %v11399 = vpack.c.b16 %v10495, %v10487
        %v11400 = vpack.c.b16 %v10496, %v10488
        %v11401 = vpack.c.b16 %v10497, %v10489
        %v11402 = vpack.c.b16 %v10498, %v10490
        %v11403 = vpack.c.b16 %v10499, %v10491
        %v11404 = vpack.c.b16 %v10500, %v10492
        %v11405 = vpack.c.b16 %v10501, %v10493
        %v11406 = vpack.c.b16 %v10502, %v10494
        %v11407 = vpack.c.b16 %v10511, %v10503
        %v11408 = vpack.c.b16 %v10512, %v10504
        %v11409 = vpack.c.b16 %v10513, %v10505
        %v11410 = vpack.c.b16 %v10514, %v10506
        %v11411 = vpack.c.b16 %v10515, %v10507
        %v11412 = vpack.c.b16 %v10516, %v10508
        %v11413 = vpack.c.b16 %v10517, %v10509
        %v11414 = vpack.c.b16 %v10518, %v10510
        %v11415 = vpack.c.b16 %v10527, %v10519
        %v11416 = vpack.c.b16 %v10528, %v10520
        %v11417 = vpack.c.b16 %v10529, %v10521
        %v11418 = vpack.c.b16 %v10530, %v10522
        %v11419 = vpack.c.b16 %v10531, %v10523
        %v11420 = vpack.c.b16 %v10532, %v10524
        %v11421 = vpack.c.b16 %v10533, %v10525
        %v11422 = vpack.c.b16 %v10534, %v10526
        %v11423 = vpack.c.b16 %v10543, %v10535
        %v11424 = vpack.c.b16 %v10544, %v10536
        %v11425 = vpack.c.b16 %v10545, %v10537
        %v11426 = vpack.c.b16 %v10546, %v10538
        %v11427 = vpack.c.b16 %v10547, %v10539
        %v11428 = vpack.c.b16 %v10548, %v10540
        %v11429 = vpack.c.b16 %v10549, %v10541
        %v11430 = vpack.c.b16 %v10550, %v10542
        %v11431 = vpack.c.b16 %v10559, %v10551
        %v11432 = vpack.c.b16 %v10560, %v10552
        %v11433 = vpack.c.b16 %v10561, %v10553
        %v11434 = vpack.c.b16 %v10562, %v10554
        %v11435 = vpack.c.b16 %v10563, %v10555
        %v11436 = vpack.c.b16 %v10564, %v10556
        %v11437 = vpack.c.b16 %v10565, %v10557
        %v11438 = vpack.c.b16 %v10566, %v10558
        %v11439 = vpack.c.b16 %v10575, %v10567
        %v11440 = vpack.c.b16 %v10576, %v10568
        %v11441 = vpack.c.b16 %v10577, %v10569
        %v11442 = vpack.c.b16 %v10578, %v10570
        %v11443 = vpack.c.b16 %v10579, %v10571
        %v11444 = vpack.c.b16 %v10580, %v10572
        %v11445 = vpack.c.b16 %v10581, %v10573
        %v11446 = vpack.c.b16 %v10582, %v10574
        %v11447 = vpack.c.b16 %v10591, %v10583
        %v11448 = vpack.c.b16 %v10592, %v10584
        %v11449 = vpack.c.b16 %v10593, %v10585
        %v11450 = vpack.c.b16 %v10594, %v10586
        %v11451 = vpack.c.b16 %v10595, %v10587
        %v11452 = vpack.c.b16 %v10596, %v10588
        %v11453 = vpack.c.b16 %v10597, %v10589
        %v11454 = vpack.c.b16 %v10598, %v10590
        %v11455 = vpack.c.b16 %v10607, %v10599
        %v11456 = vpack.c.b16 %v10608, %v10600
        %v11457 = vpack.c.b16 %v10609, %v10601
        %v11458 = vpack.c.b16 %v10610, %v10602
        %v11459 = vpack.c.b16 %v10611, %v10603
        %v11460 = vpack.c.b16 %v10612, %v10604
        %v11461 = vpack.c.b16 %v10613, %v10605
        %v11462 = vpack.c.b16 %v10614, %v10606
        %v11463 = vpack.c.b16 %v10623, %v10615
        %v11464 = vpack.c.b16 %v10624, %v10616
        %v11465 = vpack.c.b16 %v10625, %v10617
        %v11466 = vpack.c.b16 %v10626, %v10618
        %v11467 = vpack.c.b16 %v10627, %v10619
        %v11468 = vpack.c.b16 %v10628, %v10620
        %v11469 = vpack.c.b16 %v10629, %v10621
        %v11470 = vpack.c.b16 %v10630, %v10622
        %v11471 = vpack.c.b16 %v10639, %v10631
        %v11472 = vpack.c.b16 %v10640, %v10632
        %v11473 = vpack.c.b16 %v10641, %v10633
        %v11474 = vpack.c.b16 %v10642, %v10634
        %v11475 = vpack.c.b16 %v10643, %v10635
        %v11476 = vpack.c.b16 %v10644, %v10636
        %v11477 = vpack.c.b16 %v10645, %v10637
        %v11478 = vpack.c.b16 %v10646, %v10638
        %v11479 = vpack.c.b16 %v10655, %v10647
        %v11480 = vpack.c.b16 %v10656, %v10648
        %v11481 = vpack.c.b16 %v10657, %v10649
        %v11482 = vpack.c.b16 %v10658, %v10650
        %v11483 = vpack.c.b16 %v10659, %v10651
        %v11484 = vpack.c.b16 %v10660, %v10652
        %v11485 = vpack.c.b16 %v10661, %v10653
        %v11486 = vpack.c.b16 %v10662, %v10654
        %v11487 = vpack.c.b16 %v10671, %v10663
        %v11488 = vpack.c.b16 %v10672, %v10664
        %v11489 = vpack.c.b16 %v10673, %v10665
        %v11490 = vpack.c.b16 %v10674, %v10666
        %v11491 = vpack.c.b16 %v10675, %v10667
        %v11492 = vpack.c.b16 %v10676, %v10668
        %v11493 = vpack.c.b16 %v10677, %v10669
        %v11494 = vpack.c.b16 %v10678, %v10670
        %v11495 = vpack.c.b16 %v10687, %v10679
        %v11496 = vpack.c.b16 %v10688, %v10680
        %v11497 = vpack.c.b16 %v10689, %v10681
        %v11498 = vpack.c.b16 %v10690, %v10682
        %v11499 = vpack.c.b16 %v10691, %v10683
        %v11500 = vpack.c.b16 %v10692, %v10684
        %v11501 = vpack.c.b16 %v10693, %v10685
        %v11502 = vpack.c.b16 %v10694, %v10686
        %v11503 = vpack.c.b16 %v10703, %v10695
        %v11504 = vpack.c.b16 %v10704, %v10696
        %v11505 = vpack.c.b16 %v10705, %v10697
        %v11506 = vpack.c.b16 %v10706, %v10698
        %v11507 = vpack.c.b16 %v10707, %v10699
        %v11508 = vpack.c.b16 %v10708, %v10700
        %v11509 = vpack.c.b16 %v10709, %v10701
        %v11510 = vpack.c.b16 %v10710, %v10702
        %v11511 = vpack.c.b16 %v10719, %v10711
        %v11512 = vpack.c.b16 %v10720, %v10712
        %v11513 = vpack.c.b16 %v10721, %v10713
        %v11514 = vpack.c.b16 %v10722, %v10714
        %v11515 = vpack.c.b16 %v10723, %v10715
        %v11516 = vpack.c.b16 %v10724, %v10716
        %v11517 = vpack.c.b16 %v10725, %v10717
        %v11518 = vpack.c.b16 %v10726, %v10718
        %v11519 = vpack.c.b16 %v10735, %v10727
        %v11520 = vpack.c.b16 %v10736, %v10728
        %v11521 = vpack.c.b16 %v10737, %v10729
        %v11522 = vpack.c.b16 %v10738, %v10730
        %v11523 = vpack.c.b16 %v10739, %v10731
        %v11524 = vpack.c.b16 %v10740, %v10732
        %v11525 = vpack.c.b16 %v10741, %v10733
        %v11526 = vpack.c.b16 %v10742, %v10734
        %v11527 = vpack.c.b16 %v10751, %v10743
        %v11528 = vpack.c.b16 %v10752, %v10744
        %v11529 = vpack.c.b16 %v10753, %v10745
        %v11530 = vpack.c.b16 %v10754, %v10746
        %v11531 = vpack.c.b16 %v10755, %v10747
        %v11532 = vpack.c.b16 %v10756, %v10748
        %v11533 = vpack.c.b16 %v10757, %v10749
        %v11534 = vpack.c.b16 %v10758, %v10750
        %v11535 = vpack.c.b16 %v10767, %v10759
        %v11536 = vpack.c.b16 %v10768, %v10760
        %v11537 = vpack.c.b16 %v10769, %v10761
        %v11538 = vpack.c.b16 %v10770, %v10762
        %v11539 = vpack.c.b16 %v10771, %v10763
        %v11540 = vpack.c.b16 %v10772, %v10764
        %v11541 = vpack.c.b16 %v10773, %v10765
        %v11542 = vpack.c.b16 %v10774, %v10766
        %v11543 = vpack.c.b16 %v10783, %v10775
        %v11544 = vpack.c.b16 %v10784, %v10776
        %v11545 = vpack.c.b16 %v10785, %v10777
        %v11546 = vpack.c.b16 %v10786, %v10778
        %v11547 = vpack.c.b16 %v10787, %v10779
        %v11548 = vpack.c.b16 %v10788, %v10780
        %v11549 = vpack.c.b16 %v10789, %v10781
        %v11550 = vpack.c.b16 %v10790, %v10782
        %v11551 = vpack.c.b16 %v10799, %v10791
        %v11552 = vpack.c.b16 %v10800, %v10792
        %v11553 = vpack.c.b16 %v10801, %v10793
        %v11554 = vpack.c.b16 %v10802, %v10794
        %v11555 = vpack.c.b16 %v10803, %v10795
        %v11556 = vpack.c.b16 %v10804, %v10796
        %v11557 = vpack.c.b16 %v10805, %v10797
        %v11558 = vpack.c.b16 %v10806, %v10798
        %v11559 = vpack.c.b16 %v10815, %v10807
        %v11560 = vpack.c.b16 %v10816, %v10808
        %v11561 = vpack.c.b16 %v10817, %v10809
        %v11562 = vpack.c.b16 %v10818, %v10810
        %v11563 = vpack.c.b16 %v10819, %v10811
        %v11564 = vpack.c.b16 %v10820, %v10812
        %v11565 = vpack.c.b16 %v10821, %v10813
        %v11566 = vpack.c.b16 %v10822, %v10814
        %v11567 = vpack.c.b16 %v10831, %v10823
        %v11568 = vpack.c.b16 %v10832, %v10824
        %v11569 = vpack.c.b16 %v10833, %v10825
        %v11570 = vpack.c.b16 %v10834, %v10826
        %v11571 = vpack.c.b16 %v10835, %v10827
        %v11572 = vpack.c.b16 %v10836, %v10828
        %v11573 = vpack.c.b16 %v10837, %v10829
        %v11574 = vpack.c.b16 %v10838, %v10830
        %v11575 = vpack.c.b16 %v10847, %v10839
        %v11576 = vpack.c.b16 %v10848, %v10840
        %v11577 = vpack.c.b16 %v10849, %v10841
        %v11578 = vpack.c.b16 %v10850, %v10842
        %v11579 = vpack.c.b16 %v10851, %v10843
        %v11580 = vpack.c.b16 %v10852, %v10844
        %v11581 = vpack.c.b16 %v10853, %v10845
        %v11582 = vpack.c.b16 %v10854, %v10846
        %v11583 = vpack.c.b16 %v10863, %v10855
        %v11584 = vpack.c.b16 %v10864, %v10856
        %v11585 = vpack.c.b16 %v10865, %v10857
        %v11586 = vpack.c.b16 %v10866, %v10858
        %v11587 = vpack.c.b16 %v10867, %v10859
        %v11588 = vpack.c.b16 %v10868, %v10860
        %v11589 = vpack.c.b16 %v10869, %v10861
        %v11590 = vpack.c.b16 %v10870, %v10862
        %v11591 = vpack.c.b16 %v10879, %v10871
        %v11592 = vpack.c.b16 %v10880, %v10872
        %v11593 = vpack.c.b16 %v10881, %v10873
        %v11594 = vpack.c.b16 %v10882, %v10874
        %v11595 = vpack.c.b16 %v10883, %v10875
        %v11596 = vpack.c.b16 %v10884, %v10876
        %v11597 = vpack.c.b16 %v10885, %v10877
        %v11598 = vpack.c.b16 %v10886, %v10878
        %v11599 = vpack.c.b16 %v10895, %v10887
        %v11600 = vpack.c.b16 %v10896, %v10888
        %v11601 = vpack.c.b16 %v10897, %v10889
        %v11602 = vpack.c.b16 %v10898, %v10890
        %v11603 = vpack.c.b16 %v10899, %v10891
        %v11604 = vpack.c.b16 %v10900, %v10892
        %v11605 = vpack.c.b16 %v10901, %v10893
        %v11606 = vpack.c.b16 %v10902, %v10894
        %v11607 = vpack.c.b16 %v10911, %v10903
        %v11608 = vpack.c.b16 %v10912, %v10904
        %v11609 = vpack.c.b16 %v10913, %v10905
        %v11610 = vpack.c.b16 %v10914, %v10906
        %v11611 = vpack.c.b16 %v10915, %v10907
        %v11612 = vpack.c.b16 %v10916, %v10908
        %v11613 = vpack.c.b16 %v10917, %v10909
        %v11614 = vpack.c.b16 %v10918, %v10910
        %v11615 = vpack.c.b16 %v10927, %v10919
        %v11616 = vpack.c.b16 %v10928, %v10920
        %v11617 = vpack.c.b16 %v10929, %v10921
        %v11618 = vpack.c.b16 %v10930, %v10922
        %v11619 = vpack.c.b16 %v10931, %v10923
        %v11620 = vpack.c.b16 %v10932, %v10924
        %v11621 = vpack.c.b16 %v10933, %v10925
        %v11622 = vpack.c.b16 %v10934, %v10926
        %v11623 = vpack.c.b16 %v10943, %v10935
        %v11624 = vpack.c.b16 %v10944, %v10936
        %v11625 = vpack.c.b16 %v10945, %v10937
        %v11626 = vpack.c.b16 %v10946, %v10938
        %v11627 = vpack.c.b16 %v10947, %v10939
        %v11628 = vpack.c.b16 %v10948, %v10940
        %v11629 = vpack.c.b16 %v10949, %v10941
        %v11630 = vpack.c.b16 %v10950, %v10942
        %v11631 = vpack.c.b16 %v10959, %v10951
        %v11632 = vpack.c.b16 %v10960, %v10952
        %v11633 = vpack.c.b16 %v10961, %v10953
        %v11634 = vpack.c.b16 %v10962, %v10954
        %v11635 = vpack.c.b16 %v10963, %v10955
        %v11636 = vpack.c.b16 %v10964, %v10956
        %v11637 = vpack.c.b16 %v10965, %v10957
        %v11638 = vpack.c.b16 %v10966, %v10958
        %v11639 = vpack.c.b16 %v10975, %v10967
        %v11640 = vpack.c.b16 %v10976, %v10968
        %v11641 = vpack.c.b16 %v10977, %v10969
        %v11642 = vpack.c.b16 %v10978, %v10970
        %v11643 = vpack.c.b16 %v10979, %v10971
        %v11644 = vpack.c.b16 %v10980, %v10972
        %v11645 = vpack.c.b16 %v10981, %v10973
        %v11646 = vpack.c.b16 %v10982, %v10974
        %v11647 = vpack.c.b16 %v10991, %v10983
        %v11648 = vpack.c.b16 %v10992, %v10984
        %v11649 = vpack.c.b16 %v10993, %v10985
        %v11650 = vpack.c.b16 %v10994, %v10986
        %v11651 = vpack.c.b16 %v10995, %v10987
        %v11652 = vpack.c.b16 %v10996, %v10988
        %v11653 = vpack.c.b16 %v10997, %v10989
        %v11654 = vpack.c.b16 %v10998, %v10990
        %v11655 = vpack.c.b16 %v11007, %v10999
        %v11656 = vpack.c.b16 %v11008, %v11000
        %v11657 = vpack.c.b16 %v11009, %v11001
        %v11658 = vpack.c.b16 %v11010, %v11002
        %v11659 = vpack.c.b16 %v11011, %v11003
        %v11660 = vpack.c.b16 %v11012, %v11004
        %v11661 = vpack.c.b16 %v11013, %v11005
        %v11662 = vpack.c.b16 %v11014, %v11006
        %v11663 = vpack.c.b16 %v11023, %v11015
        %v11664 = vpack.c.b16 %v11024, %v11016
        %v11665 = vpack.c.b16 %v11025, %v11017
        %v11666 = vpack.c.b16 %v11026, %v11018
        %v11667 = vpack.c.b16 %v11027, %v11019
        %v11668 = vpack.c.b16 %v11028, %v11020
        %v11669 = vpack.c.b16 %v11029, %v11021
        %v11670 = vpack.c.b16 %v11030, %v11022
        %v11671 = vpack.c.b16 %v11039, %v11031
        %v11672 = vpack.c.b16 %v11040, %v11032
        %v11673 = vpack.c.b16 %v11041, %v11033
        %v11674 = vpack.c.b16 %v11042, %v11034
        %v11675 = vpack.c.b16 %v11043, %v11035
        %v11676 = vpack.c.b16 %v11044, %v11036
        %v11677 = vpack.c.b16 %v11045, %v11037
        %v11678 = vpack.c.b16 %v11046, %v11038
        %v11679 = vpack.c.b16 %v11055, %v11047
        %v11680 = vpack.c.b16 %v11056, %v11048
        %v11681 = vpack.c.b16 %v11057, %v11049
        %v11682 = vpack.c.b16 %v11058, %v11050
        %v11683 = vpack.c.b16 %v11059, %v11051
        %v11684 = vpack.c.b16 %v11060, %v11052
        %v11685 = vpack.c.b16 %v11061, %v11053
        %v11686 = vpack.c.b16 %v11062, %v11054
        %v11687 = vpack.c.b16 %v11071, %v11063
        %v11688 = vpack.c.b16 %v11072, %v11064
        %v11689 = vpack.c.b16 %v11073, %v11065
        %v11690 = vpack.c.b16 %v11074, %v11066
        %v11691 = vpack.c.b16 %v11075, %v11067
        %v11692 = vpack.c.b16 %v11076, %v11068
        %v11693 = vpack.c.b16 %v11077, %v11069
        %v11694 = vpack.c.b16 %v11078, %v11070
        %v11695 = vpack.c.b16 %v11087, %v11079
        %v11696 = vpack.c.b16 %v11088, %v11080
        %v11697 = vpack.c.b16 %v11089, %v11081
        %v11698 = vpack.c.b16 %v11090, %v11082
        %v11699 = vpack.c.b16 %v11091, %v11083
        %v11700 = vpack.c.b16 %v11092, %v11084
        %v11701 = vpack.c.b16 %v11093, %v11085
        %v11702 = vpack.c.b16 %v11094, %v11086
        %v11703 = vpack.c.b16 %v11103, %v11095
        %v11704 = vpack.c.b16 %v11104, %v11096
        %v11705 = vpack.c.b16 %v11105, %v11097
        %v11706 = vpack.c.b16 %v11106, %v11098
        %v11707 = vpack.c.b16 %v11107, %v11099
        %v11708 = vpack.c.b16 %v11108, %v11100
        %v11709 = vpack.c.b16 %v11109, %v11101
        %v11710 = vpack.c.b16 %v11110, %v11102
        %v11711 = vpack.c.b16 %v11119, %v11111
        %v11712 = vpack.c.b16 %v11120, %v11112
        %v11713 = vpack.c.b16 %v11121, %v11113
        %v11714 = vpack.c.b16 %v11122, %v11114
        %v11715 = vpack.c.b16 %v11123, %v11115
        %v11716 = vpack.c.b16 %v11124, %v11116
        %v11717 = vpack.c.b16 %v11125, %v11117
        %v11718 = vpack.c.b16 %v11126, %v11118
        %v11719 = vpack.c.b16 %v11135, %v11127
        %v11720 = vpack.c.b16 %v11136, %v11128
        %v11721 = vpack.c.b16 %v11137, %v11129
        %v11722 = vpack.c.b16 %v11138, %v11130
        %v11723 = vpack.c.b16 %v11139, %v11131
        %v11724 = vpack.c.b16 %v11140, %v11132
        %v11725 = vpack.c.b16 %v11141, %v11133
        %v11726 = vpack.c.b16 %v11142, %v11134
        %v11727 = vpack.c.b16 %v11151, %v11143
        %v11728 = vpack.c.b16 %v11152, %v11144
        %v11729 = vpack.c.b16 %v11153, %v11145
        %v11730 = vpack.c.b16 %v11154, %v11146
        %v11731 = vpack.c.b16 %v11155, %v11147
        %v11732 = vpack.c.b16 %v11156, %v11148
        %v11733 = vpack.c.b16 %v11157, %v11149
        %v11734 = vpack.c.b16 %v11158, %v11150
        %v11735 = vpack.c.b16 %v11167, %v11159
        %v11736 = vpack.c.b16 %v11168, %v11160
        %v11737 = vpack.c.b16 %v11169, %v11161
        %v11738 = vpack.c.b16 %v11170, %v11162
        %v11739 = vpack.c.b16 %v11171, %v11163
        %v11740 = vpack.c.b16 %v11172, %v11164
        %v11741 = vpack.c.b16 %v11173, %v11165
        %v11742 = vpack.c.b16 %v11174, %v11166
        %v11743 = vpack.c.b16 %v11183, %v11175
        %v11744 = vpack.c.b16 %v11184, %v11176
        %v11745 = vpack.c.b16 %v11185, %v11177
        %v11746 = vpack.c.b16 %v11186, %v11178
        %v11747 = vpack.c.b16 %v11187, %v11179
        %v11748 = vpack.c.b16 %v11188, %v11180
        %v11749 = vpack.c.b16 %v11189, %v11181
        %v11750 = vpack.c.b16 %v11190, %v11182
        %v11751 = vpack.c.b16 %v11199, %v11191
        %v11752 = vpack.c.b16 %v11200, %v11192
        %v11753 = vpack.c.b16 %v11201, %v11193
        %v11754 = vpack.c.b16 %v11202, %v11194
        %v11755 = vpack.c.b16 %v11203, %v11195
        %v11756 = vpack.c.b16 %v11204, %v11196
        %v11757 = vpack.c.b16 %v11205, %v11197
        %v11758 = vpack.c.b16 %v11206, %v11198
        %v11759 = vpack.c.b16 %v11215, %v11207
        %v11760 = vpack.c.b16 %v11216, %v11208
        %v11761 = vpack.c.b16 %v11217, %v11209
        %v11762 = vpack.c.b16 %v11218, %v11210
        %v11763 = vpack.c.b16 %v11219, %v11211
        %v11764 = vpack.c.b16 %v11220, %v11212
        %v11765 = vpack.c.b16 %v11221, %v11213
        %v11766 = vpack.c.b16 %v11222, %v11214
        %v11767 = vpack.c.b16 %v11231, %v11223
        %v11768 = vpack.c.b16 %v11232, %v11224
        %v11769 = vpack.c.b16 %v11233, %v11225
        %v11770 = vpack.c.b16 %v11234, %v11226
        %v11771 = vpack.c.b16 %v11235, %v11227
        %v11772 = vpack.c.b16 %v11236, %v11228
        %v11773 = vpack.c.b16 %v11237, %v11229
        %v11774 = vpack.c.b16 %v11238, %v11230
        %v11775 = vpack.c.b16 %v11247, %v11239
        %v11776 = vpack.c.b16 %v11248, %v11240
        %v11777 = vpack.c.b16 %v11249, %v11241
        %v11778 = vpack.c.b16 %v11250, %v11242
        %v11779 = vpack.c.b16 %v11251, %v11243
        %v11780 = vpack.c.b16 %v11252, %v11244
        %v11781 = vpack.c.b16 %v11253, %v11245
        %v11782 = vpack.c.b16 %v11254, %v11246
        %v11783 = vpack.c.b16 %v11263, %v11255
        %v11784 = vpack.c.b16 %v11264, %v11256
        %v11785 = vpack.c.b16 %v11265, %v11257
        %v11786 = vpack.c.b16 %v11266, %v11258
        %v11787 = vpack.c.b16 %v11267, %v11259
        %v11788 = vpack.c.b16 %v11268, %v11260
        %v11789 = vpack.c.b16 %v11269, %v11261
        %v11790 = vpack.c.b16 %v11270, %v11262
        %v11791 = vpack.c.b16 %v11279, %v11271
        %v11792 = vpack.c.b16 %v11280, %v11272
        %v11793 = vpack.c.b16 %v11281, %v11273
        %v11794 = vpack.c.b16 %v11282, %v11274
        %v11795 = vpack.c.b16 %v11283, %v11275
        %v11796 = vpack.c.b16 %v11284, %v11276
        %v11797 = vpack.c.b16 %v11285, %v11277
        %v11798 = vpack.c.b16 %v11286, %v11278
        %12311 = vmatprep.subr.bf16.mxu0 %v11288
        %12312 = vmatpush1.bf16.msra.mxu0 %v11287
        %12313 = vmatprep.subr.bf16.mxu0 %v11296
        %12314 = vmatpush1.bf16.msra.mxu0 %v11295
        %12315 = vmatprep.subr.bf16.mxu0 %v11304
        %12316 = vmatpush1.bf16.msra.mxu0 %v11303
        %12317 = vmatprep.subr.bf16.mxu0 %v11312
        %12318 = vmatpush1.bf16.msra.mxu0 %v11311
        %12319 = vmatprep.subr.bf16.mxu0 %v11320
        %12320 = vmatpush1.bf16.msra.mxu0 %v11319
        %12321 = vmatprep.subr.bf16.mxu0 %v11328
        %12322 = vmatpush1.bf16.msra.mxu0 %v11327
        %12323 = vmatprep.subr.bf16.mxu0 %v11336
        %12324 = vmatpush1.bf16.msra.mxu0 %v11335
        %12325 = vmatprep.subr.bf16.mxu0 %v11344
        %12326 = vmatpush1.bf16.msra.mxu0 %v11343
        %12327 = vmatprep.subr.bf16.mxu0 %v11352
        %12328 = vmatpush1.bf16.msra.mxu0 %v11351
        %12329 = vmatprep.subr.bf16.mxu0 %v11360
        %12330 = vmatpush1.bf16.msra.mxu0 %v11359
        %12331 = vmatprep.subr.bf16.mxu0 %v11368
        %12332 = vmatpush1.bf16.msra.mxu0 %v11367
        %12333 = vmatprep.subr.bf16.mxu0 %v11376
        %12334 = vmatpush1.bf16.msra.mxu0 %v11375
        %12335 = vmatprep.subr.bf16.mxu0 %v11384
        %12336 = vmatpush1.bf16.msra.mxu0 %v11383
        %12337 = vmatprep.subr.bf16.mxu0 %v11392
        %12338 = vmatpush1.bf16.msra.mxu0 %v11391
        %12339 = vmatprep.subr.bf16.mxu0 %v11400
        %12340 = vmatpush1.bf16.msra.mxu0 %v11399
        %12341 = vmatprep.subr.bf16.mxu0 %v11408
        %12342 = vmatpush1.bf16.msra.mxu0 %v11407
        %12343 = vmatprep.mubr.bf16.mxu0 %v9232
        %12344 = vmatmul.mubr.bf16.gmra.mrb[0].mxu0 %v9231
        %v12345 = vpop.f32.mrb[0].mxu0
        %v12346 = vadd.f32 0.0, %v12345
        %v12347 = vpop.f32.mrb[0].mxu0
        %v12348 = vadd.f32 0.0, %v12347
        %v12349 = vpop.f32.mrb[0].mxu0
        %v12350 = vpop.f32.mrb[0].mxu0
        %12351 = vdwg.mxu0
        %12352 = vmatprep.subr.bf16.mxu0 %v11416
        %12353 = vmatpush1.bf16.msra.mxu0 %v11415
        %12354 = vmatprep.subr.bf16.mxu0 %v11424
        %12355 = vmatpush1.bf16.msra.mxu0 %v11423
        %12356 = vmatprep.subr.bf16.mxu0 %v11432
        %12357 = vmatpush1.bf16.msra.mxu0 %v11431
        %12358 = vmatprep.subr.bf16.mxu0 %v11440
        %12359 = vmatpush1.bf16.msra.mxu0 %v11439
        %12360 = vmatprep.subr.bf16.mxu0 %v11448
        %12361 = vmatpush1.bf16.msra.mxu0 %v11447
        %12362 = vmatprep.subr.bf16.mxu0 %v11456
        %12363 = vmatpush1.bf16.msra.mxu0 %v11455
        %12364 = vmatprep.subr.bf16.mxu0 %v11464
        %12365 = vmatpush1.bf16.msra.mxu0 %v11463
        %12366 = vmatprep.subr.bf16.mxu0 %v11472
        %12367 = vmatpush1.bf16.msra.mxu0 %v11471
        %12368 = vmatprep.subr.bf16.mxu0 %v11480
        %12369 = vmatpush1.bf16.msra.mxu0 %v11479
        %12370 = vmatprep.subr.bf16.mxu0 %v11488
        %12371 = vmatpush1.bf16.msra.mxu0 %v11487
        %12372 = vmatprep.subr.bf16.mxu0 %v11496
        %12373 = vmatpush1.bf16.msra.mxu0 %v11495
        %12374 = vmatprep.subr.bf16.mxu0 %v11504
        %12375 = vmatpush1.bf16.msra.mxu0 %v11503
        %12376 = vmatprep.subr.bf16.mxu0 %v11512
        %12377 = vmatpush1.bf16.msra.mxu0 %v11511
        %12378 = vmatprep.subr.bf16.mxu0 %v11520
        %12379 = vmatpush1.bf16.msra.mxu0 %v11519
        %12380 = vmatprep.subr.bf16.mxu0 %v11528
        %12381 = vmatpush1.bf16.msra.mxu0 %v11527
        %12382 = vmatprep.subr.bf16.mxu0 %v11536
        %12383 = vmatpush1.bf16.msra.mxu0 %v11535
        %12384 = vmatprep.mubr.bf16.mxu0 %v9234
        %12385 = vmatmul.mubr.bf16.gmra.mrb[0].mxu0 %v9233
        %v12386 = vpop.f32.mrb[0].mxu0
        %v12387 = vadd.f32 %v12346, %v12386
        %v12388 = vpop.f32.mrb[0].mxu0
        %v12389 = vadd.f32 %v12348, %v12388
        %v12390 = vpop.f32.mrb[0].mxu0
        %v12391 = vpop.f32.mrb[0].mxu0
        %12392 = vdwg.mxu0
        %12393 = vmatprep.subr.bf16.mxu0 %v11544
        %12394 = vmatpush1.bf16.msra.mxu0 %v11543
        %12395 = vmatprep.subr.bf16.mxu0 %v11552
        %12396 = vmatpush1.bf16.msra.mxu0 %v11551
        %12397 = vmatprep.subr.bf16.mxu0 %v11560
        %12398 = vmatpush1.bf16.msra.mxu0 %v11559
        %12399 = vmatprep.subr.bf16.mxu0 %v11568
        %12400 = vmatpush1.bf16.msra.mxu0 %v11567
        %12401 = vmatprep.subr.bf16.mxu0 %v11576
        %12402 = vmatpush1.bf16.msra.mxu0 %v11575
        %12403 = vmatprep.subr.bf16.mxu0 %v11584
        %12404 = vmatpush1.bf16.msra.mxu0 %v11583
        %12405 = vmatprep.subr.bf16.mxu0 %v11592
        %12406 = vmatpush1.bf16.msra.mxu0 %v11591
        %12407 = vmatprep.subr.bf16.mxu0 %v11600
        %12408 = vmatpush1.bf16.msra.mxu0 %v11599
        %12409 = vmatprep.subr.bf16.mxu0 %v11608
        %12410 = vmatpush1.bf16.msra.mxu0 %v11607
        %12411 = vmatprep.subr.bf16.mxu0 %v11616
        %12412 = vmatpush1.bf16.msra.mxu0 %v11615
        %12413 = vmatprep.subr.bf16.mxu0 %v11624
        %12414 = vmatpush1.bf16.msra.mxu0 %v11623
        %12415 = vmatprep.subr.bf16.mxu0 %v11632
        %12416 = vmatpush1.bf16.msra.mxu0 %v11631
        %12417 = vmatprep.subr.bf16.mxu0 %v11640
        %12418 = vmatpush1.bf16.msra.mxu0 %v11639
        %12419 = vmatprep.subr.bf16.mxu0 %v11648
        %12420 = vmatpush1.bf16.msra.mxu0 %v11647
        %12421 = vmatprep.subr.bf16.mxu0 %v11656
        %12422 = vmatpush1.bf16.msra.mxu0 %v11655
        %12423 = vmatprep.subr.bf16.mxu0 %v11664
        %12424 = vmatpush1.bf16.msra.mxu0 %v11663
        %12425 = vmatprep.mubr.bf16.mxu0 %v9236
        %12426 = vmatmul.mubr.bf16.gmra.mrb[0].mxu0 %v9235
        %v12427 = vpop.f32.mrb[0].mxu0
        %v12428 = vadd.f32 %v12387, %v12427
        %v12429 = vpop.f32.mrb[0].mxu0
        %v12430 = vadd.f32 %v12389, %v12429
        %v12431 = vpop.f32.mrb[0].mxu0
        %v12432 = vpop.f32.mrb[0].mxu0
        %12433 = vdwg.mxu0
        %12434 = vmatprep.subr.bf16.mxu0 %v11672
        %12435 = vmatpush1.bf16.msra.mxu0 %v11671
        %12436 = vmatprep.subr.bf16.mxu0 %v11680
        %12437 = vmatpush1.bf16.msra.mxu0 %v11679
        %12438 = vmatprep.subr.bf16.mxu0 %v11688
        %12439 = vmatpush1.bf16.msra.mxu0 %v11687
        %12440 = vmatprep.subr.bf16.mxu0 %v11696
        %12441 = vmatpush1.bf16.msra.mxu0 %v11695
        %12442 = vmatprep.subr.bf16.mxu0 %v11704
        %12443 = vmatpush1.bf16.msra.mxu0 %v11703
        %12444 = vmatprep.subr.bf16.mxu0 %v11712
        %12445 = vmatpush1.bf16.msra.mxu0 %v11711
        %12446 = vmatprep.subr.bf16.mxu0 %v11720
        %12447 = vmatpush1.bf16.msra.mxu0 %v11719
        %12448 = vmatprep.subr.bf16.mxu0 %v11728
        %12449 = vmatpush1.bf16.msra.mxu0 %v11727
        %12450 = vmatprep.subr.bf16.mxu0 %v11736
        %12451 = vmatpush1.bf16.msra.mxu0 %v11735
        %12452 = vmatprep.subr.bf16.mxu0 %v11744
        %12453 = vmatpush1.bf16.msra.mxu0 %v11743
        %12454 = vmatprep.subr.bf16.mxu0 %v11752
        %12455 = vmatpush1.bf16.msra.mxu0 %v11751
        %12456 = vmatprep.subr.bf16.mxu0 %v11760
        %12457 = vmatpush1.bf16.msra.mxu0 %v11759
        %12458 = vmatprep.subr.bf16.mxu0 %v11768
        %12459 = vmatpush1.bf16.msra.mxu0 %v11767
        %12460 = vmatprep.subr.bf16.mxu0 %v11776
        %12461 = vmatpush1.bf16.msra.mxu0 %v11775
        %12462 = vmatprep.subr.bf16.mxu0 %v11784
        %12463 = vmatpush1.bf16.msra.mxu0 %v11783
        %12464 = vmatprep.subr.bf16.mxu0 %v11792
        %12465 = vmatpush1.bf16.msra.mxu0 %v11791
        %12466 = vmatprep.mubr.bf16.mxu0 %v9238
        %12467 = vmatmul.mubr.bf16.gmra.mrb[0].mxu0 %v9237
        %v12468 = vpop.f32.mrb[0].mxu0
        %v12469 = vadd.f32 %v12428, %v12468
        %v12470 = vpop.f32.mrb[0].mxu0
        %v12471 = vadd.f32 %v12430, %v12470
        %v12472 = vpop.f32.mrb[0].mxu0
        %v12473 = vpop.f32.mrb[0].mxu0
        %12474 = vdwg.mxu0
        %12475 = vmatprep.subr.bf16.mxu0 %v11290
        %12476 = vmatpush1.bf16.msra.mxu0 %v11289
        %12477 = vmatprep.subr.bf16.mxu0 %v11298
        %12478 = vmatpush1.bf16.msra.mxu0 %v11297
        %12479 = vmatprep.subr.bf16.mxu0 %v11306
        %12480 = vmatpush1.bf16.msra.mxu0 %v11305
        %12481 = vmatprep.subr.bf16.mxu0 %v11314
        %12482 = vmatpush1.bf16.msra.mxu0 %v11313
        %12483 = vmatprep.subr.bf16.mxu0 %v11322
        %12484 = vmatpush1.bf16.msra.mxu0 %v11321
        %12485 = vmatprep.subr.bf16.mxu0 %v11330
        %12486 = vmatpush1.bf16.msra.mxu0 %v11329
        %12487 = vmatprep.subr.bf16.mxu0 %v11338
        %12488 = vmatpush1.bf16.msra.mxu0 %v11337
        %12489 = vmatprep.subr.bf16.mxu0 %v11346
        %12490 = vmatpush1.bf16.msra.mxu0 %v11345
        %12491 = vmatprep.subr.bf16.mxu0 %v11354
        %12492 = vmatpush1.bf16.msra.mxu0 %v11353
        %12493 = vmatprep.subr.bf16.mxu0 %v11362
        %12494 = vmatpush1.bf16.msra.mxu0 %v11361
        %12495 = vmatprep.subr.bf16.mxu0 %v11370
        %12496 = vmatpush1.bf16.msra.mxu0 %v11369
        %12497 = vmatprep.subr.bf16.mxu0 %v11378
        %12498 = vmatpush1.bf16.msra.mxu0 %v11377
        %12499 = vmatprep.subr.bf16.mxu0 %v11386
        %12500 = vmatpush1.bf16.msra.mxu0 %v11385
        %12501 = vmatprep.subr.bf16.mxu0 %v11394
        %12502 = vmatpush1.bf16.msra.mxu0 %v11393
        %12503 = vmatprep.subr.bf16.mxu0 %v11402
        %12504 = vmatpush1.bf16.msra.mxu0 %v11401
        %12505 = vmatprep.subr.bf16.mxu0 %v11410
        %12506 = vmatpush1.bf16.msra.mxu0 %v11409
        %12507 = vmatprep.mubr.bf16.mxu0 %v9232
        %12508 = vmatmul.mubr.bf16.gmra.mrb[0].mxu0 %v9231
        %v12509 = vpop.f32.mrb[0].mxu0
        %v12510 = vadd.f32 0.0, %v12509
        %v12511 = vpop.f32.mrb[0].mxu0
        %v12512 = vadd.f32 0.0, %v12511
        %v12513 = vpop.f32.mrb[0].mxu0
        %v12514 = vpop.f32.mrb[0].mxu0
        %12515 = vdwg.mxu0
        %12516 = vmatprep.subr.bf16.mxu0 %v11418
        %12517 = vmatpush1.bf16.msra.mxu0 %v11417
        %12518 = vmatprep.subr.bf16.mxu0 %v11426
        %12519 = vmatpush1.bf16.msra.mxu0 %v11425
        %12520 = vmatprep.subr.bf16.mxu0 %v11434
        %12521 = vmatpush1.bf16.msra.mxu0 %v11433
        %12522 = vmatprep.subr.bf16.mxu0 %v11442
        %12523 = vmatpush1.bf16.msra.mxu0 %v11441
        %12524 = vmatprep.subr.bf16.mxu0 %v11450
        %12525 = vmatpush1.bf16.msra.mxu0 %v11449
        %12526 = vmatprep.subr.bf16.mxu0 %v11458
        %12527 = vmatpush1.bf16.msra.mxu0 %v11457
        %12528 = vmatprep.subr.bf16.mxu0 %v11466
        %12529 = vmatpush1.bf16.msra.mxu0 %v11465
        %12530 = vmatprep.subr.bf16.mxu0 %v11474
        %12531 = vmatpush1.bf16.msra.mxu0 %v11473
        %12532 = vmatprep.subr.bf16.mxu0 %v11482
        %12533 = vmatpush1.bf16.msra.mxu0 %v11481
        %12534 = vmatprep.subr.bf16.mxu0 %v11490
        %12535 = vmatpush1.bf16.msra.mxu0 %v11489
        %12536 = vmatprep.subr.bf16.mxu0 %v11498
        %12537 = vmatpush1.bf16.msra.mxu0 %v11497
        %12538 = vmatprep.subr.bf16.mxu0 %v11506
        %12539 = vmatpush1.bf16.msra.mxu0 %v11505
        %12540 = vmatprep.subr.bf16.mxu0 %v11514
        %12541 = vmatpush1.bf16.msra.mxu0 %v11513
        %12542 = vmatprep.subr.bf16.mxu0 %v11522
        %12543 = vmatpush1.bf16.msra.mxu0 %v11521
        %12544 = vmatprep.subr.bf16.mxu0 %v11530
        %12545 = vmatpush1.bf16.msra.mxu0 %v11529
        %12546 = vmatprep.subr.bf16.mxu0 %v11538
        %12547 = vmatpush1.bf16.msra.mxu0 %v11537
        %12548 = vmatprep.mubr.bf16.mxu0 %v9234
        %12549 = vmatmul.mubr.bf16.gmra.mrb[0].mxu0 %v9233
        %v12550 = vpop.f32.mrb[0].mxu0
        %v12551 = vadd.f32 %v12510, %v12550
        %v12552 = vpop.f32.mrb[0].mxu0
        %v12553 = vadd.f32 %v12512, %v12552
        %v12554 = vpop.f32.mrb[0].mxu0
        %v12555 = vpop.f32.mrb[0].mxu0
        %12556 = vdwg.mxu0
        %12557 = vmatprep.subr.bf16.mxu0 %v11546
        %12558 = vmatpush1.bf16.msra.mxu0 %v11545
        %12559 = vmatprep.subr.bf16.mxu0 %v11554
        %12560 = vmatpush1.bf16.msra.mxu0 %v11553
        %12561 = vmatprep.subr.bf16.mxu0 %v11562
        %12562 = vmatpush1.bf16.msra.mxu0 %v11561
        %12563 = vmatprep.subr.bf16.mxu0 %v11570
        %12564 = vmatpush1.bf16.msra.mxu0 %v11569
        %12565 = vmatprep.subr.bf16.mxu0 %v11578
        %12566 = vmatpush1.bf16.msra.mxu0 %v11577
        %12567 = vmatprep.subr.bf16.mxu0 %v11586
        %12568 = vmatpush1.bf16.msra.mxu0 %v11585
        %12569 = vmatprep.subr.bf16.mxu0 %v11594
        %12570 = vmatpush1.bf16.msra.mxu0 %v11593
        %12571 = vmatprep.subr.bf16.mxu0 %v11602
        %12572 = vmatpush1.bf16.msra.mxu0 %v11601
        %12573 = vmatprep.subr.bf16.mxu0 %v11610
        %12574 = vmatpush1.bf16.msra.mxu0 %v11609
        %12575 = vmatprep.subr.bf16.mxu0 %v11618
        %12576 = vmatpush1.bf16.msra.mxu0 %v11617
        %12577 = vmatprep.subr.bf16.mxu0 %v11626
        %12578 = vmatpush1.bf16.msra.mxu0 %v11625
        %12579 = vmatprep.subr.bf16.mxu0 %v11634
        %12580 = vmatpush1.bf16.msra.mxu0 %v11633
        %12581 = vmatprep.subr.bf16.mxu0 %v11642
        %12582 = vmatpush1.bf16.msra.mxu0 %v11641
        %12583 = vmatprep.subr.bf16.mxu0 %v11650
        %12584 = vmatpush1.bf16.msra.mxu0 %v11649
        %12585 = vmatprep.subr.bf16.mxu0 %v11658
        %12586 = vmatpush1.bf16.msra.mxu0 %v11657
        %12587 = vmatprep.subr.bf16.mxu0 %v11666
        %12588 = vmatpush1.bf16.msra.mxu0 %v11665
        %12589 = vmatprep.mubr.bf16.mxu0 %v9236
        %12590 = vmatmul.mubr.bf16.gmra.mrb[0].mxu0 %v9235
        %v12591 = vpop.f32.mrb[0].mxu0
        %v12592 = vadd.f32 %v12551, %v12591
        %v12593 = vpop.f32.mrb[0].mxu0
        %v12594 = vadd.f32 %v12553, %v12593
        %v12595 = vpop.f32.mrb[0].mxu0
        %v12596 = vpop.f32.mrb[0].mxu0
        %12597 = vdwg.mxu0
        %12598 = vmatprep.subr.bf16.mxu0 %v11674
        %12599 = vmatpush1.bf16.msra.mxu0 %v11673
        %12600 = vmatprep.subr.bf16.mxu0 %v11682
        %12601 = vmatpush1.bf16.msra.mxu0 %v11681
        %12602 = vmatprep.subr.bf16.mxu0 %v11690
        %12603 = vmatpush1.bf16.msra.mxu0 %v11689
        %12604 = vmatprep.subr.bf16.mxu0 %v11698
        %12605 = vmatpush1.bf16.msra.mxu0 %v11697
        %12606 = vmatprep.subr.bf16.mxu0 %v11706
        %12607 = vmatpush1.bf16.msra.mxu0 %v11705
        %12608 = vmatprep.subr.bf16.mxu0 %v11714
        %12609 = vmatpush1.bf16.msra.mxu0 %v11713
        %12610 = vmatprep.subr.bf16.mxu0 %v11722
        %12611 = vmatpush1.bf16.msra.mxu0 %v11721
        %12612 = vmatprep.subr.bf16.mxu0 %v11730
        %12613 = vmatpush1.bf16.msra.mxu0 %v11729
        %12614 = vmatprep.subr.bf16.mxu0 %v11738
        %12615 = vmatpush1.bf16.msra.mxu0 %v11737
        %12616 = vmatprep.subr.bf16.mxu0 %v11746
        %12617 = vmatpush1.bf16.msra.mxu0 %v11745
        %12618 = vmatprep.subr.bf16.mxu0 %v11754
        %12619 = vmatpush1.bf16.msra.mxu0 %v11753
        %12620 = vmatprep.subr.bf16.mxu0 %v11762
        %12621 = vmatpush1.bf16.msra.mxu0 %v11761
        %12622 = vmatprep.subr.bf16.mxu0 %v11770
        %12623 = vmatpush1.bf16.msra.mxu0 %v11769
        %12624 = vmatprep.subr.bf16.mxu0 %v11778
        %12625 = vmatpush1.bf16.msra.mxu0 %v11777
        %12626 = vmatprep.subr.bf16.mxu0 %v11786
        %12627 = vmatpush1.bf16.msra.mxu0 %v11785
        %12628 = vmatprep.subr.bf16.mxu0 %v11794
        %12629 = vmatpush1.bf16.msra.mxu0 %v11793
        %12630 = vmatprep.mubr.bf16.mxu0 %v9238
        %12631 = vmatmul.mubr.bf16.gmra.mrb[0].mxu0 %v9237
        %v12632 = vpop.f32.mrb[0].mxu0
        %v12633 = vadd.f32 %v12592, %v12632
        %v12634 = vpop.f32.mrb[0].mxu0
        %v12635 = vadd.f32 %v12594, %v12634
        %v12636 = vpop.f32.mrb[0].mxu0
        %v12637 = vpop.f32.mrb[0].mxu0
        %12638 = vdwg.mxu0
        %12639 = vmatprep.subr.bf16.mxu0 %v11292
        %12640 = vmatpush1.bf16.msra.mxu0 %v11291
        %12641 = vmatprep.subr.bf16.mxu0 %v11300
        %12642 = vmatpush1.bf16.msra.mxu0 %v11299
        %12643 = vmatprep.subr.bf16.mxu0 %v11308
        %12644 = vmatpush1.bf16.msra.mxu0 %v11307
        %12645 = vmatprep.subr.bf16.mxu0 %v11316
        %12646 = vmatpush1.bf16.msra.mxu0 %v11315
        %12647 = vmatprep.subr.bf16.mxu0 %v11324
        %12648 = vmatpush1.bf16.msra.mxu0 %v11323
        %12649 = vmatprep.subr.bf16.mxu0 %v11332
        %12650 = vmatpush1.bf16.msra.mxu0 %v11331
        %12651 = vmatprep.subr.bf16.mxu0 %v11340
        %12652 = vmatpush1.bf16.msra.mxu0 %v11339
        %12653 = vmatprep.subr.bf16.mxu0 %v11348
        %12654 = vmatpush1.bf16.msra.mxu0 %v11347
        %12655 = vmatprep.subr.bf16.mxu0 %v11356
        %12656 = vmatpush1.bf16.msra.mxu0 %v11355
        %12657 = vmatprep.subr.bf16.mxu0 %v11364
        %12658 = vmatpush1.bf16.msra.mxu0 %v11363
        %12659 = vmatprep.subr.bf16.mxu0 %v11372
        %12660 = vmatpush1.bf16.msra.mxu0 %v11371
        %12661 = vmatprep.subr.bf16.mxu0 %v11380
        %12662 = vmatpush1.bf16.msra.mxu0 %v11379
        %12663 = vmatprep.subr.bf16.mxu0 %v11388
        %12664 = vmatpush1.bf16.msra.mxu0 %v11387
        %12665 = vmatprep.subr.bf16.mxu0 %v11396
        %12666 = vmatpush1.bf16.msra.mxu0 %v11395
        %12667 = vmatprep.subr.bf16.mxu0 %v11404
        %12668 = vmatpush1.bf16.msra.mxu0 %v11403
        %12669 = vmatprep.subr.bf16.mxu0 %v11412
        %12670 = vmatpush1.bf16.msra.mxu0 %v11411
        %12671 = vmatprep.mubr.bf16.mxu0 %v9232
        %12672 = vmatmul.mubr.bf16.gmra.mrb[0].mxu0 %v9231
        %v12673 = vpop.f32.mrb[0].mxu0
        %v12674 = vadd.f32 0.0, %v12673
        %v12675 = vpop.f32.mrb[0].mxu0
        %v12676 = vadd.f32 0.0, %v12675
        %v12677 = vpop.f32.mrb[0].mxu0
        %v12678 = vpop.f32.mrb[0].mxu0
        %12679 = vdwg.mxu0
        %12680 = vmatprep.subr.bf16.mxu0 %v11420
        %12681 = vmatpush1.bf16.msra.mxu0 %v11419
        %12682 = vmatprep.subr.bf16.mxu0 %v11428
        %12683 = vmatpush1.bf16.msra.mxu0 %v11427
        %12684 = vmatprep.subr.bf16.mxu0 %v11436
        %12685 = vmatpush1.bf16.msra.mxu0 %v11435
        %12686 = vmatprep.subr.bf16.mxu0 %v11444
        %12687 = vmatpush1.bf16.msra.mxu0 %v11443
        %12688 = vmatprep.subr.bf16.mxu0 %v11452
        %12689 = vmatpush1.bf16.msra.mxu0 %v11451
        %12690 = vmatprep.subr.bf16.mxu0 %v11460
        %12691 = vmatpush1.bf16.msra.mxu0 %v11459
        %12692 = vmatprep.subr.bf16.mxu0 %v11468
        %12693 = vmatpush1.bf16.msra.mxu0 %v11467
        %12694 = vmatprep.subr.bf16.mxu0 %v11476
        %12695 = vmatpush1.bf16.msra.mxu0 %v11475
        %12696 = vmatprep.subr.bf16.mxu0 %v11484
        %12697 = vmatpush1.bf16.msra.mxu0 %v11483
        %12698 = vmatprep.subr.bf16.mxu0 %v11492
        %12699 = vmatpush1.bf16.msra.mxu0 %v11491
        %12700 = vmatprep.subr.bf16.mxu0 %v11500
        %12701 = vmatpush1.bf16.msra.mxu0 %v11499
        %12702 = vmatprep.subr.bf16.mxu0 %v11508
        %12703 = vmatpush1.bf16.msra.mxu0 %v11507
        %12704 = vmatprep.subr.bf16.mxu0 %v11516
        %12705 = vmatpush1.bf16.msra.mxu0 %v11515
        %12706 = vmatprep.subr.bf16.mxu0 %v11524
        %12707 = vmatpush1.bf16.msra.mxu0 %v11523
        %12708 = vmatprep.subr.bf16.mxu0 %v11532
        %12709 = vmatpush1.bf16.msra.mxu0 %v11531
        %12710 = vmatprep.subr.bf16.mxu0 %v11540
        %12711 = vmatpush1.bf16.msra.mxu0 %v11539
        %12712 = vmatprep.mubr.bf16.mxu0 %v9234
        %12713 = vmatmul.mubr.bf16.gmra.mrb[0].mxu0 %v9233
        %v12714 = vpop.f32.mrb[0].mxu0
        %v12715 = vadd.f32 %v12674, %v12714
        %v12716 = vpop.f32.mrb[0].mxu0
        %v12717 = vadd.f32 %v12676, %v12716
        %v12718 = vpop.f32.mrb[0].mxu0
        %v12719 = vpop.f32.mrb[0].mxu0
        %12720 = vdwg.mxu0
        %12721 = vmatprep.subr.bf16.mxu0 %v11548
        %12722 = vmatpush1.bf16.msra.mxu0 %v11547
        %12723 = vmatprep.subr.bf16.mxu0 %v11556
        %12724 = vmatpush1.bf16.msra.mxu0 %v11555
        %12725 = vmatprep.subr.bf16.mxu0 %v11564
        %12726 = vmatpush1.bf16.msra.mxu0 %v11563
        %12727 = vmatprep.subr.bf16.mxu0 %v11572
        %12728 = vmatpush1.bf16.msra.mxu0 %v11571
        %12729 = vmatprep.subr.bf16.mxu0 %v11580
        %12730 = vmatpush1.bf16.msra.mxu0 %v11579
        %12731 = vmatprep.subr.bf16.mxu0 %v11588
        %12732 = vmatpush1.bf16.msra.mxu0 %v11587
        %12733 = vmatprep.subr.bf16.mxu0 %v11596
        %12734 = vmatpush1.bf16.msra.mxu0 %v11595
        %12735 = vmatprep.subr.bf16.mxu0 %v11604
        %12736 = vmatpush1.bf16.msra.mxu0 %v11603
        %12737 = vmatprep.subr.bf16.mxu0 %v11612
        %12738 = vmatpush1.bf16.msra.mxu0 %v11611
        %12739 = vmatprep.subr.bf16.mxu0 %v11620
        %12740 = vmatpush1.bf16.msra.mxu0 %v11619
        %12741 = vmatprep.subr.bf16.mxu0 %v11628
        %12742 = vmatpush1.bf16.msra.mxu0 %v11627
        %12743 = vmatprep.subr.bf16.mxu0 %v11636
        %12744 = vmatpush1.bf16.msra.mxu0 %v11635
        %12745 = vmatprep.subr.bf16.mxu0 %v11644
        %12746 = vmatpush1.bf16.msra.mxu0 %v11643
        %12747 = vmatprep.subr.bf16.mxu0 %v11652
        %12748 = vmatpush1.bf16.msra.mxu0 %v11651
        %12749 = vmatprep.subr.bf16.mxu0 %v11660
        %12750 = vmatpush1.bf16.msra.mxu0 %v11659
        %12751 = vmatprep.subr.bf16.mxu0 %v11668
        %12752 = vmatpush1.bf16.msra.mxu0 %v11667
        %12753 = vmatprep.mubr.bf16.mxu0 %v9236
        %12754 = vmatmul.mubr.bf16.gmra.mrb[0].mxu0 %v9235
        %v12755 = vpop.f32.mrb[0].mxu0
        %v12756 = vadd.f32 %v12715, %v12755
        %v12757 = vpop.f32.mrb[0].mxu0
        %v12758 = vadd.f32 %v12717, %v12757
        %v12759 = vpop.f32.mrb[0].mxu0
        %v12760 = vpop.f32.mrb[0].mxu0
        %12761 = vdwg.mxu0
        %12762 = vmatprep.subr.bf16.mxu0 %v11676
        %12763 = vmatpush1.bf16.msra.mxu0 %v11675
        %12764 = vmatprep.subr.bf16.mxu0 %v11684
        %12765 = vmatpush1.bf16.msra.mxu0 %v11683
        %12766 = vmatprep.subr.bf16.mxu0 %v11692
        %12767 = vmatpush1.bf16.msra.mxu0 %v11691
        %12768 = vmatprep.subr.bf16.mxu0 %v11700
        %12769 = vmatpush1.bf16.msra.mxu0 %v11699
        %12770 = vmatprep.subr.bf16.mxu0 %v11708
        %12771 = vmatpush1.bf16.msra.mxu0 %v11707
        %12772 = vmatprep.subr.bf16.mxu0 %v11716
        %12773 = vmatpush1.bf16.msra.mxu0 %v11715
        %12774 = vmatprep.subr.bf16.mxu0 %v11724
        %12775 = vmatpush1.bf16.msra.mxu0 %v11723
        %12776 = vmatprep.subr.bf16.mxu0 %v11732
        %12777 = vmatpush1.bf16.msra.mxu0 %v11731
        %12778 = vmatprep.subr.bf16.mxu0 %v11740
        %12779 = vmatpush1.bf16.msra.mxu0 %v11739
        %12780 = vmatprep.subr.bf16.mxu0 %v11748
        %12781 = vmatpush1.bf16.msra.mxu0 %v11747
        %12782 = vmatprep.subr.bf16.mxu0 %v11756
        %12783 = vmatpush1.bf16.msra.mxu0 %v11755
        %12784 = vmatprep.subr.bf16.mxu0 %v11764
        %12785 = vmatpush1.bf16.msra.mxu0 %v11763
        %12786 = vmatprep.subr.bf16.mxu0 %v11772
        %12787 = vmatpush1.bf16.msra.mxu0 %v11771
        %12788 = vmatprep.subr.bf16.mxu0 %v11780
        %12789 = vmatpush1.bf16.msra.mxu0 %v11779
        %12790 = vmatprep.subr.bf16.mxu0 %v11788
        %12791 = vmatpush1.bf16.msra.mxu0 %v11787
        %12792 = vmatprep.subr.bf16.mxu0 %v11796
        %12793 = vmatpush1.bf16.msra.mxu0 %v11795
        %12794 = vmatprep.mubr.bf16.mxu0 %v9238
        %12795 = vmatmul.mubr.bf16.gmra.mrb[0].mxu0 %v9237
        %v12796 = vpop.f32.mrb[0].mxu0
        %v12797 = vadd.f32 %v12756, %v12796
        %v12798 = vpop.f32.mrb[0].mxu0
        %v12799 = vadd.f32 %v12758, %v12798
        %v12800 = vpop.f32.mrb[0].mxu0
        %v12801 = vpop.f32.mrb[0].mxu0
        %12802 = vdwg.mxu0
        %12803 = vmatprep.subr.bf16.mxu0 %v11294
        %12804 = vmatpush1.bf16.msra.mxu0 %v11293
        %12805 = vmatprep.subr.bf16.mxu0 %v11302
        %12806 = vmatpush1.bf16.msra.mxu0 %v11301
        %12807 = vmatprep.subr.bf16.mxu0 %v11310
        %12808 = vmatpush1.bf16.msra.mxu0 %v11309
        %12809 = vmatprep.subr.bf16.mxu0 %v11318
        %12810 = vmatpush1.bf16.msra.mxu0 %v11317
        %12811 = vmatprep.subr.bf16.mxu0 %v11326
        %12812 = vmatpush1.bf16.msra.mxu0 %v11325
        %12813 = vmatprep.subr.bf16.mxu0 %v11334
        %12814 = vmatpush1.bf16.msra.mxu0 %v11333
        %12815 = vmatprep.subr.bf16.mxu0 %v11342
        %12816 = vmatpush1.bf16.msra.mxu0 %v11341
        %12817 = vmatprep.subr.bf16.mxu0 %v11350
        %12818 = vmatpush1.bf16.msra.mxu0 %v11349
        %12819 = vmatprep.subr.bf16.mxu0 %v11358
        %12820 = vmatpush1.bf16.msra.mxu0 %v11357
        %12821 = vmatprep.subr.bf16.mxu0 %v11366
        %12822 = vmatpush1.bf16.msra.mxu0 %v11365
        %12823 = vmatprep.subr.bf16.mxu0 %v11374
        %12824 = vmatpush1.bf16.msra.mxu0 %v11373
        %12825 = vmatprep.subr.bf16.mxu0 %v11382
        %12826 = vmatpush1.bf16.msra.mxu0 %v11381
        %12827 = vmatprep.subr.bf16.mxu0 %v11390
        %12828 = vmatpush1.bf16.msra.mxu0 %v11389
        %12829 = vmatprep.subr.bf16.mxu0 %v11398
        %12830 = vmatpush1.bf16.msra.mxu0 %v11397
        %12831 = vmatprep.subr.bf16.mxu0 %v11406
        %12832 = vmatpush1.bf16.msra.mxu0 %v11405
        %12833 = vmatprep.subr.bf16.mxu0 %v11414
        %12834 = vmatpush1.bf16.msra.mxu0 %v11413
        %12835 = vmatprep.mubr.bf16.mxu0 %v9232
        %12836 = vmatmul.mubr.bf16.gmra.mrb[0].mxu0 %v9231
        %v12837 = vpop.f32.mrb[0].mxu0
        %v12838 = vadd.f32 0.0, %v12837
        %v12839 = vpop.f32.mrb[0].mxu0
        %v12840 = vadd.f32 0.0, %v12839
        %v12841 = vpop.f32.mrb[0].mxu0
        %v12842 = vpop.f32.mrb[0].mxu0
        %12843 = vdwg.mxu0
        %12844 = vmatprep.subr.bf16.mxu0 %v11422
        %12845 = vmatpush1.bf16.msra.mxu0 %v11421
        %12846 = vmatprep.subr.bf16.mxu0 %v11430
        %12847 = vmatpush1.bf16.msra.mxu0 %v11429
        %12848 = vmatprep.subr.bf16.mxu0 %v11438
        %12849 = vmatpush1.bf16.msra.mxu0 %v11437
        %12850 = vmatprep.subr.bf16.mxu0 %v11446
        %12851 = vmatpush1.bf16.msra.mxu0 %v11445
        %12852 = vmatprep.subr.bf16.mxu0 %v11454
        %12853 = vmatpush1.bf16.msra.mxu0 %v11453
        %12854 = vmatprep.subr.bf16.mxu0 %v11462
        %12855 = vmatpush1.bf16.msra.mxu0 %v11461
        %12856 = vmatprep.subr.bf16.mxu0 %v11470
        %12857 = vmatpush1.bf16.msra.mxu0 %v11469
        %12858 = vmatprep.subr.bf16.mxu0 %v11478
        %12859 = vmatpush1.bf16.msra.mxu0 %v11477
        %12860 = vmatprep.subr.bf16.mxu0 %v11486
        %12861 = vmatpush1.bf16.msra.mxu0 %v11485
        %12862 = vmatprep.subr.bf16.mxu0 %v11494
        %12863 = vmatpush1.bf16.msra.mxu0 %v11493
        %12864 = vmatprep.subr.bf16.mxu0 %v11502
        %12865 = vmatpush1.bf16.msra.mxu0 %v11501
        %12866 = vmatprep.subr.bf16.mxu0 %v11510
        %12867 = vmatpush1.bf16.msra.mxu0 %v11509
        %12868 = vmatprep.subr.bf16.mxu0 %v11518
        %12869 = vmatpush1.bf16.msra.mxu0 %v11517
        %12870 = vmatprep.subr.bf16.mxu0 %v11526
        %12871 = vmatpush1.bf16.msra.mxu0 %v11525
        %12872 = vmatprep.subr.bf16.mxu0 %v11534
        %12873 = vmatpush1.bf16.msra.mxu0 %v11533
        %12874 = vmatprep.subr.bf16.mxu0 %v11542
        %12875 = vmatpush1.bf16.msra.mxu0 %v11541
        %12876 = vmatprep.mubr.bf16.mxu0 %v9234
        %12877 = vmatmul.mubr.bf16.gmra.mrb[0].mxu0 %v9233
        %v12878 = vpop.f32.mrb[0].mxu0
        %v12879 = vadd.f32 %v12838, %v12878
        %v12880 = vpop.f32.mrb[0].mxu0
        %v12881 = vadd.f32 %v12840, %v12880
        %v12882 = vpop.f32.mrb[0].mxu0
        %v12883 = vpop.f32.mrb[0].mxu0
        %12884 = vdwg.mxu0
        %12885 = vmatprep.subr.bf16.mxu0 %v11550
        %12886 = vmatpush1.bf16.msra.mxu0 %v11549
        %12887 = vmatprep.subr.bf16.mxu0 %v11558
        %12888 = vmatpush1.bf16.msra.mxu0 %v11557
        %12889 = vmatprep.subr.bf16.mxu0 %v11566
        %12890 = vmatpush1.bf16.msra.mxu0 %v11565
        %12891 = vmatprep.subr.bf16.mxu0 %v11574
        %12892 = vmatpush1.bf16.msra.mxu0 %v11573
        %12893 = vmatprep.subr.bf16.mxu0 %v11582
        %12894 = vmatpush1.bf16.msra.mxu0 %v11581
        %12895 = vmatprep.subr.bf16.mxu0 %v11590
        %12896 = vmatpush1.bf16.msra.mxu0 %v11589
        %12897 = vmatprep.subr.bf16.mxu0 %v11598
        %12898 = vmatpush1.bf16.msra.mxu0 %v11597
        %12899 = vmatprep.subr.bf16.mxu0 %v11606
        %12900 = vmatpush1.bf16.msra.mxu0 %v11605
        %12901 = vmatprep.subr.bf16.mxu0 %v11614
        %12902 = vmatpush1.bf16.msra.mxu0 %v11613
        %12903 = vmatprep.subr.bf16.mxu0 %v11622
        %12904 = vmatpush1.bf16.msra.mxu0 %v11621
        %12905 = vmatprep.subr.bf16.mxu0 %v11630
        %12906 = vmatpush1.bf16.msra.mxu0 %v11629
        %12907 = vmatprep.subr.bf16.mxu0 %v11638
        %12908 = vmatpush1.bf16.msra.mxu0 %v11637
        %12909 = vmatprep.subr.bf16.mxu0 %v11646
        %12910 = vmatpush1.bf16.msra.mxu0 %v11645
        %12911 = vmatprep.subr.bf16.mxu0 %v11654
        %12912 = vmatpush1.bf16.msra.mxu0 %v11653
        %12913 = vmatprep.subr.bf16.mxu0 %v11662
        %12914 = vmatpush1.bf16.msra.mxu0 %v11661
        %12915 = vmatprep.subr.bf16.mxu0 %v11670
        %12916 = vmatpush1.bf16.msra.mxu0 %v11669
        %12917 = vmatprep.mubr.bf16.mxu0 %v9236
        %12918 = vmatmul.mubr.bf16.gmra.mrb[0].mxu0 %v9235
        %v12919 = vpop.f32.mrb[0].mxu0
        %v12920 = vadd.f32 %v12879, %v12919
        %v12921 = vpop.f32.mrb[0].mxu0
        %v12922 = vadd.f32 %v12881, %v12921
        %v12923 = vpop.f32.mrb[0].mxu0
        %v12924 = vpop.f32.mrb[0].mxu0
        %12925 = vdwg.mxu0
        %12926 = vmatprep.subr.bf16.mxu0 %v11678
        %12927 = vmatpush1.bf16.msra.mxu0 %v11677
        %12928 = vmatprep.subr.bf16.mxu0 %v11686
        %12929 = vmatpush1.bf16.msra.mxu0 %v11685
        %12930 = vmatprep.subr.bf16.mxu0 %v11694
        %12931 = vmatpush1.bf16.msra.mxu0 %v11693
        %12932 = vmatprep.subr.bf16.mxu0 %v11702
        %12933 = vmatpush1.bf16.msra.mxu0 %v11701
        %12934 = vmatprep.subr.bf16.mxu0 %v11710
        %12935 = vmatpush1.bf16.msra.mxu0 %v11709
        %12936 = vmatprep.subr.bf16.mxu0 %v11718
        %12937 = vmatpush1.bf16.msra.mxu0 %v11717
        %12938 = vmatprep.subr.bf16.mxu0 %v11726
        %12939 = vmatpush1.bf16.msra.mxu0 %v11725
        %12940 = vmatprep.subr.bf16.mxu0 %v11734
        %12941 = vmatpush1.bf16.msra.mxu0 %v11733
        %12942 = vmatprep.subr.bf16.mxu0 %v11742
        %12943 = vmatpush1.bf16.msra.mxu0 %v11741
        %12944 = vmatprep.subr.bf16.mxu0 %v11750
        %12945 = vmatpush1.bf16.msra.mxu0 %v11749
        %12946 = vmatprep.subr.bf16.mxu0 %v11758
        %12947 = vmatpush1.bf16.msra.mxu0 %v11757
        %12948 = vmatprep.subr.bf16.mxu0 %v11766
        %12949 = vmatpush1.bf16.msra.mxu0 %v11765
        %12950 = vmatprep.subr.bf16.mxu0 %v11774
        %12951 = vmatpush1.bf16.msra.mxu0 %v11773
        %12952 = vmatprep.subr.bf16.mxu0 %v11782
        %12953 = vmatpush1.bf16.msra.mxu0 %v11781
        %12954 = vmatprep.subr.bf16.mxu0 %v11790
        %12955 = vmatpush1.bf16.msra.mxu0 %v11789
        %12956 = vmatprep.subr.bf16.mxu0 %v11798
        %12957 = vmatpush1.bf16.msra.mxu0 %v11797
        %12958 = vmatprep.mubr.bf16.mxu0 %v9238
        %12959 = vmatmul.mubr.bf16.gmra.mrb[0].mxu0 %v9237
        %v12960 = vpop.f32.mrb[0].mxu0
        %v12961 = vadd.f32 %v12920, %v12960
        %v12962 = vpop.f32.mrb[0].mxu0
        %v12963 = vadd.f32 %v12922, %v12962
        %v12964 = vpop.f32.mrb[0].mxu0
        %v12965 = vpop.f32.mrb[0].mxu0
        %12966 = vdwg.mxu0
        %v12967 = vadd.f32 %v8722, %v12469
        %v12968 = vadd.f32 %v8724, %v12471
        %v12969 = vadd.f32 %v8886, %v12633
        %v12970 = vadd.f32 %v8888, %v12635
        %v12971 = vadd.f32 %v9050, %v12797
        %v12972 = vadd.f32 %v9052, %v12799
        %v12973 = vadd.f32 %v9214, %v12961
        %v12974 = vadd.f32 %v9216, %v12963
        %v12975 = vld [vmem:[%s513] ss:$4 sm:$0xff]
        %v12977 = vlaneseq
        %v12978 = vshrl.u32 %v12977, 7
        %v12979 = vsub.s32 0, %v12978
        %v12980 = vrot.slane %v12975, %v12979
        %v12981 = vlaneseq
        %v12982 = vshrl.u32 %v12981, 7
        %v12983 = vsub.s32 1, %v12982
        %v12984 = vrot.slane %v12975, %v12983
        %v12985 = vlaneseq
        %v12986 = vshrl.u32 %v12985, 7
        %v12987 = vsub.s32 2, %v12986
        %v12988 = vrot.slane %v12975, %v12987
        %v12989 = vlaneseq
        %v12990 = vshrl.u32 %v12989, 7
        %v12991 = vsub.s32 3, %v12990
        %v12992 = vrot.slane %v12975, %v12991
        %v12993 = vlaneseq
        %v12994 = vshrl.u32 %v12993, 7
        %v12995 = vsub.s32 4, %v12994
        %v12996 = vrot.slane %v12975, %v12995
        %v12997 = vlaneseq
        %v12998 = vshrl.u32 %v12997, 7
        %v12999 = vsub.s32 5, %v12998
        %v13000 = vrot.slane %v12975, %v12999
        %v13001 = vlaneseq
        %v13002 = vshrl.u32 %v13001, 7
        %v13003 = vsub.s32 6, %v13002
        %v13004 = vrot.slane %v12975, %v13003
        %v13005 = vlaneseq
        %v13006 = vshrl.u32 %v13005, 7
        %v13007 = vsub.s32 7, %v13006
        %v13008 = vrot.slane %v12975, %v13007
        %v13017 = vadd.f32 %v12967, %v12980
        %v13018 = vadd.f32 %v12968, %v12984
        %v13019 = vadd.f32 %v12969, %v12988
        %v13020 = vadd.f32 %v12970, %v12992
        %v13021 = vadd.f32 %v12971, %v12996
        %v13022 = vadd.f32 %v12972, %v13000
        %v13023 = vadd.f32 %v12973, %v13004
        %v13024 = vadd.f32 %v12974, %v13008
        %v13025 = vmax.f32 %v13017, 0.0
        %v13026 = vmax.f32 %v13018, 0.0
        %v13027 = vmax.f32 %v13019, 0.0
        %v13028 = vmax.f32 %v13020, 0.0
        %v13029 = vmax.f32 %v13021, 0.0
        %v13030 = vmax.f32 %v13022, 0.0
        %v13031 = vmax.f32 %v13023, 0.0
        %v13032 = vmax.f32 %v13024, 0.0
        %s13033 = scalar_lea.vmem %s513, 1
        %v13034 = vld [vmem:[%s13033] ss:$4 sm:$0xff]
        %v13036 = vlaneseq
        %v13037 = vshrl.u32 %v13036, 7
        %v13038 = vsub.s32 0, %v13037
        %v13039 = vrot.slane %v13034, %v13038
        %v13040 = vlaneseq
        %v13041 = vshrl.u32 %v13040, 7
        %v13042 = vsub.s32 1, %v13041
        %v13043 = vrot.slane %v13034, %v13042
        %v13044 = vlaneseq
        %v13045 = vshrl.u32 %v13044, 7
        %v13046 = vsub.s32 2, %v13045
        %v13047 = vrot.slane %v13034, %v13046
        %v13048 = vlaneseq
        %v13049 = vshrl.u32 %v13048, 7
        %v13050 = vsub.s32 3, %v13049
        %v13051 = vrot.slane %v13034, %v13050
        %v13052 = vlaneseq
        %v13053 = vshrl.u32 %v13052, 7
        %v13054 = vsub.s32 4, %v13053
        %v13055 = vrot.slane %v13034, %v13054
        %v13056 = vlaneseq
        %v13057 = vshrl.u32 %v13056, 7
        %v13058 = vsub.s32 5, %v13057
        %v13059 = vrot.slane %v13034, %v13058
        %v13060 = vlaneseq
        %v13061 = vshrl.u32 %v13060, 7
        %v13062 = vsub.s32 6, %v13061
        %v13063 = vrot.slane %v13034, %v13062
        %v13064 = vlaneseq
        %v13065 = vshrl.u32 %v13064, 7
        %v13066 = vsub.s32 7, %v13065
        %v13067 = vrot.slane %v13034, %v13066
        %v13076 = vmul.f32 %v13025, %v13039
        %v13077 = vmul.f32 %v13026, %v13043
        %v13078 = vmul.f32 %v13027, %v13047
        %v13079 = vmul.f32 %v13028, %v13051
        %v13080 = vmul.f32 %v13029, %v13055
        %v13081 = vmul.f32 %v13030, %v13059
        %v13082 = vmul.f32 %v13031, %v13063
        %v13083 = vmul.f32 %v13032, %v13067
        %s13084 = scalar_lea.vmem %s513, 2
        %v13085 = vld [vmem:[%s13084] ss:$4 sm:$0xff]
        %v13087 = vlaneseq
        %v13088 = vshrl.u32 %v13087, 7
        %v13089 = vsub.s32 0, %v13088
        %v13090 = vrot.slane %v13085, %v13089
        %v13091 = vlaneseq
        %v13092 = vshrl.u32 %v13091, 7
        %v13093 = vsub.s32 1, %v13092
        %v13094 = vrot.slane %v13085, %v13093
        %v13095 = vlaneseq
        %v13096 = vshrl.u32 %v13095, 7
        %v13097 = vsub.s32 2, %v13096
        %v13098 = vrot.slane %v13085, %v13097
        %v13099 = vlaneseq
        %v13100 = vshrl.u32 %v13099, 7
        %v13101 = vsub.s32 3, %v13100
        %v13102 = vrot.slane %v13085, %v13101
        %v13103 = vlaneseq
        %v13104 = vshrl.u32 %v13103, 7
        %v13105 = vsub.s32 4, %v13104
        %v13106 = vrot.slane %v13085, %v13105
        %v13107 = vlaneseq
        %v13108 = vshrl.u32 %v13107, 7
        %v13109 = vsub.s32 5, %v13108
        %v13110 = vrot.slane %v13085, %v13109
        %v13111 = vlaneseq
        %v13112 = vshrl.u32 %v13111, 7
        %v13113 = vsub.s32 6, %v13112
        %v13114 = vrot.slane %v13085, %v13113
        %v13115 = vlaneseq
        %v13116 = vshrl.u32 %v13115, 7
        %v13117 = vsub.s32 7, %v13116
        %v13118 = vrot.slane %v13085, %v13117
        %v13127 = vadd.f32 %v13076, %v13090
        %v13128 = vadd.f32 %v13077, %v13094
        %v13129 = vadd.f32 %v13078, %v13098
        %v13130 = vadd.f32 %v13079, %v13102
        %v13131 = vadd.f32 %v13080, %v13106
        %v13132 = vadd.f32 %v13081, %v13110
        %v13133 = vadd.f32 %v13082, %v13114
        %v13134 = vadd.f32 %v13083, %v13118
        %v13135 = vld [vmem:[%s446] sm:$0xff]
        %v13136 = vld [vmem:[%s446 + $0x8] sm:$0xff]
        %v13137 = vld [vmem:[%s446 + $0x10] sm:$0xff]
        %v13138 = vld [vmem:[%s446 + $0x18] sm:$0xff]
        %v13139 = vld [vmem:[%s446 + $0x20] sm:$0xff]
        %v13140 = vld [vmem:[%s446 + $0x28] sm:$0xff]
        %v13141 = vld [vmem:[%s446 + $0x30] sm:$0xff]
        %v13142 = vld [vmem:[%s446 + $0x38] sm:$0xff]
        %v13143 = vmul.f32 %v13127, %v13135
        %v13144 = vmul.f32 %v13128, %v13136
        %v13145 = vmul.f32 %v13129, %v13137
        %v13146 = vmul.f32 %v13130, %v13138
        %v13147 = vmul.f32 %v13131, %v13139
        %v13148 = vmul.f32 %v13132, %v13140
        %v13149 = vmul.f32 %v13133, %v13141
        %v13150 = vmul.f32 %v13134, %v13142
        %s13151 = smul.u32 %s30, 8
        %s13152 = smul.u32 %s1725, 24
        %s13153 = sadd.s32 %s13151, %s13152
        %s13154 = smul.addr %s13153, 8
        %s13155 = scalar_lea.vmem [#allocation2], %s13154
        %13156 = vst [vmem:[%s13155] sm:$0xff] %v13143
        %13157 = vst [vmem:[%s13155 + $0x8] sm:$0xff] %v13144
        %13158 = vst [vmem:[%s13155 + $0x10] sm:$0xff] %v13145
        %13159 = vst [vmem:[%s13155 + $0x18] sm:$0xff] %v13146
        %13160 = vst [vmem:[%s13155 + $0x20] sm:$0xff] %v13147
        %13161 = vst [vmem:[%s13155 + $0x28] sm:$0xff] %v13148
        %13162 = vst [vmem:[%s13155 + $0x30] sm:$0xff] %v13149
        %13163 = vst [vmem:[%s13155 + $0x38] sm:$0xff] %v13150
        %p13164 = scmp.eq.s32.totalorder %s29, 3
        // Predicated region
        $region89: #{tpu_custom_call.1} parent=55 // pred_check
          %p13165 = pneg %p13164
        $region90: #{tpu_custom_call.1} parent=55 // pred_check_branch
          %13167 = sbr.rel (%p13165) target = $region92
        $region91: #{tpu_custom_call.1} parent=55 // pred_region
          %v13168 = vld [vmem:[#allocation3] sm:$0xff]
          %v13169 = vld [vmem:[%s455] sm:$0xff]
          %v13171 = vlaneseq
          %v13172 = vshrl.u32 %v13171, 7
          %v13173 = vsub.s32 0, %v13172
          %v13174 = vrot.slane %v13169, %v13173
          %v13175 = vlaneseq
          %v13176 = vshrl.u32 %v13175, 7
          %v13177 = vsub.s32 1, %v13176
          %v13178 = vrot.slane %v13169, %v13177
          %v13179 = vlaneseq
          %v13180 = vshrl.u32 %v13179, 7
          %v13181 = vsub.s32 2, %v13180
          %v13182 = vrot.slane %v13169, %v13181
          %v13183 = vlaneseq
          %v13184 = vshrl.u32 %v13183, 7
          %v13185 = vsub.s32 3, %v13184
          %v13186 = vrot.slane %v13169, %v13185
          %v13187 = vlaneseq
          %v13188 = vshrl.u32 %v13187, 7
          %v13189 = vsub.s32 4, %v13188
          %v13190 = vrot.slane %v13169, %v13189
          %v13191 = vlaneseq
          %v13192 = vshrl.u32 %v13191, 7
          %v13193 = vsub.s32 5, %v13192
          %v13194 = vrot.slane %v13169, %v13193
          %v13195 = vlaneseq
          %v13196 = vshrl.u32 %v13195, 7
          %v13197 = vsub.s32 6, %v13196
          %v13198 = vrot.slane %v13169, %v13197
          %v13199 = vlaneseq
          %v13200 = vshrl.u32 %v13199, 7
          %v13201 = vsub.s32 7, %v13200
          %v13202 = vrot.slane %v13169, %v13201
          %v13211 = vmul.f32 %v13143, %v13174
          %v13212 = vmul.f32 %v13144, %v13178
          %v13213 = vmul.f32 %v13145, %v13182
          %v13214 = vmul.f32 %v13146, %v13186
          %v13215 = vmul.f32 %v13147, %v13190
          %v13216 = vmul.f32 %v13148, %v13194
          %v13217 = vmul.f32 %v13149, %v13198
          %v13218 = vmul.f32 %v13150, %v13202
          %v13219 = vadd.f32 %v13211, %v13212
          %v13220 = vadd.f32 %v13219, %v13213
          %v13221 = vadd.f32 %v13220, %v13214
          %v13222 = vadd.f32 %v13221, %v13215
          %v13223 = vadd.f32 %v13222, %v13216
          %v13224 = vadd.f32 %v13223, %v13217
          %v13225 = vadd.f32 %v13224, %v13218
          %13226 = vadd.xlane.f32.xlu0 %v13225
          %v13227 = vpop.xlane.xlu0 %13226
          %v13228 = vadd.f32 %v13168, %v13227
          %vm13229 = vcmask 7168
          %13230 = vst.msk [vmem:[#allocation3] sm:$0xff] %vm13229, %v13228
        $region92: #{tpu_custom_call.1} parent=55 // pred_fallthru
          _
        %p13231 = scmp.eq.s32.totalorder %s30, 2
        %p13232 = pnand %p13164, %p13231
        %p13233 = pneg %p13232
        // Predicated region
        $region93: #{tpu_custom_call.1} parent=55 // pred_check
          _
        $region94: #{tpu_custom_call.1} parent=55 // pred_check_branch
          %13235 = sbr.rel (%p13232) target = $region96
        $region95: #{tpu_custom_call.1} parent=55 // pred_region
          %v13236 = vld [vmem:[#allocation3] sm:$0xff]
          %v13237 = vld [vmem:[#allocation4] sm:$0x1]
          %v13239 = vlaneseq
          %v13240 = vshrl.u32 %v13239, 7
          %v13241 = vsub.s32 0, %v13240
          %v13242 = vrot.slane %v13237, %v13241
          %v13244 = vadd.f32 %v13236, %v13242
          %v13245 = vxor.u32 %v13244, 2147483648
          %v13246 = vmul.f32 %v13245, 1.442695
          %v13247 = vpow.pop %v13246
          %v13248 = vadd.f32 %v13247, 1.0
          %v13249 = vrcp.pop %v13248
          %v13250 = vmul.f32 1.0, %v13249
          %vm13251 = vcmask 7168
          %13252 = vst.msk [vmem:[%s9] sm:$0xff] %vm13251, %v13250
        $region96: #{tpu_custom_call.1} parent=55 // pred_fallthru
          _
        // Predicated region
        $region97: #{tpu_custom_call.1} parent=55 // pred_check
          %p13253 = pneg %p265
        $region98: #{tpu_custom_call.1} parent=55 // pred_check_branch
          %13255 = sbr.rel (%p13253) target = $region100
        $region99: #{tpu_custom_call.1} parent=55 // pred_region
          _
        $region100: #{tpu_custom_call.1} parent=55 // pred_fallthru
          _
        // Predicated region
        $region101: #{tpu_custom_call.1} parent=55 // pred_check
          %p13256 = pneg %p265
        $region102: #{tpu_custom_call.1} parent=55 // pred_check_branch
          %13258 = sbr.rel (%p13256) target = $region104
        $region103: #{tpu_custom_call.1} parent=55 // pred_region
          _
        $region104: #{tpu_custom_call.1} parent=55 // pred_fallthru
          _
      $region56: #{tpu_custom_call.1} parent=5 // pred_fallthru
        _
      %p13259 = scmp.le.s32.totalorder 2, %s20
      // Predicated region
      $region105: #{tpu_custom_call.1} parent=5 // pred_check
        %p13260 = pneg %p13259
      $region106: #{tpu_custom_call.1} parent=5 // pred_check_branch
        %13262 = sbr.rel (%p13260) target = $region108
      $region107: #{tpu_custom_call.1} parent=5 // pred_region
        %s13263 = ssub.s32 %s20, 2
      $region108: #{tpu_custom_call.1} parent=5 // pred_fallthru
        _
    $region6: #{tpu_custom_call.1} parent=1 // loop_footer
      %s24 = sadd.s32 1, %s20
    $region7: #{tpu_custom_call.1} parent=1 // loop_footer_branch
      %19 = sbr.rel target = $region3
    $region8: #{tpu_custom_call.1} parent=1 // loop_exit
      _
    %13264 = vsyncpa [#allocation6], 1
    %s13265 = scalar_lea.sflag [#allocation6], 1
    %13266 = vsyncpa %s13265, 1
    %13267 = vsyncpa [#allocation8], 1
    %13268 = vsyncpa [#allocation11], 1

</llo_original>
